<compile_context>
chip_gen: v7x
topology: tpu7x:2x2x1
jax: 0.10.0
libtpu: 0.0.40
codegen_flags: <defaults>
</compile_context>

<pallas_src>
from functools import partial

import jax
import jax.numpy as jnp
from jax import lax
from jax.experimental import pallas as pl
from jax.experimental.pallas import tpu as pltpu


def _round_up(x, m):
    return (x + m - 1) // m * m


def _conv_block_kernel(x_ref, w1_ref, s1_ref, b1_ref, w2_ref, s2_ref, b2_ref,
                       o_ref, slab_ref, *, H, W, Wp, guard, chunk_rows):
    """One image per grid step: conv+BN+ReLU -> conv+BN+ReLU, all in VMEM.

    x_ref:    (2*guard + H*Wp, Cpi) bf16, flat (h, w) layout; guard rows and
              the Wp-W pad columns are already zero (built on the host).
    w*_ref:   (9, K, Cout) bf16 tap-major weights.
    s*/b*:    (1, Cout) f32 folded-BN scale / shift.
    o_ref:    (H*Wp, Cp_out) bf16 flat output (pad columns dropped by wrapper).
    slab_ref: (2*guard + H*Wp, Cp_mid) bf16 persistent scratch for the layer-1
              activation (zero guard rows = layer-2 halo).
    """
    n = H * Wp
    cmid = slab_ref.shape[1]

    # Guard rows of the intermediate slab must read as zero for layer 2's halo.
    # Re-zero every grid step (a few KiB) so this stays correct even when the
    # batch axis is split across TensorCores (each core owns its own scratch).
    zeros_g = jnp.zeros((guard, cmid), slab_ref.dtype)
    slab_ref[0:guard, :] = zeros_g
    slab_ref[guard + n:guard + n + guard, :] = zeros_g

    # 0/1 column mask: 1 on real image columns, 0 on the Wp-W pad columns.
    # Built once per grid step at the (max) chunk height; sliced per chunk.
    col_pat = (lax.broadcasted_iota(jnp.int32, (Wp, 1), 0) < W).astype(jnp.float32)
    col_mask = jnp.concatenate([col_pat] * (chunk_rows // Wp), axis=0)

    s1 = s1_ref[...]
    b1 = b1_ref[...]
    s2 = s2_ref[...]
    b2 = b2_ref[...]

    def conv_chunk(src_ref, w_ref, c, ch):
        """3x3 / stride-1 / pad-1 conv of flat rows [c, c+ch).

        The f32 accumulator stays live across the 9 taps (no VMEM RMW);
        each tap is a plain row slice of the guard-padded flat slab feeding
        one lane-dense MXU matmul.
        """
        acc = None
        for kh in range(3):
            for kw in range(3):
                d = (kh - 1) * Wp + (kw - 1)
                tap = src_ref[guard + c + d:guard + c + d + ch, :]
                p = jnp.dot(tap, w_ref[kh * 3 + kw],
                            preferred_element_type=jnp.float32)
                acc = p if acc is None else acc + p
        return acc

    # Layer 1: conv -> folded-BN affine -> ReLU -> zero pad cols -> slab (bf16).
    for c in range(0, n, chunk_rows):
        ch = min(chunk_rows, n - c)            # always a multiple of Wp (and 8)
        y = conv_chunk(x_ref, w1_ref, c, ch)
        y = jnp.maximum(y * s1 + b1, 0.0)
        y = y * col_mask[:ch]                  # pad columns must be exactly 0
        slab_ref[guard + c:guard + c + ch, :] = y.astype(slab_ref.dtype)

    # Layer 2: conv (reads the VMEM slab) -> affine -> ReLU -> output (bf16).
    for c in range(0, n, chunk_rows):
        ch = min(chunk_rows, n - c)
        y = conv_chunk(slab_ref, w2_ref, c, ch)
        y = jnp.maximum(y * s2 + b2, 0.0)
        o_ref[c:c + ch, :] = y.astype(o_ref.dtype)   # lane-dense store


def conv_block_forward(x_nchw, params, *, eps=1e-5):
    """Matches conv_block.forward: NCHW float32 in -> NCHW float32 out."""
    (w1, b1, g1, be1, m1, v1), (w2, b2, g2, be2, m2, v2) = params
    N, Cin, H, W = x_nchw.shape
    Cmid = w1.shape[-1]
    Cout = w2.shape[-1]
    assert w1.shape[:3] == (3, 3, Cin) and w2.shape[:3] == (3, 3, Cmid)

    LANES = 128
    Cpi = _round_up(Cin, LANES)                # lane-dense input channels
    Cp_mid = _round_up(Cmid, LANES)            # lane-dense mid channels
    Cp_out = _round_up(Cout, LANES)            # lane-dense output channels
    Wp = _round_up(W + 1, 8)                   # flat row width (>= W+1, %8==0)
    guard = _round_up(Wp + 1, 8)               # zero guard rows per side
    n = H * Wp
    R = 2 * guard + n

    # Halo invariants the kw=+/-1 row-wrap silently relies on.
    assert Wp >= W + 1 and Wp % 8 == 0, (Wp, W)
    assert guard >= Wp + 1 and guard % 8 == 0, (guard, Wp)

    # ~256-row MXU chunks, always a whole number of flat image rows (so the
    # pad-column mask tiles exactly); cap the unroll at <= 64 chunks per layer.
    k = max(1, 256 // Wp, (H + 63) // 64)
    chunk_rows = min(k * Wp, n)

    # Host-side layout: NCHW -> NHWC, zero-pad W->Wp and C->Cpi, flatten
    # (H, Wp) -> flat rows, add zero guard rows, cast bf16.  All halo zeros are
    # built here; the kernel never re-pads the activation.
    x = jnp.transpose(x_nchw, (0, 2, 3, 1))
    x = jnp.pad(x, ((0, 0), (0, 0), (0, Wp - W), (0, Cpi - Cin)))
    x = x.reshape(N, n, Cpi)
    x = jnp.pad(x, ((0, 0), (guard, guard), (0, 0))).astype(jnp.bfloat16)

    def fold_bn(bias, gamma, beta, mean, var):
        scale = gamma / jnp.sqrt(var + eps)
        shift = (bias - mean) * scale + beta
        return scale, shift

    def prep_w(w, cpi, cpo):                   # HWIO -> (9, cpi, cpo) bf16
        ci, co = w.shape[-2], w.shape[-1]
        w = jnp.pad(w, ((0, 0), (0, 0), (0, cpi - ci), (0, cpo - co)))
        return w.reshape(9, cpi, cpo).astype(jnp.bfloat16)

    def prep_vec(v, cpo):                      # (C,) -> (1, cpo) f32
        return jnp.pad(v, (0, cpo - v.shape[0])).astype(jnp.float32).reshape(1, cpo)

    s1, sh1 = fold_bn(b1, g1, be1, m1, v1)
    s2, sh2 = fold_bn(b2, g2, be2, m2, v2)
    w1p, w2p = prep_w(w1, Cpi, Cp_mid), prep_w(w2, Cp_mid, Cp_out)
    s1p, sh1p = prep_vec(s1, Cp_mid), prep_vec(sh1, Cp_mid)
    s2p, sh2p = prep_vec(s2, Cp_out), prep_vec(sh2, Cp_out)

    # VMEM budget: double-buffered blocks (x2 once) + persistent slab + chunk
    # working set; capped at 80% of the chip's VMEM capacity.
    try:
        vmem_cap = pltpu.get_tpu_info().vmem_capacity_bytes
    except Exception:
        vmem_cap = 128 * 2 ** 20
    block_bytes = 2 * (R * Cpi * 2 + n * Cp_out * 2
                       + w1p.size * 2 + w2p.size * 2
                       + 2 * (Cp_mid + Cp_out) * 4)
    scratch_bytes = R * Cp_mid * 2
    body_bytes = 4 * chunk_rows * max(Cpi, Cp_mid, Cp_out) * 4
    vmem_limit = int(min(max(block_bytes + scratch_bytes + body_bytes + (4 << 20),
                             16 << 20),
                         int(0.8 * vmem_cap)))

    flops = 2 * N * H * W * 9 * (Cin * Cmid + Cmid * Cout)
    bytes_accessed = int(x.size * 2 + w1p.size * 2 + w2p.size * 2
                         + N * n * Cp_out * 2)

    kernel = partial(_conv_block_kernel, H=H, W=W, Wp=Wp, guard=guard,
                     chunk_rows=chunk_rows)
    out = pl.pallas_call(
        kernel,
        out_shape=jax.ShapeDtypeStruct((N, n, Cp_out), jnp.bfloat16),
        grid=(N,),
        in_specs=[
            pl.BlockSpec((None, R, Cpi), lambda nb: (nb, 0, 0)),
            # Grid-invariant operands (weights / scale / shift).
            # TODO(synk): pipeline_mode=pl.Buffered(1) here would stop
            # double-buffering them (VMEM win on v7x at large channel counts).
            pl.BlockSpec((9, Cpi, Cp_mid), lambda nb: (0, 0, 0)),
            pl.BlockSpec((1, Cp_mid), lambda nb: (0, 0)),
            pl.BlockSpec((1, Cp_mid), lambda nb: (0, 0)),
            pl.BlockSpec((9, Cp_mid, Cp_out), lambda nb: (0, 0, 0)),
            pl.BlockSpec((1, Cp_out), lambda nb: (0, 0)),
            pl.BlockSpec((1, Cp_out), lambda nb: (0, 0)),
        ],
        out_specs=pl.BlockSpec((None, n, Cp_out), lambda nb: (nb, 0, 0)),
        scratch_shapes=[pltpu.VMEM((R, Cp_mid), jnp.bfloat16)],
        compiler_params=pltpu.CompilerParams(
            dimension_semantics=("parallel",),
            vmem_limit_bytes=vmem_limit),
        cost_estimate=pl.CostEstimate(flops=flops, transcendentals=0,
                                      bytes_accessed=bytes_accessed),
    )(x, w1p, s1p, sh1p, w2p, s2p, sh2p)

    # bf16 flat output -> f32 NCHW, dropping pad columns / pad channels.
    out = out.reshape(N, H, Wp, Cp_out)[:, :, :W, :Cout].astype(jnp.float32)
    return jnp.transpose(out, (0, 3, 1, 2))


def init_params(key, in_ch, out_ch):
    """Deterministic parameter init matching the shapes of conv_block.__init__."""
    ks = jax.random.split(key, 8)

    def conv_params(kw_key, kb_key, cin, cout):
        fan_in = cin * 9
        bound = 1.0 / jnp.sqrt(fan_in)
        w = jax.random.uniform(kw_key, (3, 3, cin, cout), jnp.float32,
                               -bound, bound)            # HWIO
        b = jax.random.uniform(kb_key, (cout,), jnp.float32, -bound, bound)
        return w, b

    def bn_params(g_key, b_key, c):
        gamma = 1.0 + 0.1 * jax.random.normal(g_key, (c,), jnp.float32)
        beta = 0.1 * jax.random.normal(b_key, (c,), jnp.float32)
        mean = jnp.zeros((c,), jnp.float32)
        var = jnp.ones((c,), jnp.float32)
        return gamma, beta, mean, var

    w1, b1 = conv_params(ks[0], ks[1], in_ch, out_ch)
    g1, be1, m1, v1 = bn_params(ks[2], ks[3], out_ch)
    w2, b2 = conv_params(ks[4], ks[5], out_ch, out_ch)
    g2, be2, m2, v2 = bn_params(ks[6], ks[7], out_ch)
    return (w1, b1, g1, be1, m1, v1), (w2, b2, g2, be2, m2, v2)


def _reference_forward(x_nchw, params, eps=1e-5):
    """Pure-JAX (XLA conv) reference mirroring the kernel's bf16/f32-acc math."""
    x = jnp.transpose(x_nchw, (0, 2, 3, 1))
    for (w, b, g, be, m, v) in params:
        y = lax.conv_general_dilated(
            x.astype(jnp.bfloat16), w.astype(jnp.bfloat16),
            window_strides=(1, 1), padding=((1, 1), (1, 1)),
            dimension_numbers=("NHWC", "HWIO", "NHWC"),
            preferred_element_type=jnp.float32)
        scale = g / jnp.sqrt(v + eps)
        y = y * scale + ((b - m) * scale + be)
        x = jnp.maximum(y, 0.0)
    x = x.astype(jnp.bfloat16).astype(jnp.float32)   # mirror bf16 output store
    return jnp.transpose(x, (0, 3, 1, 2))


if __name__ == "__main__":
    key = jax.random.PRNGKey(0)
    k_x, k_p = jax.random.split(key)

    in_ch, out_ch = 4, 8
    N, H, W = 2, 16, 16
    x = jax.random.normal(k_x, (N, in_ch, H, W), jnp.float32)   # NCHW like PyTorch
    params = init_params(k_p, in_ch, out_ch)

    fwd = jax.jit(conv_block_forward)
    out = jax.block_until_ready(fwd(x, params))
    assert out.shape == (N, out_ch, H, W), out.shape

    ref = jax.block_until_ready(_reference_forward(x, params))
    err = float(jnp.max(jnp.abs(out - ref)))
    assert err < 2e-2, f"max abs err {err}"

    print("KERNEL_OK")
</pallas_src>

<mosaic_0001>
module attributes {stable_mosaic.version = 11 : i64} {
  func.func @_conv_block_kernel(%arg0: i32, %arg1: memref<1x448x128xbf16, #tpu.memory_space<vmem>>, %arg2: memref<9x128x128xbf16, #tpu.memory_space<vmem>>, %arg3: memref<1x128xf32, #tpu.memory_space<vmem>>, %arg4: memref<1x128xf32, #tpu.memory_space<vmem>>, %arg5: memref<9x128x128xbf16, #tpu.memory_space<vmem>>, %arg6: memref<1x128xf32, #tpu.memory_space<vmem>>, %arg7: memref<1x128xf32, #tpu.memory_space<vmem>>, %arg8: memref<1x384x128xbf16, #tpu.memory_space<vmem>>, %arg9: memref<448x128xbf16, #tpu.memory_space<vmem>>) attributes {dimension_semantics = [#tpu.dimension_semantics<parallel>], iteration_bounds = array<i64: 2>, scalar_prefetch = 0 : i64, scratch_operands = 1 : i64, tpu.core_type = #tpu.core_type<tc>, window_params = [{transform_indices = @transform_0, window_bounds = array<i64: 1, 448, 128>}, {pipeline_mode = #tpu.pipeline_mode<synchronous>, transform_indices = @transform_1, window_bounds = array<i64: 9, 128, 128>}, {pipeline_mode = #tpu.pipeline_mode<synchronous>, transform_indices = @transform_2, window_bounds = array<i64: 1, 128>}, {pipeline_mode = #tpu.pipeline_mode<synchronous>, transform_indices = @transform_3, window_bounds = array<i64: 1, 128>}, {pipeline_mode = #tpu.pipeline_mode<synchronous>, transform_indices = @transform_4, window_bounds = array<i64: 9, 128, 128>}, {pipeline_mode = #tpu.pipeline_mode<synchronous>, transform_indices = @transform_5, window_bounds = array<i64: 1, 128>}, {pipeline_mode = #tpu.pipeline_mode<synchronous>, transform_indices = @transform_6, window_bounds = array<i64: 1, 128>}, {transform_indices = @transform_7, window_bounds = array<i64: 1, 384, 128>}]} {
    %cst = arith.constant 0.000000e+00 : bf16
    %0 = vector.broadcast %cst : bf16 to vector<32x128xbf16>
    %c0 = arith.constant 0 : index
    %c0_0 = arith.constant 0 : index
    %1 = vector.load %arg9[%c0, %c0_0] : memref<448x128xbf16, #tpu.memory_space<vmem>>, vector<32x128xbf16>
    tpu.vector_store %arg9[%c0, %c0_0], %0 {strides = array<i32>} : memref<448x128xbf16, #tpu.memory_space<vmem>>, vector<32x128xbf16>,
    %c416 = arith.constant 416 : index
    %c0_1 = arith.constant 0 : index
    %2 = vector.load %arg9[%c416, %c0_1] : memref<448x128xbf16, #tpu.memory_space<vmem>>, vector<32x128xbf16>
    tpu.vector_store %arg9[%c416, %c0_1], %0 {strides = array<i32>} : memref<448x128xbf16, #tpu.memory_space<vmem>>, vector<32x128xbf16>,
    %3 = tpu.iota {dimensions = array<i32: 0>} : vector<24x1xi32>
    %c16_i32 = arith.constant 16 : i32
    %4 = vector.broadcast %c16_i32 : i32 to vector<24x1xi32>
    %5 = arith.cmpi slt, %3, %4 : vector<24x1xi32>
    %6 = arith.extui %5 : vector<24x1xi1> to vector<24x1xi32>
    %7 = arith.sitofp %6 : vector<24x1xi32> to vector<24x1xf32>
    %8 = tpu.concatenate %7, %7, %7, %7, %7, %7, %7, %7, %7, %7 in 0 : vector<24x1xf32>, vector<24x1xf32>, vector<24x1xf32>, vector<24x1xf32>, vector<24x1xf32>, vector<24x1xf32>, vector<24x1xf32>, vector<24x1xf32>, vector<24x1xf32>, vector<24x1xf32> -> vector<240x1xf32>
    %c0_2 = arith.constant 0 : index
    %c0_3 = arith.constant 0 : index
    %9 = vector.load %arg3[%c0_2, %c0_3] : memref<1x128xf32, #tpu.memory_space<vmem>>, vector<1x128xf32>
    %c0_4 = arith.constant 0 : index
    %c0_5 = arith.constant 0 : index
    %10 = vector.load %arg4[%c0_4, %c0_5] : memref<1x128xf32, #tpu.memory_space<vmem>>, vector<1x128xf32>
    %c0_6 = arith.constant 0 : index
    %c0_7 = arith.constant 0 : index
    %11 = vector.load %arg6[%c0_6, %c0_7] : memref<1x128xf32, #tpu.memory_space<vmem>>, vector<1x128xf32>
    %c0_8 = arith.constant 0 : index
    %c0_9 = arith.constant 0 : index
    %12 = vector.load %arg7[%c0_8, %c0_9] : memref<1x128xf32, #tpu.memory_space<vmem>>, vector<1x128xf32>
    %c0_10 = arith.constant 0 : index
    %c7 = arith.constant 7 : index
    %c0_11 = arith.constant 0 : index
    %13 = vector.load %arg1[%c0_10, %c7, %c0_11] : memref<1x448x128xbf16, #tpu.memory_space<vmem>>, vector<1x240x128xbf16>
    %14 = vector.shape_cast %13 : vector<1x240x128xbf16> to vector<240x128xbf16>
    %c0_12 = arith.constant 0 : index
    %c0_13 = arith.constant 0 : index
    %c0_14 = arith.constant 0 : index
    %15 = vector.load %arg2[%c0_12, %c0_13, %c0_14] : memref<9x128x128xbf16, #tpu.memory_space<vmem>>, vector<1x128x128xbf16>
    %16 = vector.shape_cast %15 : vector<1x128x128xbf16> to vector<128x128xbf16>
    %cst_15 = arith.constant dense<0.000000e+00> : vector<240x128xf32>
    %17 = tpu.matmul %14, %16, %cst_15 {dimension_numbers = #tpu.dot_dimension_numbers<[1], [0], [0], [1], [0, 0, 1, 1], [], []>} : vector<240x128xbf16>, vector<128x128xbf16>, vector<240x128xf32> -> vector<240x128xf32>
    %c0_16 = arith.constant 0 : index
    %c8 = arith.constant 8 : index
    %c0_17 = arith.constant 0 : index
    %18 = vector.load %arg1[%c0_16, %c8, %c0_17] : memref<1x448x128xbf16, #tpu.memory_space<vmem>>, vector<1x240x128xbf16>
    %19 = vector.shape_cast %18 : vector<1x240x128xbf16> to vector<240x128xbf16>
    %c1 = arith.constant 1 : index
    %c0_18 = arith.constant 0 : index
    %c0_19 = arith.constant 0 : index
    %20 = vector.load %arg2[%c1, %c0_18, %c0_19] : memref<9x128x128xbf16, #tpu.memory_space<vmem>>, vector<1x128x128xbf16>
    %21 = vector.shape_cast %20 : vector<1x128x128xbf16> to vector<128x128xbf16>
    %cst_20 = arith.constant dense<0.000000e+00> : vector<240x128xf32>
    %22 = tpu.matmul %19, %21, %cst_20 {dimension_numbers = #tpu.dot_dimension_numbers<[1], [0], [0], [1], [0, 0, 1, 1], [], []>} : vector<240x128xbf16>, vector<128x128xbf16>, vector<240x128xf32> -> vector<240x128xf32>
    %23 = arith.addf %17, %22 : vector<240x128xf32>
    %c0_21 = arith.constant 0 : index
    %c9 = arith.constant 9 : index
    %c0_22 = arith.constant 0 : index
    %24 = vector.load %arg1[%c0_21, %c9, %c0_22] : memref<1x448x128xbf16, #tpu.memory_space<vmem>>, vector<1x240x128xbf16>
    %25 = vector.shape_cast %24 : vector<1x240x128xbf16> to vector<240x128xbf16>
    %c2 = arith.constant 2 : index
    %c0_23 = arith.constant 0 : index
    %c0_24 = arith.constant 0 : index
    %26 = vector.load %arg2[%c2, %c0_23, %c0_24] : memref<9x128x128xbf16, #tpu.memory_space<vmem>>, vector<1x128x128xbf16>
    %27 = vector.shape_cast %26 : vector<1x128x128xbf16> to vector<128x128xbf16>
    %cst_25 = arith.constant dense<0.000000e+00> : vector<240x128xf32>
    %28 = tpu.matmul %25, %27, %cst_25 {dimension_numbers = #tpu.dot_dimension_numbers<[1], [0], [0], [1], [0, 0, 1, 1], [], []>} : vector<240x128xbf16>, vector<128x128xbf16>, vector<240x128xf32> -> vector<240x128xf32>
    %29 = arith.addf %23, %28 : vector<240x128xf32>
    %c0_26 = arith.constant 0 : index
    %c31 = arith.constant 31 : index
    %c0_27 = arith.constant 0 : index
    %30 = vector.load %arg1[%c0_26, %c31, %c0_27] : memref<1x448x128xbf16, #tpu.memory_space<vmem>>, vector<1x240x128xbf16>
    %31 = vector.shape_cast %30 : vector<1x240x128xbf16> to vector<240x128xbf16>
    %c3 = arith.constant 3 : index
    %c0_28 = arith.constant 0 : index
    %c0_29 = arith.constant 0 : index
    %32 = vector.load %arg2[%c3, %c0_28, %c0_29] : memref<9x128x128xbf16, #tpu.memory_space<vmem>>, vector<1x128x128xbf16>
    %33 = vector.shape_cast %32 : vector<1x128x128xbf16> to vector<128x128xbf16>
    %cst_30 = arith.constant dense<0.000000e+00> : vector<240x128xf32>
    %34 = tpu.matmul %31, %33, %cst_30 {dimension_numbers = #tpu.dot_dimension_numbers<[1], [0], [0], [1], [0, 0, 1, 1], [], []>} : vector<240x128xbf16>, vector<128x128xbf16>, vector<240x128xf32> -> vector<240x128xf32>
    %35 = arith.addf %29, %34 : vector<240x128xf32>
    %c0_31 = arith.constant 0 : index
    %c32 = arith.constant 32 : index
    %c0_32 = arith.constant 0 : index
    %36 = vector.load %arg1[%c0_31, %c32, %c0_32] : memref<1x448x128xbf16, #tpu.memory_space<vmem>>, vector<1x240x128xbf16>
    %37 = vector.shape_cast %36 : vector<1x240x128xbf16> to vector<240x128xbf16>
    %c4 = arith.constant 4 : index
    %c0_33 = arith.constant 0 : index
    %c0_34 = arith.constant 0 : index
    %38 = vector.load %arg2[%c4, %c0_33, %c0_34] : memref<9x128x128xbf16, #tpu.memory_space<vmem>>, vector<1x128x128xbf16>
    %39 = vector.shape_cast %38 : vector<1x128x128xbf16> to vector<128x128xbf16>
    %cst_35 = arith.constant dense<0.000000e+00> : vector<240x128xf32>
    %40 = tpu.matmul %37, %39, %cst_35 {dimension_numbers = #tpu.dot_dimension_numbers<[1], [0], [0], [1], [0, 0, 1, 1], [], []>} : vector<240x128xbf16>, vector<128x128xbf16>, vector<240x128xf32> -> vector<240x128xf32>
    %41 = arith.addf %35, %40 : vector<240x128xf32>
    %c0_36 = arith.constant 0 : index
    %c33 = arith.constant 33 : index
    %c0_37 = arith.constant 0 : index
    %42 = vector.load %arg1[%c0_36, %c33, %c0_37] : memref<1x448x128xbf16, #tpu.memory_space<vmem>>, vector<1x240x128xbf16>
    %43 = vector.shape_cast %42 : vector<1x240x128xbf16> to vector<240x128xbf16>
    %c5 = arith.constant 5 : index
    %c0_38 = arith.constant 0 : index
    %c0_39 = arith.constant 0 : index
    %44 = vector.load %arg2[%c5, %c0_38, %c0_39] : memref<9x128x128xbf16, #tpu.memory_space<vmem>>, vector<1x128x128xbf16>
    %45 = vector.shape_cast %44 : vector<1x128x128xbf16> to vector<128x128xbf16>
    %cst_40 = arith.constant dense<0.000000e+00> : vector<240x128xf32>
    %46 = tpu.matmul %43, %45, %cst_40 {dimension_numbers = #tpu.dot_dimension_numbers<[1], [0], [0], [1], [0, 0, 1, 1], [], []>} : vector<240x128xbf16>, vector<128x128xbf16>, vector<240x128xf32> -> vector<240x128xf32>
    %47 = arith.addf %41, %46 : vector<240x128xf32>
    %c0_41 = arith.constant 0 : index
    %c55 = arith.constant 55 : index
    %c0_42 = arith.constant 0 : index
    %48 = vector.load %arg1[%c0_41, %c55, %c0_42] : memref<1x448x128xbf16, #tpu.memory_space<vmem>>, vector<1x240x128xbf16>
    %49 = vector.shape_cast %48 : vector<1x240x128xbf16> to vector<240x128xbf16>
    %c6 = arith.constant 6 : index
    %c0_43 = arith.constant 0 : index
    %c0_44 = arith.constant 0 : index
    %50 = vector.load %arg2[%c6, %c0_43, %c0_44] : memref<9x128x128xbf16, #tpu.memory_space<vmem>>, vector<1x128x128xbf16>
    %51 = vector.shape_cast %50 : vector<1x128x128xbf16> to vector<128x128xbf16>
    %cst_45 = arith.constant dense<0.000000e+00> : vector<240x128xf32>
    %52 = tpu.matmul %49, %51, %cst_45 {dimension_numbers = #tpu.dot_dimension_numbers<[1], [0], [0], [1], [0, 0, 1, 1], [], []>} : vector<240x128xbf16>, vector<128x128xbf16>, vector<240x128xf32> -> vector<240x128xf32>
    %53 = arith.addf %47, %52 : vector<240x128xf32>
    %c0_46 = arith.constant 0 : index
    %c56 = arith.constant 56 : index
    %c0_47 = arith.constant 0 : index
    %54 = vector.load %arg1[%c0_46, %c56, %c0_47] : memref<1x448x128xbf16, #tpu.memory_space<vmem>>, vector<1x240x128xbf16>
    %55 = vector.shape_cast %54 : vector<1x240x128xbf16> to vector<240x128xbf16>
    %c7_48 = arith.constant 7 : index
    %c0_49 = arith.constant 0 : index
    %c0_50 = arith.constant 0 : index
    %56 = vector.load %arg2[%c7_48, %c0_49, %c0_50] : memref<9x128x128xbf16, #tpu.memory_space<vmem>>, vector<1x128x128xbf16>
    %57 = vector.shape_cast %56 : vector<1x128x128xbf16> to vector<128x128xbf16>
    %cst_51 = arith.constant dense<0.000000e+00> : vector<240x128xf32>
    %58 = tpu.matmul %55, %57, %cst_51 {dimension_numbers = #tpu.dot_dimension_numbers<[1], [0], [0], [1], [0, 0, 1, 1], [], []>} : vector<240x128xbf16>, vector<128x128xbf16>, vector<240x128xf32> -> vector<240x128xf32>
    %59 = arith.addf %53, %58 : vector<240x128xf32>
    %c0_52 = arith.constant 0 : index
    %c57 = arith.constant 57 : index
    %c0_53 = arith.constant 0 : index
    %60 = vector.load %arg1[%c0_52, %c57, %c0_53] : memref<1x448x128xbf16, #tpu.memory_space<vmem>>, vector<1x240x128xbf16>
    %61 = vector.shape_cast %60 : vector<1x240x128xbf16> to vector<240x128xbf16>
    %c8_54 = arith.constant 8 : index
    %c0_55 = arith.constant 0 : index
    %c0_56 = arith.constant 0 : index
    %62 = vector.load %arg2[%c8_54, %c0_55, %c0_56] : memref<9x128x128xbf16, #tpu.memory_space<vmem>>, vector<1x128x128xbf16>
    %63 = vector.shape_cast %62 : vector<1x128x128xbf16> to vector<128x128xbf16>
    %cst_57 = arith.constant dense<0.000000e+00> : vector<240x128xf32>
    %64 = tpu.matmul %61, %63, %cst_57 {dimension_numbers = #tpu.dot_dimension_numbers<[1], [0], [0], [1], [0, 0, 1, 1], [], []>} : vector<240x128xbf16>, vector<128x128xbf16>, vector<240x128xf32> -> vector<240x128xf32>
    %65 = arith.addf %59, %64 : vector<240x128xf32>
    %66 = vector.broadcast %9 : vector<1x128xf32> to vector<240x128xf32>
    %67 = arith.mulf %65, %66 : vector<240x128xf32>
    %68 = vector.broadcast %10 : vector<1x128xf32> to vector<240x128xf32>
    %69 = arith.addf %67, %68 : vector<240x128xf32>
    %cst_58 = arith.constant 0.000000e+00 : f32
    %70 = vector.broadcast %cst_58 : f32 to vector<240x128xf32>
    %71 = arith.maximumf %69, %70 : vector<240x128xf32>
    %72 = vector.broadcast %8 : vector<240x1xf32> to vector<240x128xf32>
    %73 = arith.mulf %71, %72 : vector<240x128xf32>
    %74 = arith.truncf %73 : vector<240x128xf32> to vector<240x128xbf16>
    %c32_59 = arith.constant 32 : index
    %c0_60 = arith.constant 0 : index
    %75 = vector.load %arg9[%c32_59, %c0_60] : memref<448x128xbf16, #tpu.memory_space<vmem>>, vector<240x128xbf16>
    tpu.vector_store %arg9[%c32_59, %c0_60], %74 {strides = array<i32>} : memref<448x128xbf16, #tpu.memory_space<vmem>>, vector<240x128xbf16>,
    %c0_61 = arith.constant 0 : index
    %c247 = arith.constant 247 : index
    %c0_62 = arith.constant 0 : index
    %76 = vector.load %arg1[%c0_61, %c247, %c0_62] : memref<1x448x128xbf16, #tpu.memory_space<vmem>>, vector<1x144x128xbf16>
    %77 = vector.shape_cast %76 : vector<1x144x128xbf16> to vector<144x128xbf16>
    %c0_63 = arith.constant 0 : index
    %c0_64 = arith.constant 0 : index
    %c0_65 = arith.constant 0 : index
    %78 = vector.load %arg2[%c0_63, %c0_64, %c0_65] : memref<9x128x128xbf16, #tpu.memory_space<vmem>>, vector<1x128x128xbf16>
    %79 = vector.shape_cast %78 : vector<1x128x128xbf16> to vector<128x128xbf16>
    %cst_66 = arith.constant dense<0.000000e+00> : vector<144x128xf32>
    %80 = tpu.matmul %77, %79, %cst_66 {dimension_numbers = #tpu.dot_dimension_numbers<[1], [0], [0], [1], [0, 0, 1, 1], [], []>} : vector<144x128xbf16>, vector<128x128xbf16>, vector<144x128xf32> -> vector<144x128xf32>
    %c0_67 = arith.constant 0 : index
    %c248 = arith.constant 248 : index
    %c0_68 = arith.constant 0 : index
    %81 = vector.load %arg1[%c0_67, %c248, %c0_68] : memref<1x448x128xbf16, #tpu.memory_space<vmem>>, vector<1x144x128xbf16>
    %82 = vector.shape_cast %81 : vector<1x144x128xbf16> to vector<144x128xbf16>
    %c1_69 = arith.constant 1 : index
    %c0_70 = arith.constant 0 : index
    %c0_71 = arith.constant 0 : index
    %83 = vector.load %arg2[%c1_69, %c0_70, %c0_71] : memref<9x128x128xbf16, #tpu.memory_space<vmem>>, vector<1x128x128xbf16>
    %84 = vector.shape_cast %83 : vector<1x128x128xbf16> to vector<128x128xbf16>
    %cst_72 = arith.constant dense<0.000000e+00> : vector<144x128xf32>
    %85 = tpu.matmul %82, %84, %cst_72 {dimension_numbers = #tpu.dot_dimension_numbers<[1], [0], [0], [1], [0, 0, 1, 1], [], []>} : vector<144x128xbf16>, vector<128x128xbf16>, vector<144x128xf32> -> vector<144x128xf32>
    %86 = arith.addf %80, %85 : vector<144x128xf32>
    %c0_73 = arith.constant 0 : index
    %c249 = arith.constant 249 : index
    %c0_74 = arith.constant 0 : index
    %87 = vector.load %arg1[%c0_73, %c249, %c0_74] : memref<1x448x128xbf16, #tpu.memory_space<vmem>>, vector<1x144x128xbf16>
    %88 = vector.shape_cast %87 : vector<1x144x128xbf16> to vector<144x128xbf16>
    %c2_75 = arith.constant 2 : index
    %c0_76 = arith.constant 0 : index
    %c0_77 = arith.constant 0 : index
    %89 = vector.load %arg2[%c2_75, %c0_76, %c0_77] : memref<9x128x128xbf16, #tpu.memory_space<vmem>>, vector<1x128x128xbf16>
    %90 = vector.shape_cast %89 : vector<1x128x128xbf16> to vector<128x128xbf16>
    %cst_78 = arith.constant dense<0.000000e+00> : vector<144x128xf32>
    %91 = tpu.matmul %88, %90, %cst_78 {dimension_numbers = #tpu.dot_dimension_numbers<[1], [0], [0], [1], [0, 0, 1, 1], [], []>} : vector<144x128xbf16>, vector<128x128xbf16>, vector<144x128xf32> -> vector<144x128xf32>
    %92 = arith.addf %86, %91 : vector<144x128xf32>
    %c0_79 = arith.constant 0 : index
    %c271 = arith.constant 271 : index
    %c0_80 = arith.constant 0 : index
    %93 = vector.load %arg1[%c0_79, %c271, %c0_80] : memref<1x448x128xbf16, #tpu.memory_space<vmem>>, vector<1x144x128xbf16>
    %94 = vector.shape_cast %93 : vector<1x144x128xbf16> to vector<144x128xbf16>
    %c3_81 = arith.constant 3 : index
    %c0_82 = arith.constant 0 : index
    %c0_83 = arith.constant 0 : index
    %95 = vector.load %arg2[%c3_81, %c0_82, %c0_83] : memref<9x128x128xbf16, #tpu.memory_space<vmem>>, vector<1x128x128xbf16>
    %96 = vector.shape_cast %95 : vector<1x128x128xbf16> to vector<128x128xbf16>
    %cst_84 = arith.constant dense<0.000000e+00> : vector<144x128xf32>
    %97 = tpu.matmul %94, %96, %cst_84 {dimension_numbers = #tpu.dot_dimension_numbers<[1], [0], [0], [1], [0, 0, 1, 1], [], []>} : vector<144x128xbf16>, vector<128x128xbf16>, vector<144x128xf32> -> vector<144x128xf32>
    %98 = arith.addf %92, %97 : vector<144x128xf32>
    %c0_85 = arith.constant 0 : index
    %c272 = arith.constant 272 : index
    %c0_86 = arith.constant 0 : index
    %99 = vector.load %arg1[%c0_85, %c272, %c0_86] : memref<1x448x128xbf16, #tpu.memory_space<vmem>>, vector<1x144x128xbf16>
    %100 = vector.shape_cast %99 : vector<1x144x128xbf16> to vector<144x128xbf16>
    %c4_87 = arith.constant 4 : index
    %c0_88 = arith.constant 0 : index
    %c0_89 = arith.constant 0 : index
    %101 = vector.load %arg2[%c4_87, %c0_88, %c0_89] : memref<9x128x128xbf16, #tpu.memory_space<vmem>>, vector<1x128x128xbf16>
    %102 = vector.shape_cast %101 : vector<1x128x128xbf16> to vector<128x128xbf16>
    %cst_90 = arith.constant dense<0.000000e+00> : vector<144x128xf32>
    %103 = tpu.matmul %100, %102, %cst_90 {dimension_numbers = #tpu.dot_dimension_numbers<[1], [0], [0], [1], [0, 0, 1, 1], [], []>} : vector<144x128xbf16>, vector<128x128xbf16>, vector<144x128xf32> -> vector<144x128xf32>
    %104 = arith.addf %98, %103 : vector<144x128xf32>
    %c0_91 = arith.constant 0 : index
    %c273 = arith.constant 273 : index
    %c0_92 = arith.constant 0 : index
    %105 = vector.load %arg1[%c0_91, %c273, %c0_92] : memref<1x448x128xbf16, #tpu.memory_space<vmem>>, vector<1x144x128xbf16>
    %106 = vector.shape_cast %105 : vector<1x144x128xbf16> to vector<144x128xbf16>
    %c5_93 = arith.constant 5 : index
    %c0_94 = arith.constant 0 : index
    %c0_95 = arith.constant 0 : index
    %107 = vector.load %arg2[%c5_93, %c0_94, %c0_95] : memref<9x128x128xbf16, #tpu.memory_space<vmem>>, vector<1x128x128xbf16>
    %108 = vector.shape_cast %107 : vector<1x128x128xbf16> to vector<128x128xbf16>
    %cst_96 = arith.constant dense<0.000000e+00> : vector<144x128xf32>
    %109 = tpu.matmul %106, %108, %cst_96 {dimension_numbers = #tpu.dot_dimension_numbers<[1], [0], [0], [1], [0, 0, 1, 1], [], []>} : vector<144x128xbf16>, vector<128x128xbf16>, vector<144x128xf32> -> vector<144x128xf32>
    %110 = arith.addf %104, %109 : vector<144x128xf32>
    %c0_97 = arith.constant 0 : index
    %c295 = arith.constant 295 : index
    %c0_98 = arith.constant 0 : index
    %111 = vector.load %arg1[%c0_97, %c295, %c0_98] : memref<1x448x128xbf16, #tpu.memory_space<vmem>>, vector<1x144x128xbf16>
    %112 = vector.shape_cast %111 : vector<1x144x128xbf16> to vector<144x128xbf16>
    %c6_99 = arith.constant 6 : index
    %c0_100 = arith.constant 0 : index
    %c0_101 = arith.constant 0 : index
    %113 = vector.load %arg2[%c6_99, %c0_100, %c0_101] : memref<9x128x128xbf16, #tpu.memory_space<vmem>>, vector<1x128x128xbf16>
    %114 = vector.shape_cast %113 : vector<1x128x128xbf16> to vector<128x128xbf16>
    %cst_102 = arith.constant dense<0.000000e+00> : vector<144x128xf32>
    %115 = tpu.matmul %112, %114, %cst_102 {dimension_numbers = #tpu.dot_dimension_numbers<[1], [0], [0], [1], [0, 0, 1, 1], [], []>} : vector<144x128xbf16>, vector<128x128xbf16>, vector<144x128xf32> -> vector<144x128xf32>
    %116 = arith.addf %110, %115 : vector<144x128xf32>
    %c0_103 = arith.constant 0 : index
    %c296 = arith.constant 296 : index
    %c0_104 = arith.constant 0 : index
    %117 = vector.load %arg1[%c0_103, %c296, %c0_104] : memref<1x448x128xbf16, #tpu.memory_space<vmem>>, vector<1x144x128xbf16>
    %118 = vector.shape_cast %117 : vector<1x144x128xbf16> to vector<144x128xbf16>
    %c7_105 = arith.constant 7 : index
    %c0_106 = arith.constant 0 : index
    %c0_107 = arith.constant 0 : index
    %119 = vector.load %arg2[%c7_105, %c0_106, %c0_107] : memref<9x128x128xbf16, #tpu.memory_space<vmem>>, vector<1x128x128xbf16>
    %120 = vector.shape_cast %119 : vector<1x128x128xbf16> to vector<128x128xbf16>
    %cst_108 = arith.constant dense<0.000000e+00> : vector<144x128xf32>
    %121 = tpu.matmul %118, %120, %cst_108 {dimension_numbers = #tpu.dot_dimension_numbers<[1], [0], [0], [1], [0, 0, 1, 1], [], []>} : vector<144x128xbf16>, vector<128x128xbf16>, vector<144x128xf32> -> vector<144x128xf32>
    %122 = arith.addf %116, %121 : vector<144x128xf32>
    %c0_109 = arith.constant 0 : index
    %c297 = arith.constant 297 : index
    %c0_110 = arith.constant 0 : index
    %123 = vector.load %arg1[%c0_109, %c297, %c0_110] : memref<1x448x128xbf16, #tpu.memory_space<vmem>>, vector<1x144x128xbf16>
    %124 = vector.shape_cast %123 : vector<1x144x128xbf16> to vector<144x128xbf16>
    %c8_111 = arith.constant 8 : index
    %c0_112 = arith.constant 0 : index
    %c0_113 = arith.constant 0 : index
    %125 = vector.load %arg2[%c8_111, %c0_112, %c0_113] : memref<9x128x128xbf16, #tpu.memory_space<vmem>>, vector<1x128x128xbf16>
    %126 = vector.shape_cast %125 : vector<1x128x128xbf16> to vector<128x128xbf16>
    %cst_114 = arith.constant dense<0.000000e+00> : vector<144x128xf32>
    %127 = tpu.matmul %124, %126, %cst_114 {dimension_numbers = #tpu.dot_dimension_numbers<[1], [0], [0], [1], [0, 0, 1, 1], [], []>} : vector<144x128xbf16>, vector<128x128xbf16>, vector<144x128xf32> -> vector<144x128xf32>
    %128 = arith.addf %122, %127 : vector<144x128xf32>
    %129 = vector.broadcast %9 : vector<1x128xf32> to vector<144x128xf32>
    %130 = arith.mulf %128, %129 : vector<144x128xf32>
    %131 = vector.broadcast %10 : vector<1x128xf32> to vector<144x128xf32>
    %132 = arith.addf %130, %131 : vector<144x128xf32>
    %cst_115 = arith.constant 0.000000e+00 : f32
    %133 = vector.broadcast %cst_115 : f32 to vector<144x128xf32>
    %134 = arith.maximumf %132, %133 : vector<144x128xf32>
    %135 = vector.extract_strided_slice %8 {offsets = [0, 0], sizes = [144, 1], strides = [1, 1]} : vector<240x1xf32> to vector<144x1xf32>
    %136 = vector.broadcast %135 : vector<144x1xf32> to vector<144x128xf32>
    %137 = arith.mulf %134, %136 : vector<144x128xf32>
    %138 = arith.truncf %137 : vector<144x128xf32> to vector<144x128xbf16>
    %c272_116 = arith.constant 272 : index
    %c0_117 = arith.constant 0 : index
    %139 = vector.load %arg9[%c272_116, %c0_117] : memref<448x128xbf16, #tpu.memory_space<vmem>>, vector<144x128xbf16>
    tpu.vector_store %arg9[%c272_116, %c0_117], %138 {strides = array<i32>} : memref<448x128xbf16, #tpu.memory_space<vmem>>, vector<144x128xbf16>,
    %c7_118 = arith.constant 7 : index
    %c0_119 = arith.constant 0 : index
    %140 = vector.load %arg9[%c7_118, %c0_119] : memref<448x128xbf16, #tpu.memory_space<vmem>>, vector<240x128xbf16>
    %c0_120 = arith.constant 0 : index
    %c0_121 = arith.constant 0 : index
    %c0_122 = arith.constant 0 : index
    %141 = vector.load %arg5[%c0_120, %c0_121, %c0_122] : memref<9x128x128xbf16, #tpu.memory_space<vmem>>, vector<1x128x128xbf16>
    %142 = vector.shape_cast %141 : vector<1x128x128xbf16> to vector<128x128xbf16>
    %cst_123 = arith.constant dense<0.000000e+00> : vector<240x128xf32>
    %143 = tpu.matmul %140, %142, %cst_123 {dimension_numbers = #tpu.dot_dimension_numbers<[1], [0], [0], [1], [0, 0, 1, 1], [], []>} : vector<240x128xbf16>, vector<128x128xbf16>, vector<240x128xf32> -> vector<240x128xf32>
    %c8_124 = arith.constant 8 : index
    %c0_125 = arith.constant 0 : index
    %144 = vector.load %arg9[%c8_124, %c0_125] : memref<448x128xbf16, #tpu.memory_space<vmem>>, vector<240x128xbf16>
    %c1_126 = arith.constant 1 : index
    %c0_127 = arith.constant 0 : index
    %c0_128 = arith.constant 0 : index
    %145 = vector.load %arg5[%c1_126, %c0_127, %c0_128] : memref<9x128x128xbf16, #tpu.memory_space<vmem>>, vector<1x128x128xbf16>
    %146 = vector.shape_cast %145 : vector<1x128x128xbf16> to vector<128x128xbf16>
    %cst_129 = arith.constant dense<0.000000e+00> : vector<240x128xf32>
    %147 = tpu.matmul %144, %146, %cst_129 {dimension_numbers = #tpu.dot_dimension_numbers<[1], [0], [0], [1], [0, 0, 1, 1], [], []>} : vector<240x128xbf16>, vector<128x128xbf16>, vector<240x128xf32> -> vector<240x128xf32>
    %148 = arith.addf %143, %147 : vector<240x128xf32>
    %c9_130 = arith.constant 9 : index
    %c0_131 = arith.constant 0 : index
    %149 = vector.load %arg9[%c9_130, %c0_131] : memref<448x128xbf16, #tpu.memory_space<vmem>>, vector<240x128xbf16>
    %c2_132 = arith.constant 2 : index
    %c0_133 = arith.constant 0 : index
    %c0_134 = arith.constant 0 : index
    %150 = vector.load %arg5[%c2_132, %c0_133, %c0_134] : memref<9x128x128xbf16, #tpu.memory_space<vmem>>, vector<1x128x128xbf16>
    %151 = vector.shape_cast %150 : vector<1x128x128xbf16> to vector<128x128xbf16>
    %cst_135 = arith.constant dense<0.000000e+00> : vector<240x128xf32>
    %152 = tpu.matmul %149, %151, %cst_135 {dimension_numbers = #tpu.dot_dimension_numbers<[1], [0], [0], [1], [0, 0, 1, 1], [], []>} : vector<240x128xbf16>, vector<128x128xbf16>, vector<240x128xf32> -> vector<240x128xf32>
    %153 = arith.addf %148, %152 : vector<240x128xf32>
    %c31_136 = arith.constant 31 : index
    %c0_137 = arith.constant 0 : index
    %154 = vector.load %arg9[%c31_136, %c0_137] : memref<448x128xbf16, #tpu.memory_space<vmem>>, vector<240x128xbf16>
    %c3_138 = arith.constant 3 : index
    %c0_139 = arith.constant 0 : index
    %c0_140 = arith.constant 0 : index
    %155 = vector.load %arg5[%c3_138, %c0_139, %c0_140] : memref<9x128x128xbf16, #tpu.memory_space<vmem>>, vector<1x128x128xbf16>
    %156 = vector.shape_cast %155 : vector<1x128x128xbf16> to vector<128x128xbf16>
    %cst_141 = arith.constant dense<0.000000e+00> : vector<240x128xf32>
    %157 = tpu.matmul %154, %156, %cst_141 {dimension_numbers = #tpu.dot_dimension_numbers<[1], [0], [0], [1], [0, 0, 1, 1], [], []>} : vector<240x128xbf16>, vector<128x128xbf16>, vector<240x128xf32> -> vector<240x128xf32>
    %158 = arith.addf %153, %157 : vector<240x128xf32>
    %c32_142 = arith.constant 32 : index
    %c0_143 = arith.constant 0 : index
    %159 = vector.load %arg9[%c32_142, %c0_143] : memref<448x128xbf16, #tpu.memory_space<vmem>>, vector<240x128xbf16>
    %c4_144 = arith.constant 4 : index
    %c0_145 = arith.constant 0 : index
    %c0_146 = arith.constant 0 : index
    %160 = vector.load %arg5[%c4_144, %c0_145, %c0_146] : memref<9x128x128xbf16, #tpu.memory_space<vmem>>, vector<1x128x128xbf16>
    %161 = vector.shape_cast %160 : vector<1x128x128xbf16> to vector<128x128xbf16>
    %cst_147 = arith.constant dense<0.000000e+00> : vector<240x128xf32>
    %162 = tpu.matmul %159, %161, %cst_147 {dimension_numbers = #tpu.dot_dimension_numbers<[1], [0], [0], [1], [0, 0, 1, 1], [], []>} : vector<240x128xbf16>, vector<128x128xbf16>, vector<240x128xf32> -> vector<240x128xf32>
    %163 = arith.addf %158, %162 : vector<240x128xf32>
    %c33_148 = arith.constant 33 : index
    %c0_149 = arith.constant 0 : index
    %164 = vector.load %arg9[%c33_148, %c0_149] : memref<448x128xbf16, #tpu.memory_space<vmem>>, vector<240x128xbf16>
    %c5_150 = arith.constant 5 : index
    %c0_151 = arith.constant 0 : index
    %c0_152 = arith.constant 0 : index
    %165 = vector.load %arg5[%c5_150, %c0_151, %c0_152] : memref<9x128x128xbf16, #tpu.memory_space<vmem>>, vector<1x128x128xbf16>
    %166 = vector.shape_cast %165 : vector<1x128x128xbf16> to vector<128x128xbf16>
    %cst_153 = arith.constant dense<0.000000e+00> : vector<240x128xf32>
    %167 = tpu.matmul %164, %166, %cst_153 {dimension_numbers = #tpu.dot_dimension_numbers<[1], [0], [0], [1], [0, 0, 1, 1], [], []>} : vector<240x128xbf16>, vector<128x128xbf16>, vector<240x128xf32> -> vector<240x128xf32>
    %168 = arith.addf %163, %167 : vector<240x128xf32>
    %c55_154 = arith.constant 55 : index
    %c0_155 = arith.constant 0 : index
    %169 = vector.load %arg9[%c55_154, %c0_155] : memref<448x128xbf16, #tpu.memory_space<vmem>>, vector<240x128xbf16>
    %c6_156 = arith.constant 6 : index
    %c0_157 = arith.constant 0 : index
    %c0_158 = arith.constant 0 : index
    %170 = vector.load %arg5[%c6_156, %c0_157, %c0_158] : memref<9x128x128xbf16, #tpu.memory_space<vmem>>, vector<1x128x128xbf16>
    %171 = vector.shape_cast %170 : vector<1x128x128xbf16> to vector<128x128xbf16>
    %cst_159 = arith.constant dense<0.000000e+00> : vector<240x128xf32>
    %172 = tpu.matmul %169, %171, %cst_159 {dimension_numbers = #tpu.dot_dimension_numbers<[1], [0], [0], [1], [0, 0, 1, 1], [], []>} : vector<240x128xbf16>, vector<128x128xbf16>, vector<240x128xf32> -> vector<240x128xf32>
    %173 = arith.addf %168, %172 : vector<240x128xf32>
    %c56_160 = arith.constant 56 : index
    %c0_161 = arith.constant 0 : index
    %174 = vector.load %arg9[%c56_160, %c0_161] : memref<448x128xbf16, #tpu.memory_space<vmem>>, vector<240x128xbf16>
    %c7_162 = arith.constant 7 : index
    %c0_163 = arith.constant 0 : index
    %c0_164 = arith.constant 0 : index
    %175 = vector.load %arg5[%c7_162, %c0_163, %c0_164] : memref<9x128x128xbf16, #tpu.memory_space<vmem>>, vector<1x128x128xbf16>
    %176 = vector.shape_cast %175 : vector<1x128x128xbf16> to vector<128x128xbf16>
    %cst_165 = arith.constant dense<0.000000e+00> : vector<240x128xf32>
    %177 = tpu.matmul %174, %176, %cst_165 {dimension_numbers = #tpu.dot_dimension_numbers<[1], [0], [0], [1], [0, 0, 1, 1], [], []>} : vector<240x128xbf16>, vector<128x128xbf16>, vector<240x128xf32> -> vector<240x128xf32>
    %178 = arith.addf %173, %177 : vector<240x128xf32>
    %c57_166 = arith.constant 57 : index
    %c0_167 = arith.constant 0 : index
    %179 = vector.load %arg9[%c57_166, %c0_167] : memref<448x128xbf16, #tpu.memory_space<vmem>>, vector<240x128xbf16>
    %c8_168 = arith.constant 8 : index
    %c0_169 = arith.constant 0 : index
    %c0_170 = arith.constant 0 : index
    %180 = vector.load %arg5[%c8_168, %c0_169, %c0_170] : memref<9x128x128xbf16, #tpu.memory_space<vmem>>, vector<1x128x128xbf16>
    %181 = vector.shape_cast %180 : vector<1x128x128xbf16> to vector<128x128xbf16>
    %cst_171 = arith.constant dense<0.000000e+00> : vector<240x128xf32>
    %182 = tpu.matmul %179, %181, %cst_171 {dimension_numbers = #tpu.dot_dimension_numbers<[1], [0], [0], [1], [0, 0, 1, 1], [], []>} : vector<240x128xbf16>, vector<128x128xbf16>, vector<240x128xf32> -> vector<240x128xf32>
    %183 = arith.addf %178, %182 : vector<240x128xf32>
    %184 = vector.broadcast %11 : vector<1x128xf32> to vector<240x128xf32>
    %185 = arith.mulf %183, %184 : vector<240x128xf32>
    %186 = vector.broadcast %12 : vector<1x128xf32> to vector<240x128xf32>
    %187 = arith.addf %185, %186 : vector<240x128xf32>
    %cst_172 = arith.constant 0.000000e+00 : f32
    %188 = vector.broadcast %cst_172 : f32 to vector<240x128xf32>
    %189 = arith.maximumf %187, %188 : vector<240x128xf32>
    %190 = arith.truncf %189 : vector<240x128xf32> to vector<240x128xbf16>
    %c0_173 = arith.constant 0 : index
    %c0_174 = arith.constant 0 : index
    %c0_175 = arith.constant 0 : index
    %191 = vector.load %arg8[%c0_173, %c0_174, %c0_175] : memref<1x384x128xbf16, #tpu.memory_space<vmem>>, vector<1x240x128xbf16>
    %192 = vector.shape_cast %191 : vector<1x240x128xbf16> to vector<240x128xbf16>
    %193 = vector.shape_cast %190 : vector<240x128xbf16> to vector<1x240x128xbf16>
    tpu.vector_store %arg8[%c0_173, %c0_174, %c0_175], %193 {strides = array<i32>} : memref<1x384x128xbf16, #tpu.memory_space<vmem>>, vector<1x240x128xbf16>,
    %c247_176 = arith.constant 247 : index
    %c0_177 = arith.constant 0 : index
    %194 = vector.load %arg9[%c247_176, %c0_177] : memref<448x128xbf16, #tpu.memory_space<vmem>>, vector<144x128xbf16>
    %c0_178 = arith.constant 0 : index
    %c0_179 = arith.constant 0 : index
    %c0_180 = arith.constant 0 : index
    %195 = vector.load %arg5[%c0_178, %c0_179, %c0_180] : memref<9x128x128xbf16, #tpu.memory_space<vmem>>, vector<1x128x128xbf16>
    %196 = vector.shape_cast %195 : vector<1x128x128xbf16> to vector<128x128xbf16>
    %cst_181 = arith.constant dense<0.000000e+00> : vector<144x128xf32>
    %197 = tpu.matmul %194, %196, %cst_181 {dimension_numbers = #tpu.dot_dimension_numbers<[1], [0], [0], [1], [0, 0, 1, 1], [], []>} : vector<144x128xbf16>, vector<128x128xbf16>, vector<144x128xf32> -> vector<144x128xf32>
    %c248_182 = arith.constant 248 : index
    %c0_183 = arith.constant 0 : index
    %198 = vector.load %arg9[%c248_182, %c0_183] : memref<448x128xbf16, #tpu.memory_space<vmem>>, vector<144x128xbf16>
    %c1_184 = arith.constant 1 : index
    %c0_185 = arith.constant 0 : index
    %c0_186 = arith.constant 0 : index
    %199 = vector.load %arg5[%c1_184, %c0_185, %c0_186] : memref<9x128x128xbf16, #tpu.memory_space<vmem>>, vector<1x128x128xbf16>
    %200 = vector.shape_cast %199 : vector<1x128x128xbf16> to vector<128x128xbf16>
    %cst_187 = arith.constant dense<0.000000e+00> : vector<144x128xf32>
    %201 = tpu.matmul %198, %200, %cst_187 {dimension_numbers = #tpu.dot_dimension_numbers<[1], [0], [0], [1], [0, 0, 1, 1], [], []>} : vector<144x128xbf16>, vector<128x128xbf16>, vector<144x128xf32> -> vector<144x128xf32>
    %202 = arith.addf %197, %201 : vector<144x128xf32>
    %c249_188 = arith.constant 249 : index
    %c0_189 = arith.constant 0 : index
    %203 = vector.load %arg9[%c249_188, %c0_189] : memref<448x128xbf16, #tpu.memory_space<vmem>>, vector<144x128xbf16>
    %c2_190 = arith.constant 2 : index
    %c0_191 = arith.constant 0 : index
    %c0_192 = arith.constant 0 : index
    %204 = vector.load %arg5[%c2_190, %c0_191, %c0_192] : memref<9x128x128xbf16, #tpu.memory_space<vmem>>, vector<1x128x128xbf16>
    %205 = vector.shape_cast %204 : vector<1x128x128xbf16> to vector<128x128xbf16>
    %cst_193 = arith.constant dense<0.000000e+00> : vector<144x128xf32>
    %206 = tpu.matmul %203, %205, %cst_193 {dimension_numbers = #tpu.dot_dimension_numbers<[1], [0], [0], [1], [0, 0, 1, 1], [], []>} : vector<144x128xbf16>, vector<128x128xbf16>, vector<144x128xf32> -> vector<144x128xf32>
    %207 = arith.addf %202, %206 : vector<144x128xf32>
    %c271_194 = arith.constant 271 : index
    %c0_195 = arith.constant 0 : index
    %208 = vector.load %arg9[%c271_194, %c0_195] : memref<448x128xbf16, #tpu.memory_space<vmem>>, vector<144x128xbf16>
    %c3_196 = arith.constant 3 : index
    %c0_197 = arith.constant 0 : index
    %c0_198 = arith.constant 0 : index
    %209 = vector.load %arg5[%c3_196, %c0_197, %c0_198] : memref<9x128x128xbf16, #tpu.memory_space<vmem>>, vector<1x128x128xbf16>
    %210 = vector.shape_cast %209 : vector<1x128x128xbf16> to vector<128x128xbf16>
    %cst_199 = arith.constant dense<0.000000e+00> : vector<144x128xf32>
    %211 = tpu.matmul %208, %210, %cst_199 {dimension_numbers = #tpu.dot_dimension_numbers<[1], [0], [0], [1], [0, 0, 1, 1], [], []>} : vector<144x128xbf16>, vector<128x128xbf16>, vector<144x128xf32> -> vector<144x128xf32>
    %212 = arith.addf %207, %211 : vector<144x128xf32>
    %c272_200 = arith.constant 272 : index
    %c0_201 = arith.constant 0 : index
    %213 = vector.load %arg9[%c272_200, %c0_201] : memref<448x128xbf16, #tpu.memory_space<vmem>>, vector<144x128xbf16>
    %c4_202 = arith.constant 4 : index
    %c0_203 = arith.constant 0 : index
    %c0_204 = arith.constant 0 : index
    %214 = vector.load %arg5[%c4_202, %c0_203, %c0_204] : memref<9x128x128xbf16, #tpu.memory_space<vmem>>, vector<1x128x128xbf16>
    %215 = vector.shape_cast %214 : vector<1x128x128xbf16> to vector<128x128xbf16>
    %cst_205 = arith.constant dense<0.000000e+00> : vector<144x128xf32>
    %216 = tpu.matmul %213, %215, %cst_205 {dimension_numbers = #tpu.dot_dimension_numbers<[1], [0], [0], [1], [0, 0, 1, 1], [], []>} : vector<144x128xbf16>, vector<128x128xbf16>, vector<144x128xf32> -> vector<144x128xf32>
    %217 = arith.addf %212, %216 : vector<144x128xf32>
    %c273_206 = arith.constant 273 : index
    %c0_207 = arith.constant 0 : index
    %218 = vector.load %arg9[%c273_206, %c0_207] : memref<448x128xbf16, #tpu.memory_space<vmem>>, vector<144x128xbf16>
    %c5_208 = arith.constant 5 : index
    %c0_209 = arith.constant 0 : index
    %c0_210 = arith.constant 0 : index
    %219 = vector.load %arg5[%c5_208, %c0_209, %c0_210] : memref<9x128x128xbf16, #tpu.memory_space<vmem>>, vector<1x128x128xbf16>
    %220 = vector.shape_cast %219 : vector<1x128x128xbf16> to vector<128x128xbf16>
    %cst_211 = arith.constant dense<0.000000e+00> : vector<144x128xf32>
    %221 = tpu.matmul %218, %220, %cst_211 {dimension_numbers = #tpu.dot_dimension_numbers<[1], [0], [0], [1], [0, 0, 1, 1], [], []>} : vector<144x128xbf16>, vector<128x128xbf16>, vector<144x128xf32> -> vector<144x128xf32>
    %222 = arith.addf %217, %221 : vector<144x128xf32>
    %c295_212 = arith.constant 295 : index
    %c0_213 = arith.constant 0 : index
    %223 = vector.load %arg9[%c295_212, %c0_213] : memref<448x128xbf16, #tpu.memory_space<vmem>>, vector<144x128xbf16>
    %c6_214 = arith.constant 6 : index
    %c0_215 = arith.constant 0 : index
    %c0_216 = arith.constant 0 : index
    %224 = vector.load %arg5[%c6_214, %c0_215, %c0_216] : memref<9x128x128xbf16, #tpu.memory_space<vmem>>, vector<1x128x128xbf16>
    %225 = vector.shape_cast %224 : vector<1x128x128xbf16> to vector<128x128xbf16>
    %cst_217 = arith.constant dense<0.000000e+00> : vector<144x128xf32>
    %226 = tpu.matmul %223, %225, %cst_217 {dimension_numbers = #tpu.dot_dimension_numbers<[1], [0], [0], [1], [0, 0, 1, 1], [], []>} : vector<144x128xbf16>, vector<128x128xbf16>, vector<144x128xf32> -> vector<144x128xf32>
    %227 = arith.addf %222, %226 : vector<144x128xf32>
    %c296_218 = arith.constant 296 : index
    %c0_219 = arith.constant 0 : index
    %228 = vector.load %arg9[%c296_218, %c0_219] : memref<448x128xbf16, #tpu.memory_space<vmem>>, vector<144x128xbf16>
    %c7_220 = arith.constant 7 : index
    %c0_221 = arith.constant 0 : index
    %c0_222 = arith.constant 0 : index
    %229 = vector.load %arg5[%c7_220, %c0_221, %c0_222] : memref<9x128x128xbf16, #tpu.memory_space<vmem>>, vector<1x128x128xbf16>
    %230 = vector.shape_cast %229 : vector<1x128x128xbf16> to vector<128x128xbf16>
    %cst_223 = arith.constant dense<0.000000e+00> : vector<144x128xf32>
    %231 = tpu.matmul %228, %230, %cst_223 {dimension_numbers = #tpu.dot_dimension_numbers<[1], [0], [0], [1], [0, 0, 1, 1], [], []>} : vector<144x128xbf16>, vector<128x128xbf16>, vector<144x128xf32> -> vector<144x128xf32>
    %232 = arith.addf %227, %231 : vector<144x128xf32>
    %c297_224 = arith.constant 297 : index
    %c0_225 = arith.constant 0 : index
    %233 = vector.load %arg9[%c297_224, %c0_225] : memref<448x128xbf16, #tpu.memory_space<vmem>>, vector<144x128xbf16>
    %c8_226 = arith.constant 8 : index
    %c0_227 = arith.constant 0 : index
    %c0_228 = arith.constant 0 : index
    %234 = vector.load %arg5[%c8_226, %c0_227, %c0_228] : memref<9x128x128xbf16, #tpu.memory_space<vmem>>, vector<1x128x128xbf16>
    %235 = vector.shape_cast %234 : vector<1x128x128xbf16> to vector<128x128xbf16>
    %cst_229 = arith.constant dense<0.000000e+00> : vector<144x128xf32>
    %236 = tpu.matmul %233, %235, %cst_229 {dimension_numbers = #tpu.dot_dimension_numbers<[1], [0], [0], [1], [0, 0, 1, 1], [], []>} : vector<144x128xbf16>, vector<128x128xbf16>, vector<144x128xf32> -> vector<144x128xf32>
    %237 = arith.addf %232, %236 : vector<144x128xf32>
    %238 = vector.broadcast %11 : vector<1x128xf32> to vector<144x128xf32>
    %239 = arith.mulf %237, %238 : vector<144x128xf32>
    %240 = vector.broadcast %12 : vector<1x128xf32> to vector<144x128xf32>
    %241 = arith.addf %239, %240 : vector<144x128xf32>
    %cst_230 = arith.constant 0.000000e+00 : f32
    %242 = vector.broadcast %cst_230 : f32 to vector<144x128xf32>
    %243 = arith.maximumf %241, %242 : vector<144x128xf32>
    %244 = arith.truncf %243 : vector<144x128xf32> to vector<144x128xbf16>
    %c0_231 = arith.constant 0 : index
    %c240 = arith.constant 240 : index
    %c0_232 = arith.constant 0 : index
    %245 = vector.load %arg8[%c0_231, %c240, %c0_232] : memref<1x384x128xbf16, #tpu.memory_space<vmem>>, vector<1x144x128xbf16>
    %246 = vector.shape_cast %245 : vector<1x144x128xbf16> to vector<144x128xbf16>
    %247 = vector.shape_cast %244 : vector<144x128xbf16> to vector<1x144x128xbf16>
    tpu.vector_store %arg8[%c0_231, %c240, %c0_232], %247 {strides = array<i32>} : memref<1x384x128xbf16, #tpu.memory_space<vmem>>, vector<1x144x128xbf16>,
    return
  }
  func.func @transform_0(%arg0: i32) -> (i32, i32, i32) {
    %c0_i32 = arith.constant 0 : i32
    %c0_i32_0 = arith.constant 0 : i32
    %c0_i32_1 = arith.constant 0 : i32
    return %arg0, %c0_i32, %c0_i32_0 : i32, i32, i32
  }
  func.func @transform_1(%arg0: i32) -> (i32, i32, i32) {
    %c0_i32 = arith.constant 0 : i32
    %c0_i32_0 = arith.constant 0 : i32
    %c0_i32_1 = arith.constant 0 : i32
    %c0_i32_2 = arith.constant 0 : i32
    return %c0_i32, %c0_i32_0, %c0_i32_1 : i32, i32, i32
  }
  func.func @transform_2(%arg0: i32) -> (i32, i32) {
    %c0_i32 = arith.constant 0 : i32
    %c0_i32_0 = arith.constant 0 : i32
    %c0_i32_1 = arith.constant 0 : i32
    return %c0_i32, %c0_i32_0 : i32, i32
  }
  func.func @transform_3(%arg0: i32) -> (i32, i32) {
    %c0_i32 = arith.constant 0 : i32
    %c0_i32_0 = arith.constant 0 : i32
    %c0_i32_1 = arith.constant 0 : i32
    return %c0_i32, %c0_i32_0 : i32, i32
  }
  func.func @transform_4(%arg0: i32) -> (i32, i32, i32) {
    %c0_i32 = arith.constant 0 : i32
    %c0_i32_0 = arith.constant 0 : i32
    %c0_i32_1 = arith.constant 0 : i32
    %c0_i32_2 = arith.constant 0 : i32
    return %c0_i32, %c0_i32_0, %c0_i32_1 : i32, i32, i32
  }
  func.func @transform_5(%arg0: i32) -> (i32, i32) {
    %c0_i32 = arith.constant 0 : i32
    %c0_i32_0 = arith.constant 0 : i32
    %c0_i32_1 = arith.constant 0 : i32
    return %c0_i32, %c0_i32_0 : i32, i32
  }
  func.func @transform_6(%arg0: i32) -> (i32, i32) {
    %c0_i32 = arith.constant 0 : i32
    %c0_i32_0 = arith.constant 0 : i32
    %c0_i32_1 = arith.constant 0 : i32
    return %c0_i32, %c0_i32_0 : i32, i32
  }
  func.func @transform_7(%arg0: i32) -> (i32, i32, i32) {
    %c0_i32 = arith.constant 0 : i32
    %c0_i32_0 = arith.constant 0 : i32
    %c0_i32_1 = arith.constant 0 : i32
    return %arg0, %c0_i32, %c0_i32_0 : i32, i32, i32
  }
}

</mosaic_0001>

<llo_original>
// kernel: conv_block_forward.1
$region0: #{conv_block_forward.1}
  #allocation0 [shape = 'u32[]', space=smem, size = 0x4, offset = 0x4, fixed_abs, tag = 'smem constant byte address 0x4 - core index']
  #allocation1 [shape = 'u32[144,128]{1,0:T(1,128)}', space=vmem, size = 0x12000, scoped, tag = 'internal scratch']
  #allocation2 [shape = 'bf16[448,128]{1,0:T(16,128)(2,1)}', space=vmem, size = 0x1c000, scoped, tag = 'scratch operand']
  %s0 = inlined_call_operand.vmem [shape: bf16[2,448,128], index: 0, kind: input, shape index: {}]
  %s1 = inlined_call_operand.vmem [shape: bf16[9,128,128], index: 1, kind: input, shape index: {}]
  %s2 = inlined_call_operand.vmem [shape: f32[1,128], index: 2, kind: input, shape index: {}]
  %s3 = inlined_call_operand.vmem [shape: f32[1,128], index: 3, kind: input, shape index: {}]
  %s4 = inlined_call_operand.vmem [shape: bf16[9,128,128], index: 4, kind: input, shape index: {}]
  %s5 = inlined_call_operand.vmem [shape: f32[1,128], index: 5, kind: input, shape index: {}]
  %s6 = inlined_call_operand.vmem [shape: f32[1,128], index: 6, kind: input, shape index: {}]
  %s7 = inlined_call_operand.vmem [shape: bf16[2,384,128], index: 7, kind: output, shape index: {}]
  %s8 = sld [smem:[#allocation0]]
  $region61: #{conv_block_forward.1} parent=0
    _
  %s10 = ssub.s32 1, %s8
  %s11 = scalar_select 0, %s10, %s8
  loop: start=0, step=1, limit=4
  $region2: #{conv_block_forward.1} parent=0 // loop_pre_header
    _
  $region3: #{conv_block_forward.1} parent=0 // loop_header
    %s13 = sphi 0, %s17
    %p14 = scmp.ge.s32.totalorder %s13, 4
    %s23 = sphi 0, %s25
    %s26 = sphi 0, %s23
    %s27 = sphi 0, %s26
    %s43 = sphi 0, %s27
    %s47 = sphi 0, %s47
    %s49 = sphi 0, %s47
    %s50 = sphi 0, %s49
    %s64 = sphi 0, %s50
    %s68 = sphi 0, %s68
    %s70 = sphi 0, %s68
    %s71 = sphi 0, %s70
    %s85 = sphi 0, %s71
    %s89 = sphi 0, %s89
    %s91 = sphi 0, %s89
    %s92 = sphi 0, %s91
    %s106 = sphi 0, %s92
    %s110 = sphi 0, %s110
    %s112 = sphi 0, %s110
    %s113 = sphi 0, %s112
    %s127 = sphi 0, %s113
    %s131 = sphi 0, %s131
    %s133 = sphi 0, %s131
    %s134 = sphi 0, %s133
    %s148 = sphi 0, %s134
    %s152 = sphi 0, %s152
    %s154 = sphi 0, %s152
    %s155 = sphi 0, %s154
    %s169 = sphi 0, %s155
    %s175 = sphi 0, %s177
    %s178 = sphi 0, %s175
    %s179 = sphi 0, %s178
    %s195 = sphi 0, %s179
  $region4: #{conv_block_forward.1} parent=0 // loop_header_branch
    %16 = sbr.rel (%p14) target = $region8
  $region5: #{conv_block_forward.1} parent=0 // loop_body
    %s18 = ssub.s32 %s13, 1
    %s19 = ssub.s32 %s13, 2
    %s20 = sadd.s32 %s13, 1
    %s21 = ssub.s32 %s13, %s20
    %p22 = scmp.eq.s32.totalorder %s21, 0
    %s24 = sadd.s32 %s23, 1
    %s25 = scalar_select %p22, %s23, %s24
    %p28 = pneg %p22
    %p29 = scmp.eq.s32.totalorder %s13, 1
    %p30 = por %p28, %p29
    %p31 = scmp.ne.s32.totalorder %s23, %s26
    %p32 = scmp.eq.s32.totalorder %s13, 0
    %p33 = por %p31, %p32
    %p34 = scmp.ne.s32.totalorder %s23, %s26
    %p35 = scmp.eq.s32.totalorder %s18, 1
    %p36 = por %p34, %p35
    %p37 = scmp.ne.s32.totalorder %s26, %s27
    %p38 = scmp.eq.s32.totalorder %s18, 0
    %p39 = por %p37, %p38
    %p40 = scmp.ne.s32.totalorder %s26, %s27
    %p41 = scmp.eq.s32.totalorder %s19, 1
    %p42 = por %p40, %p41
    %p44 = scmp.ne.s32.totalorder %s27, %s43
    %p45 = scmp.eq.s32.totalorder %s19, 0
    %p46 = por %p44, %p45
    %s48 = sadd.s32 %s47, 1
    %p51 = scmp.eq.s32.totalorder %s13, 1
    %p52 = scmp.ne.s32.totalorder %s47, %s49
    %p53 = scmp.eq.s32.totalorder %s13, 0
    %p54 = por %p52, %p53
    %p55 = scmp.ne.s32.totalorder %s47, %s49
    %p56 = scmp.eq.s32.totalorder %s18, 1
    %p57 = por %p55, %p56
    %p58 = scmp.ne.s32.totalorder %s49, %s50
    %p59 = scmp.eq.s32.totalorder %s18, 0
    %p60 = por %p58, %p59
    %p61 = scmp.ne.s32.totalorder %s49, %s50
    %p62 = scmp.eq.s32.totalorder %s19, 1
    %p63 = por %p61, %p62
    %p65 = scmp.ne.s32.totalorder %s50, %s64
    %p66 = scmp.eq.s32.totalorder %s19, 0
    %p67 = por %p65, %p66
    %s69 = sadd.s32 %s68, 1
    %p72 = scmp.eq.s32.totalorder %s13, 1
    %p73 = scmp.ne.s32.totalorder %s68, %s70
    %p74 = scmp.eq.s32.totalorder %s13, 0
    %p75 = por %p73, %p74
    %p76 = scmp.ne.s32.totalorder %s68, %s70
    %p77 = scmp.eq.s32.totalorder %s18, 1
    %p78 = por %p76, %p77
    %p79 = scmp.ne.s32.totalorder %s70, %s71
    %p80 = scmp.eq.s32.totalorder %s18, 0
    %p81 = por %p79, %p80
    %p82 = scmp.ne.s32.totalorder %s70, %s71
    %p83 = scmp.eq.s32.totalorder %s19, 1
    %p84 = por %p82, %p83
    %p86 = scmp.ne.s32.totalorder %s71, %s85
    %p87 = scmp.eq.s32.totalorder %s19, 0
    %p88 = por %p86, %p87
    %s90 = sadd.s32 %s89, 1
    %p93 = scmp.eq.s32.totalorder %s13, 1
    %p94 = scmp.ne.s32.totalorder %s89, %s91
    %p95 = scmp.eq.s32.totalorder %s13, 0
    %p96 = por %p94, %p95
    %p97 = scmp.ne.s32.totalorder %s89, %s91
    %p98 = scmp.eq.s32.totalorder %s18, 1
    %p99 = por %p97, %p98
    %p100 = scmp.ne.s32.totalorder %s91, %s92
    %p101 = scmp.eq.s32.totalorder %s18, 0
    %p102 = por %p100, %p101
    %p103 = scmp.ne.s32.totalorder %s91, %s92
    %p104 = scmp.eq.s32.totalorder %s19, 1
    %p105 = por %p103, %p104
    %p107 = scmp.ne.s32.totalorder %s92, %s106
    %p108 = scmp.eq.s32.totalorder %s19, 0
    %p109 = por %p107, %p108
    %s111 = sadd.s32 %s110, 1
    %p114 = scmp.eq.s32.totalorder %s13, 1
    %p115 = scmp.ne.s32.totalorder %s110, %s112
    %p116 = scmp.eq.s32.totalorder %s13, 0
    %p117 = por %p115, %p116
    %p118 = scmp.ne.s32.totalorder %s110, %s112
    %p119 = scmp.eq.s32.totalorder %s18, 1
    %p120 = por %p118, %p119
    %p121 = scmp.ne.s32.totalorder %s112, %s113
    %p122 = scmp.eq.s32.totalorder %s18, 0
    %p123 = por %p121, %p122
    %p124 = scmp.ne.s32.totalorder %s112, %s113
    %p125 = scmp.eq.s32.totalorder %s19, 1
    %p126 = por %p124, %p125
    %p128 = scmp.ne.s32.totalorder %s113, %s127
    %p129 = scmp.eq.s32.totalorder %s19, 0
    %p130 = por %p128, %p129
    %s132 = sadd.s32 %s131, 1
    %p135 = scmp.eq.s32.totalorder %s13, 1
    %p136 = scmp.ne.s32.totalorder %s131, %s133
    %p137 = scmp.eq.s32.totalorder %s13, 0
    %p138 = por %p136, %p137
    %p139 = scmp.ne.s32.totalorder %s131, %s133
    %p140 = scmp.eq.s32.totalorder %s18, 1
    %p141 = por %p139, %p140
    %p142 = scmp.ne.s32.totalorder %s133, %s134
    %p143 = scmp.eq.s32.totalorder %s18, 0
    %p144 = por %p142, %p143
    %p145 = scmp.ne.s32.totalorder %s133, %s134
    %p146 = scmp.eq.s32.totalorder %s19, 1
    %p147 = por %p145, %p146
    %p149 = scmp.ne.s32.totalorder %s134, %s148
    %p150 = scmp.eq.s32.totalorder %s19, 0
    %p151 = por %p149, %p150
    %s153 = sadd.s32 %s152, 1
    %p156 = scmp.eq.s32.totalorder %s13, 1
    %p157 = scmp.ne.s32.totalorder %s152, %s154
    %p158 = scmp.eq.s32.totalorder %s13, 0
    %p159 = por %p157, %p158
    %p160 = scmp.ne.s32.totalorder %s152, %s154
    %p161 = scmp.eq.s32.totalorder %s18, 1
    %p162 = por %p160, %p161
    %p163 = scmp.ne.s32.totalorder %s154, %s155
    %p164 = scmp.eq.s32.totalorder %s18, 0
    %p165 = por %p163, %p164
    %p166 = scmp.ne.s32.totalorder %s154, %s155
    %p167 = scmp.eq.s32.totalorder %s19, 1
    %p168 = por %p166, %p167
    %p170 = scmp.ne.s32.totalorder %s155, %s169
    %p171 = scmp.eq.s32.totalorder %s19, 0
    %p172 = por %p170, %p171
    %s173 = ssub.s32 %s13, %s20
    %p174 = scmp.eq.s32.totalorder %s173, 0
    %s176 = sadd.s32 %s175, 1
    %s177 = scalar_select %p174, %s175, %s176
    %p180 = pneg %p174
    %p181 = scmp.eq.s32.totalorder %s13, 1
    %p182 = por %p180, %p181
    %p183 = scmp.ne.s32.totalorder %s175, %s178
    %p184 = scmp.eq.s32.totalorder %s13, 0
    %p185 = por %p183, %p184
    %p186 = scmp.ne.s32.totalorder %s175, %s178
    %p187 = scmp.eq.s32.totalorder %s18, 1
    %p188 = por %p186, %p187
    %p189 = scmp.ne.s32.totalorder %s178, %s179
    %p190 = scmp.eq.s32.totalorder %s18, 0
    %p191 = por %p189, %p190
    %p192 = scmp.ne.s32.totalorder %s178, %s179
    %p193 = scmp.eq.s32.totalorder %s19, 1
    %p194 = por %p192, %p193
    %p196 = scmp.ne.s32.totalorder %s179, %s195
    %p197 = scmp.eq.s32.totalorder %s19, 0
    %p198 = por %p196, %p197
    %p199 = scmp.le.s32.totalorder 1, %s13
    %p200 = scmp.lt.s32.totalorder %s13, 3
    %p201 = pnand %p199, %p200
    %p202 = pneg %p201
    // Predicated region
    $region9: #{conv_block_forward.1} parent=5 // pred_check
      _
    $region10: #{conv_block_forward.1} parent=5 // pred_check_branch
      %204 = sbr.rel (%p201) target = $region12
    $region11: #{conv_block_forward.1} parent=5 // pred_region
      %s205 = ssub.s32 %s13, 1
      // Predicated region
      $region13: #{conv_block_forward.1} parent=11 // pred_check
        %p206 = pneg %p60
      $region14: #{conv_block_forward.1} parent=11 // pred_check_branch
        %208 = sbr.rel (%p206) target = $region16
      $region15: #{conv_block_forward.1} parent=11 // pred_region
        _
      $region16: #{conv_block_forward.1} parent=11 // pred_fallthru
        _
      // Predicated region
      $region17: #{conv_block_forward.1} parent=11 // pred_check
        %p209 = pneg %p81
      $region18: #{conv_block_forward.1} parent=11 // pred_check_branch
        %211 = sbr.rel (%p209) target = $region20
      $region19: #{conv_block_forward.1} parent=11 // pred_region
        _
      $region20: #{conv_block_forward.1} parent=11 // pred_fallthru
        _
      // Predicated region
      $region21: #{conv_block_forward.1} parent=11 // pred_check
        %p212 = pneg %p102
      $region22: #{conv_block_forward.1} parent=11 // pred_check_branch
        %214 = sbr.rel (%p212) target = $region24
      $region23: #{conv_block_forward.1} parent=11 // pred_region
        _
      $region24: #{conv_block_forward.1} parent=11 // pred_fallthru
        _
      // Predicated region
      $region25: #{conv_block_forward.1} parent=11 // pred_check
        %p215 = pneg %p123
      $region26: #{conv_block_forward.1} parent=11 // pred_check_branch
        %217 = sbr.rel (%p215) target = $region28
      $region27: #{conv_block_forward.1} parent=11 // pred_region
        _
      $region28: #{conv_block_forward.1} parent=11 // pred_fallthru
        _
      // Predicated region
      $region29: #{conv_block_forward.1} parent=11 // pred_check
        %p218 = pneg %p144
      $region30: #{conv_block_forward.1} parent=11 // pred_check_branch
        %220 = sbr.rel (%p218) target = $region32
      $region31: #{conv_block_forward.1} parent=11 // pred_region
        _
      $region32: #{conv_block_forward.1} parent=11 // pred_fallthru
        _
      // Predicated region
      $region33: #{conv_block_forward.1} parent=11 // pred_check
        %p221 = pneg %p165
      $region34: #{conv_block_forward.1} parent=11 // pred_check_branch
        %223 = sbr.rel (%p221) target = $region36
      $region35: #{conv_block_forward.1} parent=11 // pred_region
        _
      $region36: #{conv_block_forward.1} parent=11 // pred_fallthru
        _
    $region12: #{conv_block_forward.1} parent=5 // pred_fallthru
      _
    %p224 = scmp.lt.s32.totalorder %s13, 2
    // Predicated region
    $region37: #{conv_block_forward.1} parent=5 // pred_check
      %p225 = pneg %p224
    $region38: #{conv_block_forward.1} parent=5 // pred_check_branch
      %227 = sbr.rel (%p225) target = $region40
    $region39: #{conv_block_forward.1} parent=5 // pred_region
      // Predicated region
      $region41: #{conv_block_forward.1} parent=39 // pred_check
        %p228 = pneg %p33
      $region42: #{conv_block_forward.1} parent=39 // pred_check_branch
        %230 = sbr.rel (%p228) target = $region44
      $region43: #{conv_block_forward.1} parent=39 // pred_region
        %p231 = scmp.lt.s32.totalorder %s13, 1
        %s232 = scalar_select %p231, %s13, 1
        %s233 = smul.addr %s232, 56
        %s234 = smul.addr %s233, 4
        %s235 = scalar_lea.vmem %s0, %s234
      $region44: #{conv_block_forward.1} parent=39 // pred_fallthru
        _
    $region40: #{conv_block_forward.1} parent=5 // pred_fallthru
      _
    %p236 = scmp.le.s32.totalorder 1, %s13
    %p237 = scmp.lt.s32.totalorder %s13, 3
    %p238 = pnand %p236, %p237
    %p239 = pneg %p238
    // Predicated region
    $region45: #{conv_block_forward.1} parent=5 // pred_check
      _
    $region46: #{conv_block_forward.1} parent=5 // pred_check_branch
      %241 = sbr.rel (%p238) target = $region48
    $region47: #{conv_block_forward.1} parent=5 // pred_region
      %s242 = ssub.s32 %s13, 1
      %p243 = scmp.lt.s32.totalorder %s18, 1
      %s244 = scalar_select %p243, %s18, 1
      %s245 = smul.addr %s244, 56
      %s246 = smul.addr %s245, 4
      %s247 = scalar_lea.vmem %s0, %s246
      %p248 = pneg %p39
      %p249 = pneg %p36
      %p250 = pneg %p60
      %p251 = pneg %p57
      %p252 = pneg %p81
      %p253 = pneg %p78
      %p254 = pneg %p102
      %p255 = pneg %p99
      %p256 = pneg %p123
      %p257 = pneg %p120
      %p258 = pneg %p144
      %p259 = pneg %p141
      %p260 = pneg %p165
      %p261 = pneg %p162
      %p262 = pneg %p191
      %p263 = pneg %p188
      %p264 = scmp.lt.s32.totalorder %s18, 1
      %s265 = scalar_select %p264, %s18, 1
      %s266 = smul.addr %s265, 48
      %s267 = smul.addr %s266, 4
      %s268 = scalar_lea.vmem %s7, %s267
      %p269 = scmp.lt.s32.totalorder %s18, 1
      %s270 = scalar_select %p269, %s18, 1
      %s271 = smul.addr %s270, 56
      %s272 = smul.addr %s271, 4
      %s273 = scalar_lea.vmem %s0, %s272
      %p274 = scmp.lt.s32.totalorder %s18, 1
      %s275 = scalar_select %p274, %s18, 1
      %s276 = smul.addr %s275, 48
      %s277 = smul.addr %s276, 4
      %s278 = scalar_lea.vmem %s7, %s277
      %280 = vst [vmem:[#allocation2] sm:$0xff] 0
      %281 = vst [vmem:[#allocation2 + $0x8] sm:$0xff] 0
      %282 = vst [vmem:[#allocation2 + $0xd0] sm:$0xff] 0
      %283 = vst [vmem:[#allocation2 + $0xd8] sm:$0xff] 0
      %v284 = vlaneseq
      %v285 = vshrl.u32 %v284, 7
      %v286 = vadd.s32 %v285, 8
      %v287 = vadd.s32 %v285, 16
      %vm288 = vcmp.lt.s32.totalorder %v285, 16
      %vm289 = vcmp.lt.s32.totalorder %v286, 16
      %vm290 = vcmp.lt.s32.totalorder %v287, 16
      %v291 = vsel %vm288, 1, 0
      %v292 = vsel %vm289, 1, 0
      %v293 = vsel %vm290, 1, 0
      %v294 = vcvt.s32.f32 %v291
      %v295 = vcvt.s32.f32 %v292
      %v296 = vcvt.s32.f32 %v293
      %v297 = vld [vmem:[%s2] sm:$0x1]
      %v298 = vld [vmem:[%s3] sm:$0x1]
      %v299 = vld [vmem:[%s5] sm:$0x1]
      %v300 = vld [vmem:[%s6] sm:$0x1]
      %v301 = vld [vmem:[%s273] sm:$0x8]
      %v302 = vld [vmem:[%s273 + $0x4] sm:$0xf]
      %v303 = vld [vmem:[%s273 + $0x8] sm:$0xf]
      %v304 = vld [vmem:[%s273 + $0xc] sm:$0xf]
      %v305 = vld [vmem:[%s273 + $0x10] sm:$0xf]
      %v306 = vld [vmem:[%s273 + $0x14] sm:$0xf]
      %v307 = vld [vmem:[%s273 + $0x18] sm:$0xf]
      %v308 = vld [vmem:[%s273 + $0x1c] sm:$0xf]
      %v309 = vld [vmem:[%s273 + $0x20] sm:$0xf]
      %v310 = vld [vmem:[%s273 + $0x24] sm:$0xf]
      %v311 = vld [vmem:[%s273 + $0x28] sm:$0xf]
      %v312 = vld [vmem:[%s273 + $0x2c] sm:$0xf]
      %v313 = vld [vmem:[%s273 + $0x30] sm:$0xf]
      %v314 = vld [vmem:[%s273 + $0x34] sm:$0xf]
      %v315 = vld [vmem:[%s273 + $0x38] sm:$0xf]
      %v316 = vld [vmem:[%s273 + $0x3c] sm:$0xf]
      %v317 = vld [vmem:[%s273 + $0x40] sm:$0xf]
      %v318 = vld [vmem:[%s273 + $0x44] sm:$0xf]
      %v319 = vld [vmem:[%s273 + $0x48] sm:$0xf]
      %v320 = vld [vmem:[%s273 + $0x4c] sm:$0xf]
      %v321 = vld [vmem:[%s273 + $0x50] sm:$0xf]
      %v322 = vld [vmem:[%s273 + $0x54] sm:$0xf]
      %v323 = vld [vmem:[%s273 + $0x58] sm:$0xf]
      %v324 = vld [vmem:[%s273 + $0x5c] sm:$0xf]
      %v325 = vld [vmem:[%s273 + $0x60] sm:$0xf]
      %v326 = vld [vmem:[%s273 + $0x64] sm:$0xf]
      %v327 = vld [vmem:[%s273 + $0x68] sm:$0xf]
      %v328 = vld [vmem:[%s273 + $0x6c] sm:$0xf]
      %v329 = vld [vmem:[%s273 + $0x70] sm:$0xf]
      %v330 = vld [vmem:[%s273 + $0x74] sm:$0xf]
      %v331 = vld [vmem:[%s273 + $0x78] sm:$0xf]
      %v332 = vld [vmem:[%s1] sm:$0xf]
      %v333 = vld [vmem:[%s1 + $0x4] sm:$0xf]
      %v334 = vld [vmem:[%s1 + $0x8] sm:$0xf]
      %v335 = vld [vmem:[%s1 + $0xc] sm:$0xf]
      %v336 = vld [vmem:[%s1 + $0x10] sm:$0xf]
      %v337 = vld [vmem:[%s1 + $0x14] sm:$0xf]
      %v338 = vld [vmem:[%s1 + $0x18] sm:$0xf]
      %v339 = vld [vmem:[%s1 + $0x1c] sm:$0xf]
      %v340 = vld [vmem:[%s1 + $0x20] sm:$0xf]
      %v341 = vld [vmem:[%s1 + $0x24] sm:$0xf]
      %v342 = vld [vmem:[%s1 + $0x28] sm:$0xf]
      %v343 = vld [vmem:[%s1 + $0x2c] sm:$0xf]
      %v344 = vld [vmem:[%s1 + $0x30] sm:$0xf]
      %v345 = vld [vmem:[%s1 + $0x34] sm:$0xf]
      %v346 = vld [vmem:[%s1 + $0x38] sm:$0xf]
      %v347 = vld [vmem:[%s1 + $0x3c] sm:$0xf]
      %s348 = scalar_lea.vmem %s1, 64
      %v349 = vld [vmem:[%s348] sm:$0xf]
      %v350 = vld [vmem:[%s348 + $0x4] sm:$0xf]
      %v351 = vld [vmem:[%s348 + $0x8] sm:$0xf]
      %v352 = vld [vmem:[%s348 + $0xc] sm:$0xf]
      %v353 = vld [vmem:[%s348 + $0x10] sm:$0xf]
      %v354 = vld [vmem:[%s348 + $0x14] sm:$0xf]
      %v355 = vld [vmem:[%s348 + $0x18] sm:$0xf]
      %v356 = vld [vmem:[%s348 + $0x1c] sm:$0xf]
      %v357 = vld [vmem:[%s348 + $0x20] sm:$0xf]
      %v358 = vld [vmem:[%s348 + $0x24] sm:$0xf]
      %v359 = vld [vmem:[%s348 + $0x28] sm:$0xf]
      %v360 = vld [vmem:[%s348 + $0x2c] sm:$0xf]
      %v361 = vld [vmem:[%s348 + $0x30] sm:$0xf]
      %v362 = vld [vmem:[%s348 + $0x34] sm:$0xf]
      %v363 = vld [vmem:[%s348 + $0x38] sm:$0xf]
      %v364 = vld [vmem:[%s348 + $0x3c] sm:$0xf]
      %v395 = vunpack.c.l.b16 %v302
      %v396 = vunpack.c.l.b16 %v303
      %v397 = vunpack.c.l.b16 %v304
      %v398 = vunpack.c.l.b16 %v305
      %v399 = vunpack.c.l.b16 %v306
      %v400 = vunpack.c.l.b16 %v307
      %v401 = vunpack.c.l.b16 %v308
      %v402 = vunpack.c.l.b16 %v309
      %v403 = vunpack.c.l.b16 %v310
      %v404 = vunpack.c.l.b16 %v311
      %v405 = vunpack.c.l.b16 %v312
      %v406 = vunpack.c.l.b16 %v313
      %v407 = vunpack.c.l.b16 %v314
      %v408 = vunpack.c.l.b16 %v315
      %v409 = vunpack.c.l.b16 %v316
      %v410 = vunpack.c.l.b16 %v317
      %v411 = vunpack.c.l.b16 %v318
      %v412 = vunpack.c.l.b16 %v319
      %v413 = vunpack.c.l.b16 %v320
      %v414 = vunpack.c.l.b16 %v321
      %v415 = vunpack.c.l.b16 %v322
      %v416 = vunpack.c.l.b16 %v323
      %v417 = vunpack.c.l.b16 %v324
      %v418 = vunpack.c.l.b16 %v325
      %v419 = vunpack.c.l.b16 %v326
      %v420 = vunpack.c.l.b16 %v327
      %v421 = vunpack.c.l.b16 %v328
      %v422 = vunpack.c.l.b16 %v329
      %v423 = vunpack.c.l.b16 %v330
      %v424 = vunpack.c.l.b16 %v331
      %v425 = vpack.c.b16 %v396, %v395
      %v426 = vpack.c.b16 %v398, %v397
      %v427 = vpack.c.b16 %v400, %v399
      %v428 = vpack.c.b16 %v402, %v401
      %v429 = vpack.c.b16 %v404, %v403
      %v430 = vpack.c.b16 %v406, %v405
      %v431 = vpack.c.b16 %v408, %v407
      %v432 = vpack.c.b16 %v410, %v409
      %v433 = vpack.c.b16 %v412, %v411
      %v434 = vpack.c.b16 %v414, %v413
      %v435 = vpack.c.b16 %v416, %v415
      %v436 = vpack.c.b16 %v418, %v417
      %v437 = vpack.c.b16 %v420, %v419
      %v438 = vpack.c.b16 %v422, %v421
      %v439 = vpack.c.b16 %v424, %v423
      %v471 = vunpack.c.l.b16 %v349
      %v472 = vunpack.c.l.b16 %v350
      %v473 = vunpack.c.l.b16 %v351
      %v474 = vunpack.c.l.b16 %v352
      %v475 = vunpack.c.l.b16 %v353
      %v476 = vunpack.c.l.b16 %v354
      %v477 = vunpack.c.l.b16 %v355
      %v478 = vunpack.c.l.b16 %v356
      %v479 = vunpack.c.l.b16 %v357
      %v480 = vunpack.c.l.b16 %v358
      %v481 = vunpack.c.l.b16 %v359
      %v482 = vunpack.c.l.b16 %v360
      %v483 = vunpack.c.l.b16 %v361
      %v484 = vunpack.c.l.b16 %v362
      %v485 = vunpack.c.l.b16 %v363
      %v486 = vunpack.c.l.b16 %v364
      %v487 = vpack.c.b16 %v472, %v471
      %v488 = vpack.c.b16 %v474, %v473
      %v489 = vpack.c.b16 %v476, %v475
      %v490 = vpack.c.b16 %v478, %v477
      %v491 = vpack.c.b16 %v480, %v479
      %v492 = vpack.c.b16 %v482, %v481
      %v493 = vpack.c.b16 %v484, %v483
      %v494 = vpack.c.b16 %v486, %v485
      %503 = vmatprep.subr.bf16.mxu0 0
      %504 = vmatpush1.bf16.msra.mxu0 %v487
      %505 = vmatprep.subr.bf16.mxu0 0
      %506 = vmatpush1.bf16.msra.mxu0 %v488
      %507 = vmatprep.subr.bf16.mxu0 0
      %508 = vmatpush1.bf16.msra.mxu0 %v489
      %509 = vmatprep.subr.bf16.mxu0 0
      %510 = vmatpush1.bf16.msra.mxu0 %v490
      %511 = vmatprep.subr.bf16.mxu0 0
      %512 = vmatpush1.bf16.msra.mxu0 %v491
      %513 = vmatprep.subr.bf16.mxu0 0
      %514 = vmatpush1.bf16.msra.mxu0 %v492
      %515 = vmatprep.subr.bf16.mxu0 0
      %516 = vmatpush1.bf16.msra.mxu0 %v493
      %517 = vmatprep.subr.bf16.mxu0 0
      %518 = vmatpush1.bf16.msra.mxu0 %v494
      %519 = vmatprep.subr.bf16.mxu0 0
      %520 = vmatpush1.bf16.msra.mxu0 0
      %521 = vmatprep.subr.bf16.mxu0 0
      %522 = vmatpush1.bf16.msra.mxu0 0
      %523 = vmatprep.subr.bf16.mxu0 0
      %524 = vmatpush1.bf16.msra.mxu0 0
      %525 = vmatprep.subr.bf16.mxu0 0
      %526 = vmatpush1.bf16.msra.mxu0 0
      %527 = vmatprep.subr.bf16.mxu0 0
      %528 = vmatpush1.bf16.msra.mxu0 0
      %529 = vmatprep.subr.bf16.mxu0 0
      %530 = vmatpush1.bf16.msra.mxu0 0
      %531 = vmatprep.subr.bf16.mxu0 0
      %532 = vmatpush1.bf16.msra.mxu0 0
      %533 = vmatprep.subr.bf16.mxu0 0
      %534 = vmatpush1.bf16.msra.mxu0 0
      %535 = vmatprep.mubr.bf16.mxu0 0
      %536 = vmatmul.mubr.bf16.gmra.mrb[0].mxu0 %v425
      %v537 = vpop.f32.mrb[0].mxu0
      %v538 = vadd.f32 0.0, %v537
      %v539 = vpop.f32.mrb[0].mxu0
      %v540 = vpop.f32.mrb[0].mxu0
      %v541 = vadd.f32 0.0, %v540
      %v542 = vpop.f32.mrb[0].mxu0
      %543 = vmatprep.mubr.bf16.mxu0 0
      %544 = vmatmul.mubr.bf16.gmra.mrb[0].mxu0 %v426
      %v545 = vpop.f32.mrb[0].mxu0
      %v546 = vadd.f32 0.0, %v545
      %v547 = vpop.f32.mrb[0].mxu0
      %v548 = vpop.f32.mrb[0].mxu0
      %v549 = vadd.f32 0.0, %v548
      %v550 = vpop.f32.mrb[0].mxu0
      %551 = vmatprep.mubr.bf16.mxu0 0
      %552 = vmatmul.mubr.bf16.gmra.mrb[0].mxu0 %v427
      %v553 = vpop.f32.mrb[0].mxu0
      %v554 = vadd.f32 0.0, %v553
      %v555 = vpop.f32.mrb[0].mxu0
      %v556 = vpop.f32.mrb[0].mxu0
      %v557 = vadd.f32 0.0, %v556
      %v558 = vpop.f32.mrb[0].mxu0
      %559 = vmatprep.mubr.bf16.mxu0 0
      %560 = vmatmul.mubr.bf16.gmra.mrb[0].mxu0 %v428
      %v561 = vpop.f32.mrb[0].mxu0
      %v562 = vadd.f32 0.0, %v561
      %v563 = vpop.f32.mrb[0].mxu0
      %v564 = vpop.f32.mrb[0].mxu0
      %v565 = vadd.f32 0.0, %v564
      %v566 = vpop.f32.mrb[0].mxu0
      %567 = vmatprep.mubr.bf16.mxu0 0
      %568 = vmatmul.mubr.bf16.gmra.mrb[0].mxu0 %v429
      %v569 = vpop.f32.mrb[0].mxu0
      %v570 = vadd.f32 0.0, %v569
      %v571 = vpop.f32.mrb[0].mxu0
      %v572 = vpop.f32.mrb[0].mxu0
      %v573 = vadd.f32 0.0, %v572
      %v574 = vpop.f32.mrb[0].mxu0
      %575 = vmatprep.mubr.bf16.mxu0 0
      %576 = vmatmul.mubr.bf16.gmra.mrb[0].mxu0 %v430
      %v577 = vpop.f32.mrb[0].mxu0
      %v578 = vadd.f32 0.0, %v577
      %v579 = vpop.f32.mrb[0].mxu0
      %v580 = vpop.f32.mrb[0].mxu0
      %v581 = vadd.f32 0.0, %v580
      %v582 = vpop.f32.mrb[0].mxu0
      %583 = vmatprep.mubr.bf16.mxu0 0
      %584 = vmatmul.mubr.bf16.gmra.mrb[0].mxu0 %v431
      %v585 = vpop.f32.mrb[0].mxu0
      %v586 = vadd.f32 0.0, %v585
      %v587 = vpop.f32.mrb[0].mxu0
      %v588 = vpop.f32.mrb[0].mxu0
      %v589 = vadd.f32 0.0, %v588
      %v590 = vpop.f32.mrb[0].mxu0
      %591 = vmatprep.mubr.bf16.mxu0 0
      %592 = vmatmul.mubr.bf16.gmra.mrb[0].mxu0 %v432
      %v593 = vpop.f32.mrb[0].mxu0
      %v594 = vadd.f32 0.0, %v593
      %v595 = vpop.f32.mrb[0].mxu0
      %v596 = vpop.f32.mrb[0].mxu0
      %v597 = vadd.f32 0.0, %v596
      %v598 = vpop.f32.mrb[0].mxu0
      %599 = vmatprep.mubr.bf16.mxu0 0
      %600 = vmatmul.mubr.bf16.gmra.mrb[0].mxu0 %v433
      %v601 = vpop.f32.mrb[0].mxu0
      %v602 = vadd.f32 0.0, %v601
      %v603 = vpop.f32.mrb[0].mxu0
      %v604 = vpop.f32.mrb[0].mxu0
      %v605 = vadd.f32 0.0, %v604
      %v606 = vpop.f32.mrb[0].mxu0
      %607 = vmatprep.mubr.bf16.mxu0 0
      %608 = vmatmul.mubr.bf16.gmra.mrb[0].mxu0 %v434
      %v609 = vpop.f32.mrb[0].mxu0
      %v610 = vadd.f32 0.0, %v609
      %v611 = vpop.f32.mrb[0].mxu0
      %v612 = vpop.f32.mrb[0].mxu0
      %v613 = vadd.f32 0.0, %v612
      %v614 = vpop.f32.mrb[0].mxu0
      %615 = vmatprep.mubr.bf16.mxu0 0
      %616 = vmatmul.mubr.bf16.gmra.mrb[0].mxu0 %v435
      %v617 = vpop.f32.mrb[0].mxu0
      %v618 = vadd.f32 0.0, %v617
      %v619 = vpop.f32.mrb[0].mxu0
      %v620 = vpop.f32.mrb[0].mxu0
      %v621 = vadd.f32 0.0, %v620
      %v622 = vpop.f32.mrb[0].mxu0
      %623 = vmatprep.mubr.bf16.mxu0 0
      %624 = vmatmul.mubr.bf16.gmra.mrb[0].mxu0 %v436
      %v625 = vpop.f32.mrb[0].mxu0
      %v626 = vadd.f32 0.0, %v625
      %v627 = vpop.f32.mrb[0].mxu0
      %v628 = vpop.f32.mrb[0].mxu0
      %v629 = vadd.f32 0.0, %v628
      %v630 = vpop.f32.mrb[0].mxu0
      %631 = vmatprep.mubr.bf16.mxu0 0
      %632 = vmatmul.mubr.bf16.gmra.mrb[0].mxu0 %v437
      %v633 = vpop.f32.mrb[0].mxu0
      %v634 = vadd.f32 0.0, %v633
      %v635 = vpop.f32.mrb[0].mxu0
      %v636 = vpop.f32.mrb[0].mxu0
      %v637 = vadd.f32 0.0, %v636
      %v638 = vpop.f32.mrb[0].mxu0
      %639 = vmatprep.mubr.bf16.mxu0 0
      %640 = vmatmul.mubr.bf16.gmra.mrb[0].mxu0 %v438
      %v641 = vpop.f32.mrb[0].mxu0
      %v642 = vadd.f32 0.0, %v641
      %v643 = vpop.f32.mrb[0].mxu0
      %v644 = vpop.f32.mrb[0].mxu0
      %v645 = vadd.f32 0.0, %v644
      %v646 = vpop.f32.mrb[0].mxu0
      %647 = vmatprep.mubr.bf16.mxu0 0
      %648 = vmatmul.mubr.bf16.gmra.mrb[0].mxu0 %v439
      %v649 = vpop.f32.mrb[0].mxu0
      %v650 = vadd.f32 0.0, %v649
      %v651 = vpop.f32.mrb[0].mxu0
      %v652 = vpop.f32.mrb[0].mxu0
      %v653 = vadd.f32 0.0, %v652
      %v654 = vpop.f32.mrb[0].mxu0
      %655 = vdwg.mxu0
      %v657 = vunpack.c.l.b16 %v301
      %v658 = vpack.c.b16 %v395, %v657
      %v659 = vpack.c.b16 %v397, %v396
      %v660 = vpack.c.b16 %v399, %v398
      %v661 = vpack.c.b16 %v401, %v400
      %v662 = vpack.c.b16 %v403, %v402
      %v663 = vpack.c.b16 %v405, %v404
      %v664 = vpack.c.b16 %v407, %v406
      %v665 = vpack.c.b16 %v409, %v408
      %v666 = vpack.c.b16 %v411, %v410
      %v667 = vpack.c.b16 %v413, %v412
      %v668 = vpack.c.b16 %v415, %v414
      %v669 = vpack.c.b16 %v417, %v416
      %v670 = vpack.c.b16 %v419, %v418
      %v671 = vpack.c.b16 %v421, %v420
      %v672 = vpack.c.b16 %v423, %v422
      %v673 = vpack.c.b16 %v424, %v424
      %vm674 = vsmask.f32 4352
      %v676 = vshrl.u32 %v658, 16
      %v678 = vrot.slane %v676, 3
      %v679 = vshll.u32 %v658, 16
      %v681 = vrot.slane %v679, 4
      %v682 = vor.u32 %v678, %v681
      %v684 = vshrl.u32 %v659, 16
      %v686 = vrot.slane %v684, 3
      %v687 = vshll.u32 %v659, 16
      %v689 = vrot.slane %v687, 4
      %v690 = vor.u32 %v686, %v689
      %v691 = vsel %vm674, %v682, %v690
      %v693 = vshrl.u32 %v660, 16
      %v695 = vrot.slane %v693, 3
      %v696 = vshll.u32 %v660, 16
      %v698 = vrot.slane %v696, 4
      %v699 = vor.u32 %v695, %v698
      %v700 = vsel %vm674, %v690, %v699
      %v702 = vshrl.u32 %v661, 16
      %v704 = vrot.slane %v702, 3
      %v705 = vshll.u32 %v661, 16
      %v707 = vrot.slane %v705, 4
      %v708 = vor.u32 %v704, %v707
      %v709 = vsel %vm674, %v699, %v708
      %v711 = vshrl.u32 %v662, 16
      %v713 = vrot.slane %v711, 3
      %v714 = vshll.u32 %v662, 16
      %v716 = vrot.slane %v714, 4
      %v717 = vor.u32 %v713, %v716
      %v718 = vsel %vm674, %v708, %v717
      %v720 = vshrl.u32 %v663, 16
      %v722 = vrot.slane %v720, 3
      %v723 = vshll.u32 %v663, 16
      %v725 = vrot.slane %v723, 4
      %v726 = vor.u32 %v722, %v725
      %v727 = vsel %vm674, %v717, %v726
      %v729 = vshrl.u32 %v664, 16
      %v731 = vrot.slane %v729, 3
      %v732 = vshll.u32 %v664, 16
      %v734 = vrot.slane %v732, 4
      %v735 = vor.u32 %v731, %v734
      %v736 = vsel %vm674, %v726, %v735
      %v738 = vshrl.u32 %v665, 16
      %v740 = vrot.slane %v738, 3
      %v741 = vshll.u32 %v665, 16
      %v743 = vrot.slane %v741, 4
      %v744 = vor.u32 %v740, %v743
      %v745 = vsel %vm674, %v735, %v744
      %v747 = vshrl.u32 %v666, 16
      %v749 = vrot.slane %v747, 3
      %v750 = vshll.u32 %v666, 16
      %v752 = vrot.slane %v750, 4
      %v753 = vor.u32 %v749, %v752
      %v754 = vsel %vm674, %v744, %v753
      %v756 = vshrl.u32 %v667, 16
      %v758 = vrot.slane %v756, 3
      %v759 = vshll.u32 %v667, 16
      %v761 = vrot.slane %v759, 4
      %v762 = vor.u32 %v758, %v761
      %v763 = vsel %vm674, %v753, %v762
      %v765 = vshrl.u32 %v668, 16
      %v767 = vrot.slane %v765, 3
      %v768 = vshll.u32 %v668, 16
      %v770 = vrot.slane %v768, 4
      %v771 = vor.u32 %v767, %v770
      %v772 = vsel %vm674, %v762, %v771
      %v774 = vshrl.u32 %v669, 16
      %v776 = vrot.slane %v774, 3
      %v777 = vshll.u32 %v669, 16
      %v779 = vrot.slane %v777, 4
      %v780 = vor.u32 %v776, %v779
      %v781 = vsel %vm674, %v771, %v780
      %v783 = vshrl.u32 %v670, 16
      %v785 = vrot.slane %v783, 3
      %v786 = vshll.u32 %v670, 16
      %v788 = vrot.slane %v786, 4
      %v789 = vor.u32 %v785, %v788
      %v790 = vsel %vm674, %v780, %v789
      %v792 = vshrl.u32 %v671, 16
      %v794 = vrot.slane %v792, 3
      %v795 = vshll.u32 %v671, 16
      %v797 = vrot.slane %v795, 4
      %v798 = vor.u32 %v794, %v797
      %v799 = vsel %vm674, %v789, %v798
      %v801 = vshrl.u32 %v672, 16
      %v803 = vrot.slane %v801, 3
      %v804 = vshll.u32 %v672, 16
      %v806 = vrot.slane %v804, 4
      %v807 = vor.u32 %v803, %v806
      %v808 = vsel %vm674, %v798, %v807
      %v810 = vshrl.u32 %v673, 16
      %v812 = vrot.slane %v810, 3
      %v813 = vshll.u32 %v673, 16
      %v815 = vrot.slane %v813, 4
      %v816 = vor.u32 %v812, %v815
      %v817 = vsel %vm674, %v807, %v816
      %v849 = vunpack.c.l.b16 %v332
      %v850 = vunpack.c.l.b16 %v333
      %v851 = vunpack.c.l.b16 %v334
      %v852 = vunpack.c.l.b16 %v335
      %v853 = vunpack.c.l.b16 %v336
      %v854 = vunpack.c.l.b16 %v337
      %v855 = vunpack.c.l.b16 %v338
      %v856 = vunpack.c.l.b16 %v339
      %v857 = vunpack.c.l.b16 %v340
      %v858 = vunpack.c.l.b16 %v341
      %v859 = vunpack.c.l.b16 %v342
      %v860 = vunpack.c.l.b16 %v343
      %v861 = vunpack.c.l.b16 %v344
      %v862 = vunpack.c.l.b16 %v345
      %v863 = vunpack.c.l.b16 %v346
      %v864 = vunpack.c.l.b16 %v347
      %v865 = vpack.c.b16 %v850, %v849
      %v866 = vpack.c.b16 %v852, %v851
      %v867 = vpack.c.b16 %v854, %v853
      %v868 = vpack.c.b16 %v856, %v855
      %v869 = vpack.c.b16 %v858, %v857
      %v870 = vpack.c.b16 %v860, %v859
      %v871 = vpack.c.b16 %v862, %v861
      %v872 = vpack.c.b16 %v864, %v863
      %881 = vmatprep.subr.bf16.mxu0 0
      %882 = vmatpush1.bf16.msra.mxu0 %v865
      %883 = vmatprep.subr.bf16.mxu0 0
      %884 = vmatpush1.bf16.msra.mxu0 %v866
      %885 = vmatprep.subr.bf16.mxu0 0
      %886 = vmatpush1.bf16.msra.mxu0 %v867
      %887 = vmatprep.subr.bf16.mxu0 0
      %888 = vmatpush1.bf16.msra.mxu0 %v868
      %889 = vmatprep.subr.bf16.mxu0 0
      %890 = vmatpush1.bf16.msra.mxu0 %v869
      %891 = vmatprep.subr.bf16.mxu0 0
      %892 = vmatpush1.bf16.msra.mxu0 %v870
      %893 = vmatprep.subr.bf16.mxu0 0
      %894 = vmatpush1.bf16.msra.mxu0 %v871
      %895 = vmatprep.subr.bf16.mxu0 0
      %896 = vmatpush1.bf16.msra.mxu0 %v872
      %897 = vmatprep.subr.bf16.mxu0 0
      %898 = vmatpush1.bf16.msra.mxu0 0
      %899 = vmatprep.subr.bf16.mxu0 0
      %900 = vmatpush1.bf16.msra.mxu0 0
      %901 = vmatprep.subr.bf16.mxu0 0
      %902 = vmatpush1.bf16.msra.mxu0 0
      %903 = vmatprep.subr.bf16.mxu0 0
      %904 = vmatpush1.bf16.msra.mxu0 0
      %905 = vmatprep.subr.bf16.mxu0 0
      %906 = vmatpush1.bf16.msra.mxu0 0
      %907 = vmatprep.subr.bf16.mxu0 0
      %908 = vmatpush1.bf16.msra.mxu0 0
      %909 = vmatprep.subr.bf16.mxu0 0
      %910 = vmatpush1.bf16.msra.mxu0 0
      %911 = vmatprep.subr.bf16.mxu0 0
      %912 = vmatpush1.bf16.msra.mxu0 0
      %913 = vmatprep.mubr.bf16.mxu0 0
      %914 = vmatmul.mubr.bf16.gmra.mrb[0].mxu0 %v691
      %v915 = vpop.f32.mrb[0].mxu0
      %v916 = vadd.f32 %v538, %v915
      %v917 = vpop.f32.mrb[0].mxu0
      %v918 = vpop.f32.mrb[0].mxu0
      %v919 = vadd.f32 %v541, %v918
      %v920 = vpop.f32.mrb[0].mxu0
      %921 = vmatprep.mubr.bf16.mxu0 0
      %922 = vmatmul.mubr.bf16.gmra.mrb[0].mxu0 %v700
      %v923 = vpop.f32.mrb[0].mxu0
      %v924 = vadd.f32 %v546, %v923
      %v925 = vpop.f32.mrb[0].mxu0
      %v926 = vpop.f32.mrb[0].mxu0
      %v927 = vadd.f32 %v549, %v926
      %v928 = vpop.f32.mrb[0].mxu0
      %929 = vmatprep.mubr.bf16.mxu0 0
      %930 = vmatmul.mubr.bf16.gmra.mrb[0].mxu0 %v709
      %v931 = vpop.f32.mrb[0].mxu0
      %v932 = vadd.f32 %v554, %v931
      %v933 = vpop.f32.mrb[0].mxu0
      %v934 = vpop.f32.mrb[0].mxu0
      %v935 = vadd.f32 %v557, %v934
      %v936 = vpop.f32.mrb[0].mxu0
      %937 = vmatprep.mubr.bf16.mxu0 0
      %938 = vmatmul.mubr.bf16.gmra.mrb[0].mxu0 %v718
      %v939 = vpop.f32.mrb[0].mxu0
      %v940 = vadd.f32 %v562, %v939
      %v941 = vpop.f32.mrb[0].mxu0
      %v942 = vpop.f32.mrb[0].mxu0
      %v943 = vadd.f32 %v565, %v942
      %v944 = vpop.f32.mrb[0].mxu0
      %945 = vmatprep.mubr.bf16.mxu0 0
      %946 = vmatmul.mubr.bf16.gmra.mrb[0].mxu0 %v727
      %v947 = vpop.f32.mrb[0].mxu0
      %v948 = vadd.f32 %v570, %v947
      %v949 = vpop.f32.mrb[0].mxu0
      %v950 = vpop.f32.mrb[0].mxu0
      %v951 = vadd.f32 %v573, %v950
      %v952 = vpop.f32.mrb[0].mxu0
      %953 = vmatprep.mubr.bf16.mxu0 0
      %954 = vmatmul.mubr.bf16.gmra.mrb[0].mxu0 %v736
      %v955 = vpop.f32.mrb[0].mxu0
      %v956 = vadd.f32 %v578, %v955
      %v957 = vpop.f32.mrb[0].mxu0
      %v958 = vpop.f32.mrb[0].mxu0
      %v959 = vadd.f32 %v581, %v958
      %v960 = vpop.f32.mrb[0].mxu0
      %961 = vmatprep.mubr.bf16.mxu0 0
      %962 = vmatmul.mubr.bf16.gmra.mrb[0].mxu0 %v745
      %v963 = vpop.f32.mrb[0].mxu0
      %v964 = vadd.f32 %v586, %v963
      %v965 = vpop.f32.mrb[0].mxu0
      %v966 = vpop.f32.mrb[0].mxu0
      %v967 = vadd.f32 %v589, %v966
      %v968 = vpop.f32.mrb[0].mxu0
      %969 = vmatprep.mubr.bf16.mxu0 0
      %970 = vmatmul.mubr.bf16.gmra.mrb[0].mxu0 %v754
      %v971 = vpop.f32.mrb[0].mxu0
      %v972 = vadd.f32 %v594, %v971
      %v973 = vpop.f32.mrb[0].mxu0
      %v974 = vpop.f32.mrb[0].mxu0
      %v975 = vadd.f32 %v597, %v974
      %v976 = vpop.f32.mrb[0].mxu0
      %977 = vmatprep.mubr.bf16.mxu0 0
      %978 = vmatmul.mubr.bf16.gmra.mrb[0].mxu0 %v763
      %v979 = vpop.f32.mrb[0].mxu0
      %v980 = vadd.f32 %v602, %v979
      %v981 = vpop.f32.mrb[0].mxu0
      %v982 = vpop.f32.mrb[0].mxu0
      %v983 = vadd.f32 %v605, %v982
      %v984 = vpop.f32.mrb[0].mxu0
      %985 = vmatprep.mubr.bf16.mxu0 0
      %986 = vmatmul.mubr.bf16.gmra.mrb[0].mxu0 %v772
      %v987 = vpop.f32.mrb[0].mxu0
      %v988 = vadd.f32 %v610, %v987
      %v989 = vpop.f32.mrb[0].mxu0
      %v990 = vpop.f32.mrb[0].mxu0
      %v991 = vadd.f32 %v613, %v990
      %v992 = vpop.f32.mrb[0].mxu0
      %993 = vmatprep.mubr.bf16.mxu0 0
      %994 = vmatmul.mubr.bf16.gmra.mrb[0].mxu0 %v781
      %v995 = vpop.f32.mrb[0].mxu0
      %v996 = vadd.f32 %v618, %v995
      %v997 = vpop.f32.mrb[0].mxu0
      %v998 = vpop.f32.mrb[0].mxu0
      %v999 = vadd.f32 %v621, %v998
      %v1000 = vpop.f32.mrb[0].mxu0
      %1001 = vmatprep.mubr.bf16.mxu0 0
      %1002 = vmatmul.mubr.bf16.gmra.mrb[0].mxu0 %v790
      %v1003 = vpop.f32.mrb[0].mxu0
      %v1004 = vadd.f32 %v626, %v1003
      %v1005 = vpop.f32.mrb[0].mxu0
      %v1006 = vpop.f32.mrb[0].mxu0
      %v1007 = vadd.f32 %v629, %v1006
      %v1008 = vpop.f32.mrb[0].mxu0
      %1009 = vmatprep.mubr.bf16.mxu0 0
      %1010 = vmatmul.mubr.bf16.gmra.mrb[0].mxu0 %v799
      %v1011 = vpop.f32.mrb[0].mxu0
      %v1012 = vadd.f32 %v634, %v1011
      %v1013 = vpop.f32.mrb[0].mxu0
      %v1014 = vpop.f32.mrb[0].mxu0
      %v1015 = vadd.f32 %v637, %v1014
      %v1016 = vpop.f32.mrb[0].mxu0
      %1017 = vmatprep.mubr.bf16.mxu0 0
      %1018 = vmatmul.mubr.bf16.gmra.mrb[0].mxu0 %v808
      %v1019 = vpop.f32.mrb[0].mxu0
      %v1020 = vadd.f32 %v642, %v1019
      %v1021 = vpop.f32.mrb[0].mxu0
      %v1022 = vpop.f32.mrb[0].mxu0
      %v1023 = vadd.f32 %v645, %v1022
      %v1024 = vpop.f32.mrb[0].mxu0
      %1025 = vmatprep.mubr.bf16.mxu0 0
      %1026 = vmatmul.mubr.bf16.gmra.mrb[0].mxu0 %v817
      %v1027 = vpop.f32.mrb[0].mxu0
      %v1028 = vadd.f32 %v650, %v1027
      %v1029 = vpop.f32.mrb[0].mxu0
      %v1030 = vpop.f32.mrb[0].mxu0
      %v1031 = vadd.f32 %v653, %v1030
      %v1032 = vpop.f32.mrb[0].mxu0
      %1033 = vdwg.mxu0
      %v1034 = vld [vmem:[%s273 + $0x4] sm:$0xf]
      %v1035 = vld [vmem:[%s273 + $0x8] sm:$0xf]
      %v1036 = vld [vmem:[%s273 + $0xc] sm:$0xf]
      %v1037 = vld [vmem:[%s273 + $0x10] sm:$0xf]
      %v1038 = vld [vmem:[%s273 + $0x14] sm:$0xf]
      %v1039 = vld [vmem:[%s273 + $0x18] sm:$0xf]
      %v1040 = vld [vmem:[%s273 + $0x1c] sm:$0xf]
      %v1041 = vld [vmem:[%s273 + $0x20] sm:$0xf]
      %v1042 = vld [vmem:[%s273 + $0x24] sm:$0xf]
      %v1043 = vld [vmem:[%s273 + $0x28] sm:$0xf]
      %v1044 = vld [vmem:[%s273 + $0x2c] sm:$0xf]
      %v1045 = vld [vmem:[%s273 + $0x30] sm:$0xf]
      %v1046 = vld [vmem:[%s273 + $0x34] sm:$0xf]
      %v1047 = vld [vmem:[%s273 + $0x38] sm:$0xf]
      %v1048 = vld [vmem:[%s273 + $0x3c] sm:$0xf]
      %v1049 = vld [vmem:[%s273 + $0x40] sm:$0xf]
      %v1050 = vld [vmem:[%s273 + $0x44] sm:$0xf]
      %v1051 = vld [vmem:[%s273 + $0x48] sm:$0xf]
      %v1052 = vld [vmem:[%s273 + $0x4c] sm:$0xf]
      %v1053 = vld [vmem:[%s273 + $0x50] sm:$0xf]
      %v1054 = vld [vmem:[%s273 + $0x54] sm:$0xf]
      %v1055 = vld [vmem:[%s273 + $0x58] sm:$0xf]
      %v1056 = vld [vmem:[%s273 + $0x5c] sm:$0xf]
      %v1057 = vld [vmem:[%s273 + $0x60] sm:$0xf]
      %v1058 = vld [vmem:[%s273 + $0x64] sm:$0xf]
      %v1059 = vld [vmem:[%s273 + $0x68] sm:$0xf]
      %v1060 = vld [vmem:[%s273 + $0x6c] sm:$0xf]
      %v1061 = vld [vmem:[%s273 + $0x70] sm:$0xf]
      %v1062 = vld [vmem:[%s273 + $0x74] sm:$0xf]
      %v1063 = vld [vmem:[%s273 + $0x78] sm:$0xf]
      %v1064 = vld [vmem:[%s273 + $0x7c] sm:$0x1]
      %s1065 = scalar_lea.vmem %s1, 128
      %v1066 = vld [vmem:[%s1065] sm:$0xf]
      %v1067 = vld [vmem:[%s1065 + $0x4] sm:$0xf]
      %v1068 = vld [vmem:[%s1065 + $0x8] sm:$0xf]
      %v1069 = vld [vmem:[%s1065 + $0xc] sm:$0xf]
      %v1070 = vld [vmem:[%s1065 + $0x10] sm:$0xf]
      %v1071 = vld [vmem:[%s1065 + $0x14] sm:$0xf]
      %v1072 = vld [vmem:[%s1065 + $0x18] sm:$0xf]
      %v1073 = vld [vmem:[%s1065 + $0x1c] sm:$0xf]
      %v1074 = vld [vmem:[%s1065 + $0x20] sm:$0xf]
      %v1075 = vld [vmem:[%s1065 + $0x24] sm:$0xf]
      %v1076 = vld [vmem:[%s1065 + $0x28] sm:$0xf]
      %v1077 = vld [vmem:[%s1065 + $0x2c] sm:$0xf]
      %v1078 = vld [vmem:[%s1065 + $0x30] sm:$0xf]
      %v1079 = vld [vmem:[%s1065 + $0x34] sm:$0xf]
      %v1080 = vld [vmem:[%s1065 + $0x38] sm:$0xf]
      %v1081 = vld [vmem:[%s1065 + $0x3c] sm:$0xf]
      %v1113 = vunpack.c.l.b16 %v1034
      %v1114 = vunpack.c.l.b16 %v1035
      %v1115 = vunpack.c.l.b16 %v1036
      %v1116 = vunpack.c.l.b16 %v1037
      %v1117 = vunpack.c.l.b16 %v1038
      %v1118 = vunpack.c.l.b16 %v1039
      %v1119 = vunpack.c.l.b16 %v1040
      %v1120 = vunpack.c.l.b16 %v1041
      %v1121 = vunpack.c.l.b16 %v1042
      %v1122 = vunpack.c.l.b16 %v1043
      %v1123 = vunpack.c.l.b16 %v1044
      %v1124 = vunpack.c.l.b16 %v1045
      %v1125 = vunpack.c.l.b16 %v1046
      %v1126 = vunpack.c.l.b16 %v1047
      %v1127 = vunpack.c.l.b16 %v1048
      %v1128 = vunpack.c.l.b16 %v1049
      %v1129 = vunpack.c.l.b16 %v1050
      %v1130 = vunpack.c.l.b16 %v1051
      %v1131 = vunpack.c.l.b16 %v1052
      %v1132 = vunpack.c.l.b16 %v1053
      %v1133 = vunpack.c.l.b16 %v1054
      %v1134 = vunpack.c.l.b16 %v1055
      %v1135 = vunpack.c.l.b16 %v1056
      %v1136 = vunpack.c.l.b16 %v1057
      %v1137 = vunpack.c.l.b16 %v1058
      %v1138 = vunpack.c.l.b16 %v1059
      %v1139 = vunpack.c.l.b16 %v1060
      %v1140 = vunpack.c.l.b16 %v1061
      %v1141 = vunpack.c.l.b16 %v1062
      %v1142 = vunpack.c.l.b16 %v1063
      %v1143 = vunpack.c.l.b16 %v1064
      %v1144 = vpack.c.b16 %v1114, %v1113
      %v1145 = vpack.c.b16 %v1116, %v1115
      %v1146 = vpack.c.b16 %v1118, %v1117
      %v1147 = vpack.c.b16 %v1120, %v1119
      %v1148 = vpack.c.b16 %v1122, %v1121
      %v1149 = vpack.c.b16 %v1124, %v1123
      %v1150 = vpack.c.b16 %v1126, %v1125
      %v1151 = vpack.c.b16 %v1128, %v1127
      %v1152 = vpack.c.b16 %v1130, %v1129
      %v1153 = vpack.c.b16 %v1132, %v1131
      %v1154 = vpack.c.b16 %v1134, %v1133
      %v1155 = vpack.c.b16 %v1136, %v1135
      %v1156 = vpack.c.b16 %v1138, %v1137
      %v1157 = vpack.c.b16 %v1140, %v1139
      %v1158 = vpack.c.b16 %v1142, %v1141
      %v1159 = vpack.c.b16 %v1143, %v1143
      %vm1160 = vsmask.f32 7424
      %v1162 = vshrl.u32 %v1144, 16
      %v1164 = vshll.u32 %v1144, 16
      %v1166 = vrot.slane %v1164, 1
      %v1167 = vor.u32 %v1162, %v1166
      %v1169 = vshll.u32 %v1145, 16
      %v1171 = vrot.slane %v1169, 1
      %v1172 = vsel %vm1160, %v1167, %v1171
      %v1173 = vshrl.u32 %v1145, 16
      %v1175 = vor.u32 %v1173, %v1171
      %v1177 = vshll.u32 %v1146, 16
      %v1179 = vrot.slane %v1177, 1
      %v1180 = vsel %vm1160, %v1175, %v1179
      %v1181 = vshrl.u32 %v1146, 16
      %v1183 = vor.u32 %v1181, %v1179
      %v1185 = vshll.u32 %v1147, 16
      %v1187 = vrot.slane %v1185, 1
      %v1188 = vsel %vm1160, %v1183, %v1187
      %v1189 = vshrl.u32 %v1147, 16
      %v1191 = vor.u32 %v1189, %v1187
      %v1193 = vshll.u32 %v1148, 16
      %v1195 = vrot.slane %v1193, 1
      %v1196 = vsel %vm1160, %v1191, %v1195
      %v1197 = vshrl.u32 %v1148, 16
      %v1199 = vor.u32 %v1197, %v1195
      %v1201 = vshll.u32 %v1149, 16
      %v1203 = vrot.slane %v1201, 1
      %v1204 = vsel %vm1160, %v1199, %v1203
      %v1205 = vshrl.u32 %v1149, 16
      %v1207 = vor.u32 %v1205, %v1203
      %v1209 = vshll.u32 %v1150, 16
      %v1211 = vrot.slane %v1209, 1
      %v1212 = vsel %vm1160, %v1207, %v1211
      %v1213 = vshrl.u32 %v1150, 16
      %v1215 = vor.u32 %v1213, %v1211
      %v1217 = vshll.u32 %v1151, 16
      %v1219 = vrot.slane %v1217, 1
      %v1220 = vsel %vm1160, %v1215, %v1219
      %v1221 = vshrl.u32 %v1151, 16
      %v1223 = vor.u32 %v1221, %v1219
      %v1225 = vshll.u32 %v1152, 16
      %v1227 = vrot.slane %v1225, 1
      %v1228 = vsel %vm1160, %v1223, %v1227
      %v1229 = vshrl.u32 %v1152, 16
      %v1231 = vor.u32 %v1229, %v1227
      %v1233 = vshll.u32 %v1153, 16
      %v1235 = vrot.slane %v1233, 1
      %v1236 = vsel %vm1160, %v1231, %v1235
      %v1237 = vshrl.u32 %v1153, 16
      %v1239 = vor.u32 %v1237, %v1235
      %v1241 = vshll.u32 %v1154, 16
      %v1243 = vrot.slane %v1241, 1
      %v1244 = vsel %vm1160, %v1239, %v1243
      %v1245 = vshrl.u32 %v1154, 16
      %v1247 = vor.u32 %v1245, %v1243
      %v1249 = vshll.u32 %v1155, 16
      %v1251 = vrot.slane %v1249, 1
      %v1252 = vsel %vm1160, %v1247, %v1251
      %v1253 = vshrl.u32 %v1155, 16
      %v1255 = vor.u32 %v1253, %v1251
      %v1257 = vshll.u32 %v1156, 16
      %v1259 = vrot.slane %v1257, 1
      %v1260 = vsel %vm1160, %v1255, %v1259
      %v1261 = vshrl.u32 %v1156, 16
      %v1263 = vor.u32 %v1261, %v1259
      %v1265 = vshll.u32 %v1157, 16
      %v1267 = vrot.slane %v1265, 1
      %v1268 = vsel %vm1160, %v1263, %v1267
      %v1269 = vshrl.u32 %v1157, 16
      %v1271 = vor.u32 %v1269, %v1267
      %v1273 = vshll.u32 %v1158, 16
      %v1275 = vrot.slane %v1273, 1
      %v1276 = vsel %vm1160, %v1271, %v1275
      %v1277 = vshrl.u32 %v1158, 16
      %v1279 = vor.u32 %v1277, %v1275
      %v1281 = vshll.u32 %v1159, 16
      %v1283 = vrot.slane %v1281, 1
      %v1284 = vsel %vm1160, %v1279, %v1283
      %v1316 = vunpack.c.l.b16 %v1066
      %v1317 = vunpack.c.l.b16 %v1067
      %v1318 = vunpack.c.l.b16 %v1068
      %v1319 = vunpack.c.l.b16 %v1069
      %v1320 = vunpack.c.l.b16 %v1070
      %v1321 = vunpack.c.l.b16 %v1071
      %v1322 = vunpack.c.l.b16 %v1072
      %v1323 = vunpack.c.l.b16 %v1073
      %v1324 = vunpack.c.l.b16 %v1074
      %v1325 = vunpack.c.l.b16 %v1075
      %v1326 = vunpack.c.l.b16 %v1076
      %v1327 = vunpack.c.l.b16 %v1077
      %v1328 = vunpack.c.l.b16 %v1078
      %v1329 = vunpack.c.l.b16 %v1079
      %v1330 = vunpack.c.l.b16 %v1080
      %v1331 = vunpack.c.l.b16 %v1081
      %v1332 = vpack.c.b16 %v1317, %v1316
      %v1333 = vpack.c.b16 %v1319, %v1318
      %v1334 = vpack.c.b16 %v1321, %v1320
      %v1335 = vpack.c.b16 %v1323, %v1322
      %v1336 = vpack.c.b16 %v1325, %v1324
      %v1337 = vpack.c.b16 %v1327, %v1326
      %v1338 = vpack.c.b16 %v1329, %v1328
      %v1339 = vpack.c.b16 %v1331, %v1330
      %1348 = vmatprep.subr.bf16.mxu0 0
      %1349 = vmatpush1.bf16.msra.mxu0 %v1332
      %1350 = vmatprep.subr.bf16.mxu0 0
      %1351 = vmatpush1.bf16.msra.mxu0 %v1333
      %1352 = vmatprep.subr.bf16.mxu0 0
      %1353 = vmatpush1.bf16.msra.mxu0 %v1334
      %1354 = vmatprep.subr.bf16.mxu0 0
      %1355 = vmatpush1.bf16.msra.mxu0 %v1335
      %1356 = vmatprep.subr.bf16.mxu0 0
      %1357 = vmatpush1.bf16.msra.mxu0 %v1336
      %1358 = vmatprep.subr.bf16.mxu0 0
      %1359 = vmatpush1.bf16.msra.mxu0 %v1337
      %1360 = vmatprep.subr.bf16.mxu0 0
      %1361 = vmatpush1.bf16.msra.mxu0 %v1338
      %1362 = vmatprep.subr.bf16.mxu0 0
      %1363 = vmatpush1.bf16.msra.mxu0 %v1339
      %1364 = vmatprep.subr.bf16.mxu0 0
      %1365 = vmatpush1.bf16.msra.mxu0 0
      %1366 = vmatprep.subr.bf16.mxu0 0
      %1367 = vmatpush1.bf16.msra.mxu0 0
      %1368 = vmatprep.subr.bf16.mxu0 0
      %1369 = vmatpush1.bf16.msra.mxu0 0
      %1370 = vmatprep.subr.bf16.mxu0 0
      %1371 = vmatpush1.bf16.msra.mxu0 0
      %1372 = vmatprep.subr.bf16.mxu0 0
      %1373 = vmatpush1.bf16.msra.mxu0 0
      %1374 = vmatprep.subr.bf16.mxu0 0
      %1375 = vmatpush1.bf16.msra.mxu0 0
      %1376 = vmatprep.subr.bf16.mxu0 0
      %1377 = vmatpush1.bf16.msra.mxu0 0
      %1378 = vmatprep.subr.bf16.mxu0 0
      %1379 = vmatpush1.bf16.msra.mxu0 0
      %1380 = vmatprep.mubr.bf16.mxu0 0
      %1381 = vmatmul.mubr.bf16.gmra.mrb[0].mxu0 %v1172
      %v1382 = vpop.f32.mrb[0].mxu0
      %v1383 = vadd.f32 0.0, %v1382
      %v1384 = vpop.f32.mrb[0].mxu0
      %v1385 = vpop.f32.mrb[0].mxu0
      %v1386 = vadd.f32 0.0, %v1385
      %v1387 = vpop.f32.mrb[0].mxu0
      %1388 = vmatprep.mubr.bf16.mxu0 0
      %1389 = vmatmul.mubr.bf16.gmra.mrb[0].mxu0 %v1180
      %v1390 = vpop.f32.mrb[0].mxu0
      %v1391 = vadd.f32 0.0, %v1390
      %v1392 = vpop.f32.mrb[0].mxu0
      %v1393 = vpop.f32.mrb[0].mxu0
      %v1394 = vadd.f32 0.0, %v1393
      %v1395 = vpop.f32.mrb[0].mxu0
      %1396 = vmatprep.mubr.bf16.mxu0 0
      %1397 = vmatmul.mubr.bf16.gmra.mrb[0].mxu0 %v1188
      %v1398 = vpop.f32.mrb[0].mxu0
      %v1399 = vadd.f32 0.0, %v1398
      %v1400 = vpop.f32.mrb[0].mxu0
      %v1401 = vpop.f32.mrb[0].mxu0
      %v1402 = vadd.f32 0.0, %v1401
      %v1403 = vpop.f32.mrb[0].mxu0
      %1404 = vmatprep.mubr.bf16.mxu0 0
      %1405 = vmatmul.mubr.bf16.gmra.mrb[0].mxu0 %v1196
      %v1406 = vpop.f32.mrb[0].mxu0
      %v1407 = vadd.f32 0.0, %v1406
      %v1408 = vpop.f32.mrb[0].mxu0
      %v1409 = vpop.f32.mrb[0].mxu0
      %v1410 = vadd.f32 0.0, %v1409
      %v1411 = vpop.f32.mrb[0].mxu0
      %1412 = vmatprep.mubr.bf16.mxu0 0
      %1413 = vmatmul.mubr.bf16.gmra.mrb[0].mxu0 %v1204
      %v1414 = vpop.f32.mrb[0].mxu0
      %v1415 = vadd.f32 0.0, %v1414
      %v1416 = vpop.f32.mrb[0].mxu0
      %v1417 = vpop.f32.mrb[0].mxu0
      %v1418 = vadd.f32 0.0, %v1417
      %v1419 = vpop.f32.mrb[0].mxu0
      %1420 = vmatprep.mubr.bf16.mxu0 0
      %1421 = vmatmul.mubr.bf16.gmra.mrb[0].mxu0 %v1212
      %v1422 = vpop.f32.mrb[0].mxu0
      %v1423 = vadd.f32 0.0, %v1422
      %v1424 = vpop.f32.mrb[0].mxu0
      %v1425 = vpop.f32.mrb[0].mxu0
      %v1426 = vadd.f32 0.0, %v1425
      %v1427 = vpop.f32.mrb[0].mxu0
      %1428 = vmatprep.mubr.bf16.mxu0 0
      %1429 = vmatmul.mubr.bf16.gmra.mrb[0].mxu0 %v1220
      %v1430 = vpop.f32.mrb[0].mxu0
      %v1431 = vadd.f32 0.0, %v1430
      %v1432 = vpop.f32.mrb[0].mxu0
      %v1433 = vpop.f32.mrb[0].mxu0
      %v1434 = vadd.f32 0.0, %v1433
      %v1435 = vpop.f32.mrb[0].mxu0
      %1436 = vmatprep.mubr.bf16.mxu0 0
      %1437 = vmatmul.mubr.bf16.gmra.mrb[0].mxu0 %v1228
      %v1438 = vpop.f32.mrb[0].mxu0
      %v1439 = vadd.f32 0.0, %v1438
      %v1440 = vpop.f32.mrb[0].mxu0
      %v1441 = vpop.f32.mrb[0].mxu0
      %v1442 = vadd.f32 0.0, %v1441
      %v1443 = vpop.f32.mrb[0].mxu0
      %1444 = vmatprep.mubr.bf16.mxu0 0
      %1445 = vmatmul.mubr.bf16.gmra.mrb[0].mxu0 %v1236
      %v1446 = vpop.f32.mrb[0].mxu0
      %v1447 = vadd.f32 0.0, %v1446
      %v1448 = vpop.f32.mrb[0].mxu0
      %v1449 = vpop.f32.mrb[0].mxu0
      %v1450 = vadd.f32 0.0, %v1449
      %v1451 = vpop.f32.mrb[0].mxu0
      %1452 = vmatprep.mubr.bf16.mxu0 0
      %1453 = vmatmul.mubr.bf16.gmra.mrb[0].mxu0 %v1244
      %v1454 = vpop.f32.mrb[0].mxu0
      %v1455 = vadd.f32 0.0, %v1454
      %v1456 = vpop.f32.mrb[0].mxu0
      %v1457 = vpop.f32.mrb[0].mxu0
      %v1458 = vadd.f32 0.0, %v1457
      %v1459 = vpop.f32.mrb[0].mxu0
      %1460 = vmatprep.mubr.bf16.mxu0 0
      %1461 = vmatmul.mubr.bf16.gmra.mrb[0].mxu0 %v1252
      %v1462 = vpop.f32.mrb[0].mxu0
      %v1463 = vadd.f32 0.0, %v1462
      %v1464 = vpop.f32.mrb[0].mxu0
      %v1465 = vpop.f32.mrb[0].mxu0
      %v1466 = vadd.f32 0.0, %v1465
      %v1467 = vpop.f32.mrb[0].mxu0
      %1468 = vmatprep.mubr.bf16.mxu0 0
      %1469 = vmatmul.mubr.bf16.gmra.mrb[0].mxu0 %v1260
      %v1470 = vpop.f32.mrb[0].mxu0
      %v1471 = vadd.f32 0.0, %v1470
      %v1472 = vpop.f32.mrb[0].mxu0
      %v1473 = vpop.f32.mrb[0].mxu0
      %v1474 = vadd.f32 0.0, %v1473
      %v1475 = vpop.f32.mrb[0].mxu0
      %1476 = vmatprep.mubr.bf16.mxu0 0
      %1477 = vmatmul.mubr.bf16.gmra.mrb[0].mxu0 %v1268
      %v1478 = vpop.f32.mrb[0].mxu0
      %v1479 = vadd.f32 0.0, %v1478
      %v1480 = vpop.f32.mrb[0].mxu0
      %v1481 = vpop.f32.mrb[0].mxu0
      %v1482 = vadd.f32 0.0, %v1481
      %v1483 = vpop.f32.mrb[0].mxu0
      %1484 = vmatprep.mubr.bf16.mxu0 0
      %1485 = vmatmul.mubr.bf16.gmra.mrb[0].mxu0 %v1276
      %v1486 = vpop.f32.mrb[0].mxu0
      %v1487 = vadd.f32 0.0, %v1486
      %v1488 = vpop.f32.mrb[0].mxu0
      %v1489 = vpop.f32.mrb[0].mxu0
      %v1490 = vadd.f32 0.0, %v1489
      %v1491 = vpop.f32.mrb[0].mxu0
      %1492 = vmatprep.mubr.bf16.mxu0 0
      %1493 = vmatmul.mubr.bf16.gmra.mrb[0].mxu0 %v1284
      %v1494 = vpop.f32.mrb[0].mxu0
      %v1495 = vadd.f32 0.0, %v1494
      %v1496 = vpop.f32.mrb[0].mxu0
      %v1497 = vpop.f32.mrb[0].mxu0
      %v1498 = vadd.f32 0.0, %v1497
      %v1499 = vpop.f32.mrb[0].mxu0
      %1500 = vdwg.mxu0
      %v1501 = vadd.f32 %v916, %v1383
      %v1502 = vadd.f32 %v919, %v1386
      %v1503 = vadd.f32 %v924, %v1391
      %v1504 = vadd.f32 %v927, %v1394
      %v1505 = vadd.f32 %v932, %v1399
      %v1506 = vadd.f32 %v935, %v1402
      %v1507 = vadd.f32 %v940, %v1407
      %v1508 = vadd.f32 %v943, %v1410
      %v1509 = vadd.f32 %v948, %v1415
      %v1510 = vadd.f32 %v951, %v1418
      %v1511 = vadd.f32 %v956, %v1423
      %v1512 = vadd.f32 %v959, %v1426
      %v1513 = vadd.f32 %v964, %v1431
      %v1514 = vadd.f32 %v967, %v1434
      %v1515 = vadd.f32 %v972, %v1439
      %v1516 = vadd.f32 %v975, %v1442
      %v1517 = vadd.f32 %v980, %v1447
      %v1518 = vadd.f32 %v983, %v1450
      %v1519 = vadd.f32 %v988, %v1455
      %v1520 = vadd.f32 %v991, %v1458
      %v1521 = vadd.f32 %v996, %v1463
      %v1522 = vadd.f32 %v999, %v1466
      %v1523 = vadd.f32 %v1004, %v1471
      %v1524 = vadd.f32 %v1007, %v1474
      %v1525 = vadd.f32 %v1012, %v1479
      %v1526 = vadd.f32 %v1015, %v1482
      %v1527 = vadd.f32 %v1020, %v1487
      %v1528 = vadd.f32 %v1023, %v1490
      %v1529 = vadd.f32 %v1028, %v1495
      %v1530 = vadd.f32 %v1031, %v1498
      %v1531 = vld [vmem:[%s273 + $0xc] sm:$0x8]
      %v1532 = vld [vmem:[%s273 + $0x10] sm:$0xf]
      %v1533 = vld [vmem:[%s273 + $0x14] sm:$0xf]
      %v1534 = vld [vmem:[%s273 + $0x18] sm:$0xf]
      %v1535 = vld [vmem:[%s273 + $0x1c] sm:$0xf]
      %v1536 = vld [vmem:[%s273 + $0x20] sm:$0xf]
      %v1537 = vld [vmem:[%s273 + $0x24] sm:$0xf]
      %v1538 = vld [vmem:[%s273 + $0x28] sm:$0xf]
      %v1539 = vld [vmem:[%s273 + $0x2c] sm:$0xf]
      %v1540 = vld [vmem:[%s273 + $0x30] sm:$0xf]
      %v1541 = vld [vmem:[%s273 + $0x34] sm:$0xf]
      %v1542 = vld [vmem:[%s273 + $0x38] sm:$0xf]
      %v1543 = vld [vmem:[%s273 + $0x3c] sm:$0xf]
      %v1544 = vld [vmem:[%s273 + $0x40] sm:$0xf]
      %v1545 = vld [vmem:[%s273 + $0x44] sm:$0xf]
      %v1546 = vld [vmem:[%s273 + $0x48] sm:$0xf]
      %v1547 = vld [vmem:[%s273 + $0x4c] sm:$0xf]
      %v1548 = vld [vmem:[%s273 + $0x50] sm:$0xf]
      %v1549 = vld [vmem:[%s273 + $0x54] sm:$0xf]
      %v1550 = vld [vmem:[%s273 + $0x58] sm:$0xf]
      %v1551 = vld [vmem:[%s273 + $0x5c] sm:$0xf]
      %v1552 = vld [vmem:[%s273 + $0x60] sm:$0xf]
      %v1553 = vld [vmem:[%s273 + $0x64] sm:$0xf]
      %v1554 = vld [vmem:[%s273 + $0x68] sm:$0xf]
      %v1555 = vld [vmem:[%s273 + $0x6c] sm:$0xf]
      %v1556 = vld [vmem:[%s273 + $0x70] sm:$0xf]
      %v1557 = vld [vmem:[%s273 + $0x74] sm:$0xf]
      %v1558 = vld [vmem:[%s273 + $0x78] sm:$0xf]
      %v1559 = vld [vmem:[%s273 + $0x7c] sm:$0xf]
      %v1560 = vld [vmem:[%s273 + $0x80] sm:$0xf]
      %v1561 = vld [vmem:[%s273 + $0x84] sm:$0xf]
      %s1562 = scalar_lea.vmem %s1, 192
      %v1563 = vld [vmem:[%s1562] sm:$0xf]
      %v1564 = vld [vmem:[%s1562 + $0x4] sm:$0xf]
      %v1565 = vld [vmem:[%s1562 + $0x8] sm:$0xf]
      %v1566 = vld [vmem:[%s1562 + $0xc] sm:$0xf]
      %v1567 = vld [vmem:[%s1562 + $0x10] sm:$0xf]
      %v1568 = vld [vmem:[%s1562 + $0x14] sm:$0xf]
      %v1569 = vld [vmem:[%s1562 + $0x18] sm:$0xf]
      %v1570 = vld [vmem:[%s1562 + $0x1c] sm:$0xf]
      %v1571 = vld [vmem:[%s1562 + $0x20] sm:$0xf]
      %v1572 = vld [vmem:[%s1562 + $0x24] sm:$0xf]
      %v1573 = vld [vmem:[%s1562 + $0x28] sm:$0xf]
      %v1574 = vld [vmem:[%s1562 + $0x2c] sm:$0xf]
      %v1575 = vld [vmem:[%s1562 + $0x30] sm:$0xf]
      %v1576 = vld [vmem:[%s1562 + $0x34] sm:$0xf]
      %v1577 = vld [vmem:[%s1562 + $0x38] sm:$0xf]
      %v1578 = vld [vmem:[%s1562 + $0x3c] sm:$0xf]
      %v1610 = vunpack.c.l.b16 %v1531
      %v1611 = vunpack.c.l.b16 %v1532
      %v1612 = vunpack.c.l.b16 %v1533
      %v1613 = vunpack.c.l.b16 %v1534
      %v1614 = vunpack.c.l.b16 %v1535
      %v1615 = vunpack.c.l.b16 %v1536
      %v1616 = vunpack.c.l.b16 %v1537
      %v1617 = vunpack.c.l.b16 %v1538
      %v1618 = vunpack.c.l.b16 %v1539
      %v1619 = vunpack.c.l.b16 %v1540
      %v1620 = vunpack.c.l.b16 %v1541
      %v1621 = vunpack.c.l.b16 %v1542
      %v1622 = vunpack.c.l.b16 %v1543
      %v1623 = vunpack.c.l.b16 %v1544
      %v1624 = vunpack.c.l.b16 %v1545
      %v1625 = vunpack.c.l.b16 %v1546
      %v1626 = vunpack.c.l.b16 %v1547
      %v1627 = vunpack.c.l.b16 %v1548
      %v1628 = vunpack.c.l.b16 %v1549
      %v1629 = vunpack.c.l.b16 %v1550
      %v1630 = vunpack.c.l.b16 %v1551
      %v1631 = vunpack.c.l.b16 %v1552
      %v1632 = vunpack.c.l.b16 %v1553
      %v1633 = vunpack.c.l.b16 %v1554
      %v1634 = vunpack.c.l.b16 %v1555
      %v1635 = vunpack.c.l.b16 %v1556
      %v1636 = vunpack.c.l.b16 %v1557
      %v1637 = vunpack.c.l.b16 %v1558
      %v1638 = vunpack.c.l.b16 %v1559
      %v1639 = vunpack.c.l.b16 %v1560
      %v1640 = vunpack.c.l.b16 %v1561
      %v1641 = vpack.c.b16 %v1611, %v1610
      %v1642 = vpack.c.b16 %v1613, %v1612
      %v1643 = vpack.c.b16 %v1615, %v1614
      %v1644 = vpack.c.b16 %v1617, %v1616
      %v1645 = vpack.c.b16 %v1619, %v1618
      %v1646 = vpack.c.b16 %v1621, %v1620
      %v1647 = vpack.c.b16 %v1623, %v1622
      %v1648 = vpack.c.b16 %v1625, %v1624
      %v1649 = vpack.c.b16 %v1627, %v1626
      %v1650 = vpack.c.b16 %v1629, %v1628
      %v1651 = vpack.c.b16 %v1631, %v1630
      %v1652 = vpack.c.b16 %v1633, %v1632
      %v1653 = vpack.c.b16 %v1635, %v1634
      %v1654 = vpack.c.b16 %v1637, %v1636
      %v1655 = vpack.c.b16 %v1639, %v1638
      %v1656 = vpack.c.b16 %v1640, %v1640
      %v1658 = vshrl.u32 %v1641, 16
      %v1660 = vrot.slane %v1658, 3
      %v1661 = vshll.u32 %v1641, 16
      %v1663 = vrot.slane %v1661, 4
      %v1664 = vor.u32 %v1660, %v1663
      %v1666 = vshrl.u32 %v1642, 16
      %v1668 = vrot.slane %v1666, 3
      %v1669 = vshll.u32 %v1642, 16
      %v1671 = vrot.slane %v1669, 4
      %v1672 = vor.u32 %v1668, %v1671
      %v1673 = vsel %vm674, %v1664, %v1672
      %v1675 = vshrl.u32 %v1643, 16
      %v1677 = vrot.slane %v1675, 3
      %v1678 = vshll.u32 %v1643, 16
      %v1680 = vrot.slane %v1678, 4
      %v1681 = vor.u32 %v1677, %v1680
      %v1682 = vsel %vm674, %v1672, %v1681
      %v1684 = vshrl.u32 %v1644, 16
      %v1686 = vrot.slane %v1684, 3
      %v1687 = vshll.u32 %v1644, 16
      %v1689 = vrot.slane %v1687, 4
      %v1690 = vor.u32 %v1686, %v1689
      %v1691 = vsel %vm674, %v1681, %v1690
      %v1693 = vshrl.u32 %v1645, 16
      %v1695 = vrot.slane %v1693, 3
      %v1696 = vshll.u32 %v1645, 16
      %v1698 = vrot.slane %v1696, 4
      %v1699 = vor.u32 %v1695, %v1698
      %v1700 = vsel %vm674, %v1690, %v1699
      %v1702 = vshrl.u32 %v1646, 16
      %v1704 = vrot.slane %v1702, 3
      %v1705 = vshll.u32 %v1646, 16
      %v1707 = vrot.slane %v1705, 4
      %v1708 = vor.u32 %v1704, %v1707
      %v1709 = vsel %vm674, %v1699, %v1708
      %v1711 = vshrl.u32 %v1647, 16
      %v1713 = vrot.slane %v1711, 3
      %v1714 = vshll.u32 %v1647, 16
      %v1716 = vrot.slane %v1714, 4
      %v1717 = vor.u32 %v1713, %v1716
      %v1718 = vsel %vm674, %v1708, %v1717
      %v1720 = vshrl.u32 %v1648, 16
      %v1722 = vrot.slane %v1720, 3
      %v1723 = vshll.u32 %v1648, 16
      %v1725 = vrot.slane %v1723, 4
      %v1726 = vor.u32 %v1722, %v1725
      %v1727 = vsel %vm674, %v1717, %v1726
      %v1729 = vshrl.u32 %v1649, 16
      %v1731 = vrot.slane %v1729, 3
      %v1732 = vshll.u32 %v1649, 16
      %v1734 = vrot.slane %v1732, 4
      %v1735 = vor.u32 %v1731, %v1734
      %v1736 = vsel %vm674, %v1726, %v1735
      %v1738 = vshrl.u32 %v1650, 16
      %v1740 = vrot.slane %v1738, 3
      %v1741 = vshll.u32 %v1650, 16
      %v1743 = vrot.slane %v1741, 4
      %v1744 = vor.u32 %v1740, %v1743
      %v1745 = vsel %vm674, %v1735, %v1744
      %v1747 = vshrl.u32 %v1651, 16
      %v1749 = vrot.slane %v1747, 3
      %v1750 = vshll.u32 %v1651, 16
      %v1752 = vrot.slane %v1750, 4
      %v1753 = vor.u32 %v1749, %v1752
      %v1754 = vsel %vm674, %v1744, %v1753
      %v1756 = vshrl.u32 %v1652, 16
      %v1758 = vrot.slane %v1756, 3
      %v1759 = vshll.u32 %v1652, 16
      %v1761 = vrot.slane %v1759, 4
      %v1762 = vor.u32 %v1758, %v1761
      %v1763 = vsel %vm674, %v1753, %v1762
      %v1765 = vshrl.u32 %v1653, 16
      %v1767 = vrot.slane %v1765, 3
      %v1768 = vshll.u32 %v1653, 16
      %v1770 = vrot.slane %v1768, 4
      %v1771 = vor.u32 %v1767, %v1770
      %v1772 = vsel %vm674, %v1762, %v1771
      %v1774 = vshrl.u32 %v1654, 16
      %v1776 = vrot.slane %v1774, 3
      %v1777 = vshll.u32 %v1654, 16
      %v1779 = vrot.slane %v1777, 4
      %v1780 = vor.u32 %v1776, %v1779
      %v1781 = vsel %vm674, %v1771, %v1780
      %v1783 = vshrl.u32 %v1655, 16
      %v1785 = vrot.slane %v1783, 3
      %v1786 = vshll.u32 %v1655, 16
      %v1788 = vrot.slane %v1786, 4
      %v1789 = vor.u32 %v1785, %v1788
      %v1790 = vsel %vm674, %v1780, %v1789
      %v1792 = vshrl.u32 %v1656, 16
      %v1794 = vrot.slane %v1792, 3
      %v1795 = vshll.u32 %v1656, 16
      %v1797 = vrot.slane %v1795, 4
      %v1798 = vor.u32 %v1794, %v1797
      %v1799 = vsel %vm674, %v1789, %v1798
      %v1831 = vunpack.c.l.b16 %v1563
      %v1832 = vunpack.c.l.b16 %v1564
      %v1833 = vunpack.c.l.b16 %v1565
      %v1834 = vunpack.c.l.b16 %v1566
      %v1835 = vunpack.c.l.b16 %v1567
      %v1836 = vunpack.c.l.b16 %v1568
      %v1837 = vunpack.c.l.b16 %v1569
      %v1838 = vunpack.c.l.b16 %v1570
      %v1839 = vunpack.c.l.b16 %v1571
      %v1840 = vunpack.c.l.b16 %v1572
      %v1841 = vunpack.c.l.b16 %v1573
      %v1842 = vunpack.c.l.b16 %v1574
      %v1843 = vunpack.c.l.b16 %v1575
      %v1844 = vunpack.c.l.b16 %v1576
      %v1845 = vunpack.c.l.b16 %v1577
      %v1846 = vunpack.c.l.b16 %v1578
      %v1847 = vpack.c.b16 %v1832, %v1831
      %v1848 = vpack.c.b16 %v1834, %v1833
      %v1849 = vpack.c.b16 %v1836, %v1835
      %v1850 = vpack.c.b16 %v1838, %v1837
      %v1851 = vpack.c.b16 %v1840, %v1839
      %v1852 = vpack.c.b16 %v1842, %v1841
      %v1853 = vpack.c.b16 %v1844, %v1843
      %v1854 = vpack.c.b16 %v1846, %v1845
      %1863 = vmatprep.subr.bf16.mxu0 0
      %1864 = vmatpush1.bf16.msra.mxu0 %v1847
      %1865 = vmatprep.subr.bf16.mxu0 0
      %1866 = vmatpush1.bf16.msra.mxu0 %v1848
      %1867 = vmatprep.subr.bf16.mxu0 0
      %1868 = vmatpush1.bf16.msra.mxu0 %v1849
      %1869 = vmatprep.subr.bf16.mxu0 0
      %1870 = vmatpush1.bf16.msra.mxu0 %v1850
      %1871 = vmatprep.subr.bf16.mxu0 0
      %1872 = vmatpush1.bf16.msra.mxu0 %v1851
      %1873 = vmatprep.subr.bf16.mxu0 0
      %1874 = vmatpush1.bf16.msra.mxu0 %v1852
      %1875 = vmatprep.subr.bf16.mxu0 0
      %1876 = vmatpush1.bf16.msra.mxu0 %v1853
      %1877 = vmatprep.subr.bf16.mxu0 0
      %1878 = vmatpush1.bf16.msra.mxu0 %v1854
      %1879 = vmatprep.subr.bf16.mxu0 0
      %1880 = vmatpush1.bf16.msra.mxu0 0
      %1881 = vmatprep.subr.bf16.mxu0 0
      %1882 = vmatpush1.bf16.msra.mxu0 0
      %1883 = vmatprep.subr.bf16.mxu0 0
      %1884 = vmatpush1.bf16.msra.mxu0 0
      %1885 = vmatprep.subr.bf16.mxu0 0
      %1886 = vmatpush1.bf16.msra.mxu0 0
      %1887 = vmatprep.subr.bf16.mxu0 0
      %1888 = vmatpush1.bf16.msra.mxu0 0
      %1889 = vmatprep.subr.bf16.mxu0 0
      %1890 = vmatpush1.bf16.msra.mxu0 0
      %1891 = vmatprep.subr.bf16.mxu0 0
      %1892 = vmatpush1.bf16.msra.mxu0 0
      %1893 = vmatprep.subr.bf16.mxu0 0
      %1894 = vmatpush1.bf16.msra.mxu0 0
      %1895 = vmatprep.mubr.bf16.mxu0 0
      %1896 = vmatmul.mubr.bf16.gmra.mrb[0].mxu0 %v1673
      %v1897 = vpop.f32.mrb[0].mxu0
      %v1898 = vadd.f32 0.0, %v1897
      %v1899 = vpop.f32.mrb[0].mxu0
      %v1900 = vpop.f32.mrb[0].mxu0
      %v1901 = vadd.f32 0.0, %v1900
      %v1902 = vpop.f32.mrb[0].mxu0
      %1903 = vmatprep.mubr.bf16.mxu0 0
      %1904 = vmatmul.mubr.bf16.gmra.mrb[0].mxu0 %v1682
      %v1905 = vpop.f32.mrb[0].mxu0
      %v1906 = vadd.f32 0.0, %v1905
      %v1907 = vpop.f32.mrb[0].mxu0
      %v1908 = vpop.f32.mrb[0].mxu0
      %v1909 = vadd.f32 0.0, %v1908
      %v1910 = vpop.f32.mrb[0].mxu0
      %1911 = vmatprep.mubr.bf16.mxu0 0
      %1912 = vmatmul.mubr.bf16.gmra.mrb[0].mxu0 %v1691
      %v1913 = vpop.f32.mrb[0].mxu0
      %v1914 = vadd.f32 0.0, %v1913
      %v1915 = vpop.f32.mrb[0].mxu0
      %v1916 = vpop.f32.mrb[0].mxu0
      %v1917 = vadd.f32 0.0, %v1916
      %v1918 = vpop.f32.mrb[0].mxu0
      %1919 = vmatprep.mubr.bf16.mxu0 0
      %1920 = vmatmul.mubr.bf16.gmra.mrb[0].mxu0 %v1700
      %v1921 = vpop.f32.mrb[0].mxu0
      %v1922 = vadd.f32 0.0, %v1921
      %v1923 = vpop.f32.mrb[0].mxu0
      %v1924 = vpop.f32.mrb[0].mxu0
      %v1925 = vadd.f32 0.0, %v1924
      %v1926 = vpop.f32.mrb[0].mxu0
      %1927 = vmatprep.mubr.bf16.mxu0 0
      %1928 = vmatmul.mubr.bf16.gmra.mrb[0].mxu0 %v1709
      %v1929 = vpop.f32.mrb[0].mxu0
      %v1930 = vadd.f32 0.0, %v1929
      %v1931 = vpop.f32.mrb[0].mxu0
      %v1932 = vpop.f32.mrb[0].mxu0
      %v1933 = vadd.f32 0.0, %v1932
      %v1934 = vpop.f32.mrb[0].mxu0
      %1935 = vmatprep.mubr.bf16.mxu0 0
      %1936 = vmatmul.mubr.bf16.gmra.mrb[0].mxu0 %v1718
      %v1937 = vpop.f32.mrb[0].mxu0
      %v1938 = vadd.f32 0.0, %v1937
      %v1939 = vpop.f32.mrb[0].mxu0
      %v1940 = vpop.f32.mrb[0].mxu0
      %v1941 = vadd.f32 0.0, %v1940
      %v1942 = vpop.f32.mrb[0].mxu0
      %1943 = vmatprep.mubr.bf16.mxu0 0
      %1944 = vmatmul.mubr.bf16.gmra.mrb[0].mxu0 %v1727
      %v1945 = vpop.f32.mrb[0].mxu0
      %v1946 = vadd.f32 0.0, %v1945
      %v1947 = vpop.f32.mrb[0].mxu0
      %v1948 = vpop.f32.mrb[0].mxu0
      %v1949 = vadd.f32 0.0, %v1948
      %v1950 = vpop.f32.mrb[0].mxu0
      %1951 = vmatprep.mubr.bf16.mxu0 0
      %1952 = vmatmul.mubr.bf16.gmra.mrb[0].mxu0 %v1736
      %v1953 = vpop.f32.mrb[0].mxu0
      %v1954 = vadd.f32 0.0, %v1953
      %v1955 = vpop.f32.mrb[0].mxu0
      %v1956 = vpop.f32.mrb[0].mxu0
      %v1957 = vadd.f32 0.0, %v1956
      %v1958 = vpop.f32.mrb[0].mxu0
      %1959 = vmatprep.mubr.bf16.mxu0 0
      %1960 = vmatmul.mubr.bf16.gmra.mrb[0].mxu0 %v1745
      %v1961 = vpop.f32.mrb[0].mxu0
      %v1962 = vadd.f32 0.0, %v1961
      %v1963 = vpop.f32.mrb[0].mxu0
      %v1964 = vpop.f32.mrb[0].mxu0
      %v1965 = vadd.f32 0.0, %v1964
      %v1966 = vpop.f32.mrb[0].mxu0
      %1967 = vmatprep.mubr.bf16.mxu0 0
      %1968 = vmatmul.mubr.bf16.gmra.mrb[0].mxu0 %v1754
      %v1969 = vpop.f32.mrb[0].mxu0
      %v1970 = vadd.f32 0.0, %v1969
      %v1971 = vpop.f32.mrb[0].mxu0
      %v1972 = vpop.f32.mrb[0].mxu0
      %v1973 = vadd.f32 0.0, %v1972
      %v1974 = vpop.f32.mrb[0].mxu0
      %1975 = vmatprep.mubr.bf16.mxu0 0
      %1976 = vmatmul.mubr.bf16.gmra.mrb[0].mxu0 %v1763
      %v1977 = vpop.f32.mrb[0].mxu0
      %v1978 = vadd.f32 0.0, %v1977
      %v1979 = vpop.f32.mrb[0].mxu0
      %v1980 = vpop.f32.mrb[0].mxu0
      %v1981 = vadd.f32 0.0, %v1980
      %v1982 = vpop.f32.mrb[0].mxu0
      %1983 = vmatprep.mubr.bf16.mxu0 0
      %1984 = vmatmul.mubr.bf16.gmra.mrb[0].mxu0 %v1772
      %v1985 = vpop.f32.mrb[0].mxu0
      %v1986 = vadd.f32 0.0, %v1985
      %v1987 = vpop.f32.mrb[0].mxu0
      %v1988 = vpop.f32.mrb[0].mxu0
      %v1989 = vadd.f32 0.0, %v1988
      %v1990 = vpop.f32.mrb[0].mxu0
      %1991 = vmatprep.mubr.bf16.mxu0 0
      %1992 = vmatmul.mubr.bf16.gmra.mrb[0].mxu0 %v1781
      %v1993 = vpop.f32.mrb[0].mxu0
      %v1994 = vadd.f32 0.0, %v1993
      %v1995 = vpop.f32.mrb[0].mxu0
      %v1996 = vpop.f32.mrb[0].mxu0
      %v1997 = vadd.f32 0.0, %v1996
      %v1998 = vpop.f32.mrb[0].mxu0
      %1999 = vmatprep.mubr.bf16.mxu0 0
      %2000 = vmatmul.mubr.bf16.gmra.mrb[0].mxu0 %v1790
      %v2001 = vpop.f32.mrb[0].mxu0
      %v2002 = vadd.f32 0.0, %v2001
      %v2003 = vpop.f32.mrb[0].mxu0
      %v2004 = vpop.f32.mrb[0].mxu0
      %v2005 = vadd.f32 0.0, %v2004
      %v2006 = vpop.f32.mrb[0].mxu0
      %2007 = vmatprep.mubr.bf16.mxu0 0
      %2008 = vmatmul.mubr.bf16.gmra.mrb[0].mxu0 %v1799
      %v2009 = vpop.f32.mrb[0].mxu0
      %v2010 = vadd.f32 0.0, %v2009
      %v2011 = vpop.f32.mrb[0].mxu0
      %v2012 = vpop.f32.mrb[0].mxu0
      %v2013 = vadd.f32 0.0, %v2012
      %v2014 = vpop.f32.mrb[0].mxu0
      %2015 = vdwg.mxu0
      %v2016 = vadd.f32 %v1501, %v1898
      %v2017 = vadd.f32 %v1502, %v1901
      %v2018 = vadd.f32 %v1503, %v1906
      %v2019 = vadd.f32 %v1504, %v1909
      %v2020 = vadd.f32 %v1505, %v1914
      %v2021 = vadd.f32 %v1506, %v1917
      %v2022 = vadd.f32 %v1507, %v1922
      %v2023 = vadd.f32 %v1508, %v1925
      %v2024 = vadd.f32 %v1509, %v1930
      %v2025 = vadd.f32 %v1510, %v1933
      %v2026 = vadd.f32 %v1511, %v1938
      %v2027 = vadd.f32 %v1512, %v1941
      %v2028 = vadd.f32 %v1513, %v1946
      %v2029 = vadd.f32 %v1514, %v1949
      %v2030 = vadd.f32 %v1515, %v1954
      %v2031 = vadd.f32 %v1516, %v1957
      %v2032 = vadd.f32 %v1517, %v1962
      %v2033 = vadd.f32 %v1518, %v1965
      %v2034 = vadd.f32 %v1519, %v1970
      %v2035 = vadd.f32 %v1520, %v1973
      %v2036 = vadd.f32 %v1521, %v1978
      %v2037 = vadd.f32 %v1522, %v1981
      %v2038 = vadd.f32 %v1523, %v1986
      %v2039 = vadd.f32 %v1524, %v1989
      %v2040 = vadd.f32 %v1525, %v1994
      %v2041 = vadd.f32 %v1526, %v1997
      %v2042 = vadd.f32 %v1527, %v2002
      %v2043 = vadd.f32 %v1528, %v2005
      %v2044 = vadd.f32 %v1529, %v2010
      %v2045 = vadd.f32 %v1530, %v2013
      %s2046 = scalar_lea.vmem %s1, 256
      %v2047 = vld [vmem:[%s2046] sm:$0xf]
      %v2048 = vld [vmem:[%s2046 + $0x4] sm:$0xf]
      %v2049 = vld [vmem:[%s2046 + $0x8] sm:$0xf]
      %v2050 = vld [vmem:[%s2046 + $0xc] sm:$0xf]
      %v2051 = vld [vmem:[%s2046 + $0x10] sm:$0xf]
      %v2052 = vld [vmem:[%s2046 + $0x14] sm:$0xf]
      %v2053 = vld [vmem:[%s2046 + $0x18] sm:$0xf]
      %v2054 = vld [vmem:[%s2046 + $0x1c] sm:$0xf]
      %v2055 = vld [vmem:[%s2046 + $0x20] sm:$0xf]
      %v2056 = vld [vmem:[%s2046 + $0x24] sm:$0xf]
      %v2057 = vld [vmem:[%s2046 + $0x28] sm:$0xf]
      %v2058 = vld [vmem:[%s2046 + $0x2c] sm:$0xf]
      %v2059 = vld [vmem:[%s2046 + $0x30] sm:$0xf]
      %v2060 = vld [vmem:[%s2046 + $0x34] sm:$0xf]
      %v2061 = vld [vmem:[%s2046 + $0x38] sm:$0xf]
      %v2062 = vld [vmem:[%s2046 + $0x3c] sm:$0xf]
      %v2063 = vpack.c.b16 %v1612, %v1611
      %v2064 = vpack.c.b16 %v1614, %v1613
      %v2065 = vpack.c.b16 %v1616, %v1615
      %v2066 = vpack.c.b16 %v1618, %v1617
      %v2067 = vpack.c.b16 %v1620, %v1619
      %v2068 = vpack.c.b16 %v1622, %v1621
      %v2069 = vpack.c.b16 %v1624, %v1623
      %v2070 = vpack.c.b16 %v1626, %v1625
      %v2071 = vpack.c.b16 %v1628, %v1627
      %v2072 = vpack.c.b16 %v1630, %v1629
      %v2073 = vpack.c.b16 %v1632, %v1631
      %v2074 = vpack.c.b16 %v1634, %v1633
      %v2075 = vpack.c.b16 %v1636, %v1635
      %v2076 = vpack.c.b16 %v1638, %v1637
      %v2077 = vpack.c.b16 %v1640, %v1639
      %v2109 = vunpack.c.l.b16 %v2047
      %v2110 = vunpack.c.l.b16 %v2048
      %v2111 = vunpack.c.l.b16 %v2049
      %v2112 = vunpack.c.l.b16 %v2050
      %v2113 = vunpack.c.l.b16 %v2051
      %v2114 = vunpack.c.l.b16 %v2052
      %v2115 = vunpack.c.l.b16 %v2053
      %v2116 = vunpack.c.l.b16 %v2054
      %v2117 = vunpack.c.l.b16 %v2055
      %v2118 = vunpack.c.l.b16 %v2056
      %v2119 = vunpack.c.l.b16 %v2057
      %v2120 = vunpack.c.l.b16 %v2058
      %v2121 = vunpack.c.l.b16 %v2059
      %v2122 = vunpack.c.l.b16 %v2060
      %v2123 = vunpack.c.l.b16 %v2061
      %v2124 = vunpack.c.l.b16 %v2062
      %v2125 = vpack.c.b16 %v2110, %v2109
      %v2126 = vpack.c.b16 %v2112, %v2111
      %v2127 = vpack.c.b16 %v2114, %v2113
      %v2128 = vpack.c.b16 %v2116, %v2115
      %v2129 = vpack.c.b16 %v2118, %v2117
      %v2130 = vpack.c.b16 %v2120, %v2119
      %v2131 = vpack.c.b16 %v2122, %v2121
      %v2132 = vpack.c.b16 %v2124, %v2123
      %2141 = vmatprep.subr.bf16.mxu0 0
      %2142 = vmatpush1.bf16.msra.mxu0 %v2125
      %2143 = vmatprep.subr.bf16.mxu0 0
      %2144 = vmatpush1.bf16.msra.mxu0 %v2126
      %2145 = vmatprep.subr.bf16.mxu0 0
      %2146 = vmatpush1.bf16.msra.mxu0 %v2127
      %2147 = vmatprep.subr.bf16.mxu0 0
      %2148 = vmatpush1.bf16.msra.mxu0 %v2128
      %2149 = vmatprep.subr.bf16.mxu0 0
      %2150 = vmatpush1.bf16.msra.mxu0 %v2129
      %2151 = vmatprep.subr.bf16.mxu0 0
      %2152 = vmatpush1.bf16.msra.mxu0 %v2130
      %2153 = vmatprep.subr.bf16.mxu0 0
      %2154 = vmatpush1.bf16.msra.mxu0 %v2131
      %2155 = vmatprep.subr.bf16.mxu0 0
      %2156 = vmatpush1.bf16.msra.mxu0 %v2132
      %2157 = vmatprep.subr.bf16.mxu0 0
      %2158 = vmatpush1.bf16.msra.mxu0 0
      %2159 = vmatprep.subr.bf16.mxu0 0
      %2160 = vmatpush1.bf16.msra.mxu0 0
      %2161 = vmatprep.subr.bf16.mxu0 0
      %2162 = vmatpush1.bf16.msra.mxu0 0
      %2163 = vmatprep.subr.bf16.mxu0 0
      %2164 = vmatpush1.bf16.msra.mxu0 0
      %2165 = vmatprep.subr.bf16.mxu0 0
      %2166 = vmatpush1.bf16.msra.mxu0 0
      %2167 = vmatprep.subr.bf16.mxu0 0
      %2168 = vmatpush1.bf16.msra.mxu0 0
      %2169 = vmatprep.subr.bf16.mxu0 0
      %2170 = vmatpush1.bf16.msra.mxu0 0
      %2171 = vmatprep.subr.bf16.mxu0 0
      %2172 = vmatpush1.bf16.msra.mxu0 0
      %2173 = vmatprep.mubr.bf16.mxu0 0
      %2174 = vmatmul.mubr.bf16.gmra.mrb[0].mxu0 %v2063
      %v2175 = vpop.f32.mrb[0].mxu0
      %v2176 = vadd.f32 0.0, %v2175
      %v2177 = vpop.f32.mrb[0].mxu0
      %v2178 = vpop.f32.mrb[0].mxu0
      %v2179 = vadd.f32 0.0, %v2178
      %v2180 = vpop.f32.mrb[0].mxu0
      %2181 = vmatprep.mubr.bf16.mxu0 0
      %2182 = vmatmul.mubr.bf16.gmra.mrb[0].mxu0 %v2064
      %v2183 = vpop.f32.mrb[0].mxu0
      %v2184 = vadd.f32 0.0, %v2183
      %v2185 = vpop.f32.mrb[0].mxu0
      %v2186 = vpop.f32.mrb[0].mxu0
      %v2187 = vadd.f32 0.0, %v2186
      %v2188 = vpop.f32.mrb[0].mxu0
      %2189 = vmatprep.mubr.bf16.mxu0 0
      %2190 = vmatmul.mubr.bf16.gmra.mrb[0].mxu0 %v2065
      %v2191 = vpop.f32.mrb[0].mxu0
      %v2192 = vadd.f32 0.0, %v2191
      %v2193 = vpop.f32.mrb[0].mxu0
      %v2194 = vpop.f32.mrb[0].mxu0
      %v2195 = vadd.f32 0.0, %v2194
      %v2196 = vpop.f32.mrb[0].mxu0
      %2197 = vmatprep.mubr.bf16.mxu0 0
      %2198 = vmatmul.mubr.bf16.gmra.mrb[0].mxu0 %v2066
      %v2199 = vpop.f32.mrb[0].mxu0
      %v2200 = vadd.f32 0.0, %v2199
      %v2201 = vpop.f32.mrb[0].mxu0
      %v2202 = vpop.f32.mrb[0].mxu0
      %v2203 = vadd.f32 0.0, %v2202
      %v2204 = vpop.f32.mrb[0].mxu0
      %2205 = vmatprep.mubr.bf16.mxu0 0
      %2206 = vmatmul.mubr.bf16.gmra.mrb[0].mxu0 %v2067
      %v2207 = vpop.f32.mrb[0].mxu0
      %v2208 = vadd.f32 0.0, %v2207
      %v2209 = vpop.f32.mrb[0].mxu0
      %v2210 = vpop.f32.mrb[0].mxu0
      %v2211 = vadd.f32 0.0, %v2210
      %v2212 = vpop.f32.mrb[0].mxu0
      %2213 = vmatprep.mubr.bf16.mxu0 0
      %2214 = vmatmul.mubr.bf16.gmra.mrb[0].mxu0 %v2068
      %v2215 = vpop.f32.mrb[0].mxu0
      %v2216 = vadd.f32 0.0, %v2215
      %v2217 = vpop.f32.mrb[0].mxu0
      %v2218 = vpop.f32.mrb[0].mxu0
      %v2219 = vadd.f32 0.0, %v2218
      %v2220 = vpop.f32.mrb[0].mxu0
      %2221 = vmatprep.mubr.bf16.mxu0 0
      %2222 = vmatmul.mubr.bf16.gmra.mrb[0].mxu0 %v2069
      %v2223 = vpop.f32.mrb[0].mxu0
      %v2224 = vadd.f32 0.0, %v2223
      %v2225 = vpop.f32.mrb[0].mxu0
      %v2226 = vpop.f32.mrb[0].mxu0
      %v2227 = vadd.f32 0.0, %v2226
      %v2228 = vpop.f32.mrb[0].mxu0
      %2229 = vmatprep.mubr.bf16.mxu0 0
      %2230 = vmatmul.mubr.bf16.gmra.mrb[0].mxu0 %v2070
      %v2231 = vpop.f32.mrb[0].mxu0
      %v2232 = vadd.f32 0.0, %v2231
      %v2233 = vpop.f32.mrb[0].mxu0
      %v2234 = vpop.f32.mrb[0].mxu0
      %v2235 = vadd.f32 0.0, %v2234
      %v2236 = vpop.f32.mrb[0].mxu0
      %2237 = vmatprep.mubr.bf16.mxu0 0
      %2238 = vmatmul.mubr.bf16.gmra.mrb[0].mxu0 %v2071
      %v2239 = vpop.f32.mrb[0].mxu0
      %v2240 = vadd.f32 0.0, %v2239
      %v2241 = vpop.f32.mrb[0].mxu0
      %v2242 = vpop.f32.mrb[0].mxu0
      %v2243 = vadd.f32 0.0, %v2242
      %v2244 = vpop.f32.mrb[0].mxu0
      %2245 = vmatprep.mubr.bf16.mxu0 0
      %2246 = vmatmul.mubr.bf16.gmra.mrb[0].mxu0 %v2072
      %v2247 = vpop.f32.mrb[0].mxu0
      %v2248 = vadd.f32 0.0, %v2247
      %v2249 = vpop.f32.mrb[0].mxu0
      %v2250 = vpop.f32.mrb[0].mxu0
      %v2251 = vadd.f32 0.0, %v2250
      %v2252 = vpop.f32.mrb[0].mxu0
      %2253 = vmatprep.mubr.bf16.mxu0 0
      %2254 = vmatmul.mubr.bf16.gmra.mrb[0].mxu0 %v2073
      %v2255 = vpop.f32.mrb[0].mxu0
      %v2256 = vadd.f32 0.0, %v2255
      %v2257 = vpop.f32.mrb[0].mxu0
      %v2258 = vpop.f32.mrb[0].mxu0
      %v2259 = vadd.f32 0.0, %v2258
      %v2260 = vpop.f32.mrb[0].mxu0
      %2261 = vmatprep.mubr.bf16.mxu0 0
      %2262 = vmatmul.mubr.bf16.gmra.mrb[0].mxu0 %v2074
      %v2263 = vpop.f32.mrb[0].mxu0
      %v2264 = vadd.f32 0.0, %v2263
      %v2265 = vpop.f32.mrb[0].mxu0
      %v2266 = vpop.f32.mrb[0].mxu0
      %v2267 = vadd.f32 0.0, %v2266
      %v2268 = vpop.f32.mrb[0].mxu0
      %2269 = vmatprep.mubr.bf16.mxu0 0
      %2270 = vmatmul.mubr.bf16.gmra.mrb[0].mxu0 %v2075
      %v2271 = vpop.f32.mrb[0].mxu0
      %v2272 = vadd.f32 0.0, %v2271
      %v2273 = vpop.f32.mrb[0].mxu0
      %v2274 = vpop.f32.mrb[0].mxu0
      %v2275 = vadd.f32 0.0, %v2274
      %v2276 = vpop.f32.mrb[0].mxu0
      %2277 = vmatprep.mubr.bf16.mxu0 0
      %2278 = vmatmul.mubr.bf16.gmra.mrb[0].mxu0 %v2076
      %v2279 = vpop.f32.mrb[0].mxu0
      %v2280 = vadd.f32 0.0, %v2279
      %v2281 = vpop.f32.mrb[0].mxu0
      %v2282 = vpop.f32.mrb[0].mxu0
      %v2283 = vadd.f32 0.0, %v2282
      %v2284 = vpop.f32.mrb[0].mxu0
      %2285 = vmatprep.mubr.bf16.mxu0 0
      %2286 = vmatmul.mubr.bf16.gmra.mrb[0].mxu0 %v2077
      %v2287 = vpop.f32.mrb[0].mxu0
      %v2288 = vadd.f32 0.0, %v2287
      %v2289 = vpop.f32.mrb[0].mxu0
      %v2290 = vpop.f32.mrb[0].mxu0
      %v2291 = vadd.f32 0.0, %v2290
      %v2292 = vpop.f32.mrb[0].mxu0
      %2293 = vdwg.mxu0
      %v2294 = vadd.f32 %v2016, %v2176
      %v2295 = vadd.f32 %v2017, %v2179
      %v2296 = vadd.f32 %v2018, %v2184
      %v2297 = vadd.f32 %v2019, %v2187
      %v2298 = vadd.f32 %v2020, %v2192
      %v2299 = vadd.f32 %v2021, %v2195
      %v2300 = vadd.f32 %v2022, %v2200
      %v2301 = vadd.f32 %v2023, %v2203
      %v2302 = vadd.f32 %v2024, %v2208
      %v2303 = vadd.f32 %v2025, %v2211
      %v2304 = vadd.f32 %v2026, %v2216
      %v2305 = vadd.f32 %v2027, %v2219
      %v2306 = vadd.f32 %v2028, %v2224
      %v2307 = vadd.f32 %v2029, %v2227
      %v2308 = vadd.f32 %v2030, %v2232
      %v2309 = vadd.f32 %v2031, %v2235
      %v2310 = vadd.f32 %v2032, %v2240
      %v2311 = vadd.f32 %v2033, %v2243
      %v2312 = vadd.f32 %v2034, %v2248
      %v2313 = vadd.f32 %v2035, %v2251
      %v2314 = vadd.f32 %v2036, %v2256
      %v2315 = vadd.f32 %v2037, %v2259
      %v2316 = vadd.f32 %v2038, %v2264
      %v2317 = vadd.f32 %v2039, %v2267
      %v2318 = vadd.f32 %v2040, %v2272
      %v2319 = vadd.f32 %v2041, %v2275
      %v2320 = vadd.f32 %v2042, %v2280
      %v2321 = vadd.f32 %v2043, %v2283
      %v2322 = vadd.f32 %v2044, %v2288
      %v2323 = vadd.f32 %v2045, %v2291
      %v2324 = vld [vmem:[%s273 + $0x10] sm:$0xf]
      %v2325 = vld [vmem:[%s273 + $0x14] sm:$0xf]
      %v2326 = vld [vmem:[%s273 + $0x18] sm:$0xf]
      %v2327 = vld [vmem:[%s273 + $0x1c] sm:$0xf]
      %v2328 = vld [vmem:[%s273 + $0x20] sm:$0xf]
      %v2329 = vld [vmem:[%s273 + $0x24] sm:$0xf]
      %v2330 = vld [vmem:[%s273 + $0x28] sm:$0xf]
      %v2331 = vld [vmem:[%s273 + $0x2c] sm:$0xf]
      %v2332 = vld [vmem:[%s273 + $0x30] sm:$0xf]
      %v2333 = vld [vmem:[%s273 + $0x34] sm:$0xf]
      %v2334 = vld [vmem:[%s273 + $0x38] sm:$0xf]
      %v2335 = vld [vmem:[%s273 + $0x3c] sm:$0xf]
      %v2336 = vld [vmem:[%s273 + $0x40] sm:$0xf]
      %v2337 = vld [vmem:[%s273 + $0x44] sm:$0xf]
      %v2338 = vld [vmem:[%s273 + $0x48] sm:$0xf]
      %v2339 = vld [vmem:[%s273 + $0x4c] sm:$0xf]
      %v2340 = vld [vmem:[%s273 + $0x50] sm:$0xf]
      %v2341 = vld [vmem:[%s273 + $0x54] sm:$0xf]
      %v2342 = vld [vmem:[%s273 + $0x58] sm:$0xf]
      %v2343 = vld [vmem:[%s273 + $0x5c] sm:$0xf]
      %v2344 = vld [vmem:[%s273 + $0x60] sm:$0xf]
      %v2345 = vld [vmem:[%s273 + $0x64] sm:$0xf]
      %v2346 = vld [vmem:[%s273 + $0x68] sm:$0xf]
      %v2347 = vld [vmem:[%s273 + $0x6c] sm:$0xf]
      %v2348 = vld [vmem:[%s273 + $0x70] sm:$0xf]
      %v2349 = vld [vmem:[%s273 + $0x74] sm:$0xf]
      %v2350 = vld [vmem:[%s273 + $0x78] sm:$0xf]
      %v2351 = vld [vmem:[%s273 + $0x7c] sm:$0xf]
      %v2352 = vld [vmem:[%s273 + $0x80] sm:$0xf]
      %v2353 = vld [vmem:[%s273 + $0x84] sm:$0xf]
      %v2354 = vld [vmem:[%s273 + $0x88] sm:$0x1]
      %s2355 = scalar_lea.vmem %s1, 320
      %v2356 = vld [vmem:[%s2355] sm:$0xf]
      %v2357 = vld [vmem:[%s2355 + $0x4] sm:$0xf]
      %v2358 = vld [vmem:[%s2355 + $0x8] sm:$0xf]
      %v2359 = vld [vmem:[%s2355 + $0xc] sm:$0xf]
      %v2360 = vld [vmem:[%s2355 + $0x10] sm:$0xf]
      %v2361 = vld [vmem:[%s2355 + $0x14] sm:$0xf]
      %v2362 = vld [vmem:[%s2355 + $0x18] sm:$0xf]
      %v2363 = vld [vmem:[%s2355 + $0x1c] sm:$0xf]
      %v2364 = vld [vmem:[%s2355 + $0x20] sm:$0xf]
      %v2365 = vld [vmem:[%s2355 + $0x24] sm:$0xf]
      %v2366 = vld [vmem:[%s2355 + $0x28] sm:$0xf]
      %v2367 = vld [vmem:[%s2355 + $0x2c] sm:$0xf]
      %v2368 = vld [vmem:[%s2355 + $0x30] sm:$0xf]
      %v2369 = vld [vmem:[%s2355 + $0x34] sm:$0xf]
      %v2370 = vld [vmem:[%s2355 + $0x38] sm:$0xf]
      %v2371 = vld [vmem:[%s2355 + $0x3c] sm:$0xf]
      %v2403 = vunpack.c.l.b16 %v2324
      %v2404 = vunpack.c.l.b16 %v2325
      %v2405 = vunpack.c.l.b16 %v2326
      %v2406 = vunpack.c.l.b16 %v2327
      %v2407 = vunpack.c.l.b16 %v2328
      %v2408 = vunpack.c.l.b16 %v2329
      %v2409 = vunpack.c.l.b16 %v2330
      %v2410 = vunpack.c.l.b16 %v2331
      %v2411 = vunpack.c.l.b16 %v2332
      %v2412 = vunpack.c.l.b16 %v2333
      %v2413 = vunpack.c.l.b16 %v2334
      %v2414 = vunpack.c.l.b16 %v2335
      %v2415 = vunpack.c.l.b16 %v2336
      %v2416 = vunpack.c.l.b16 %v2337
      %v2417 = vunpack.c.l.b16 %v2338
      %v2418 = vunpack.c.l.b16 %v2339
      %v2419 = vunpack.c.l.b16 %v2340
      %v2420 = vunpack.c.l.b16 %v2341
      %v2421 = vunpack.c.l.b16 %v2342
      %v2422 = vunpack.c.l.b16 %v2343
      %v2423 = vunpack.c.l.b16 %v2344
      %v2424 = vunpack.c.l.b16 %v2345
      %v2425 = vunpack.c.l.b16 %v2346
      %v2426 = vunpack.c.l.b16 %v2347
      %v2427 = vunpack.c.l.b16 %v2348
      %v2428 = vunpack.c.l.b16 %v2349
      %v2429 = vunpack.c.l.b16 %v2350
      %v2430 = vunpack.c.l.b16 %v2351
      %v2431 = vunpack.c.l.b16 %v2352
      %v2432 = vunpack.c.l.b16 %v2353
      %v2433 = vunpack.c.l.b16 %v2354
      %v2434 = vpack.c.b16 %v2404, %v2403
      %v2435 = vpack.c.b16 %v2406, %v2405
      %v2436 = vpack.c.b16 %v2408, %v2407
      %v2437 = vpack.c.b16 %v2410, %v2409
      %v2438 = vpack.c.b16 %v2412, %v2411
      %v2439 = vpack.c.b16 %v2414, %v2413
      %v2440 = vpack.c.b16 %v2416, %v2415
      %v2441 = vpack.c.b16 %v2418, %v2417
      %v2442 = vpack.c.b16 %v2420, %v2419
      %v2443 = vpack.c.b16 %v2422, %v2421
      %v2444 = vpack.c.b16 %v2424, %v2423
      %v2445 = vpack.c.b16 %v2426, %v2425
      %v2446 = vpack.c.b16 %v2428, %v2427
      %v2447 = vpack.c.b16 %v2430, %v2429
      %v2448 = vpack.c.b16 %v2432, %v2431
      %v2449 = vpack.c.b16 %v2433, %v2433
      %v2451 = vshrl.u32 %v2434, 16
      %v2453 = vshll.u32 %v2434, 16
      %v2455 = vrot.slane %v2453, 1
      %v2456 = vor.u32 %v2451, %v2455
      %v2458 = vshll.u32 %v2435, 16
      %v2460 = vrot.slane %v2458, 1
      %v2461 = vsel %vm1160, %v2456, %v2460
      %v2462 = vshrl.u32 %v2435, 16
      %v2464 = vor.u32 %v2462, %v2460
      %v2466 = vshll.u32 %v2436, 16
      %v2468 = vrot.slane %v2466, 1
      %v2469 = vsel %vm1160, %v2464, %v2468
      %v2470 = vshrl.u32 %v2436, 16
      %v2472 = vor.u32 %v2470, %v2468
      %v2474 = vshll.u32 %v2437, 16
      %v2476 = vrot.slane %v2474, 1
      %v2477 = vsel %vm1160, %v2472, %v2476
      %v2478 = vshrl.u32 %v2437, 16
      %v2480 = vor.u32 %v2478, %v2476
      %v2482 = vshll.u32 %v2438, 16
      %v2484 = vrot.slane %v2482, 1
      %v2485 = vsel %vm1160, %v2480, %v2484
      %v2486 = vshrl.u32 %v2438, 16
      %v2488 = vor.u32 %v2486, %v2484
      %v2490 = vshll.u32 %v2439, 16
      %v2492 = vrot.slane %v2490, 1
      %v2493 = vsel %vm1160, %v2488, %v2492
      %v2494 = vshrl.u32 %v2439, 16
      %v2496 = vor.u32 %v2494, %v2492
      %v2498 = vshll.u32 %v2440, 16
      %v2500 = vrot.slane %v2498, 1
      %v2501 = vsel %vm1160, %v2496, %v2500
      %v2502 = vshrl.u32 %v2440, 16
      %v2504 = vor.u32 %v2502, %v2500
      %v2506 = vshll.u32 %v2441, 16
      %v2508 = vrot.slane %v2506, 1
      %v2509 = vsel %vm1160, %v2504, %v2508
      %v2510 = vshrl.u32 %v2441, 16
      %v2512 = vor.u32 %v2510, %v2508
      %v2514 = vshll.u32 %v2442, 16
      %v2516 = vrot.slane %v2514, 1
      %v2517 = vsel %vm1160, %v2512, %v2516
      %v2518 = vshrl.u32 %v2442, 16
      %v2520 = vor.u32 %v2518, %v2516
      %v2522 = vshll.u32 %v2443, 16
      %v2524 = vrot.slane %v2522, 1
      %v2525 = vsel %vm1160, %v2520, %v2524
      %v2526 = vshrl.u32 %v2443, 16
      %v2528 = vor.u32 %v2526, %v2524
      %v2530 = vshll.u32 %v2444, 16
      %v2532 = vrot.slane %v2530, 1
      %v2533 = vsel %vm1160, %v2528, %v2532
      %v2534 = vshrl.u32 %v2444, 16
      %v2536 = vor.u32 %v2534, %v2532
      %v2538 = vshll.u32 %v2445, 16
      %v2540 = vrot.slane %v2538, 1
      %v2541 = vsel %vm1160, %v2536, %v2540
      %v2542 = vshrl.u32 %v2445, 16
      %v2544 = vor.u32 %v2542, %v2540
      %v2546 = vshll.u32 %v2446, 16
      %v2548 = vrot.slane %v2546, 1
      %v2549 = vsel %vm1160, %v2544, %v2548
      %v2550 = vshrl.u32 %v2446, 16
      %v2552 = vor.u32 %v2550, %v2548
      %v2554 = vshll.u32 %v2447, 16
      %v2556 = vrot.slane %v2554, 1
      %v2557 = vsel %vm1160, %v2552, %v2556
      %v2558 = vshrl.u32 %v2447, 16
      %v2560 = vor.u32 %v2558, %v2556
      %v2562 = vshll.u32 %v2448, 16
      %v2564 = vrot.slane %v2562, 1
      %v2565 = vsel %vm1160, %v2560, %v2564
      %v2566 = vshrl.u32 %v2448, 16
      %v2568 = vor.u32 %v2566, %v2564
      %v2570 = vshll.u32 %v2449, 16
      %v2572 = vrot.slane %v2570, 1
      %v2573 = vsel %vm1160, %v2568, %v2572
      %v2605 = vunpack.c.l.b16 %v2356
      %v2606 = vunpack.c.l.b16 %v2357
      %v2607 = vunpack.c.l.b16 %v2358
      %v2608 = vunpack.c.l.b16 %v2359
      %v2609 = vunpack.c.l.b16 %v2360
      %v2610 = vunpack.c.l.b16 %v2361
      %v2611 = vunpack.c.l.b16 %v2362
      %v2612 = vunpack.c.l.b16 %v2363
      %v2613 = vunpack.c.l.b16 %v2364
      %v2614 = vunpack.c.l.b16 %v2365
      %v2615 = vunpack.c.l.b16 %v2366
      %v2616 = vunpack.c.l.b16 %v2367
      %v2617 = vunpack.c.l.b16 %v2368
      %v2618 = vunpack.c.l.b16 %v2369
      %v2619 = vunpack.c.l.b16 %v2370
      %v2620 = vunpack.c.l.b16 %v2371
      %v2621 = vpack.c.b16 %v2606, %v2605
      %v2622 = vpack.c.b16 %v2608, %v2607
      %v2623 = vpack.c.b16 %v2610, %v2609
      %v2624 = vpack.c.b16 %v2612, %v2611
      %v2625 = vpack.c.b16 %v2614, %v2613
      %v2626 = vpack.c.b16 %v2616, %v2615
      %v2627 = vpack.c.b16 %v2618, %v2617
      %v2628 = vpack.c.b16 %v2620, %v2619
      %2637 = vmatprep.subr.bf16.mxu0 0
      %2638 = vmatpush1.bf16.msra.mxu0 %v2621
      %2639 = vmatprep.subr.bf16.mxu0 0
      %2640 = vmatpush1.bf16.msra.mxu0 %v2622
      %2641 = vmatprep.subr.bf16.mxu0 0
      %2642 = vmatpush1.bf16.msra.mxu0 %v2623
      %2643 = vmatprep.subr.bf16.mxu0 0
      %2644 = vmatpush1.bf16.msra.mxu0 %v2624
      %2645 = vmatprep.subr.bf16.mxu0 0
      %2646 = vmatpush1.bf16.msra.mxu0 %v2625
      %2647 = vmatprep.subr.bf16.mxu0 0
      %2648 = vmatpush1.bf16.msra.mxu0 %v2626
      %2649 = vmatprep.subr.bf16.mxu0 0
      %2650 = vmatpush1.bf16.msra.mxu0 %v2627
      %2651 = vmatprep.subr.bf16.mxu0 0
      %2652 = vmatpush1.bf16.msra.mxu0 %v2628
      %2653 = vmatprep.subr.bf16.mxu0 0
      %2654 = vmatpush1.bf16.msra.mxu0 0
      %2655 = vmatprep.subr.bf16.mxu0 0
      %2656 = vmatpush1.bf16.msra.mxu0 0
      %2657 = vmatprep.subr.bf16.mxu0 0
      %2658 = vmatpush1.bf16.msra.mxu0 0
      %2659 = vmatprep.subr.bf16.mxu0 0
      %2660 = vmatpush1.bf16.msra.mxu0 0
      %2661 = vmatprep.subr.bf16.mxu0 0
      %2662 = vmatpush1.bf16.msra.mxu0 0
      %2663 = vmatprep.subr.bf16.mxu0 0
      %2664 = vmatpush1.bf16.msra.mxu0 0
      %2665 = vmatprep.subr.bf16.mxu0 0
      %2666 = vmatpush1.bf16.msra.mxu0 0
      %2667 = vmatprep.subr.bf16.mxu0 0
      %2668 = vmatpush1.bf16.msra.mxu0 0
      %2669 = vmatprep.mubr.bf16.mxu0 0
      %2670 = vmatmul.mubr.bf16.gmra.mrb[0].mxu0 %v2461
      %v2671 = vpop.f32.mrb[0].mxu0
      %v2672 = vadd.f32 0.0, %v2671
      %v2673 = vpop.f32.mrb[0].mxu0
      %v2674 = vpop.f32.mrb[0].mxu0
      %v2675 = vadd.f32 0.0, %v2674
      %v2676 = vpop.f32.mrb[0].mxu0
      %2677 = vmatprep.mubr.bf16.mxu0 0
      %2678 = vmatmul.mubr.bf16.gmra.mrb[0].mxu0 %v2469
      %v2679 = vpop.f32.mrb[0].mxu0
      %v2680 = vadd.f32 0.0, %v2679
      %v2681 = vpop.f32.mrb[0].mxu0
      %v2682 = vpop.f32.mrb[0].mxu0
      %v2683 = vadd.f32 0.0, %v2682
      %v2684 = vpop.f32.mrb[0].mxu0
      %2685 = vmatprep.mubr.bf16.mxu0 0
      %2686 = vmatmul.mubr.bf16.gmra.mrb[0].mxu0 %v2477
      %v2687 = vpop.f32.mrb[0].mxu0
      %v2688 = vadd.f32 0.0, %v2687
      %v2689 = vpop.f32.mrb[0].mxu0
      %v2690 = vpop.f32.mrb[0].mxu0
      %v2691 = vadd.f32 0.0, %v2690
      %v2692 = vpop.f32.mrb[0].mxu0
      %2693 = vmatprep.mubr.bf16.mxu0 0
      %2694 = vmatmul.mubr.bf16.gmra.mrb[0].mxu0 %v2485
      %v2695 = vpop.f32.mrb[0].mxu0
      %v2696 = vadd.f32 0.0, %v2695
      %v2697 = vpop.f32.mrb[0].mxu0
      %v2698 = vpop.f32.mrb[0].mxu0
      %v2699 = vadd.f32 0.0, %v2698
      %v2700 = vpop.f32.mrb[0].mxu0
      %2701 = vmatprep.mubr.bf16.mxu0 0
      %2702 = vmatmul.mubr.bf16.gmra.mrb[0].mxu0 %v2493
      %v2703 = vpop.f32.mrb[0].mxu0
      %v2704 = vadd.f32 0.0, %v2703
      %v2705 = vpop.f32.mrb[0].mxu0
      %v2706 = vpop.f32.mrb[0].mxu0
      %v2707 = vadd.f32 0.0, %v2706
      %v2708 = vpop.f32.mrb[0].mxu0
      %2709 = vmatprep.mubr.bf16.mxu0 0
      %2710 = vmatmul.mubr.bf16.gmra.mrb[0].mxu0 %v2501
      %v2711 = vpop.f32.mrb[0].mxu0
      %v2712 = vadd.f32 0.0, %v2711
      %v2713 = vpop.f32.mrb[0].mxu0
      %v2714 = vpop.f32.mrb[0].mxu0
      %v2715 = vadd.f32 0.0, %v2714
      %v2716 = vpop.f32.mrb[0].mxu0
      %2717 = vmatprep.mubr.bf16.mxu0 0
      %2718 = vmatmul.mubr.bf16.gmra.mrb[0].mxu0 %v2509
      %v2719 = vpop.f32.mrb[0].mxu0
      %v2720 = vadd.f32 0.0, %v2719
      %v2721 = vpop.f32.mrb[0].mxu0
      %v2722 = vpop.f32.mrb[0].mxu0
      %v2723 = vadd.f32 0.0, %v2722
      %v2724 = vpop.f32.mrb[0].mxu0
      %2725 = vmatprep.mubr.bf16.mxu0 0
      %2726 = vmatmul.mubr.bf16.gmra.mrb[0].mxu0 %v2517
      %v2727 = vpop.f32.mrb[0].mxu0
      %v2728 = vadd.f32 0.0, %v2727
      %v2729 = vpop.f32.mrb[0].mxu0
      %v2730 = vpop.f32.mrb[0].mxu0
      %v2731 = vadd.f32 0.0, %v2730
      %v2732 = vpop.f32.mrb[0].mxu0
      %2733 = vmatprep.mubr.bf16.mxu0 0
      %2734 = vmatmul.mubr.bf16.gmra.mrb[0].mxu0 %v2525
      %v2735 = vpop.f32.mrb[0].mxu0
      %v2736 = vadd.f32 0.0, %v2735
      %v2737 = vpop.f32.mrb[0].mxu0
      %v2738 = vpop.f32.mrb[0].mxu0
      %v2739 = vadd.f32 0.0, %v2738
      %v2740 = vpop.f32.mrb[0].mxu0
      %2741 = vmatprep.mubr.bf16.mxu0 0
      %2742 = vmatmul.mubr.bf16.gmra.mrb[0].mxu0 %v2533
      %v2743 = vpop.f32.mrb[0].mxu0
      %v2744 = vadd.f32 0.0, %v2743
      %v2745 = vpop.f32.mrb[0].mxu0
      %v2746 = vpop.f32.mrb[0].mxu0
      %v2747 = vadd.f32 0.0, %v2746
      %v2748 = vpop.f32.mrb[0].mxu0
      %2749 = vmatprep.mubr.bf16.mxu0 0
      %2750 = vmatmul.mubr.bf16.gmra.mrb[0].mxu0 %v2541
      %v2751 = vpop.f32.mrb[0].mxu0
      %v2752 = vadd.f32 0.0, %v2751
      %v2753 = vpop.f32.mrb[0].mxu0
      %v2754 = vpop.f32.mrb[0].mxu0
      %v2755 = vadd.f32 0.0, %v2754
      %v2756 = vpop.f32.mrb[0].mxu0
      %2757 = vmatprep.mubr.bf16.mxu0 0
      %2758 = vmatmul.mubr.bf16.gmra.mrb[0].mxu0 %v2549
      %v2759 = vpop.f32.mrb[0].mxu0
      %v2760 = vadd.f32 0.0, %v2759
      %v2761 = vpop.f32.mrb[0].mxu0
      %v2762 = vpop.f32.mrb[0].mxu0
      %v2763 = vadd.f32 0.0, %v2762
      %v2764 = vpop.f32.mrb[0].mxu0
      %2765 = vmatprep.mubr.bf16.mxu0 0
      %2766 = vmatmul.mubr.bf16.gmra.mrb[0].mxu0 %v2557
      %v2767 = vpop.f32.mrb[0].mxu0
      %v2768 = vadd.f32 0.0, %v2767
      %v2769 = vpop.f32.mrb[0].mxu0
      %v2770 = vpop.f32.mrb[0].mxu0
      %v2771 = vadd.f32 0.0, %v2770
      %v2772 = vpop.f32.mrb[0].mxu0
      %2773 = vmatprep.mubr.bf16.mxu0 0
      %2774 = vmatmul.mubr.bf16.gmra.mrb[0].mxu0 %v2565
      %v2775 = vpop.f32.mrb[0].mxu0
      %v2776 = vadd.f32 0.0, %v2775
      %v2777 = vpop.f32.mrb[0].mxu0
      %v2778 = vpop.f32.mrb[0].mxu0
      %v2779 = vadd.f32 0.0, %v2778
      %v2780 = vpop.f32.mrb[0].mxu0
      %2781 = vmatprep.mubr.bf16.mxu0 0
      %2782 = vmatmul.mubr.bf16.gmra.mrb[0].mxu0 %v2573
      %v2783 = vpop.f32.mrb[0].mxu0
      %v2784 = vadd.f32 0.0, %v2783
      %v2785 = vpop.f32.mrb[0].mxu0
      %v2786 = vpop.f32.mrb[0].mxu0
      %v2787 = vadd.f32 0.0, %v2786
      %v2788 = vpop.f32.mrb[0].mxu0
      %2789 = vdwg.mxu0
      %v2790 = vadd.f32 %v2294, %v2672
      %v2791 = vadd.f32 %v2295, %v2675
      %v2792 = vadd.f32 %v2296, %v2680
      %v2793 = vadd.f32 %v2297, %v2683
      %v2794 = vadd.f32 %v2298, %v2688
      %v2795 = vadd.f32 %v2299, %v2691
      %v2796 = vadd.f32 %v2300, %v2696
      %v2797 = vadd.f32 %v2301, %v2699
      %v2798 = vadd.f32 %v2302, %v2704
      %v2799 = vadd.f32 %v2303, %v2707
      %v2800 = vadd.f32 %v2304, %v2712
      %v2801 = vadd.f32 %v2305, %v2715
      %v2802 = vadd.f32 %v2306, %v2720
      %v2803 = vadd.f32 %v2307, %v2723
      %v2804 = vadd.f32 %v2308, %v2728
      %v2805 = vadd.f32 %v2309, %v2731
      %v2806 = vadd.f32 %v2310, %v2736
      %v2807 = vadd.f32 %v2311, %v2739
      %v2808 = vadd.f32 %v2312, %v2744
      %v2809 = vadd.f32 %v2313, %v2747
      %v2810 = vadd.f32 %v2314, %v2752
      %v2811 = vadd.f32 %v2315, %v2755
      %v2812 = vadd.f32 %v2316, %v2760
      %v2813 = vadd.f32 %v2317, %v2763
      %v2814 = vadd.f32 %v2318, %v2768
      %v2815 = vadd.f32 %v2319, %v2771
      %v2816 = vadd.f32 %v2320, %v2776
      %v2817 = vadd.f32 %v2321, %v2779
      %v2818 = vadd.f32 %v2322, %v2784
      %v2819 = vadd.f32 %v2323, %v2787
      %v2820 = vld [vmem:[%s273 + $0x18] sm:$0x8]
      %v2821 = vld [vmem:[%s273 + $0x1c] sm:$0xf]
      %v2822 = vld [vmem:[%s273 + $0x20] sm:$0xf]
      %v2823 = vld [vmem:[%s273 + $0x24] sm:$0xf]
      %v2824 = vld [vmem:[%s273 + $0x28] sm:$0xf]
      %v2825 = vld [vmem:[%s273 + $0x2c] sm:$0xf]
      %v2826 = vld [vmem:[%s273 + $0x30] sm:$0xf]
      %v2827 = vld [vmem:[%s273 + $0x34] sm:$0xf]
      %v2828 = vld [vmem:[%s273 + $0x38] sm:$0xf]
      %v2829 = vld [vmem:[%s273 + $0x3c] sm:$0xf]
      %v2830 = vld [vmem:[%s273 + $0x40] sm:$0xf]
      %v2831 = vld [vmem:[%s273 + $0x44] sm:$0xf]
      %v2832 = vld [vmem:[%s273 + $0x48] sm:$0xf]
      %v2833 = vld [vmem:[%s273 + $0x4c] sm:$0xf]
      %v2834 = vld [vmem:[%s273 + $0x50] sm:$0xf]
      %v2835 = vld [vmem:[%s273 + $0x54] sm:$0xf]
      %v2836 = vld [vmem:[%s273 + $0x58] sm:$0xf]
      %v2837 = vld [vmem:[%s273 + $0x5c] sm:$0xf]
      %v2838 = vld [vmem:[%s273 + $0x60] sm:$0xf]
      %v2839 = vld [vmem:[%s273 + $0x64] sm:$0xf]
      %v2840 = vld [vmem:[%s273 + $0x68] sm:$0xf]
      %v2841 = vld [vmem:[%s273 + $0x6c] sm:$0xf]
      %v2842 = vld [vmem:[%s273 + $0x70] sm:$0xf]
      %v2843 = vld [vmem:[%s273 + $0x74] sm:$0xf]
      %v2844 = vld [vmem:[%s273 + $0x78] sm:$0xf]
      %v2845 = vld [vmem:[%s273 + $0x7c] sm:$0xf]
      %v2846 = vld [vmem:[%s273 + $0x80] sm:$0xf]
      %v2847 = vld [vmem:[%s273 + $0x84] sm:$0xf]
      %v2848 = vld [vmem:[%s273 + $0x88] sm:$0xf]
      %v2849 = vld [vmem:[%s273 + $0x8c] sm:$0xf]
      %v2850 = vld [vmem:[%s273 + $0x90] sm:$0xf]
      %s2851 = scalar_lea.vmem %s1, 384
      %v2852 = vld [vmem:[%s2851] sm:$0xf]
      %v2853 = vld [vmem:[%s2851 + $0x4] sm:$0xf]
      %v2854 = vld [vmem:[%s2851 + $0x8] sm:$0xf]
      %v2855 = vld [vmem:[%s2851 + $0xc] sm:$0xf]
      %v2856 = vld [vmem:[%s2851 + $0x10] sm:$0xf]
      %v2857 = vld [vmem:[%s2851 + $0x14] sm:$0xf]
      %v2858 = vld [vmem:[%s2851 + $0x18] sm:$0xf]
      %v2859 = vld [vmem:[%s2851 + $0x1c] sm:$0xf]
      %v2860 = vld [vmem:[%s2851 + $0x20] sm:$0xf]
      %v2861 = vld [vmem:[%s2851 + $0x24] sm:$0xf]
      %v2862 = vld [vmem:[%s2851 + $0x28] sm:$0xf]
      %v2863 = vld [vmem:[%s2851 + $0x2c] sm:$0xf]
      %v2864 = vld [vmem:[%s2851 + $0x30] sm:$0xf]
      %v2865 = vld [vmem:[%s2851 + $0x34] sm:$0xf]
      %v2866 = vld [vmem:[%s2851 + $0x38] sm:$0xf]
      %v2867 = vld [vmem:[%s2851 + $0x3c] sm:$0xf]
      %v2899 = vunpack.c.l.b16 %v2820
      %v2900 = vunpack.c.l.b16 %v2821
      %v2901 = vunpack.c.l.b16 %v2822
      %v2902 = vunpack.c.l.b16 %v2823
      %v2903 = vunpack.c.l.b16 %v2824
      %v2904 = vunpack.c.l.b16 %v2825
      %v2905 = vunpack.c.l.b16 %v2826
      %v2906 = vunpack.c.l.b16 %v2827
      %v2907 = vunpack.c.l.b16 %v2828
      %v2908 = vunpack.c.l.b16 %v2829
      %v2909 = vunpack.c.l.b16 %v2830
      %v2910 = vunpack.c.l.b16 %v2831
      %v2911 = vunpack.c.l.b16 %v2832
      %v2912 = vunpack.c.l.b16 %v2833
      %v2913 = vunpack.c.l.b16 %v2834
      %v2914 = vunpack.c.l.b16 %v2835
      %v2915 = vunpack.c.l.b16 %v2836
      %v2916 = vunpack.c.l.b16 %v2837
      %v2917 = vunpack.c.l.b16 %v2838
      %v2918 = vunpack.c.l.b16 %v2839
      %v2919 = vunpack.c.l.b16 %v2840
      %v2920 = vunpack.c.l.b16 %v2841
      %v2921 = vunpack.c.l.b16 %v2842
      %v2922 = vunpack.c.l.b16 %v2843
      %v2923 = vunpack.c.l.b16 %v2844
      %v2924 = vunpack.c.l.b16 %v2845
      %v2925 = vunpack.c.l.b16 %v2846
      %v2926 = vunpack.c.l.b16 %v2847
      %v2927 = vunpack.c.l.b16 %v2848
      %v2928 = vunpack.c.l.b16 %v2849
      %v2929 = vunpack.c.l.b16 %v2850
      %v2930 = vpack.c.b16 %v2900, %v2899
      %v2931 = vpack.c.b16 %v2902, %v2901
      %v2932 = vpack.c.b16 %v2904, %v2903
      %v2933 = vpack.c.b16 %v2906, %v2905
      %v2934 = vpack.c.b16 %v2908, %v2907
      %v2935 = vpack.c.b16 %v2910, %v2909
      %v2936 = vpack.c.b16 %v2912, %v2911
      %v2937 = vpack.c.b16 %v2914, %v2913
      %v2938 = vpack.c.b16 %v2916, %v2915
      %v2939 = vpack.c.b16 %v2918, %v2917
      %v2940 = vpack.c.b16 %v2920, %v2919
      %v2941 = vpack.c.b16 %v2922, %v2921
      %v2942 = vpack.c.b16 %v2924, %v2923
      %v2943 = vpack.c.b16 %v2926, %v2925
      %v2944 = vpack.c.b16 %v2928, %v2927
      %v2945 = vpack.c.b16 %v2929, %v2929
      %v2947 = vshrl.u32 %v2930, 16
      %v2949 = vrot.slane %v2947, 3
      %v2950 = vshll.u32 %v2930, 16
      %v2952 = vrot.slane %v2950, 4
      %v2953 = vor.u32 %v2949, %v2952
      %v2955 = vshrl.u32 %v2931, 16
      %v2957 = vrot.slane %v2955, 3
      %v2958 = vshll.u32 %v2931, 16
      %v2960 = vrot.slane %v2958, 4
      %v2961 = vor.u32 %v2957, %v2960
      %v2962 = vsel %vm674, %v2953, %v2961
      %v2964 = vshrl.u32 %v2932, 16
      %v2966 = vrot.slane %v2964, 3
      %v2967 = vshll.u32 %v2932, 16
      %v2969 = vrot.slane %v2967, 4
      %v2970 = vor.u32 %v2966, %v2969
      %v2971 = vsel %vm674, %v2961, %v2970
      %v2973 = vshrl.u32 %v2933, 16
      %v2975 = vrot.slane %v2973, 3
      %v2976 = vshll.u32 %v2933, 16
      %v2978 = vrot.slane %v2976, 4
      %v2979 = vor.u32 %v2975, %v2978
      %v2980 = vsel %vm674, %v2970, %v2979
      %v2982 = vshrl.u32 %v2934, 16
      %v2984 = vrot.slane %v2982, 3
      %v2985 = vshll.u32 %v2934, 16
      %v2987 = vrot.slane %v2985, 4
      %v2988 = vor.u32 %v2984, %v2987
      %v2989 = vsel %vm674, %v2979, %v2988
      %v2991 = vshrl.u32 %v2935, 16
      %v2993 = vrot.slane %v2991, 3
      %v2994 = vshll.u32 %v2935, 16
      %v2996 = vrot.slane %v2994, 4
      %v2997 = vor.u32 %v2993, %v2996
      %v2998 = vsel %vm674, %v2988, %v2997
      %v3000 = vshrl.u32 %v2936, 16
      %v3002 = vrot.slane %v3000, 3
      %v3003 = vshll.u32 %v2936, 16
      %v3005 = vrot.slane %v3003, 4
      %v3006 = vor.u32 %v3002, %v3005
      %v3007 = vsel %vm674, %v2997, %v3006
      %v3009 = vshrl.u32 %v2937, 16
      %v3011 = vrot.slane %v3009, 3
      %v3012 = vshll.u32 %v2937, 16
      %v3014 = vrot.slane %v3012, 4
      %v3015 = vor.u32 %v3011, %v3014
      %v3016 = vsel %vm674, %v3006, %v3015
      %v3018 = vshrl.u32 %v2938, 16
      %v3020 = vrot.slane %v3018, 3
      %v3021 = vshll.u32 %v2938, 16
      %v3023 = vrot.slane %v3021, 4
      %v3024 = vor.u32 %v3020, %v3023
      %v3025 = vsel %vm674, %v3015, %v3024
      %v3027 = vshrl.u32 %v2939, 16
      %v3029 = vrot.slane %v3027, 3
      %v3030 = vshll.u32 %v2939, 16
      %v3032 = vrot.slane %v3030, 4
      %v3033 = vor.u32 %v3029, %v3032
      %v3034 = vsel %vm674, %v3024, %v3033
      %v3036 = vshrl.u32 %v2940, 16
      %v3038 = vrot.slane %v3036, 3
      %v3039 = vshll.u32 %v2940, 16
      %v3041 = vrot.slane %v3039, 4
      %v3042 = vor.u32 %v3038, %v3041
      %v3043 = vsel %vm674, %v3033, %v3042
      %v3045 = vshrl.u32 %v2941, 16
      %v3047 = vrot.slane %v3045, 3
      %v3048 = vshll.u32 %v2941, 16
      %v3050 = vrot.slane %v3048, 4
      %v3051 = vor.u32 %v3047, %v3050
      %v3052 = vsel %vm674, %v3042, %v3051
      %v3054 = vshrl.u32 %v2942, 16
      %v3056 = vrot.slane %v3054, 3
      %v3057 = vshll.u32 %v2942, 16
      %v3059 = vrot.slane %v3057, 4
      %v3060 = vor.u32 %v3056, %v3059
      %v3061 = vsel %vm674, %v3051, %v3060
      %v3063 = vshrl.u32 %v2943, 16
      %v3065 = vrot.slane %v3063, 3
      %v3066 = vshll.u32 %v2943, 16
      %v3068 = vrot.slane %v3066, 4
      %v3069 = vor.u32 %v3065, %v3068
      %v3070 = vsel %vm674, %v3060, %v3069
      %v3072 = vshrl.u32 %v2944, 16
      %v3074 = vrot.slane %v3072, 3
      %v3075 = vshll.u32 %v2944, 16
      %v3077 = vrot.slane %v3075, 4
      %v3078 = vor.u32 %v3074, %v3077
      %v3079 = vsel %vm674, %v3069, %v3078
      %v3081 = vshrl.u32 %v2945, 16
      %v3083 = vrot.slane %v3081, 3
      %v3084 = vshll.u32 %v2945, 16
      %v3086 = vrot.slane %v3084, 4
      %v3087 = vor.u32 %v3083, %v3086
      %v3088 = vsel %vm674, %v3078, %v3087
      %v3120 = vunpack.c.l.b16 %v2852
      %v3121 = vunpack.c.l.b16 %v2853
      %v3122 = vunpack.c.l.b16 %v2854
      %v3123 = vunpack.c.l.b16 %v2855
      %v3124 = vunpack.c.l.b16 %v2856
      %v3125 = vunpack.c.l.b16 %v2857
      %v3126 = vunpack.c.l.b16 %v2858
      %v3127 = vunpack.c.l.b16 %v2859
      %v3128 = vunpack.c.l.b16 %v2860
      %v3129 = vunpack.c.l.b16 %v2861
      %v3130 = vunpack.c.l.b16 %v2862
      %v3131 = vunpack.c.l.b16 %v2863
      %v3132 = vunpack.c.l.b16 %v2864
      %v3133 = vunpack.c.l.b16 %v2865
      %v3134 = vunpack.c.l.b16 %v2866
      %v3135 = vunpack.c.l.b16 %v2867
      %v3136 = vpack.c.b16 %v3121, %v3120
      %v3137 = vpack.c.b16 %v3123, %v3122
      %v3138 = vpack.c.b16 %v3125, %v3124
      %v3139 = vpack.c.b16 %v3127, %v3126
      %v3140 = vpack.c.b16 %v3129, %v3128
      %v3141 = vpack.c.b16 %v3131, %v3130
      %v3142 = vpack.c.b16 %v3133, %v3132
      %v3143 = vpack.c.b16 %v3135, %v3134
      %3152 = vmatprep.subr.bf16.mxu0 0
      %3153 = vmatpush1.bf16.msra.mxu0 %v3136
      %3154 = vmatprep.subr.bf16.mxu0 0
      %3155 = vmatpush1.bf16.msra.mxu0 %v3137
      %3156 = vmatprep.subr.bf16.mxu0 0
      %3157 = vmatpush1.bf16.msra.mxu0 %v3138
      %3158 = vmatprep.subr.bf16.mxu0 0
      %3159 = vmatpush1.bf16.msra.mxu0 %v3139
      %3160 = vmatprep.subr.bf16.mxu0 0
      %3161 = vmatpush1.bf16.msra.mxu0 %v3140
      %3162 = vmatprep.subr.bf16.mxu0 0
      %3163 = vmatpush1.bf16.msra.mxu0 %v3141
      %3164 = vmatprep.subr.bf16.mxu0 0
      %3165 = vmatpush1.bf16.msra.mxu0 %v3142
      %3166 = vmatprep.subr.bf16.mxu0 0
      %3167 = vmatpush1.bf16.msra.mxu0 %v3143
      %3168 = vmatprep.subr.bf16.mxu0 0
      %3169 = vmatpush1.bf16.msra.mxu0 0
      %3170 = vmatprep.subr.bf16.mxu0 0
      %3171 = vmatpush1.bf16.msra.mxu0 0
      %3172 = vmatprep.subr.bf16.mxu0 0
      %3173 = vmatpush1.bf16.msra.mxu0 0
      %3174 = vmatprep.subr.bf16.mxu0 0
      %3175 = vmatpush1.bf16.msra.mxu0 0
      %3176 = vmatprep.subr.bf16.mxu0 0
      %3177 = vmatpush1.bf16.msra.mxu0 0
      %3178 = vmatprep.subr.bf16.mxu0 0
      %3179 = vmatpush1.bf16.msra.mxu0 0
      %3180 = vmatprep.subr.bf16.mxu0 0
      %3181 = vmatpush1.bf16.msra.mxu0 0
      %3182 = vmatprep.subr.bf16.mxu0 0
      %3183 = vmatpush1.bf16.msra.mxu0 0
      %3184 = vmatprep.mubr.bf16.mxu0 0
      %3185 = vmatmul.mubr.bf16.gmra.mrb[0].mxu0 %v2962
      %v3186 = vpop.f32.mrb[0].mxu0
      %v3187 = vadd.f32 0.0, %v3186
      %v3188 = vpop.f32.mrb[0].mxu0
      %v3189 = vpop.f32.mrb[0].mxu0
      %v3190 = vadd.f32 0.0, %v3189
      %v3191 = vpop.f32.mrb[0].mxu0
      %3192 = vmatprep.mubr.bf16.mxu0 0
      %3193 = vmatmul.mubr.bf16.gmra.mrb[0].mxu0 %v2971
      %v3194 = vpop.f32.mrb[0].mxu0
      %v3195 = vadd.f32 0.0, %v3194
      %v3196 = vpop.f32.mrb[0].mxu0
      %v3197 = vpop.f32.mrb[0].mxu0
      %v3198 = vadd.f32 0.0, %v3197
      %v3199 = vpop.f32.mrb[0].mxu0
      %3200 = vmatprep.mubr.bf16.mxu0 0
      %3201 = vmatmul.mubr.bf16.gmra.mrb[0].mxu0 %v2980
      %v3202 = vpop.f32.mrb[0].mxu0
      %v3203 = vadd.f32 0.0, %v3202
      %v3204 = vpop.f32.mrb[0].mxu0
      %v3205 = vpop.f32.mrb[0].mxu0
      %v3206 = vadd.f32 0.0, %v3205
      %v3207 = vpop.f32.mrb[0].mxu0
      %3208 = vmatprep.mubr.bf16.mxu0 0
      %3209 = vmatmul.mubr.bf16.gmra.mrb[0].mxu0 %v2989
      %v3210 = vpop.f32.mrb[0].mxu0
      %v3211 = vadd.f32 0.0, %v3210
      %v3212 = vpop.f32.mrb[0].mxu0
      %v3213 = vpop.f32.mrb[0].mxu0
      %v3214 = vadd.f32 0.0, %v3213
      %v3215 = vpop.f32.mrb[0].mxu0
      %3216 = vmatprep.mubr.bf16.mxu0 0
      %3217 = vmatmul.mubr.bf16.gmra.mrb[0].mxu0 %v2998
      %v3218 = vpop.f32.mrb[0].mxu0
      %v3219 = vadd.f32 0.0, %v3218
      %v3220 = vpop.f32.mrb[0].mxu0
      %v3221 = vpop.f32.mrb[0].mxu0
      %v3222 = vadd.f32 0.0, %v3221
      %v3223 = vpop.f32.mrb[0].mxu0
      %3224 = vmatprep.mubr.bf16.mxu0 0
      %3225 = vmatmul.mubr.bf16.gmra.mrb[0].mxu0 %v3007
      %v3226 = vpop.f32.mrb[0].mxu0
      %v3227 = vadd.f32 0.0, %v3226
      %v3228 = vpop.f32.mrb[0].mxu0
      %v3229 = vpop.f32.mrb[0].mxu0
      %v3230 = vadd.f32 0.0, %v3229
      %v3231 = vpop.f32.mrb[0].mxu0
      %3232 = vmatprep.mubr.bf16.mxu0 0
      %3233 = vmatmul.mubr.bf16.gmra.mrb[0].mxu0 %v3016
      %v3234 = vpop.f32.mrb[0].mxu0
      %v3235 = vadd.f32 0.0, %v3234
      %v3236 = vpop.f32.mrb[0].mxu0
      %v3237 = vpop.f32.mrb[0].mxu0
      %v3238 = vadd.f32 0.0, %v3237
      %v3239 = vpop.f32.mrb[0].mxu0
      %3240 = vmatprep.mubr.bf16.mxu0 0
      %3241 = vmatmul.mubr.bf16.gmra.mrb[0].mxu0 %v3025
      %v3242 = vpop.f32.mrb[0].mxu0
      %v3243 = vadd.f32 0.0, %v3242
      %v3244 = vpop.f32.mrb[0].mxu0
      %v3245 = vpop.f32.mrb[0].mxu0
      %v3246 = vadd.f32 0.0, %v3245
      %v3247 = vpop.f32.mrb[0].mxu0
      %3248 = vmatprep.mubr.bf16.mxu0 0
      %3249 = vmatmul.mubr.bf16.gmra.mrb[0].mxu0 %v3034
      %v3250 = vpop.f32.mrb[0].mxu0
      %v3251 = vadd.f32 0.0, %v3250
      %v3252 = vpop.f32.mrb[0].mxu0
      %v3253 = vpop.f32.mrb[0].mxu0
      %v3254 = vadd.f32 0.0, %v3253
      %v3255 = vpop.f32.mrb[0].mxu0
      %3256 = vmatprep.mubr.bf16.mxu0 0
      %3257 = vmatmul.mubr.bf16.gmra.mrb[0].mxu0 %v3043
      %v3258 = vpop.f32.mrb[0].mxu0
      %v3259 = vadd.f32 0.0, %v3258
      %v3260 = vpop.f32.mrb[0].mxu0
      %v3261 = vpop.f32.mrb[0].mxu0
      %v3262 = vadd.f32 0.0, %v3261
      %v3263 = vpop.f32.mrb[0].mxu0
      %3264 = vmatprep.mubr.bf16.mxu0 0
      %3265 = vmatmul.mubr.bf16.gmra.mrb[0].mxu0 %v3052
      %v3266 = vpop.f32.mrb[0].mxu0
      %v3267 = vadd.f32 0.0, %v3266
      %v3268 = vpop.f32.mrb[0].mxu0
      %v3269 = vpop.f32.mrb[0].mxu0
      %v3270 = vadd.f32 0.0, %v3269
      %v3271 = vpop.f32.mrb[0].mxu0
      %3272 = vmatprep.mubr.bf16.mxu0 0
      %3273 = vmatmul.mubr.bf16.gmra.mrb[0].mxu0 %v3061
      %v3274 = vpop.f32.mrb[0].mxu0
      %v3275 = vadd.f32 0.0, %v3274
      %v3276 = vpop.f32.mrb[0].mxu0
      %v3277 = vpop.f32.mrb[0].mxu0
      %v3278 = vadd.f32 0.0, %v3277
      %v3279 = vpop.f32.mrb[0].mxu0
      %3280 = vmatprep.mubr.bf16.mxu0 0
      %3281 = vmatmul.mubr.bf16.gmra.mrb[0].mxu0 %v3070
      %v3282 = vpop.f32.mrb[0].mxu0
      %v3283 = vadd.f32 0.0, %v3282
      %v3284 = vpop.f32.mrb[0].mxu0
      %v3285 = vpop.f32.mrb[0].mxu0
      %v3286 = vadd.f32 0.0, %v3285
      %v3287 = vpop.f32.mrb[0].mxu0
      %3288 = vmatprep.mubr.bf16.mxu0 0
      %3289 = vmatmul.mubr.bf16.gmra.mrb[0].mxu0 %v3079
      %v3290 = vpop.f32.mrb[0].mxu0
      %v3291 = vadd.f32 0.0, %v3290
      %v3292 = vpop.f32.mrb[0].mxu0
      %v3293 = vpop.f32.mrb[0].mxu0
      %v3294 = vadd.f32 0.0, %v3293
      %v3295 = vpop.f32.mrb[0].mxu0
      %3296 = vmatprep.mubr.bf16.mxu0 0
      %3297 = vmatmul.mubr.bf16.gmra.mrb[0].mxu0 %v3088
      %v3298 = vpop.f32.mrb[0].mxu0
      %v3299 = vadd.f32 0.0, %v3298
      %v3300 = vpop.f32.mrb[0].mxu0
      %v3301 = vpop.f32.mrb[0].mxu0
      %v3302 = vadd.f32 0.0, %v3301
      %v3303 = vpop.f32.mrb[0].mxu0
      %3304 = vdwg.mxu0
      %v3305 = vadd.f32 %v2790, %v3187
      %v3306 = vadd.f32 %v2791, %v3190
      %v3307 = vadd.f32 %v2792, %v3195
      %v3308 = vadd.f32 %v2793, %v3198
      %v3309 = vadd.f32 %v2794, %v3203
      %v3310 = vadd.f32 %v2795, %v3206
      %v3311 = vadd.f32 %v2796, %v3211
      %v3312 = vadd.f32 %v2797, %v3214
      %v3313 = vadd.f32 %v2798, %v3219
      %v3314 = vadd.f32 %v2799, %v3222
      %v3315 = vadd.f32 %v2800, %v3227
      %v3316 = vadd.f32 %v2801, %v3230
      %v3317 = vadd.f32 %v2802, %v3235
      %v3318 = vadd.f32 %v2803, %v3238
      %v3319 = vadd.f32 %v2804, %v3243
      %v3320 = vadd.f32 %v2805, %v3246
      %v3321 = vadd.f32 %v2806, %v3251
      %v3322 = vadd.f32 %v2807, %v3254
      %v3323 = vadd.f32 %v2808, %v3259
      %v3324 = vadd.f32 %v2809, %v3262
      %v3325 = vadd.f32 %v2810, %v3267
      %v3326 = vadd.f32 %v2811, %v3270
      %v3327 = vadd.f32 %v2812, %v3275
      %v3328 = vadd.f32 %v2813, %v3278
      %v3329 = vadd.f32 %v2814, %v3283
      %v3330 = vadd.f32 %v2815, %v3286
      %v3331 = vadd.f32 %v2816, %v3291
      %v3332 = vadd.f32 %v2817, %v3294
      %v3333 = vadd.f32 %v2818, %v3299
      %v3334 = vadd.f32 %v2819, %v3302
      %s3335 = scalar_lea.vmem %s1, 448
      %v3336 = vld [vmem:[%s3335] sm:$0xf]
      %v3337 = vld [vmem:[%s3335 + $0x4] sm:$0xf]
      %v3338 = vld [vmem:[%s3335 + $0x8] sm:$0xf]
      %v3339 = vld [vmem:[%s3335 + $0xc] sm:$0xf]
      %v3340 = vld [vmem:[%s3335 + $0x10] sm:$0xf]
      %v3341 = vld [vmem:[%s3335 + $0x14] sm:$0xf]
      %v3342 = vld [vmem:[%s3335 + $0x18] sm:$0xf]
      %v3343 = vld [vmem:[%s3335 + $0x1c] sm:$0xf]
      %v3344 = vld [vmem:[%s3335 + $0x20] sm:$0xf]
      %v3345 = vld [vmem:[%s3335 + $0x24] sm:$0xf]
      %v3346 = vld [vmem:[%s3335 + $0x28] sm:$0xf]
      %v3347 = vld [vmem:[%s3335 + $0x2c] sm:$0xf]
      %v3348 = vld [vmem:[%s3335 + $0x30] sm:$0xf]
      %v3349 = vld [vmem:[%s3335 + $0x34] sm:$0xf]
      %v3350 = vld [vmem:[%s3335 + $0x38] sm:$0xf]
      %v3351 = vld [vmem:[%s3335 + $0x3c] sm:$0xf]
      %v3352 = vpack.c.b16 %v2901, %v2900
      %v3353 = vpack.c.b16 %v2903, %v2902
      %v3354 = vpack.c.b16 %v2905, %v2904
      %v3355 = vpack.c.b16 %v2907, %v2906
      %v3356 = vpack.c.b16 %v2909, %v2908
      %v3357 = vpack.c.b16 %v2911, %v2910
      %v3358 = vpack.c.b16 %v2913, %v2912
      %v3359 = vpack.c.b16 %v2915, %v2914
      %v3360 = vpack.c.b16 %v2917, %v2916
      %v3361 = vpack.c.b16 %v2919, %v2918
      %v3362 = vpack.c.b16 %v2921, %v2920
      %v3363 = vpack.c.b16 %v2923, %v2922
      %v3364 = vpack.c.b16 %v2925, %v2924
      %v3365 = vpack.c.b16 %v2927, %v2926
      %v3366 = vpack.c.b16 %v2929, %v2928
      %v3398 = vunpack.c.l.b16 %v3336
      %v3399 = vunpack.c.l.b16 %v3337
      %v3400 = vunpack.c.l.b16 %v3338
      %v3401 = vunpack.c.l.b16 %v3339
      %v3402 = vunpack.c.l.b16 %v3340
      %v3403 = vunpack.c.l.b16 %v3341
      %v3404 = vunpack.c.l.b16 %v3342
      %v3405 = vunpack.c.l.b16 %v3343
      %v3406 = vunpack.c.l.b16 %v3344
      %v3407 = vunpack.c.l.b16 %v3345
      %v3408 = vunpack.c.l.b16 %v3346
      %v3409 = vunpack.c.l.b16 %v3347
      %v3410 = vunpack.c.l.b16 %v3348
      %v3411 = vunpack.c.l.b16 %v3349
      %v3412 = vunpack.c.l.b16 %v3350
      %v3413 = vunpack.c.l.b16 %v3351
      %v3414 = vpack.c.b16 %v3399, %v3398
      %v3415 = vpack.c.b16 %v3401, %v3400
      %v3416 = vpack.c.b16 %v3403, %v3402
      %v3417 = vpack.c.b16 %v3405, %v3404
      %v3418 = vpack.c.b16 %v3407, %v3406
      %v3419 = vpack.c.b16 %v3409, %v3408
      %v3420 = vpack.c.b16 %v3411, %v3410
      %v3421 = vpack.c.b16 %v3413, %v3412
      %3430 = vmatprep.subr.bf16.mxu0 0
      %3431 = vmatpush1.bf16.msra.mxu0 %v3414
      %3432 = vmatprep.subr.bf16.mxu0 0
      %3433 = vmatpush1.bf16.msra.mxu0 %v3415
      %3434 = vmatprep.subr.bf16.mxu0 0
      %3435 = vmatpush1.bf16.msra.mxu0 %v3416
      %3436 = vmatprep.subr.bf16.mxu0 0
      %3437 = vmatpush1.bf16.msra.mxu0 %v3417
      %3438 = vmatprep.subr.bf16.mxu0 0
      %3439 = vmatpush1.bf16.msra.mxu0 %v3418
      %3440 = vmatprep.subr.bf16.mxu0 0
      %3441 = vmatpush1.bf16.msra.mxu0 %v3419
      %3442 = vmatprep.subr.bf16.mxu0 0
      %3443 = vmatpush1.bf16.msra.mxu0 %v3420
      %3444 = vmatprep.subr.bf16.mxu0 0
      %3445 = vmatpush1.bf16.msra.mxu0 %v3421
      %3446 = vmatprep.subr.bf16.mxu0 0
      %3447 = vmatpush1.bf16.msra.mxu0 0
      %3448 = vmatprep.subr.bf16.mxu0 0
      %3449 = vmatpush1.bf16.msra.mxu0 0
      %3450 = vmatprep.subr.bf16.mxu0 0
      %3451 = vmatpush1.bf16.msra.mxu0 0
      %3452 = vmatprep.subr.bf16.mxu0 0
      %3453 = vmatpush1.bf16.msra.mxu0 0
      %3454 = vmatprep.subr.bf16.mxu0 0
      %3455 = vmatpush1.bf16.msra.mxu0 0
      %3456 = vmatprep.subr.bf16.mxu0 0
      %3457 = vmatpush1.bf16.msra.mxu0 0
      %3458 = vmatprep.subr.bf16.mxu0 0
      %3459 = vmatpush1.bf16.msra.mxu0 0
      %3460 = vmatprep.subr.bf16.mxu0 0
      %3461 = vmatpush1.bf16.msra.mxu0 0
      %3462 = vmatprep.mubr.bf16.mxu0 0
      %3463 = vmatmul.mubr.bf16.gmra.mrb[0].mxu0 %v3352
      %v3464 = vpop.f32.mrb[0].mxu0
      %v3465 = vadd.f32 0.0, %v3464
      %v3466 = vpop.f32.mrb[0].mxu0
      %v3467 = vpop.f32.mrb[0].mxu0
      %v3468 = vadd.f32 0.0, %v3467
      %v3469 = vpop.f32.mrb[0].mxu0
      %3470 = vmatprep.mubr.bf16.mxu0 0
      %3471 = vmatmul.mubr.bf16.gmra.mrb[0].mxu0 %v3353
      %v3472 = vpop.f32.mrb[0].mxu0
      %v3473 = vadd.f32 0.0, %v3472
      %v3474 = vpop.f32.mrb[0].mxu0
      %v3475 = vpop.f32.mrb[0].mxu0
      %v3476 = vadd.f32 0.0, %v3475
      %v3477 = vpop.f32.mrb[0].mxu0
      %3478 = vmatprep.mubr.bf16.mxu0 0
      %3479 = vmatmul.mubr.bf16.gmra.mrb[0].mxu0 %v3354
      %v3480 = vpop.f32.mrb[0].mxu0
      %v3481 = vadd.f32 0.0, %v3480
      %v3482 = vpop.f32.mrb[0].mxu0
      %v3483 = vpop.f32.mrb[0].mxu0
      %v3484 = vadd.f32 0.0, %v3483
      %v3485 = vpop.f32.mrb[0].mxu0
      %3486 = vmatprep.mubr.bf16.mxu0 0
      %3487 = vmatmul.mubr.bf16.gmra.mrb[0].mxu0 %v3355
      %v3488 = vpop.f32.mrb[0].mxu0
      %v3489 = vadd.f32 0.0, %v3488
      %v3490 = vpop.f32.mrb[0].mxu0
      %v3491 = vpop.f32.mrb[0].mxu0
      %v3492 = vadd.f32 0.0, %v3491
      %v3493 = vpop.f32.mrb[0].mxu0
      %3494 = vmatprep.mubr.bf16.mxu0 0
      %3495 = vmatmul.mubr.bf16.gmra.mrb[0].mxu0 %v3356
      %v3496 = vpop.f32.mrb[0].mxu0
      %v3497 = vadd.f32 0.0, %v3496
      %v3498 = vpop.f32.mrb[0].mxu0
      %v3499 = vpop.f32.mrb[0].mxu0
      %v3500 = vadd.f32 0.0, %v3499
      %v3501 = vpop.f32.mrb[0].mxu0
      %3502 = vmatprep.mubr.bf16.mxu0 0
      %3503 = vmatmul.mubr.bf16.gmra.mrb[0].mxu0 %v3357
      %v3504 = vpop.f32.mrb[0].mxu0
      %v3505 = vadd.f32 0.0, %v3504
      %v3506 = vpop.f32.mrb[0].mxu0
      %v3507 = vpop.f32.mrb[0].mxu0
      %v3508 = vadd.f32 0.0, %v3507
      %v3509 = vpop.f32.mrb[0].mxu0
      %3510 = vmatprep.mubr.bf16.mxu0 0
      %3511 = vmatmul.mubr.bf16.gmra.mrb[0].mxu0 %v3358
      %v3512 = vpop.f32.mrb[0].mxu0
      %v3513 = vadd.f32 0.0, %v3512
      %v3514 = vpop.f32.mrb[0].mxu0
      %v3515 = vpop.f32.mrb[0].mxu0
      %v3516 = vadd.f32 0.0, %v3515
      %v3517 = vpop.f32.mrb[0].mxu0
      %3518 = vmatprep.mubr.bf16.mxu0 0
      %3519 = vmatmul.mubr.bf16.gmra.mrb[0].mxu0 %v3359
      %v3520 = vpop.f32.mrb[0].mxu0
      %v3521 = vadd.f32 0.0, %v3520
      %v3522 = vpop.f32.mrb[0].mxu0
      %v3523 = vpop.f32.mrb[0].mxu0
      %v3524 = vadd.f32 0.0, %v3523
      %v3525 = vpop.f32.mrb[0].mxu0
      %3526 = vmatprep.mubr.bf16.mxu0 0
      %3527 = vmatmul.mubr.bf16.gmra.mrb[0].mxu0 %v3360
      %v3528 = vpop.f32.mrb[0].mxu0
      %v3529 = vadd.f32 0.0, %v3528
      %v3530 = vpop.f32.mrb[0].mxu0
      %v3531 = vpop.f32.mrb[0].mxu0
      %v3532 = vadd.f32 0.0, %v3531
      %v3533 = vpop.f32.mrb[0].mxu0
      %3534 = vmatprep.mubr.bf16.mxu0 0
      %3535 = vmatmul.mubr.bf16.gmra.mrb[0].mxu0 %v3361
      %v3536 = vpop.f32.mrb[0].mxu0
      %v3537 = vadd.f32 0.0, %v3536
      %v3538 = vpop.f32.mrb[0].mxu0
      %v3539 = vpop.f32.mrb[0].mxu0
      %v3540 = vadd.f32 0.0, %v3539
      %v3541 = vpop.f32.mrb[0].mxu0
      %3542 = vmatprep.mubr.bf16.mxu0 0
      %3543 = vmatmul.mubr.bf16.gmra.mrb[0].mxu0 %v3362
      %v3544 = vpop.f32.mrb[0].mxu0
      %v3545 = vadd.f32 0.0, %v3544
      %v3546 = vpop.f32.mrb[0].mxu0
      %v3547 = vpop.f32.mrb[0].mxu0
      %v3548 = vadd.f32 0.0, %v3547
      %v3549 = vpop.f32.mrb[0].mxu0
      %3550 = vmatprep.mubr.bf16.mxu0 0
      %3551 = vmatmul.mubr.bf16.gmra.mrb[0].mxu0 %v3363
      %v3552 = vpop.f32.mrb[0].mxu0
      %v3553 = vadd.f32 0.0, %v3552
      %v3554 = vpop.f32.mrb[0].mxu0
      %v3555 = vpop.f32.mrb[0].mxu0
      %v3556 = vadd.f32 0.0, %v3555
      %v3557 = vpop.f32.mrb[0].mxu0
      %3558 = vmatprep.mubr.bf16.mxu0 0
      %3559 = vmatmul.mubr.bf16.gmra.mrb[0].mxu0 %v3364
      %v3560 = vpop.f32.mrb[0].mxu0
      %v3561 = vadd.f32 0.0, %v3560
      %v3562 = vpop.f32.mrb[0].mxu0
      %v3563 = vpop.f32.mrb[0].mxu0
      %v3564 = vadd.f32 0.0, %v3563
      %v3565 = vpop.f32.mrb[0].mxu0
      %3566 = vmatprep.mubr.bf16.mxu0 0
      %3567 = vmatmul.mubr.bf16.gmra.mrb[0].mxu0 %v3365
      %v3568 = vpop.f32.mrb[0].mxu0
      %v3569 = vadd.f32 0.0, %v3568
      %v3570 = vpop.f32.mrb[0].mxu0
      %v3571 = vpop.f32.mrb[0].mxu0
      %v3572 = vadd.f32 0.0, %v3571
      %v3573 = vpop.f32.mrb[0].mxu0
      %3574 = vmatprep.mubr.bf16.mxu0 0
      %3575 = vmatmul.mubr.bf16.gmra.mrb[0].mxu0 %v3366
      %v3576 = vpop.f32.mrb[0].mxu0
      %v3577 = vadd.f32 0.0, %v3576
      %v3578 = vpop.f32.mrb[0].mxu0
      %v3579 = vpop.f32.mrb[0].mxu0
      %v3580 = vadd.f32 0.0, %v3579
      %v3581 = vpop.f32.mrb[0].mxu0
      %3582 = vdwg.mxu0
      %v3583 = vadd.f32 %v3305, %v3465
      %v3584 = vadd.f32 %v3306, %v3468
      %v3585 = vadd.f32 %v3307, %v3473
      %v3586 = vadd.f32 %v3308, %v3476
      %v3587 = vadd.f32 %v3309, %v3481
      %v3588 = vadd.f32 %v3310, %v3484
      %v3589 = vadd.f32 %v3311, %v3489
      %v3590 = vadd.f32 %v3312, %v3492
      %v3591 = vadd.f32 %v3313, %v3497
      %v3592 = vadd.f32 %v3314, %v3500
      %v3593 = vadd.f32 %v3315, %v3505
      %v3594 = vadd.f32 %v3316, %v3508
      %v3595 = vadd.f32 %v3317, %v3513
      %v3596 = vadd.f32 %v3318, %v3516
      %v3597 = vadd.f32 %v3319, %v3521
      %v3598 = vadd.f32 %v3320, %v3524
      %v3599 = vadd.f32 %v3321, %v3529
      %v3600 = vadd.f32 %v3322, %v3532
      %v3601 = vadd.f32 %v3323, %v3537
      %v3602 = vadd.f32 %v3324, %v3540
      %v3603 = vadd.f32 %v3325, %v3545
      %v3604 = vadd.f32 %v3326, %v3548
      %v3605 = vadd.f32 %v3327, %v3553
      %v3606 = vadd.f32 %v3328, %v3556
      %v3607 = vadd.f32 %v3329, %v3561
      %v3608 = vadd.f32 %v3330, %v3564
      %v3609 = vadd.f32 %v3331, %v3569
      %v3610 = vadd.f32 %v3332, %v3572
      %v3611 = vadd.f32 %v3333, %v3577
      %v3612 = vadd.f32 %v3334, %v3580
      %v3613 = vld [vmem:[%s273 + $0x1c] sm:$0xf]
      %v3614 = vld [vmem:[%s273 + $0x20] sm:$0xf]
      %v3615 = vld [vmem:[%s273 + $0x24] sm:$0xf]
      %v3616 = vld [vmem:[%s273 + $0x28] sm:$0xf]
      %v3617 = vld [vmem:[%s273 + $0x2c] sm:$0xf]
      %v3618 = vld [vmem:[%s273 + $0x30] sm:$0xf]
      %v3619 = vld [vmem:[%s273 + $0x34] sm:$0xf]
      %v3620 = vld [vmem:[%s273 + $0x38] sm:$0xf]
      %v3621 = vld [vmem:[%s273 + $0x3c] sm:$0xf]
      %v3622 = vld [vmem:[%s273 + $0x40] sm:$0xf]
      %v3623 = vld [vmem:[%s273 + $0x44] sm:$0xf]
      %v3624 = vld [vmem:[%s273 + $0x48] sm:$0xf]
      %v3625 = vld [vmem:[%s273 + $0x4c] sm:$0xf]
      %v3626 = vld [vmem:[%s273 + $0x50] sm:$0xf]
      %v3627 = vld [vmem:[%s273 + $0x54] sm:$0xf]
      %v3628 = vld [vmem:[%s273 + $0x58] sm:$0xf]
      %v3629 = vld [vmem:[%s273 + $0x5c] sm:$0xf]
      %v3630 = vld [vmem:[%s273 + $0x60] sm:$0xf]
      %v3631 = vld [vmem:[%s273 + $0x64] sm:$0xf]
      %v3632 = vld [vmem:[%s273 + $0x68] sm:$0xf]
      %v3633 = vld [vmem:[%s273 + $0x6c] sm:$0xf]
      %v3634 = vld [vmem:[%s273 + $0x70] sm:$0xf]
      %v3635 = vld [vmem:[%s273 + $0x74] sm:$0xf]
      %v3636 = vld [vmem:[%s273 + $0x78] sm:$0xf]
      %v3637 = vld [vmem:[%s273 + $0x7c] sm:$0xf]
      %v3638 = vld [vmem:[%s273 + $0x80] sm:$0xf]
      %v3639 = vld [vmem:[%s273 + $0x84] sm:$0xf]
      %v3640 = vld [vmem:[%s273 + $0x88] sm:$0xf]
      %v3641 = vld [vmem:[%s273 + $0x8c] sm:$0xf]
      %v3642 = vld [vmem:[%s273 + $0x90] sm:$0xf]
      %v3643 = vld [vmem:[%s273 + $0x94] sm:$0x1]
      %s3644 = scalar_lea.vmem %s1, 512
      %v3645 = vld [vmem:[%s3644] sm:$0xf]
      %v3646 = vld [vmem:[%s3644 + $0x4] sm:$0xf]
      %v3647 = vld [vmem:[%s3644 + $0x8] sm:$0xf]
      %v3648 = vld [vmem:[%s3644 + $0xc] sm:$0xf]
      %v3649 = vld [vmem:[%s3644 + $0x10] sm:$0xf]
      %v3650 = vld [vmem:[%s3644 + $0x14] sm:$0xf]
      %v3651 = vld [vmem:[%s3644 + $0x18] sm:$0xf]
      %v3652 = vld [vmem:[%s3644 + $0x1c] sm:$0xf]
      %v3653 = vld [vmem:[%s3644 + $0x20] sm:$0xf]
      %v3654 = vld [vmem:[%s3644 + $0x24] sm:$0xf]
      %v3655 = vld [vmem:[%s3644 + $0x28] sm:$0xf]
      %v3656 = vld [vmem:[%s3644 + $0x2c] sm:$0xf]
      %v3657 = vld [vmem:[%s3644 + $0x30] sm:$0xf]
      %v3658 = vld [vmem:[%s3644 + $0x34] sm:$0xf]
      %v3659 = vld [vmem:[%s3644 + $0x38] sm:$0xf]
      %v3660 = vld [vmem:[%s3644 + $0x3c] sm:$0xf]
      %v3692 = vunpack.c.l.b16 %v3613
      %v3693 = vunpack.c.l.b16 %v3614
      %v3694 = vunpack.c.l.b16 %v3615
      %v3695 = vunpack.c.l.b16 %v3616
      %v3696 = vunpack.c.l.b16 %v3617
      %v3697 = vunpack.c.l.b16 %v3618
      %v3698 = vunpack.c.l.b16 %v3619
      %v3699 = vunpack.c.l.b16 %v3620
      %v3700 = vunpack.c.l.b16 %v3621
      %v3701 = vunpack.c.l.b16 %v3622
      %v3702 = vunpack.c.l.b16 %v3623
      %v3703 = vunpack.c.l.b16 %v3624
      %v3704 = vunpack.c.l.b16 %v3625
      %v3705 = vunpack.c.l.b16 %v3626
      %v3706 = vunpack.c.l.b16 %v3627
      %v3707 = vunpack.c.l.b16 %v3628
      %v3708 = vunpack.c.l.b16 %v3629
      %v3709 = vunpack.c.l.b16 %v3630
      %v3710 = vunpack.c.l.b16 %v3631
      %v3711 = vunpack.c.l.b16 %v3632
      %v3712 = vunpack.c.l.b16 %v3633
      %v3713 = vunpack.c.l.b16 %v3634
      %v3714 = vunpack.c.l.b16 %v3635
      %v3715 = vunpack.c.l.b16 %v3636
      %v3716 = vunpack.c.l.b16 %v3637
      %v3717 = vunpack.c.l.b16 %v3638
      %v3718 = vunpack.c.l.b16 %v3639
      %v3719 = vunpack.c.l.b16 %v3640
      %v3720 = vunpack.c.l.b16 %v3641
      %v3721 = vunpack.c.l.b16 %v3642
      %v3722 = vunpack.c.l.b16 %v3643
      %v3723 = vpack.c.b16 %v3693, %v3692
      %v3724 = vpack.c.b16 %v3695, %v3694
      %v3725 = vpack.c.b16 %v3697, %v3696
      %v3726 = vpack.c.b16 %v3699, %v3698
      %v3727 = vpack.c.b16 %v3701, %v3700
      %v3728 = vpack.c.b16 %v3703, %v3702
      %v3729 = vpack.c.b16 %v3705, %v3704
      %v3730 = vpack.c.b16 %v3707, %v3706
      %v3731 = vpack.c.b16 %v3709, %v3708
      %v3732 = vpack.c.b16 %v3711, %v3710
      %v3733 = vpack.c.b16 %v3713, %v3712
      %v3734 = vpack.c.b16 %v3715, %v3714
      %v3735 = vpack.c.b16 %v3717, %v3716
      %v3736 = vpack.c.b16 %v3719, %v3718
      %v3737 = vpack.c.b16 %v3721, %v3720
      %v3738 = vpack.c.b16 %v3722, %v3722
      %v3740 = vshrl.u32 %v3723, 16
      %v3742 = vshll.u32 %v3723, 16
      %v3744 = vrot.slane %v3742, 1
      %v3745 = vor.u32 %v3740, %v3744
      %v3747 = vshll.u32 %v3724, 16
      %v3749 = vrot.slane %v3747, 1
      %v3750 = vsel %vm1160, %v3745, %v3749
      %v3751 = vshrl.u32 %v3724, 16
      %v3753 = vor.u32 %v3751, %v3749
      %v3755 = vshll.u32 %v3725, 16
      %v3757 = vrot.slane %v3755, 1
      %v3758 = vsel %vm1160, %v3753, %v3757
      %v3759 = vshrl.u32 %v3725, 16
      %v3761 = vor.u32 %v3759, %v3757
      %v3763 = vshll.u32 %v3726, 16
      %v3765 = vrot.slane %v3763, 1
      %v3766 = vsel %vm1160, %v3761, %v3765
      %v3767 = vshrl.u32 %v3726, 16
      %v3769 = vor.u32 %v3767, %v3765
      %v3771 = vshll.u32 %v3727, 16
      %v3773 = vrot.slane %v3771, 1
      %v3774 = vsel %vm1160, %v3769, %v3773
      %v3775 = vshrl.u32 %v3727, 16
      %v3777 = vor.u32 %v3775, %v3773
      %v3779 = vshll.u32 %v3728, 16
      %v3781 = vrot.slane %v3779, 1
      %v3782 = vsel %vm1160, %v3777, %v3781
      %v3783 = vshrl.u32 %v3728, 16
      %v3785 = vor.u32 %v3783, %v3781
      %v3787 = vshll.u32 %v3729, 16
      %v3789 = vrot.slane %v3787, 1
      %v3790 = vsel %vm1160, %v3785, %v3789
      %v3791 = vshrl.u32 %v3729, 16
      %v3793 = vor.u32 %v3791, %v3789
      %v3795 = vshll.u32 %v3730, 16
      %v3797 = vrot.slane %v3795, 1
      %v3798 = vsel %vm1160, %v3793, %v3797
      %v3799 = vshrl.u32 %v3730, 16
      %v3801 = vor.u32 %v3799, %v3797
      %v3803 = vshll.u32 %v3731, 16
      %v3805 = vrot.slane %v3803, 1
      %v3806 = vsel %vm1160, %v3801, %v3805
      %v3807 = vshrl.u32 %v3731, 16
      %v3809 = vor.u32 %v3807, %v3805
      %v3811 = vshll.u32 %v3732, 16
      %v3813 = vrot.slane %v3811, 1
      %v3814 = vsel %vm1160, %v3809, %v3813
      %v3815 = vshrl.u32 %v3732, 16
      %v3817 = vor.u32 %v3815, %v3813
      %v3819 = vshll.u32 %v3733, 16
      %v3821 = vrot.slane %v3819, 1
      %v3822 = vsel %vm1160, %v3817, %v3821
      %v3823 = vshrl.u32 %v3733, 16
      %v3825 = vor.u32 %v3823, %v3821
      %v3827 = vshll.u32 %v3734, 16
      %v3829 = vrot.slane %v3827, 1
      %v3830 = vsel %vm1160, %v3825, %v3829
      %v3831 = vshrl.u32 %v3734, 16
      %v3833 = vor.u32 %v3831, %v3829
      %v3835 = vshll.u32 %v3735, 16
      %v3837 = vrot.slane %v3835, 1
      %v3838 = vsel %vm1160, %v3833, %v3837
      %v3839 = vshrl.u32 %v3735, 16
      %v3841 = vor.u32 %v3839, %v3837
      %v3843 = vshll.u32 %v3736, 16
      %v3845 = vrot.slane %v3843, 1
      %v3846 = vsel %vm1160, %v3841, %v3845
      %v3847 = vshrl.u32 %v3736, 16
      %v3849 = vor.u32 %v3847, %v3845
      %v3851 = vshll.u32 %v3737, 16
      %v3853 = vrot.slane %v3851, 1
      %v3854 = vsel %vm1160, %v3849, %v3853
      %v3855 = vshrl.u32 %v3737, 16
      %v3857 = vor.u32 %v3855, %v3853
      %v3859 = vshll.u32 %v3738, 16
      %v3861 = vrot.slane %v3859, 1
      %v3862 = vsel %vm1160, %v3857, %v3861
      %v3894 = vunpack.c.l.b16 %v3645
      %v3895 = vunpack.c.l.b16 %v3646
      %v3896 = vunpack.c.l.b16 %v3647
      %v3897 = vunpack.c.l.b16 %v3648
      %v3898 = vunpack.c.l.b16 %v3649
      %v3899 = vunpack.c.l.b16 %v3650
      %v3900 = vunpack.c.l.b16 %v3651
      %v3901 = vunpack.c.l.b16 %v3652
      %v3902 = vunpack.c.l.b16 %v3653
      %v3903 = vunpack.c.l.b16 %v3654
      %v3904 = vunpack.c.l.b16 %v3655
      %v3905 = vunpack.c.l.b16 %v3656
      %v3906 = vunpack.c.l.b16 %v3657
      %v3907 = vunpack.c.l.b16 %v3658
      %v3908 = vunpack.c.l.b16 %v3659
      %v3909 = vunpack.c.l.b16 %v3660
      %v3910 = vpack.c.b16 %v3895, %v3894
      %v3911 = vpack.c.b16 %v3897, %v3896
      %v3912 = vpack.c.b16 %v3899, %v3898
      %v3913 = vpack.c.b16 %v3901, %v3900
      %v3914 = vpack.c.b16 %v3903, %v3902
      %v3915 = vpack.c.b16 %v3905, %v3904
      %v3916 = vpack.c.b16 %v3907, %v3906
      %v3917 = vpack.c.b16 %v3909, %v3908
      %3926 = vmatprep.subr.bf16.mxu0 0
      %3927 = vmatpush1.bf16.msra.mxu0 %v3910
      %3928 = vmatprep.subr.bf16.mxu0 0
      %3929 = vmatpush1.bf16.msra.mxu0 %v3911
      %3930 = vmatprep.subr.bf16.mxu0 0
      %3931 = vmatpush1.bf16.msra.mxu0 %v3912
      %3932 = vmatprep.subr.bf16.mxu0 0
      %3933 = vmatpush1.bf16.msra.mxu0 %v3913
      %3934 = vmatprep.subr.bf16.mxu0 0
      %3935 = vmatpush1.bf16.msra.mxu0 %v3914
      %3936 = vmatprep.subr.bf16.mxu0 0
      %3937 = vmatpush1.bf16.msra.mxu0 %v3915
      %3938 = vmatprep.subr.bf16.mxu0 0
      %3939 = vmatpush1.bf16.msra.mxu0 %v3916
      %3940 = vmatprep.subr.bf16.mxu0 0
      %3941 = vmatpush1.bf16.msra.mxu0 %v3917
      %3942 = vmatprep.subr.bf16.mxu0 0
      %3943 = vmatpush1.bf16.msra.mxu0 0
      %3944 = vmatprep.subr.bf16.mxu0 0
      %3945 = vmatpush1.bf16.msra.mxu0 0
      %3946 = vmatprep.subr.bf16.mxu0 0
      %3947 = vmatpush1.bf16.msra.mxu0 0
      %3948 = vmatprep.subr.bf16.mxu0 0
      %3949 = vmatpush1.bf16.msra.mxu0 0
      %3950 = vmatprep.subr.bf16.mxu0 0
      %3951 = vmatpush1.bf16.msra.mxu0 0
      %3952 = vmatprep.subr.bf16.mxu0 0
      %3953 = vmatpush1.bf16.msra.mxu0 0
      %3954 = vmatprep.subr.bf16.mxu0 0
      %3955 = vmatpush1.bf16.msra.mxu0 0
      %3956 = vmatprep.subr.bf16.mxu0 0
      %3957 = vmatpush1.bf16.msra.mxu0 0
      %3958 = vmatprep.mubr.bf16.mxu0 0
      %3959 = vmatmul.mubr.bf16.gmra.mrb[0].mxu0 %v3750
      %v3960 = vpop.f32.mrb[0].mxu0
      %v3961 = vadd.f32 0.0, %v3960
      %v3962 = vpop.f32.mrb[0].mxu0
      %v3963 = vpop.f32.mrb[0].mxu0
      %v3964 = vadd.f32 0.0, %v3963
      %v3965 = vpop.f32.mrb[0].mxu0
      %3966 = vmatprep.mubr.bf16.mxu0 0
      %3967 = vmatmul.mubr.bf16.gmra.mrb[0].mxu0 %v3758
      %v3968 = vpop.f32.mrb[0].mxu0
      %v3969 = vadd.f32 0.0, %v3968
      %v3970 = vpop.f32.mrb[0].mxu0
      %v3971 = vpop.f32.mrb[0].mxu0
      %v3972 = vadd.f32 0.0, %v3971
      %v3973 = vpop.f32.mrb[0].mxu0
      %3974 = vmatprep.mubr.bf16.mxu0 0
      %3975 = vmatmul.mubr.bf16.gmra.mrb[0].mxu0 %v3766
      %v3976 = vpop.f32.mrb[0].mxu0
      %v3977 = vadd.f32 0.0, %v3976
      %v3978 = vpop.f32.mrb[0].mxu0
      %v3979 = vpop.f32.mrb[0].mxu0
      %v3980 = vadd.f32 0.0, %v3979
      %v3981 = vpop.f32.mrb[0].mxu0
      %3982 = vmatprep.mubr.bf16.mxu0 0
      %3983 = vmatmul.mubr.bf16.gmra.mrb[0].mxu0 %v3774
      %v3984 = vpop.f32.mrb[0].mxu0
      %v3985 = vadd.f32 0.0, %v3984
      %v3986 = vpop.f32.mrb[0].mxu0
      %v3987 = vpop.f32.mrb[0].mxu0
      %v3988 = vadd.f32 0.0, %v3987
      %v3989 = vpop.f32.mrb[0].mxu0
      %3990 = vmatprep.mubr.bf16.mxu0 0
      %3991 = vmatmul.mubr.bf16.gmra.mrb[0].mxu0 %v3782
      %v3992 = vpop.f32.mrb[0].mxu0
      %v3993 = vadd.f32 0.0, %v3992
      %v3994 = vpop.f32.mrb[0].mxu0
      %v3995 = vpop.f32.mrb[0].mxu0
      %v3996 = vadd.f32 0.0, %v3995
      %v3997 = vpop.f32.mrb[0].mxu0
      %3998 = vmatprep.mubr.bf16.mxu0 0
      %3999 = vmatmul.mubr.bf16.gmra.mrb[0].mxu0 %v3790
      %v4000 = vpop.f32.mrb[0].mxu0
      %v4001 = vadd.f32 0.0, %v4000
      %v4002 = vpop.f32.mrb[0].mxu0
      %v4003 = vpop.f32.mrb[0].mxu0
      %v4004 = vadd.f32 0.0, %v4003
      %v4005 = vpop.f32.mrb[0].mxu0
      %4006 = vmatprep.mubr.bf16.mxu0 0
      %4007 = vmatmul.mubr.bf16.gmra.mrb[0].mxu0 %v3798
      %v4008 = vpop.f32.mrb[0].mxu0
      %v4009 = vadd.f32 0.0, %v4008
      %v4010 = vpop.f32.mrb[0].mxu0
      %v4011 = vpop.f32.mrb[0].mxu0
      %v4012 = vadd.f32 0.0, %v4011
      %v4013 = vpop.f32.mrb[0].mxu0
      %4014 = vmatprep.mubr.bf16.mxu0 0
      %4015 = vmatmul.mubr.bf16.gmra.mrb[0].mxu0 %v3806
      %v4016 = vpop.f32.mrb[0].mxu0
      %v4017 = vadd.f32 0.0, %v4016
      %v4018 = vpop.f32.mrb[0].mxu0
      %v4019 = vpop.f32.mrb[0].mxu0
      %v4020 = vadd.f32 0.0, %v4019
      %v4021 = vpop.f32.mrb[0].mxu0
      %4022 = vmatprep.mubr.bf16.mxu0 0
      %4023 = vmatmul.mubr.bf16.gmra.mrb[0].mxu0 %v3814
      %v4024 = vpop.f32.mrb[0].mxu0
      %v4025 = vadd.f32 0.0, %v4024
      %v4026 = vpop.f32.mrb[0].mxu0
      %v4027 = vpop.f32.mrb[0].mxu0
      %v4028 = vadd.f32 0.0, %v4027
      %v4029 = vpop.f32.mrb[0].mxu0
      %4030 = vmatprep.mubr.bf16.mxu0 0
      %4031 = vmatmul.mubr.bf16.gmra.mrb[0].mxu0 %v3822
      %v4032 = vpop.f32.mrb[0].mxu0
      %v4033 = vadd.f32 0.0, %v4032
      %v4034 = vpop.f32.mrb[0].mxu0
      %v4035 = vpop.f32.mrb[0].mxu0
      %v4036 = vadd.f32 0.0, %v4035
      %v4037 = vpop.f32.mrb[0].mxu0
      %4038 = vmatprep.mubr.bf16.mxu0 0
      %4039 = vmatmul.mubr.bf16.gmra.mrb[0].mxu0 %v3830
      %v4040 = vpop.f32.mrb[0].mxu0
      %v4041 = vadd.f32 0.0, %v4040
      %v4042 = vpop.f32.mrb[0].mxu0
      %v4043 = vpop.f32.mrb[0].mxu0
      %v4044 = vadd.f32 0.0, %v4043
      %v4045 = vpop.f32.mrb[0].mxu0
      %4046 = vmatprep.mubr.bf16.mxu0 0
      %4047 = vmatmul.mubr.bf16.gmra.mrb[0].mxu0 %v3838
      %v4048 = vpop.f32.mrb[0].mxu0
      %v4049 = vadd.f32 0.0, %v4048
      %v4050 = vpop.f32.mrb[0].mxu0
      %v4051 = vpop.f32.mrb[0].mxu0
      %v4052 = vadd.f32 0.0, %v4051
      %v4053 = vpop.f32.mrb[0].mxu0
      %4054 = vmatprep.mubr.bf16.mxu0 0
      %4055 = vmatmul.mubr.bf16.gmra.mrb[0].mxu0 %v3846
      %v4056 = vpop.f32.mrb[0].mxu0
      %v4057 = vadd.f32 0.0, %v4056
      %v4058 = vpop.f32.mrb[0].mxu0
      %v4059 = vpop.f32.mrb[0].mxu0
      %v4060 = vadd.f32 0.0, %v4059
      %v4061 = vpop.f32.mrb[0].mxu0
      %4062 = vmatprep.mubr.bf16.mxu0 0
      %4063 = vmatmul.mubr.bf16.gmra.mrb[0].mxu0 %v3854
      %v4064 = vpop.f32.mrb[0].mxu0
      %v4065 = vadd.f32 0.0, %v4064
      %v4066 = vpop.f32.mrb[0].mxu0
      %v4067 = vpop.f32.mrb[0].mxu0
      %v4068 = vadd.f32 0.0, %v4067
      %v4069 = vpop.f32.mrb[0].mxu0
      %4070 = vmatprep.mubr.bf16.mxu0 0
      %4071 = vmatmul.mubr.bf16.gmra.mrb[0].mxu0 %v3862
      %v4072 = vpop.f32.mrb[0].mxu0
      %v4073 = vadd.f32 0.0, %v4072
      %v4074 = vpop.f32.mrb[0].mxu0
      %v4075 = vpop.f32.mrb[0].mxu0
      %v4076 = vadd.f32 0.0, %v4075
      %v4077 = vpop.f32.mrb[0].mxu0
      %4078 = vdwg.mxu0
      %v4079 = vadd.f32 %v3583, %v3961
      %v4080 = vadd.f32 %v3584, %v3964
      %v4081 = vadd.f32 %v3585, %v3969
      %v4082 = vadd.f32 %v3586, %v3972
      %v4083 = vadd.f32 %v3587, %v3977
      %v4084 = vadd.f32 %v3588, %v3980
      %v4085 = vadd.f32 %v3589, %v3985
      %v4086 = vadd.f32 %v3590, %v3988
      %v4087 = vadd.f32 %v3591, %v3993
      %v4088 = vadd.f32 %v3592, %v3996
      %v4089 = vadd.f32 %v3593, %v4001
      %v4090 = vadd.f32 %v3594, %v4004
      %v4091 = vadd.f32 %v3595, %v4009
      %v4092 = vadd.f32 %v3596, %v4012
      %v4093 = vadd.f32 %v3597, %v4017
      %v4094 = vadd.f32 %v3598, %v4020
      %v4095 = vadd.f32 %v3599, %v4025
      %v4096 = vadd.f32 %v3600, %v4028
      %v4097 = vadd.f32 %v3601, %v4033
      %v4098 = vadd.f32 %v3602, %v4036
      %v4099 = vadd.f32 %v3603, %v4041
      %v4100 = vadd.f32 %v3604, %v4044
      %v4101 = vadd.f32 %v3605, %v4049
      %v4102 = vadd.f32 %v3606, %v4052
      %v4103 = vadd.f32 %v3607, %v4057
      %v4104 = vadd.f32 %v3608, %v4060
      %v4105 = vadd.f32 %v3609, %v4065
      %v4106 = vadd.f32 %v3610, %v4068
      %v4107 = vadd.f32 %v3611, %v4073
      %v4108 = vadd.f32 %v3612, %v4076
      %v4110 = vlaneseq
      %v4111 = vshrl.u32 %v4110, 7
      %v4112 = vsub.s32 0, %v4111
      %v4113 = vrot.slane %v297, %v4112
      %v4115 = vmul.f32 %v4079, %v4113
      %v4116 = vmul.f32 %v4080, %v4113
      %v4117 = vmul.f32 %v4081, %v4113
      %v4118 = vmul.f32 %v4082, %v4113
      %v4119 = vmul.f32 %v4083, %v4113
      %v4120 = vmul.f32 %v4084, %v4113
      %v4121 = vmul.f32 %v4085, %v4113
      %v4122 = vmul.f32 %v4086, %v4113
      %v4123 = vmul.f32 %v4087, %v4113
      %v4124 = vmul.f32 %v4088, %v4113
      %v4125 = vmul.f32 %v4089, %v4113
      %v4126 = vmul.f32 %v4090, %v4113
      %v4127 = vmul.f32 %v4091, %v4113
      %v4128 = vmul.f32 %v4092, %v4113
      %v4129 = vmul.f32 %v4093, %v4113
      %v4130 = vmul.f32 %v4094, %v4113
      %v4131 = vmul.f32 %v4095, %v4113
      %v4132 = vmul.f32 %v4096, %v4113
      %v4133 = vmul.f32 %v4097, %v4113
      %v4134 = vmul.f32 %v4098, %v4113
      %v4135 = vmul.f32 %v4099, %v4113
      %v4136 = vmul.f32 %v4100, %v4113
      %v4137 = vmul.f32 %v4101, %v4113
      %v4138 = vmul.f32 %v4102, %v4113
      %v4139 = vmul.f32 %v4103, %v4113
      %v4140 = vmul.f32 %v4104, %v4113
      %v4141 = vmul.f32 %v4105, %v4113
      %v4142 = vmul.f32 %v4106, %v4113
      %v4143 = vmul.f32 %v4107, %v4113
      %v4144 = vmul.f32 %v4108, %v4113
      %v4146 = vlaneseq
      %v4147 = vshrl.u32 %v4146, 7
      %v4148 = vsub.s32 0, %v4147
      %v4149 = vrot.slane %v298, %v4148
      %v4151 = vadd.f32 %v4115, %v4149
      %v4152 = vadd.f32 %v4116, %v4149
      %v4153 = vadd.f32 %v4117, %v4149
      %v4154 = vadd.f32 %v4118, %v4149
      %v4155 = vadd.f32 %v4119, %v4149
      %v4156 = vadd.f32 %v4120, %v4149
      %v4157 = vadd.f32 %v4121, %v4149
      %v4158 = vadd.f32 %v4122, %v4149
      %v4159 = vadd.f32 %v4123, %v4149
      %v4160 = vadd.f32 %v4124, %v4149
      %v4161 = vadd.f32 %v4125, %v4149
      %v4162 = vadd.f32 %v4126, %v4149
      %v4163 = vadd.f32 %v4127, %v4149
      %v4164 = vadd.f32 %v4128, %v4149
      %v4165 = vadd.f32 %v4129, %v4149
      %v4166 = vadd.f32 %v4130, %v4149
      %v4167 = vadd.f32 %v4131, %v4149
      %v4168 = vadd.f32 %v4132, %v4149
      %v4169 = vadd.f32 %v4133, %v4149
      %v4170 = vadd.f32 %v4134, %v4149
      %v4171 = vadd.f32 %v4135, %v4149
      %v4172 = vadd.f32 %v4136, %v4149
      %v4173 = vadd.f32 %v4137, %v4149
      %v4174 = vadd.f32 %v4138, %v4149
      %v4175 = vadd.f32 %v4139, %v4149
      %v4176 = vadd.f32 %v4140, %v4149
      %v4177 = vadd.f32 %v4141, %v4149
      %v4178 = vadd.f32 %v4142, %v4149
      %v4179 = vadd.f32 %v4143, %v4149
      %v4180 = vadd.f32 %v4144, %v4149
      %v4181 = vmax.f32 %v4151, 0.0
      %v4182 = vmax.f32 %v4152, 0.0
      %v4183 = vmax.f32 %v4153, 0.0
      %v4184 = vmax.f32 %v4154, 0.0
      %v4185 = vmax.f32 %v4155, 0.0
      %v4186 = vmax.f32 %v4156, 0.0
      %v4187 = vmax.f32 %v4157, 0.0
      %v4188 = vmax.f32 %v4158, 0.0
      %v4189 = vmax.f32 %v4159, 0.0
      %v4190 = vmax.f32 %v4160, 0.0
      %v4191 = vmax.f32 %v4161, 0.0
      %v4192 = vmax.f32 %v4162, 0.0
      %v4193 = vmax.f32 %v4163, 0.0
      %v4194 = vmax.f32 %v4164, 0.0
      %v4195 = vmax.f32 %v4165, 0.0
      %v4196 = vmax.f32 %v4166, 0.0
      %v4197 = vmax.f32 %v4167, 0.0
      %v4198 = vmax.f32 %v4168, 0.0
      %v4199 = vmax.f32 %v4169, 0.0
      %v4200 = vmax.f32 %v4170, 0.0
      %v4201 = vmax.f32 %v4171, 0.0
      %v4202 = vmax.f32 %v4172, 0.0
      %v4203 = vmax.f32 %v4173, 0.0
      %v4204 = vmax.f32 %v4174, 0.0
      %v4205 = vmax.f32 %v4175, 0.0
      %v4206 = vmax.f32 %v4176, 0.0
      %v4207 = vmax.f32 %v4177, 0.0
      %v4208 = vmax.f32 %v4178, 0.0
      %v4209 = vmax.f32 %v4179, 0.0
      %v4210 = vmax.f32 %v4180, 0.0
      %4212 = vset.pattern.permute.xlu0 0
      %4213 = vperm.xlu0 %4212, %v294
      %v4214 = vpop.permute.xlu0 %4213
      %4217 = vset.pattern.permute.xlu0 0
      %4218 = vperm.xlu0 %4217, %v295
      %v4219 = vpop.permute.xlu0 %4218
      %4222 = vset.pattern.permute.xlu0 0
      %4223 = vperm.xlu0 %4222, %v296
      %v4224 = vpop.permute.xlu0 %4223
      %v4226 = vmul.f32 %v4181, %v4214
      %v4227 = vmul.f32 %v4182, %v4219
      %v4228 = vmul.f32 %v4183, %v4224
      %v4229 = vmul.f32 %v4184, %v4214
      %v4230 = vmul.f32 %v4185, %v4219
      %v4231 = vmul.f32 %v4186, %v4224
      %v4232 = vmul.f32 %v4187, %v4214
      %v4233 = vmul.f32 %v4188, %v4219
      %v4234 = vmul.f32 %v4189, %v4224
      %v4235 = vmul.f32 %v4190, %v4214
      %v4236 = vmul.f32 %v4191, %v4219
      %v4237 = vmul.f32 %v4192, %v4224
      %v4238 = vmul.f32 %v4193, %v4214
      %v4239 = vmul.f32 %v4194, %v4219
      %v4240 = vmul.f32 %v4195, %v4224
      %v4241 = vmul.f32 %v4196, %v4214
      %v4242 = vmul.f32 %v4197, %v4219
      %v4243 = vmul.f32 %v4198, %v4224
      %v4244 = vmul.f32 %v4199, %v4214
      %v4245 = vmul.f32 %v4200, %v4219
      %v4246 = vmul.f32 %v4201, %v4224
      %v4247 = vmul.f32 %v4202, %v4214
      %v4248 = vmul.f32 %v4203, %v4219
      %v4249 = vmul.f32 %v4204, %v4224
      %v4250 = vmul.f32 %v4205, %v4214
      %v4251 = vmul.f32 %v4206, %v4219
      %v4252 = vmul.f32 %v4207, %v4224
      %v4253 = vmul.f32 %v4208, %v4214
      %v4254 = vmul.f32 %v4209, %v4219
      %v4255 = vmul.f32 %v4210, %v4224
      %v4256 = vpack.c.bf16 %v4227, %v4226
      %v4257 = vpack.c.bf16 %v4229, %v4228
      %v4258 = vpack.c.bf16 %v4231, %v4230
      %v4259 = vpack.c.bf16 %v4233, %v4232
      %v4260 = vpack.c.bf16 %v4235, %v4234
      %v4261 = vpack.c.bf16 %v4237, %v4236
      %v4262 = vpack.c.bf16 %v4239, %v4238
      %v4263 = vpack.c.bf16 %v4241, %v4240
      %v4264 = vpack.c.bf16 %v4243, %v4242
      %v4265 = vpack.c.bf16 %v4245, %v4244
      %v4266 = vpack.c.bf16 %v4247, %v4246
      %v4267 = vpack.c.bf16 %v4249, %v4248
      %v4268 = vpack.c.bf16 %v4251, %v4250
      %v4269 = vpack.c.bf16 %v4253, %v4252
      %v4270 = vpack.c.bf16 %v4255, %v4254
      %4271 = vst [vmem:[#allocation2 + $0x10] sm:$0xff] %v4256
      %4272 = vst [vmem:[#allocation2 + $0x18] sm:$0xff] %v4257
      %4273 = vst [vmem:[#allocation2 + $0x20] sm:$0xff] %v4258
      %4274 = vst [vmem:[#allocation2 + $0x28] sm:$0xff] %v4259
      %4275 = vst [vmem:[#allocation2 + $0x30] sm:$0xff] %v4260
      %4276 = vst [vmem:[#allocation2 + $0x38] sm:$0xff] %v4261
      %4277 = vst [vmem:[#allocation2 + $0x40] sm:$0xff] %v4262
      %4278 = vst [vmem:[#allocation2 + $0x48] sm:$0xff] %v4263
      %4279 = vst [vmem:[#allocation2 + $0x50] sm:$0xff] %v4264
      %4280 = vst [vmem:[#allocation2 + $0x58] sm:$0xff] %v4265
      %4281 = vst [vmem:[#allocation2 + $0x60] sm:$0xff] %v4266
      %4282 = vst [vmem:[#allocation2 + $0x68] sm:$0xff] %v4267
      %4283 = vst [vmem:[#allocation2 + $0x70] sm:$0xff] %v4268
      %4284 = vst [vmem:[#allocation2 + $0x78] sm:$0xff] %v4269
      %4285 = vst [vmem:[#allocation2 + $0x80] sm:$0xff] %v4270
      %v4286 = vld [vmem:[%s273 + $0x78] sm:$0x8]
      %v4287 = vld [vmem:[%s273 + $0x7c] sm:$0xf]
      %v4288 = vld [vmem:[%s273 + $0x80] sm:$0xf]
      %v4289 = vld [vmem:[%s273 + $0x84] sm:$0xf]
      %v4290 = vld [vmem:[%s273 + $0x88] sm:$0xf]
      %v4291 = vld [vmem:[%s273 + $0x8c] sm:$0xf]
      %v4292 = vld [vmem:[%s273 + $0x90] sm:$0xf]
      %v4293 = vld [vmem:[%s273 + $0x94] sm:$0xf]
      %v4294 = vld [vmem:[%s273 + $0x98] sm:$0xf]
      %v4295 = vld [vmem:[%s273 + $0x9c] sm:$0xf]
      %v4296 = vld [vmem:[%s273 + $0xa0] sm:$0xf]
      %v4297 = vld [vmem:[%s273 + $0xa4] sm:$0xf]
      %v4298 = vld [vmem:[%s273 + $0xa8] sm:$0xf]
      %v4299 = vld [vmem:[%s273 + $0xac] sm:$0xf]
      %v4300 = vld [vmem:[%s273 + $0xb0] sm:$0xf]
      %v4301 = vld [vmem:[%s273 + $0xb4] sm:$0xf]
      %v4302 = vld [vmem:[%s273 + $0xb8] sm:$0xf]
      %v4303 = vld [vmem:[%s273 + $0xbc] sm:$0xf]
      %v4304 = vld [vmem:[%s273 + $0xc0] sm:$0xf]
      %v4305 = vld [vmem:[%s1] sm:$0xf]
      %v4306 = vld [vmem:[%s1 + $0x4] sm:$0xf]
      %v4307 = vld [vmem:[%s1 + $0x8] sm:$0xf]
      %v4308 = vld [vmem:[%s1 + $0xc] sm:$0xf]
      %v4309 = vld [vmem:[%s1 + $0x10] sm:$0xf]
      %v4310 = vld [vmem:[%s1 + $0x14] sm:$0xf]
      %v4311 = vld [vmem:[%s1 + $0x18] sm:$0xf]
      %v4312 = vld [vmem:[%s1 + $0x1c] sm:$0xf]
      %v4313 = vld [vmem:[%s1 + $0x20] sm:$0xf]
      %v4314 = vld [vmem:[%s1 + $0x24] sm:$0xf]
      %v4315 = vld [vmem:[%s1 + $0x28] sm:$0xf]
      %v4316 = vld [vmem:[%s1 + $0x2c] sm:$0xf]
      %v4317 = vld [vmem:[%s1 + $0x30] sm:$0xf]
      %v4318 = vld [vmem:[%s1 + $0x34] sm:$0xf]
      %v4319 = vld [vmem:[%s1 + $0x38] sm:$0xf]
      %v4320 = vld [vmem:[%s1 + $0x3c] sm:$0xf]
      %v4321 = vld [vmem:[%s348] sm:$0xf]
      %v4322 = vld [vmem:[%s348 + $0x4] sm:$0xf]
      %v4323 = vld [vmem:[%s348 + $0x8] sm:$0xf]
      %v4324 = vld [vmem:[%s348 + $0xc] sm:$0xf]
      %v4325 = vld [vmem:[%s348 + $0x10] sm:$0xf]
      %v4326 = vld [vmem:[%s348 + $0x14] sm:$0xf]
      %v4327 = vld [vmem:[%s348 + $0x18] sm:$0xf]
      %v4328 = vld [vmem:[%s348 + $0x1c] sm:$0xf]
      %v4329 = vld [vmem:[%s348 + $0x20] sm:$0xf]
      %v4330 = vld [vmem:[%s348 + $0x24] sm:$0xf]
      %v4331 = vld [vmem:[%s348 + $0x28] sm:$0xf]
      %v4332 = vld [vmem:[%s348 + $0x2c] sm:$0xf]
      %v4333 = vld [vmem:[%s348 + $0x30] sm:$0xf]
      %v4334 = vld [vmem:[%s348 + $0x34] sm:$0xf]
      %v4335 = vld [vmem:[%s348 + $0x38] sm:$0xf]
      %v4336 = vld [vmem:[%s348 + $0x3c] sm:$0xf]
      %v4355 = vunpack.c.l.b16 %v4287
      %v4356 = vunpack.c.l.b16 %v4288
      %v4357 = vunpack.c.l.b16 %v4289
      %v4358 = vunpack.c.l.b16 %v4290
      %v4359 = vunpack.c.l.b16 %v4291
      %v4360 = vunpack.c.l.b16 %v4292
      %v4361 = vunpack.c.l.b16 %v4293
      %v4362 = vunpack.c.l.b16 %v4294
      %v4363 = vunpack.c.l.b16 %v4295
      %v4364 = vunpack.c.l.b16 %v4296
      %v4365 = vunpack.c.l.b16 %v4297
      %v4366 = vunpack.c.l.b16 %v4298
      %v4367 = vunpack.c.l.b16 %v4299
      %v4368 = vunpack.c.l.b16 %v4300
      %v4369 = vunpack.c.l.b16 %v4301
      %v4370 = vunpack.c.l.b16 %v4302
      %v4371 = vunpack.c.l.b16 %v4303
      %v4372 = vunpack.c.l.b16 %v4304
      %v4373 = vpack.c.b16 %v4356, %v4355
      %v4374 = vpack.c.b16 %v4358, %v4357
      %v4375 = vpack.c.b16 %v4360, %v4359
      %v4376 = vpack.c.b16 %v4362, %v4361
      %v4377 = vpack.c.b16 %v4364, %v4363
      %v4378 = vpack.c.b16 %v4366, %v4365
      %v4379 = vpack.c.b16 %v4368, %v4367
      %v4380 = vpack.c.b16 %v4370, %v4369
      %v4381 = vpack.c.b16 %v4372, %v4371
      %v4407 = vunpack.c.l.b16 %v4321
      %v4408 = vunpack.c.l.b16 %v4322
      %v4409 = vunpack.c.l.b16 %v4323
      %v4410 = vunpack.c.l.b16 %v4324
      %v4411 = vunpack.c.l.b16 %v4325
      %v4412 = vunpack.c.l.b16 %v4326
      %v4413 = vunpack.c.l.b16 %v4327
      %v4414 = vunpack.c.l.b16 %v4328
      %v4415 = vunpack.c.l.b16 %v4329
      %v4416 = vunpack.c.l.b16 %v4330
      %v4417 = vunpack.c.l.b16 %v4331
      %v4418 = vunpack.c.l.b16 %v4332
      %v4419 = vunpack.c.l.b16 %v4333
      %v4420 = vunpack.c.l.b16 %v4334
      %v4421 = vunpack.c.l.b16 %v4335
      %v4422 = vunpack.c.l.b16 %v4336
      %v4423 = vpack.c.b16 %v4408, %v4407
      %v4424 = vpack.c.b16 %v4410, %v4409
      %v4425 = vpack.c.b16 %v4412, %v4411
      %v4426 = vpack.c.b16 %v4414, %v4413
      %v4427 = vpack.c.b16 %v4416, %v4415
      %v4428 = vpack.c.b16 %v4418, %v4417
      %v4429 = vpack.c.b16 %v4420, %v4419
      %v4430 = vpack.c.b16 %v4422, %v4421
      %4439 = vmatprep.subr.bf16.mxu0 0
      %4440 = vmatpush1.bf16.msra.mxu0 %v4423
      %4441 = vmatprep.subr.bf16.mxu0 0
      %4442 = vmatpush1.bf16.msra.mxu0 %v4424
      %4443 = vmatprep.subr.bf16.mxu0 0
      %4444 = vmatpush1.bf16.msra.mxu0 %v4425
      %4445 = vmatprep.subr.bf16.mxu0 0
      %4446 = vmatpush1.bf16.msra.mxu0 %v4426
      %4447 = vmatprep.subr.bf16.mxu0 0
      %4448 = vmatpush1.bf16.msra.mxu0 %v4427
      %4449 = vmatprep.subr.bf16.mxu0 0
      %4450 = vmatpush1.bf16.msra.mxu0 %v4428
      %4451 = vmatprep.subr.bf16.mxu0 0
      %4452 = vmatpush1.bf16.msra.mxu0 %v4429
      %4453 = vmatprep.subr.bf16.mxu0 0
      %4454 = vmatpush1.bf16.msra.mxu0 %v4430
      %4455 = vmatprep.subr.bf16.mxu0 0
      %4456 = vmatpush1.bf16.msra.mxu0 0
      %4457 = vmatprep.subr.bf16.mxu0 0
      %4458 = vmatpush1.bf16.msra.mxu0 0
      %4459 = vmatprep.subr.bf16.mxu0 0
      %4460 = vmatpush1.bf16.msra.mxu0 0
      %4461 = vmatprep.subr.bf16.mxu0 0
      %4462 = vmatpush1.bf16.msra.mxu0 0
      %4463 = vmatprep.subr.bf16.mxu0 0
      %4464 = vmatpush1.bf16.msra.mxu0 0
      %4465 = vmatprep.subr.bf16.mxu0 0
      %4466 = vmatpush1.bf16.msra.mxu0 0
      %4467 = vmatprep.subr.bf16.mxu0 0
      %4468 = vmatpush1.bf16.msra.mxu0 0
      %4469 = vmatprep.subr.bf16.mxu0 0
      %4470 = vmatpush1.bf16.msra.mxu0 0
      %4471 = vmatprep.mubr.bf16.mxu0 0
      %4472 = vmatmul.mubr.bf16.gmra.mrb[0].mxu0 %v4373
      %v4473 = vpop.f32.mrb[0].mxu0
      %v4474 = vadd.f32 0.0, %v4473
      %v4475 = vpop.f32.mrb[0].mxu0
      %v4476 = vpop.f32.mrb[0].mxu0
      %v4477 = vadd.f32 0.0, %v4476
      %v4478 = vpop.f32.mrb[0].mxu0
      %4479 = vmatprep.mubr.bf16.mxu0 0
      %4480 = vmatmul.mubr.bf16.gmra.mrb[0].mxu0 %v4374
      %v4481 = vpop.f32.mrb[0].mxu0
      %v4482 = vadd.f32 0.0, %v4481
      %v4483 = vpop.f32.mrb[0].mxu0
      %v4484 = vpop.f32.mrb[0].mxu0
      %v4485 = vadd.f32 0.0, %v4484
      %v4486 = vpop.f32.mrb[0].mxu0
      %4487 = vmatprep.mubr.bf16.mxu0 0
      %4488 = vmatmul.mubr.bf16.gmra.mrb[0].mxu0 %v4375
      %v4489 = vpop.f32.mrb[0].mxu0
      %v4490 = vadd.f32 0.0, %v4489
      %v4491 = vpop.f32.mrb[0].mxu0
      %v4492 = vpop.f32.mrb[0].mxu0
      %v4493 = vadd.f32 0.0, %v4492
      %v4494 = vpop.f32.mrb[0].mxu0
      %4495 = vmatprep.mubr.bf16.mxu0 0
      %4496 = vmatmul.mubr.bf16.gmra.mrb[0].mxu0 %v4376
      %v4497 = vpop.f32.mrb[0].mxu0
      %v4498 = vadd.f32 0.0, %v4497
      %v4499 = vpop.f32.mrb[0].mxu0
      %v4500 = vpop.f32.mrb[0].mxu0
      %v4501 = vadd.f32 0.0, %v4500
      %v4502 = vpop.f32.mrb[0].mxu0
      %4503 = vmatprep.mubr.bf16.mxu0 0
      %4504 = vmatmul.mubr.bf16.gmra.mrb[0].mxu0 %v4377
      %v4505 = vpop.f32.mrb[0].mxu0
      %v4506 = vadd.f32 0.0, %v4505
      %v4507 = vpop.f32.mrb[0].mxu0
      %v4508 = vpop.f32.mrb[0].mxu0
      %v4509 = vadd.f32 0.0, %v4508
      %v4510 = vpop.f32.mrb[0].mxu0
      %4511 = vmatprep.mubr.bf16.mxu0 0
      %4512 = vmatmul.mubr.bf16.gmra.mrb[0].mxu0 %v4378
      %v4513 = vpop.f32.mrb[0].mxu0
      %v4514 = vadd.f32 0.0, %v4513
      %v4515 = vpop.f32.mrb[0].mxu0
      %v4516 = vpop.f32.mrb[0].mxu0
      %v4517 = vadd.f32 0.0, %v4516
      %v4518 = vpop.f32.mrb[0].mxu0
      %4519 = vmatprep.mubr.bf16.mxu0 0
      %4520 = vmatmul.mubr.bf16.gmra.mrb[0].mxu0 %v4379
      %v4521 = vpop.f32.mrb[0].mxu0
      %v4522 = vadd.f32 0.0, %v4521
      %v4523 = vpop.f32.mrb[0].mxu0
      %v4524 = vpop.f32.mrb[0].mxu0
      %v4525 = vadd.f32 0.0, %v4524
      %v4526 = vpop.f32.mrb[0].mxu0
      %4527 = vmatprep.mubr.bf16.mxu0 0
      %4528 = vmatmul.mubr.bf16.gmra.mrb[0].mxu0 %v4380
      %v4529 = vpop.f32.mrb[0].mxu0
      %v4530 = vadd.f32 0.0, %v4529
      %v4531 = vpop.f32.mrb[0].mxu0
      %v4532 = vpop.f32.mrb[0].mxu0
      %v4533 = vadd.f32 0.0, %v4532
      %v4534 = vpop.f32.mrb[0].mxu0
      %4535 = vmatprep.mubr.bf16.mxu0 0
      %4536 = vmatmul.mubr.bf16.gmra.mrb[0].mxu0 %v4381
      %v4537 = vpop.f32.mrb[0].mxu0
      %v4538 = vadd.f32 0.0, %v4537
      %v4539 = vpop.f32.mrb[0].mxu0
      %v4540 = vpop.f32.mrb[0].mxu0
      %v4541 = vadd.f32 0.0, %v4540
      %v4542 = vpop.f32.mrb[0].mxu0
      %4543 = vdwg.mxu0
      %v4545 = vunpack.c.l.b16 %v4286
      %v4546 = vpack.c.b16 %v4355, %v4545
      %v4547 = vpack.c.b16 %v4357, %v4356
      %v4548 = vpack.c.b16 %v4359, %v4358
      %v4549 = vpack.c.b16 %v4361, %v4360
      %v4550 = vpack.c.b16 %v4363, %v4362
      %v4551 = vpack.c.b16 %v4365, %v4364
      %v4552 = vpack.c.b16 %v4367, %v4366
      %v4553 = vpack.c.b16 %v4369, %v4368
      %v4554 = vpack.c.b16 %v4371, %v4370
      %v4555 = vpack.c.b16 %v4372, %v4372
      %v4557 = vshrl.u32 %v4546, 16
      %v4559 = vrot.slane %v4557, 3
      %v4560 = vshll.u32 %v4546, 16
      %v4562 = vrot.slane %v4560, 4
      %v4563 = vor.u32 %v4559, %v4562
      %v4565 = vshrl.u32 %v4547, 16
      %v4567 = vrot.slane %v4565, 3
      %v4568 = vshll.u32 %v4547, 16
      %v4570 = vrot.slane %v4568, 4
      %v4571 = vor.u32 %v4567, %v4570
      %v4572 = vsel %vm674, %v4563, %v4571
      %v4574 = vshrl.u32 %v4548, 16
      %v4576 = vrot.slane %v4574, 3
      %v4577 = vshll.u32 %v4548, 16
      %v4579 = vrot.slane %v4577, 4
      %v4580 = vor.u32 %v4576, %v4579
      %v4581 = vsel %vm674, %v4571, %v4580
      %v4583 = vshrl.u32 %v4549, 16
      %v4585 = vrot.slane %v4583, 3
      %v4586 = vshll.u32 %v4549, 16
      %v4588 = vrot.slane %v4586, 4
      %v4589 = vor.u32 %v4585, %v4588
      %v4590 = vsel %vm674, %v4580, %v4589
      %v4592 = vshrl.u32 %v4550, 16
      %v4594 = vrot.slane %v4592, 3
      %v4595 = vshll.u32 %v4550, 16
      %v4597 = vrot.slane %v4595, 4
      %v4598 = vor.u32 %v4594, %v4597
      %v4599 = vsel %vm674, %v4589, %v4598
      %v4601 = vshrl.u32 %v4551, 16
      %v4603 = vrot.slane %v4601, 3
      %v4604 = vshll.u32 %v4551, 16
      %v4606 = vrot.slane %v4604, 4
      %v4607 = vor.u32 %v4603, %v4606
      %v4608 = vsel %vm674, %v4598, %v4607
      %v4610 = vshrl.u32 %v4552, 16
      %v4612 = vrot.slane %v4610, 3
      %v4613 = vshll.u32 %v4552, 16
      %v4615 = vrot.slane %v4613, 4
      %v4616 = vor.u32 %v4612, %v4615
      %v4617 = vsel %vm674, %v4607, %v4616
      %v4619 = vshrl.u32 %v4553, 16
      %v4621 = vrot.slane %v4619, 3
      %v4622 = vshll.u32 %v4553, 16
      %v4624 = vrot.slane %v4622, 4
      %v4625 = vor.u32 %v4621, %v4624
      %v4626 = vsel %vm674, %v4616, %v4625
      %v4628 = vshrl.u32 %v4554, 16
      %v4630 = vrot.slane %v4628, 3
      %v4631 = vshll.u32 %v4554, 16
      %v4633 = vrot.slane %v4631, 4
      %v4634 = vor.u32 %v4630, %v4633
      %v4635 = vsel %vm674, %v4625, %v4634
      %v4637 = vshrl.u32 %v4555, 16
      %v4639 = vrot.slane %v4637, 3
      %v4640 = vshll.u32 %v4555, 16
      %v4642 = vrot.slane %v4640, 4
      %v4643 = vor.u32 %v4639, %v4642
      %v4644 = vsel %vm674, %v4634, %v4643
      %v4670 = vunpack.c.l.b16 %v4305
      %v4671 = vunpack.c.l.b16 %v4306
      %v4672 = vunpack.c.l.b16 %v4307
      %v4673 = vunpack.c.l.b16 %v4308
      %v4674 = vunpack.c.l.b16 %v4309
      %v4675 = vunpack.c.l.b16 %v4310
      %v4676 = vunpack.c.l.b16 %v4311
      %v4677 = vunpack.c.l.b16 %v4312
      %v4678 = vunpack.c.l.b16 %v4313
      %v4679 = vunpack.c.l.b16 %v4314
      %v4680 = vunpack.c.l.b16 %v4315
      %v4681 = vunpack.c.l.b16 %v4316
      %v4682 = vunpack.c.l.b16 %v4317
      %v4683 = vunpack.c.l.b16 %v4318
      %v4684 = vunpack.c.l.b16 %v4319
      %v4685 = vunpack.c.l.b16 %v4320
      %v4686 = vpack.c.b16 %v4671, %v4670
      %v4687 = vpack.c.b16 %v4673, %v4672
      %v4688 = vpack.c.b16 %v4675, %v4674
      %v4689 = vpack.c.b16 %v4677, %v4676
      %v4690 = vpack.c.b16 %v4679, %v4678
      %v4691 = vpack.c.b16 %v4681, %v4680
      %v4692 = vpack.c.b16 %v4683, %v4682
      %v4693 = vpack.c.b16 %v4685, %v4684
      %4702 = vmatprep.subr.bf16.mxu0 0
      %4703 = vmatpush1.bf16.msra.mxu0 %v4686
      %4704 = vmatprep.subr.bf16.mxu0 0
      %4705 = vmatpush1.bf16.msra.mxu0 %v4687
      %4706 = vmatprep.subr.bf16.mxu0 0
      %4707 = vmatpush1.bf16.msra.mxu0 %v4688
      %4708 = vmatprep.subr.bf16.mxu0 0
      %4709 = vmatpush1.bf16.msra.mxu0 %v4689
      %4710 = vmatprep.subr.bf16.mxu0 0
      %4711 = vmatpush1.bf16.msra.mxu0 %v4690
      %4712 = vmatprep.subr.bf16.mxu0 0
      %4713 = vmatpush1.bf16.msra.mxu0 %v4691
      %4714 = vmatprep.subr.bf16.mxu0 0
      %4715 = vmatpush1.bf16.msra.mxu0 %v4692
      %4716 = vmatprep.subr.bf16.mxu0 0
      %4717 = vmatpush1.bf16.msra.mxu0 %v4693
      %4718 = vmatprep.subr.bf16.mxu0 0
      %4719 = vmatpush1.bf16.msra.mxu0 0
      %4720 = vmatprep.subr.bf16.mxu0 0
      %4721 = vmatpush1.bf16.msra.mxu0 0
      %4722 = vmatprep.subr.bf16.mxu0 0
      %4723 = vmatpush1.bf16.msra.mxu0 0
      %4724 = vmatprep.subr.bf16.mxu0 0
      %4725 = vmatpush1.bf16.msra.mxu0 0
      %4726 = vmatprep.subr.bf16.mxu0 0
      %4727 = vmatpush1.bf16.msra.mxu0 0
      %4728 = vmatprep.subr.bf16.mxu0 0
      %4729 = vmatpush1.bf16.msra.mxu0 0
      %4730 = vmatprep.subr.bf16.mxu0 0
      %4731 = vmatpush1.bf16.msra.mxu0 0
      %4732 = vmatprep.subr.bf16.mxu0 0
      %4733 = vmatpush1.bf16.msra.mxu0 0
      %4734 = vmatprep.mubr.bf16.mxu0 0
      %4735 = vmatmul.mubr.bf16.gmra.mrb[0].mxu0 %v4572
      %v4736 = vpop.f32.mrb[0].mxu0
      %v4737 = vadd.f32 %v4474, %v4736
      %v4738 = vpop.f32.mrb[0].mxu0
      %v4739 = vpop.f32.mrb[0].mxu0
      %v4740 = vadd.f32 %v4477, %v4739
      %v4741 = vpop.f32.mrb[0].mxu0
      %4742 = vmatprep.mubr.bf16.mxu0 0
      %4743 = vmatmul.mubr.bf16.gmra.mrb[0].mxu0 %v4581
      %v4744 = vpop.f32.mrb[0].mxu0
      %v4745 = vadd.f32 %v4482, %v4744
      %v4746 = vpop.f32.mrb[0].mxu0
      %v4747 = vpop.f32.mrb[0].mxu0
      %v4748 = vadd.f32 %v4485, %v4747
      %v4749 = vpop.f32.mrb[0].mxu0
      %4750 = vmatprep.mubr.bf16.mxu0 0
      %4751 = vmatmul.mubr.bf16.gmra.mrb[0].mxu0 %v4590
      %v4752 = vpop.f32.mrb[0].mxu0
      %v4753 = vadd.f32 %v4490, %v4752
      %v4754 = vpop.f32.mrb[0].mxu0
      %v4755 = vpop.f32.mrb[0].mxu0
      %v4756 = vadd.f32 %v4493, %v4755
      %v4757 = vpop.f32.mrb[0].mxu0
      %4758 = vmatprep.mubr.bf16.mxu0 0
      %4759 = vmatmul.mubr.bf16.gmra.mrb[0].mxu0 %v4599
      %v4760 = vpop.f32.mrb[0].mxu0
      %v4761 = vadd.f32 %v4498, %v4760
      %v4762 = vpop.f32.mrb[0].mxu0
      %v4763 = vpop.f32.mrb[0].mxu0
      %v4764 = vadd.f32 %v4501, %v4763
      %v4765 = vpop.f32.mrb[0].mxu0
      %4766 = vmatprep.mubr.bf16.mxu0 0
      %4767 = vmatmul.mubr.bf16.gmra.mrb[0].mxu0 %v4608
      %v4768 = vpop.f32.mrb[0].mxu0
      %v4769 = vadd.f32 %v4506, %v4768
      %v4770 = vpop.f32.mrb[0].mxu0
      %v4771 = vpop.f32.mrb[0].mxu0
      %v4772 = vadd.f32 %v4509, %v4771
      %v4773 = vpop.f32.mrb[0].mxu0
      %4774 = vmatprep.mubr.bf16.mxu0 0
      %4775 = vmatmul.mubr.bf16.gmra.mrb[0].mxu0 %v4617
      %v4776 = vpop.f32.mrb[0].mxu0
      %v4777 = vadd.f32 %v4514, %v4776
      %v4778 = vpop.f32.mrb[0].mxu0
      %v4779 = vpop.f32.mrb[0].mxu0
      %v4780 = vadd.f32 %v4517, %v4779
      %v4781 = vpop.f32.mrb[0].mxu0
      %4782 = vmatprep.mubr.bf16.mxu0 0
      %4783 = vmatmul.mubr.bf16.gmra.mrb[0].mxu0 %v4626
      %v4784 = vpop.f32.mrb[0].mxu0
      %v4785 = vadd.f32 %v4522, %v4784
      %v4786 = vpop.f32.mrb[0].mxu0
      %v4787 = vpop.f32.mrb[0].mxu0
      %v4788 = vadd.f32 %v4525, %v4787
      %v4789 = vpop.f32.mrb[0].mxu0
      %4790 = vmatprep.mubr.bf16.mxu0 0
      %4791 = vmatmul.mubr.bf16.gmra.mrb[0].mxu0 %v4635
      %v4792 = vpop.f32.mrb[0].mxu0
      %v4793 = vadd.f32 %v4530, %v4792
      %v4794 = vpop.f32.mrb[0].mxu0
      %v4795 = vpop.f32.mrb[0].mxu0
      %v4796 = vadd.f32 %v4533, %v4795
      %v4797 = vpop.f32.mrb[0].mxu0
      %4798 = vmatprep.mubr.bf16.mxu0 0
      %4799 = vmatmul.mubr.bf16.gmra.mrb[0].mxu0 %v4644
      %v4800 = vpop.f32.mrb[0].mxu0
      %v4801 = vadd.f32 %v4538, %v4800
      %v4802 = vpop.f32.mrb[0].mxu0
      %v4803 = vpop.f32.mrb[0].mxu0
      %v4804 = vadd.f32 %v4541, %v4803
      %v4805 = vpop.f32.mrb[0].mxu0
      %4806 = vdwg.mxu0
      %v4807 = vld [vmem:[%s273 + $0x7c] sm:$0xf]
      %v4808 = vld [vmem:[%s273 + $0x80] sm:$0xf]
      %v4809 = vld [vmem:[%s273 + $0x84] sm:$0xf]
      %v4810 = vld [vmem:[%s273 + $0x88] sm:$0xf]
      %v4811 = vld [vmem:[%s273 + $0x8c] sm:$0xf]
      %v4812 = vld [vmem:[%s273 + $0x90] sm:$0xf]
      %v4813 = vld [vmem:[%s273 + $0x94] sm:$0xf]
      %v4814 = vld [vmem:[%s273 + $0x98] sm:$0xf]
      %v4815 = vld [vmem:[%s273 + $0x9c] sm:$0xf]
      %v4816 = vld [vmem:[%s273 + $0xa0] sm:$0xf]
      %v4817 = vld [vmem:[%s273 + $0xa4] sm:$0xf]
      %v4818 = vld [vmem:[%s273 + $0xa8] sm:$0xf]
      %v4819 = vld [vmem:[%s273 + $0xac] sm:$0xf]
      %v4820 = vld [vmem:[%s273 + $0xb0] sm:$0xf]
      %v4821 = vld [vmem:[%s273 + $0xb4] sm:$0xf]
      %v4822 = vld [vmem:[%s273 + $0xb8] sm:$0xf]
      %v4823 = vld [vmem:[%s273 + $0xbc] sm:$0xf]
      %v4824 = vld [vmem:[%s273 + $0xc0] sm:$0xf]
      %v4825 = vld [vmem:[%s273 + $0xc4] sm:$0x1]
      %v4826 = vld [vmem:[%s1065] sm:$0xf]
      %v4827 = vld [vmem:[%s1065 + $0x4] sm:$0xf]
      %v4828 = vld [vmem:[%s1065 + $0x8] sm:$0xf]
      %v4829 = vld [vmem:[%s1065 + $0xc] sm:$0xf]
      %v4830 = vld [vmem:[%s1065 + $0x10] sm:$0xf]
      %v4831 = vld [vmem:[%s1065 + $0x14] sm:$0xf]
      %v4832 = vld [vmem:[%s1065 + $0x18] sm:$0xf]
      %v4833 = vld [vmem:[%s1065 + $0x1c] sm:$0xf]
      %v4834 = vld [vmem:[%s1065 + $0x20] sm:$0xf]
      %v4835 = vld [vmem:[%s1065 + $0x24] sm:$0xf]
      %v4836 = vld [vmem:[%s1065 + $0x28] sm:$0xf]
      %v4837 = vld [vmem:[%s1065 + $0x2c] sm:$0xf]
      %v4838 = vld [vmem:[%s1065 + $0x30] sm:$0xf]
      %v4839 = vld [vmem:[%s1065 + $0x34] sm:$0xf]
      %v4840 = vld [vmem:[%s1065 + $0x38] sm:$0xf]
      %v4841 = vld [vmem:[%s1065 + $0x3c] sm:$0xf]
      %v4861 = vunpack.c.l.b16 %v4807
      %v4862 = vunpack.c.l.b16 %v4808
      %v4863 = vunpack.c.l.b16 %v4809
      %v4864 = vunpack.c.l.b16 %v4810
      %v4865 = vunpack.c.l.b16 %v4811
      %v4866 = vunpack.c.l.b16 %v4812
      %v4867 = vunpack.c.l.b16 %v4813
      %v4868 = vunpack.c.l.b16 %v4814
      %v4869 = vunpack.c.l.b16 %v4815
      %v4870 = vunpack.c.l.b16 %v4816
      %v4871 = vunpack.c.l.b16 %v4817
      %v4872 = vunpack.c.l.b16 %v4818
      %v4873 = vunpack.c.l.b16 %v4819
      %v4874 = vunpack.c.l.b16 %v4820
      %v4875 = vunpack.c.l.b16 %v4821
      %v4876 = vunpack.c.l.b16 %v4822
      %v4877 = vunpack.c.l.b16 %v4823
      %v4878 = vunpack.c.l.b16 %v4824
      %v4879 = vunpack.c.l.b16 %v4825
      %v4880 = vpack.c.b16 %v4862, %v4861
      %v4881 = vpack.c.b16 %v4864, %v4863
      %v4882 = vpack.c.b16 %v4866, %v4865
      %v4883 = vpack.c.b16 %v4868, %v4867
      %v4884 = vpack.c.b16 %v4870, %v4869
      %v4885 = vpack.c.b16 %v4872, %v4871
      %v4886 = vpack.c.b16 %v4874, %v4873
      %v4887 = vpack.c.b16 %v4876, %v4875
      %v4888 = vpack.c.b16 %v4878, %v4877
      %v4889 = vpack.c.b16 %v4879, %v4879
      %v4891 = vshrl.u32 %v4880, 16
      %v4893 = vshll.u32 %v4880, 16
      %v4895 = vrot.slane %v4893, 1
      %v4896 = vor.u32 %v4891, %v4895
      %v4898 = vshll.u32 %v4881, 16
      %v4900 = vrot.slane %v4898, 1
      %v4901 = vsel %vm1160, %v4896, %v4900
      %v4902 = vshrl.u32 %v4881, 16
      %v4904 = vor.u32 %v4902, %v4900
      %v4906 = vshll.u32 %v4882, 16
      %v4908 = vrot.slane %v4906, 1
      %v4909 = vsel %vm1160, %v4904, %v4908
      %v4910 = vshrl.u32 %v4882, 16
      %v4912 = vor.u32 %v4910, %v4908
      %v4914 = vshll.u32 %v4883, 16
      %v4916 = vrot.slane %v4914, 1
      %v4917 = vsel %vm1160, %v4912, %v4916
      %v4918 = vshrl.u32 %v4883, 16
      %v4920 = vor.u32 %v4918, %v4916
      %v4922 = vshll.u32 %v4884, 16
      %v4924 = vrot.slane %v4922, 1
      %v4925 = vsel %vm1160, %v4920, %v4924
      %v4926 = vshrl.u32 %v4884, 16
      %v4928 = vor.u32 %v4926, %v4924
      %v4930 = vshll.u32 %v4885, 16
      %v4932 = vrot.slane %v4930, 1
      %v4933 = vsel %vm1160, %v4928, %v4932
      %v4934 = vshrl.u32 %v4885, 16
      %v4936 = vor.u32 %v4934, %v4932
      %v4938 = vshll.u32 %v4886, 16
      %v4940 = vrot.slane %v4938, 1
      %v4941 = vsel %vm1160, %v4936, %v4940
      %v4942 = vshrl.u32 %v4886, 16
      %v4944 = vor.u32 %v4942, %v4940
      %v4946 = vshll.u32 %v4887, 16
      %v4948 = vrot.slane %v4946, 1
      %v4949 = vsel %vm1160, %v4944, %v4948
      %v4950 = vshrl.u32 %v4887, 16
      %v4952 = vor.u32 %v4950, %v4948
      %v4954 = vshll.u32 %v4888, 16
      %v4956 = vrot.slane %v4954, 1
      %v4957 = vsel %vm1160, %v4952, %v4956
      %v4958 = vshrl.u32 %v4888, 16
      %v4960 = vor.u32 %v4958, %v4956
      %v4962 = vshll.u32 %v4889, 16
      %v4964 = vrot.slane %v4962, 1
      %v4965 = vsel %vm1160, %v4960, %v4964
      %v4991 = vunpack.c.l.b16 %v4826
      %v4992 = vunpack.c.l.b16 %v4827
      %v4993 = vunpack.c.l.b16 %v4828
      %v4994 = vunpack.c.l.b16 %v4829
      %v4995 = vunpack.c.l.b16 %v4830
      %v4996 = vunpack.c.l.b16 %v4831
      %v4997 = vunpack.c.l.b16 %v4832
      %v4998 = vunpack.c.l.b16 %v4833
      %v4999 = vunpack.c.l.b16 %v4834
      %v5000 = vunpack.c.l.b16 %v4835
      %v5001 = vunpack.c.l.b16 %v4836
      %v5002 = vunpack.c.l.b16 %v4837
      %v5003 = vunpack.c.l.b16 %v4838
      %v5004 = vunpack.c.l.b16 %v4839
      %v5005 = vunpack.c.l.b16 %v4840
      %v5006 = vunpack.c.l.b16 %v4841
      %v5007 = vpack.c.b16 %v4992, %v4991
      %v5008 = vpack.c.b16 %v4994, %v4993
      %v5009 = vpack.c.b16 %v4996, %v4995
      %v5010 = vpack.c.b16 %v4998, %v4997
      %v5011 = vpack.c.b16 %v5000, %v4999
      %v5012 = vpack.c.b16 %v5002, %v5001
      %v5013 = vpack.c.b16 %v5004, %v5003
      %v5014 = vpack.c.b16 %v5006, %v5005
      %5023 = vmatprep.subr.bf16.mxu0 0
      %5024 = vmatpush1.bf16.msra.mxu0 %v5007
      %5025 = vmatprep.subr.bf16.mxu0 0
      %5026 = vmatpush1.bf16.msra.mxu0 %v5008
      %5027 = vmatprep.subr.bf16.mxu0 0
      %5028 = vmatpush1.bf16.msra.mxu0 %v5009
      %5029 = vmatprep.subr.bf16.mxu0 0
      %5030 = vmatpush1.bf16.msra.mxu0 %v5010
      %5031 = vmatprep.subr.bf16.mxu0 0
      %5032 = vmatpush1.bf16.msra.mxu0 %v5011
      %5033 = vmatprep.subr.bf16.mxu0 0
      %5034 = vmatpush1.bf16.msra.mxu0 %v5012
      %5035 = vmatprep.subr.bf16.mxu0 0
      %5036 = vmatpush1.bf16.msra.mxu0 %v5013
      %5037 = vmatprep.subr.bf16.mxu0 0
      %5038 = vmatpush1.bf16.msra.mxu0 %v5014
      %5039 = vmatprep.subr.bf16.mxu0 0
      %5040 = vmatpush1.bf16.msra.mxu0 0
      %5041 = vmatprep.subr.bf16.mxu0 0
      %5042 = vmatpush1.bf16.msra.mxu0 0
      %5043 = vmatprep.subr.bf16.mxu0 0
      %5044 = vmatpush1.bf16.msra.mxu0 0
      %5045 = vmatprep.subr.bf16.mxu0 0
      %5046 = vmatpush1.bf16.msra.mxu0 0
      %5047 = vmatprep.subr.bf16.mxu0 0
      %5048 = vmatpush1.bf16.msra.mxu0 0
      %5049 = vmatprep.subr.bf16.mxu0 0
      %5050 = vmatpush1.bf16.msra.mxu0 0
      %5051 = vmatprep.subr.bf16.mxu0 0
      %5052 = vmatpush1.bf16.msra.mxu0 0
      %5053 = vmatprep.subr.bf16.mxu0 0
      %5054 = vmatpush1.bf16.msra.mxu0 0
      %5055 = vmatprep.mubr.bf16.mxu0 0
      %5056 = vmatmul.mubr.bf16.gmra.mrb[0].mxu0 %v4901
      %v5057 = vpop.f32.mrb[0].mxu0
      %v5058 = vadd.f32 0.0, %v5057
      %v5059 = vpop.f32.mrb[0].mxu0
      %v5060 = vpop.f32.mrb[0].mxu0
      %v5061 = vadd.f32 0.0, %v5060
      %v5062 = vpop.f32.mrb[0].mxu0
      %5063 = vmatprep.mubr.bf16.mxu0 0
      %5064 = vmatmul.mubr.bf16.gmra.mrb[0].mxu0 %v4909
      %v5065 = vpop.f32.mrb[0].mxu0
      %v5066 = vadd.f32 0.0, %v5065
      %v5067 = vpop.f32.mrb[0].mxu0
      %v5068 = vpop.f32.mrb[0].mxu0
      %v5069 = vadd.f32 0.0, %v5068
      %v5070 = vpop.f32.mrb[0].mxu0
      %5071 = vmatprep.mubr.bf16.mxu0 0
      %5072 = vmatmul.mubr.bf16.gmra.mrb[0].mxu0 %v4917
      %v5073 = vpop.f32.mrb[0].mxu0
      %v5074 = vadd.f32 0.0, %v5073
      %v5075 = vpop.f32.mrb[0].mxu0
      %v5076 = vpop.f32.mrb[0].mxu0
      %v5077 = vadd.f32 0.0, %v5076
      %v5078 = vpop.f32.mrb[0].mxu0
      %5079 = vmatprep.mubr.bf16.mxu0 0
      %5080 = vmatmul.mubr.bf16.gmra.mrb[0].mxu0 %v4925
      %v5081 = vpop.f32.mrb[0].mxu0
      %v5082 = vadd.f32 0.0, %v5081
      %v5083 = vpop.f32.mrb[0].mxu0
      %v5084 = vpop.f32.mrb[0].mxu0
      %v5085 = vadd.f32 0.0, %v5084
      %v5086 = vpop.f32.mrb[0].mxu0
      %5087 = vmatprep.mubr.bf16.mxu0 0
      %5088 = vmatmul.mubr.bf16.gmra.mrb[0].mxu0 %v4933
      %v5089 = vpop.f32.mrb[0].mxu0
      %v5090 = vadd.f32 0.0, %v5089
      %v5091 = vpop.f32.mrb[0].mxu0
      %v5092 = vpop.f32.mrb[0].mxu0
      %v5093 = vadd.f32 0.0, %v5092
      %v5094 = vpop.f32.mrb[0].mxu0
      %5095 = vmatprep.mubr.bf16.mxu0 0
      %5096 = vmatmul.mubr.bf16.gmra.mrb[0].mxu0 %v4941
      %v5097 = vpop.f32.mrb[0].mxu0
      %v5098 = vadd.f32 0.0, %v5097
      %v5099 = vpop.f32.mrb[0].mxu0
      %v5100 = vpop.f32.mrb[0].mxu0
      %v5101 = vadd.f32 0.0, %v5100
      %v5102 = vpop.f32.mrb[0].mxu0
      %5103 = vmatprep.mubr.bf16.mxu0 0
      %5104 = vmatmul.mubr.bf16.gmra.mrb[0].mxu0 %v4949
      %v5105 = vpop.f32.mrb[0].mxu0
      %v5106 = vadd.f32 0.0, %v5105
      %v5107 = vpop.f32.mrb[0].mxu0
      %v5108 = vpop.f32.mrb[0].mxu0
      %v5109 = vadd.f32 0.0, %v5108
      %v5110 = vpop.f32.mrb[0].mxu0
      %5111 = vmatprep.mubr.bf16.mxu0 0
      %5112 = vmatmul.mubr.bf16.gmra.mrb[0].mxu0 %v4957
      %v5113 = vpop.f32.mrb[0].mxu0
      %v5114 = vadd.f32 0.0, %v5113
      %v5115 = vpop.f32.mrb[0].mxu0
      %v5116 = vpop.f32.mrb[0].mxu0
      %v5117 = vadd.f32 0.0, %v5116
      %v5118 = vpop.f32.mrb[0].mxu0
      %5119 = vmatprep.mubr.bf16.mxu0 0
      %5120 = vmatmul.mubr.bf16.gmra.mrb[0].mxu0 %v4965
      %v5121 = vpop.f32.mrb[0].mxu0
      %v5122 = vadd.f32 0.0, %v5121
      %v5123 = vpop.f32.mrb[0].mxu0
      %v5124 = vpop.f32.mrb[0].mxu0
      %v5125 = vadd.f32 0.0, %v5124
      %v5126 = vpop.f32.mrb[0].mxu0
      %5127 = vdwg.mxu0
      %v5128 = vadd.f32 %v4737, %v5058
      %v5129 = vadd.f32 %v4740, %v5061
      %v5130 = vadd.f32 %v4745, %v5066
      %v5131 = vadd.f32 %v4748, %v5069
      %v5132 = vadd.f32 %v4753, %v5074
      %v5133 = vadd.f32 %v4756, %v5077
      %v5134 = vadd.f32 %v4761, %v5082
      %v5135 = vadd.f32 %v4764, %v5085
      %v5136 = vadd.f32 %v4769, %v5090
      %v5137 = vadd.f32 %v4772, %v5093
      %v5138 = vadd.f32 %v4777, %v5098
      %v5139 = vadd.f32 %v4780, %v5101
      %v5140 = vadd.f32 %v4785, %v5106
      %v5141 = vadd.f32 %v4788, %v5109
      %v5142 = vadd.f32 %v4793, %v5114
      %v5143 = vadd.f32 %v4796, %v5117
      %v5144 = vadd.f32 %v4801, %v5122
      %v5145 = vadd.f32 %v4804, %v5125
      %v5146 = vld [vmem:[%s273 + $0x84] sm:$0x8]
      %v5147 = vld [vmem:[%s273 + $0x88] sm:$0xf]
      %v5148 = vld [vmem:[%s273 + $0x8c] sm:$0xf]
      %v5149 = vld [vmem:[%s273 + $0x90] sm:$0xf]
      %v5150 = vld [vmem:[%s273 + $0x94] sm:$0xf]
      %v5151 = vld [vmem:[%s273 + $0x98] sm:$0xf]
      %v5152 = vld [vmem:[%s273 + $0x9c] sm:$0xf]
      %v5153 = vld [vmem:[%s273 + $0xa0] sm:$0xf]
      %v5154 = vld [vmem:[%s273 + $0xa4] sm:$0xf]
      %v5155 = vld [vmem:[%s273 + $0xa8] sm:$0xf]
      %v5156 = vld [vmem:[%s273 + $0xac] sm:$0xf]
      %v5157 = vld [vmem:[%s273 + $0xb0] sm:$0xf]
      %v5158 = vld [vmem:[%s273 + $0xb4] sm:$0xf]
      %v5159 = vld [vmem:[%s273 + $0xb8] sm:$0xf]
      %v5160 = vld [vmem:[%s273 + $0xbc] sm:$0xf]
      %v5161 = vld [vmem:[%s273 + $0xc0] sm:$0xf]
      %v5162 = vld [vmem:[%s273 + $0xc4] sm:$0xf]
      %v5163 = vld [vmem:[%s273 + $0xc8] sm:$0xf]
      %v5164 = vld [vmem:[%s273 + $0xcc] sm:$0xf]
      %v5165 = vld [vmem:[%s1562] sm:$0xf]
      %v5166 = vld [vmem:[%s1562 + $0x4] sm:$0xf]
      %v5167 = vld [vmem:[%s1562 + $0x8] sm:$0xf]
      %v5168 = vld [vmem:[%s1562 + $0xc] sm:$0xf]
      %v5169 = vld [vmem:[%s1562 + $0x10] sm:$0xf]
      %v5170 = vld [vmem:[%s1562 + $0x14] sm:$0xf]
      %v5171 = vld [vmem:[%s1562 + $0x18] sm:$0xf]
      %v5172 = vld [vmem:[%s1562 + $0x1c] sm:$0xf]
      %v5173 = vld [vmem:[%s1562 + $0x20] sm:$0xf]
      %v5174 = vld [vmem:[%s1562 + $0x24] sm:$0xf]
      %v5175 = vld [vmem:[%s1562 + $0x28] sm:$0xf]
      %v5176 = vld [vmem:[%s1562 + $0x2c] sm:$0xf]
      %v5177 = vld [vmem:[%s1562 + $0x30] sm:$0xf]
      %v5178 = vld [vmem:[%s1562 + $0x34] sm:$0xf]
      %v5179 = vld [vmem:[%s1562 + $0x38] sm:$0xf]
      %v5180 = vld [vmem:[%s1562 + $0x3c] sm:$0xf]
      %v5200 = vunpack.c.l.b16 %v5146
      %v5201 = vunpack.c.l.b16 %v5147
      %v5202 = vunpack.c.l.b16 %v5148
      %v5203 = vunpack.c.l.b16 %v5149
      %v5204 = vunpack.c.l.b16 %v5150
      %v5205 = vunpack.c.l.b16 %v5151
      %v5206 = vunpack.c.l.b16 %v5152
      %v5207 = vunpack.c.l.b16 %v5153
      %v5208 = vunpack.c.l.b16 %v5154
      %v5209 = vunpack.c.l.b16 %v5155
      %v5210 = vunpack.c.l.b16 %v5156
      %v5211 = vunpack.c.l.b16 %v5157
      %v5212 = vunpack.c.l.b16 %v5158
      %v5213 = vunpack.c.l.b16 %v5159
      %v5214 = vunpack.c.l.b16 %v5160
      %v5215 = vunpack.c.l.b16 %v5161
      %v5216 = vunpack.c.l.b16 %v5162
      %v5217 = vunpack.c.l.b16 %v5163
      %v5218 = vunpack.c.l.b16 %v5164
      %v5219 = vpack.c.b16 %v5201, %v5200
      %v5220 = vpack.c.b16 %v5203, %v5202
      %v5221 = vpack.c.b16 %v5205, %v5204
      %v5222 = vpack.c.b16 %v5207, %v5206
      %v5223 = vpack.c.b16 %v5209, %v5208
      %v5224 = vpack.c.b16 %v5211, %v5210
      %v5225 = vpack.c.b16 %v5213, %v5212
      %v5226 = vpack.c.b16 %v5215, %v5214
      %v5227 = vpack.c.b16 %v5217, %v5216
      %v5228 = vpack.c.b16 %v5218, %v5218
      %v5230 = vshrl.u32 %v5219, 16
      %v5232 = vrot.slane %v5230, 3
      %v5233 = vshll.u32 %v5219, 16
      %v5235 = vrot.slane %v5233, 4
      %v5236 = vor.u32 %v5232, %v5235
      %v5238 = vshrl.u32 %v5220, 16
      %v5240 = vrot.slane %v5238, 3
      %v5241 = vshll.u32 %v5220, 16
      %v5243 = vrot.slane %v5241, 4
      %v5244 = vor.u32 %v5240, %v5243
      %v5245 = vsel %vm674, %v5236, %v5244
      %v5247 = vshrl.u32 %v5221, 16
      %v5249 = vrot.slane %v5247, 3
      %v5250 = vshll.u32 %v5221, 16
      %v5252 = vrot.slane %v5250, 4
      %v5253 = vor.u32 %v5249, %v5252
      %v5254 = vsel %vm674, %v5244, %v5253
      %v5256 = vshrl.u32 %v5222, 16
      %v5258 = vrot.slane %v5256, 3
      %v5259 = vshll.u32 %v5222, 16
      %v5261 = vrot.slane %v5259, 4
      %v5262 = vor.u32 %v5258, %v5261
      %v5263 = vsel %vm674, %v5253, %v5262
      %v5265 = vshrl.u32 %v5223, 16
      %v5267 = vrot.slane %v5265, 3
      %v5268 = vshll.u32 %v5223, 16
      %v5270 = vrot.slane %v5268, 4
      %v5271 = vor.u32 %v5267, %v5270
      %v5272 = vsel %vm674, %v5262, %v5271
      %v5274 = vshrl.u32 %v5224, 16
      %v5276 = vrot.slane %v5274, 3
      %v5277 = vshll.u32 %v5224, 16
      %v5279 = vrot.slane %v5277, 4
      %v5280 = vor.u32 %v5276, %v5279
      %v5281 = vsel %vm674, %v5271, %v5280
      %v5283 = vshrl.u32 %v5225, 16
      %v5285 = vrot.slane %v5283, 3
      %v5286 = vshll.u32 %v5225, 16
      %v5288 = vrot.slane %v5286, 4
      %v5289 = vor.u32 %v5285, %v5288
      %v5290 = vsel %vm674, %v5280, %v5289
      %v5292 = vshrl.u32 %v5226, 16
      %v5294 = vrot.slane %v5292, 3
      %v5295 = vshll.u32 %v5226, 16
      %v5297 = vrot.slane %v5295, 4
      %v5298 = vor.u32 %v5294, %v5297
      %v5299 = vsel %vm674, %v5289, %v5298
      %v5301 = vshrl.u32 %v5227, 16
      %v5303 = vrot.slane %v5301, 3
      %v5304 = vshll.u32 %v5227, 16
      %v5306 = vrot.slane %v5304, 4
      %v5307 = vor.u32 %v5303, %v5306
      %v5308 = vsel %vm674, %v5298, %v5307
      %v5310 = vshrl.u32 %v5228, 16
      %v5312 = vrot.slane %v5310, 3
      %v5313 = vshll.u32 %v5228, 16
      %v5315 = vrot.slane %v5313, 4
      %v5316 = vor.u32 %v5312, %v5315
      %v5317 = vsel %vm674, %v5307, %v5316
      %v5343 = vunpack.c.l.b16 %v5165
      %v5344 = vunpack.c.l.b16 %v5166
      %v5345 = vunpack.c.l.b16 %v5167
      %v5346 = vunpack.c.l.b16 %v5168
      %v5347 = vunpack.c.l.b16 %v5169
      %v5348 = vunpack.c.l.b16 %v5170
      %v5349 = vunpack.c.l.b16 %v5171
      %v5350 = vunpack.c.l.b16 %v5172
      %v5351 = vunpack.c.l.b16 %v5173
      %v5352 = vunpack.c.l.b16 %v5174
      %v5353 = vunpack.c.l.b16 %v5175
      %v5354 = vunpack.c.l.b16 %v5176
      %v5355 = vunpack.c.l.b16 %v5177
      %v5356 = vunpack.c.l.b16 %v5178
      %v5357 = vunpack.c.l.b16 %v5179
      %v5358 = vunpack.c.l.b16 %v5180
      %v5359 = vpack.c.b16 %v5344, %v5343
      %v5360 = vpack.c.b16 %v5346, %v5345
      %v5361 = vpack.c.b16 %v5348, %v5347
      %v5362 = vpack.c.b16 %v5350, %v5349
      %v5363 = vpack.c.b16 %v5352, %v5351
      %v5364 = vpack.c.b16 %v5354, %v5353
      %v5365 = vpack.c.b16 %v5356, %v5355
      %v5366 = vpack.c.b16 %v5358, %v5357
      %5375 = vmatprep.subr.bf16.mxu0 0
      %5376 = vmatpush1.bf16.msra.mxu0 %v5359
      %5377 = vmatprep.subr.bf16.mxu0 0
      %5378 = vmatpush1.bf16.msra.mxu0 %v5360
      %5379 = vmatprep.subr.bf16.mxu0 0
      %5380 = vmatpush1.bf16.msra.mxu0 %v5361
      %5381 = vmatprep.subr.bf16.mxu0 0
      %5382 = vmatpush1.bf16.msra.mxu0 %v5362
      %5383 = vmatprep.subr.bf16.mxu0 0
      %5384 = vmatpush1.bf16.msra.mxu0 %v5363
      %5385 = vmatprep.subr.bf16.mxu0 0
      %5386 = vmatpush1.bf16.msra.mxu0 %v5364
      %5387 = vmatprep.subr.bf16.mxu0 0
      %5388 = vmatpush1.bf16.msra.mxu0 %v5365
      %5389 = vmatprep.subr.bf16.mxu0 0
      %5390 = vmatpush1.bf16.msra.mxu0 %v5366
      %5391 = vmatprep.subr.bf16.mxu0 0
      %5392 = vmatpush1.bf16.msra.mxu0 0
      %5393 = vmatprep.subr.bf16.mxu0 0
      %5394 = vmatpush1.bf16.msra.mxu0 0
      %5395 = vmatprep.subr.bf16.mxu0 0
      %5396 = vmatpush1.bf16.msra.mxu0 0
      %5397 = vmatprep.subr.bf16.mxu0 0
      %5398 = vmatpush1.bf16.msra.mxu0 0
      %5399 = vmatprep.subr.bf16.mxu0 0
      %5400 = vmatpush1.bf16.msra.mxu0 0
      %5401 = vmatprep.subr.bf16.mxu0 0
      %5402 = vmatpush1.bf16.msra.mxu0 0
      %5403 = vmatprep.subr.bf16.mxu0 0
      %5404 = vmatpush1.bf16.msra.mxu0 0
      %5405 = vmatprep.subr.bf16.mxu0 0
      %5406 = vmatpush1.bf16.msra.mxu0 0
      %5407 = vmatprep.mubr.bf16.mxu0 0
      %5408 = vmatmul.mubr.bf16.gmra.mrb[0].mxu0 %v5245
      %v5409 = vpop.f32.mrb[0].mxu0
      %v5410 = vadd.f32 0.0, %v5409
      %v5411 = vpop.f32.mrb[0].mxu0
      %v5412 = vpop.f32.mrb[0].mxu0
      %v5413 = vadd.f32 0.0, %v5412
      %v5414 = vpop.f32.mrb[0].mxu0
      %5415 = vmatprep.mubr.bf16.mxu0 0
      %5416 = vmatmul.mubr.bf16.gmra.mrb[0].mxu0 %v5254
      %v5417 = vpop.f32.mrb[0].mxu0
      %v5418 = vadd.f32 0.0, %v5417
      %v5419 = vpop.f32.mrb[0].mxu0
      %v5420 = vpop.f32.mrb[0].mxu0
      %v5421 = vadd.f32 0.0, %v5420
      %v5422 = vpop.f32.mrb[0].mxu0
      %5423 = vmatprep.mubr.bf16.mxu0 0
      %5424 = vmatmul.mubr.bf16.gmra.mrb[0].mxu0 %v5263
      %v5425 = vpop.f32.mrb[0].mxu0
      %v5426 = vadd.f32 0.0, %v5425
      %v5427 = vpop.f32.mrb[0].mxu0
      %v5428 = vpop.f32.mrb[0].mxu0
      %v5429 = vadd.f32 0.0, %v5428
      %v5430 = vpop.f32.mrb[0].mxu0
      %5431 = vmatprep.mubr.bf16.mxu0 0
      %5432 = vmatmul.mubr.bf16.gmra.mrb[0].mxu0 %v5272
      %v5433 = vpop.f32.mrb[0].mxu0
      %v5434 = vadd.f32 0.0, %v5433
      %v5435 = vpop.f32.mrb[0].mxu0
      %v5436 = vpop.f32.mrb[0].mxu0
      %v5437 = vadd.f32 0.0, %v5436
      %v5438 = vpop.f32.mrb[0].mxu0
      %5439 = vmatprep.mubr.bf16.mxu0 0
      %5440 = vmatmul.mubr.bf16.gmra.mrb[0].mxu0 %v5281
      %v5441 = vpop.f32.mrb[0].mxu0
      %v5442 = vadd.f32 0.0, %v5441
      %v5443 = vpop.f32.mrb[0].mxu0
      %v5444 = vpop.f32.mrb[0].mxu0
      %v5445 = vadd.f32 0.0, %v5444
      %v5446 = vpop.f32.mrb[0].mxu0
      %5447 = vmatprep.mubr.bf16.mxu0 0
      %5448 = vmatmul.mubr.bf16.gmra.mrb[0].mxu0 %v5290
      %v5449 = vpop.f32.mrb[0].mxu0
      %v5450 = vadd.f32 0.0, %v5449
      %v5451 = vpop.f32.mrb[0].mxu0
      %v5452 = vpop.f32.mrb[0].mxu0
      %v5453 = vadd.f32 0.0, %v5452
      %v5454 = vpop.f32.mrb[0].mxu0
      %5455 = vmatprep.mubr.bf16.mxu0 0
      %5456 = vmatmul.mubr.bf16.gmra.mrb[0].mxu0 %v5299
      %v5457 = vpop.f32.mrb[0].mxu0
      %v5458 = vadd.f32 0.0, %v5457
      %v5459 = vpop.f32.mrb[0].mxu0
      %v5460 = vpop.f32.mrb[0].mxu0
      %v5461 = vadd.f32 0.0, %v5460
      %v5462 = vpop.f32.mrb[0].mxu0
      %5463 = vmatprep.mubr.bf16.mxu0 0
      %5464 = vmatmul.mubr.bf16.gmra.mrb[0].mxu0 %v5308
      %v5465 = vpop.f32.mrb[0].mxu0
      %v5466 = vadd.f32 0.0, %v5465
      %v5467 = vpop.f32.mrb[0].mxu0
      %v5468 = vpop.f32.mrb[0].mxu0
      %v5469 = vadd.f32 0.0, %v5468
      %v5470 = vpop.f32.mrb[0].mxu0
      %5471 = vmatprep.mubr.bf16.mxu0 0
      %5472 = vmatmul.mubr.bf16.gmra.mrb[0].mxu0 %v5317
      %v5473 = vpop.f32.mrb[0].mxu0
      %v5474 = vadd.f32 0.0, %v5473
      %v5475 = vpop.f32.mrb[0].mxu0
      %v5476 = vpop.f32.mrb[0].mxu0
      %v5477 = vadd.f32 0.0, %v5476
      %v5478 = vpop.f32.mrb[0].mxu0
      %5479 = vdwg.mxu0
      %v5480 = vadd.f32 %v5128, %v5410
      %v5481 = vadd.f32 %v5129, %v5413
      %v5482 = vadd.f32 %v5130, %v5418
      %v5483 = vadd.f32 %v5131, %v5421
      %v5484 = vadd.f32 %v5132, %v5426
      %v5485 = vadd.f32 %v5133, %v5429
      %v5486 = vadd.f32 %v5134, %v5434
      %v5487 = vadd.f32 %v5135, %v5437
      %v5488 = vadd.f32 %v5136, %v5442
      %v5489 = vadd.f32 %v5137, %v5445
      %v5490 = vadd.f32 %v5138, %v5450
      %v5491 = vadd.f32 %v5139, %v5453
      %v5492 = vadd.f32 %v5140, %v5458
      %v5493 = vadd.f32 %v5141, %v5461
      %v5494 = vadd.f32 %v5142, %v5466
      %v5495 = vadd.f32 %v5143, %v5469
      %v5496 = vadd.f32 %v5144, %v5474
      %v5497 = vadd.f32 %v5145, %v5477
      %v5498 = vld [vmem:[%s2046] sm:$0xf]
      %v5499 = vld [vmem:[%s2046 + $0x4] sm:$0xf]
      %v5500 = vld [vmem:[%s2046 + $0x8] sm:$0xf]
      %v5501 = vld [vmem:[%s2046 + $0xc] sm:$0xf]
      %v5502 = vld [vmem:[%s2046 + $0x10] sm:$0xf]
      %v5503 = vld [vmem:[%s2046 + $0x14] sm:$0xf]
      %v5504 = vld [vmem:[%s2046 + $0x18] sm:$0xf]
      %v5505 = vld [vmem:[%s2046 + $0x1c] sm:$0xf]
      %v5506 = vld [vmem:[%s2046 + $0x20] sm:$0xf]
      %v5507 = vld [vmem:[%s2046 + $0x24] sm:$0xf]
      %v5508 = vld [vmem:[%s2046 + $0x28] sm:$0xf]
      %v5509 = vld [vmem:[%s2046 + $0x2c] sm:$0xf]
      %v5510 = vld [vmem:[%s2046 + $0x30] sm:$0xf]
      %v5511 = vld [vmem:[%s2046 + $0x34] sm:$0xf]
      %v5512 = vld [vmem:[%s2046 + $0x38] sm:$0xf]
      %v5513 = vld [vmem:[%s2046 + $0x3c] sm:$0xf]
      %v5514 = vpack.c.b16 %v5202, %v5201
      %v5515 = vpack.c.b16 %v5204, %v5203
      %v5516 = vpack.c.b16 %v5206, %v5205
      %v5517 = vpack.c.b16 %v5208, %v5207
      %v5518 = vpack.c.b16 %v5210, %v5209
      %v5519 = vpack.c.b16 %v5212, %v5211
      %v5520 = vpack.c.b16 %v5214, %v5213
      %v5521 = vpack.c.b16 %v5216, %v5215
      %v5522 = vpack.c.b16 %v5218, %v5217
      %v5548 = vunpack.c.l.b16 %v5498
      %v5549 = vunpack.c.l.b16 %v5499
      %v5550 = vunpack.c.l.b16 %v5500
      %v5551 = vunpack.c.l.b16 %v5501
      %v5552 = vunpack.c.l.b16 %v5502
      %v5553 = vunpack.c.l.b16 %v5503
      %v5554 = vunpack.c.l.b16 %v5504
      %v5555 = vunpack.c.l.b16 %v5505
      %v5556 = vunpack.c.l.b16 %v5506
      %v5557 = vunpack.c.l.b16 %v5507
      %v5558 = vunpack.c.l.b16 %v5508
      %v5559 = vunpack.c.l.b16 %v5509
      %v5560 = vunpack.c.l.b16 %v5510
      %v5561 = vunpack.c.l.b16 %v5511
      %v5562 = vunpack.c.l.b16 %v5512
      %v5563 = vunpack.c.l.b16 %v5513
      %v5564 = vpack.c.b16 %v5549, %v5548
      %v5565 = vpack.c.b16 %v5551, %v5550
      %v5566 = vpack.c.b16 %v5553, %v5552
      %v5567 = vpack.c.b16 %v5555, %v5554
      %v5568 = vpack.c.b16 %v5557, %v5556
      %v5569 = vpack.c.b16 %v5559, %v5558
      %v5570 = vpack.c.b16 %v5561, %v5560
      %v5571 = vpack.c.b16 %v5563, %v5562
      %5580 = vmatprep.subr.bf16.mxu0 0
      %5581 = vmatpush1.bf16.msra.mxu0 %v5564
      %5582 = vmatprep.subr.bf16.mxu0 0
      %5583 = vmatpush1.bf16.msra.mxu0 %v5565
      %5584 = vmatprep.subr.bf16.mxu0 0
      %5585 = vmatpush1.bf16.msra.mxu0 %v5566
      %5586 = vmatprep.subr.bf16.mxu0 0
      %5587 = vmatpush1.bf16.msra.mxu0 %v5567
      %5588 = vmatprep.subr.bf16.mxu0 0
      %5589 = vmatpush1.bf16.msra.mxu0 %v5568
      %5590 = vmatprep.subr.bf16.mxu0 0
      %5591 = vmatpush1.bf16.msra.mxu0 %v5569
      %5592 = vmatprep.subr.bf16.mxu0 0
      %5593 = vmatpush1.bf16.msra.mxu0 %v5570
      %5594 = vmatprep.subr.bf16.mxu0 0
      %5595 = vmatpush1.bf16.msra.mxu0 %v5571
      %5596 = vmatprep.subr.bf16.mxu0 0
      %5597 = vmatpush1.bf16.msra.mxu0 0
      %5598 = vmatprep.subr.bf16.mxu0 0
      %5599 = vmatpush1.bf16.msra.mxu0 0
      %5600 = vmatprep.subr.bf16.mxu0 0
      %5601 = vmatpush1.bf16.msra.mxu0 0
      %5602 = vmatprep.subr.bf16.mxu0 0
      %5603 = vmatpush1.bf16.msra.mxu0 0
      %5604 = vmatprep.subr.bf16.mxu0 0
      %5605 = vmatpush1.bf16.msra.mxu0 0
      %5606 = vmatprep.subr.bf16.mxu0 0
      %5607 = vmatpush1.bf16.msra.mxu0 0
      %5608 = vmatprep.subr.bf16.mxu0 0
      %5609 = vmatpush1.bf16.msra.mxu0 0
      %5610 = vmatprep.subr.bf16.mxu0 0
      %5611 = vmatpush1.bf16.msra.mxu0 0
      %5612 = vmatprep.mubr.bf16.mxu0 0
      %5613 = vmatmul.mubr.bf16.gmra.mrb[0].mxu0 %v5514
      %v5614 = vpop.f32.mrb[0].mxu0
      %v5615 = vadd.f32 0.0, %v5614
      %v5616 = vpop.f32.mrb[0].mxu0
      %v5617 = vpop.f32.mrb[0].mxu0
      %v5618 = vadd.f32 0.0, %v5617
      %v5619 = vpop.f32.mrb[0].mxu0
      %5620 = vmatprep.mubr.bf16.mxu0 0
      %5621 = vmatmul.mubr.bf16.gmra.mrb[0].mxu0 %v5515
      %v5622 = vpop.f32.mrb[0].mxu0
      %v5623 = vadd.f32 0.0, %v5622
      %v5624 = vpop.f32.mrb[0].mxu0
      %v5625 = vpop.f32.mrb[0].mxu0
      %v5626 = vadd.f32 0.0, %v5625
      %v5627 = vpop.f32.mrb[0].mxu0
      %5628 = vmatprep.mubr.bf16.mxu0 0
      %5629 = vmatmul.mubr.bf16.gmra.mrb[0].mxu0 %v5516
      %v5630 = vpop.f32.mrb[0].mxu0
      %v5631 = vadd.f32 0.0, %v5630
      %v5632 = vpop.f32.mrb[0].mxu0
      %v5633 = vpop.f32.mrb[0].mxu0
      %v5634 = vadd.f32 0.0, %v5633
      %v5635 = vpop.f32.mrb[0].mxu0
      %5636 = vmatprep.mubr.bf16.mxu0 0
      %5637 = vmatmul.mubr.bf16.gmra.mrb[0].mxu0 %v5517
      %v5638 = vpop.f32.mrb[0].mxu0
      %v5639 = vadd.f32 0.0, %v5638
      %v5640 = vpop.f32.mrb[0].mxu0
      %v5641 = vpop.f32.mrb[0].mxu0
      %v5642 = vadd.f32 0.0, %v5641
      %v5643 = vpop.f32.mrb[0].mxu0
      %5644 = vmatprep.mubr.bf16.mxu0 0
      %5645 = vmatmul.mubr.bf16.gmra.mrb[0].mxu0 %v5518
      %v5646 = vpop.f32.mrb[0].mxu0
      %v5647 = vadd.f32 0.0, %v5646
      %v5648 = vpop.f32.mrb[0].mxu0
      %v5649 = vpop.f32.mrb[0].mxu0
      %v5650 = vadd.f32 0.0, %v5649
      %v5651 = vpop.f32.mrb[0].mxu0
      %5652 = vmatprep.mubr.bf16.mxu0 0
      %5653 = vmatmul.mubr.bf16.gmra.mrb[0].mxu0 %v5519
      %v5654 = vpop.f32.mrb[0].mxu0
      %v5655 = vadd.f32 0.0, %v5654
      %v5656 = vpop.f32.mrb[0].mxu0
      %v5657 = vpop.f32.mrb[0].mxu0
      %v5658 = vadd.f32 0.0, %v5657
      %v5659 = vpop.f32.mrb[0].mxu0
      %5660 = vmatprep.mubr.bf16.mxu0 0
      %5661 = vmatmul.mubr.bf16.gmra.mrb[0].mxu0 %v5520
      %v5662 = vpop.f32.mrb[0].mxu0
      %v5663 = vadd.f32 0.0, %v5662
      %v5664 = vpop.f32.mrb[0].mxu0
      %v5665 = vpop.f32.mrb[0].mxu0
      %v5666 = vadd.f32 0.0, %v5665
      %v5667 = vpop.f32.mrb[0].mxu0
      %5668 = vmatprep.mubr.bf16.mxu0 0
      %5669 = vmatmul.mubr.bf16.gmra.mrb[0].mxu0 %v5521
      %v5670 = vpop.f32.mrb[0].mxu0
      %v5671 = vadd.f32 0.0, %v5670
      %v5672 = vpop.f32.mrb[0].mxu0
      %v5673 = vpop.f32.mrb[0].mxu0
      %v5674 = vadd.f32 0.0, %v5673
      %v5675 = vpop.f32.mrb[0].mxu0
      %5676 = vmatprep.mubr.bf16.mxu0 0
      %5677 = vmatmul.mubr.bf16.gmra.mrb[0].mxu0 %v5522
      %v5678 = vpop.f32.mrb[0].mxu0
      %v5679 = vadd.f32 0.0, %v5678
      %v5680 = vpop.f32.mrb[0].mxu0
      %v5681 = vpop.f32.mrb[0].mxu0
      %v5682 = vadd.f32 0.0, %v5681
      %v5683 = vpop.f32.mrb[0].mxu0
      %5684 = vdwg.mxu0
      %v5685 = vadd.f32 %v5480, %v5615
      %v5686 = vadd.f32 %v5481, %v5618
      %v5687 = vadd.f32 %v5482, %v5623
      %v5688 = vadd.f32 %v5483, %v5626
      %v5689 = vadd.f32 %v5484, %v5631
      %v5690 = vadd.f32 %v5485, %v5634
      %v5691 = vadd.f32 %v5486, %v5639
      %v5692 = vadd.f32 %v5487, %v5642
      %v5693 = vadd.f32 %v5488, %v5647
      %v5694 = vadd.f32 %v5489, %v5650
      %v5695 = vadd.f32 %v5490, %v5655
      %v5696 = vadd.f32 %v5491, %v5658
      %v5697 = vadd.f32 %v5492, %v5663
      %v5698 = vadd.f32 %v5493, %v5666
      %v5699 = vadd.f32 %v5494, %v5671
      %v5700 = vadd.f32 %v5495, %v5674
      %v5701 = vadd.f32 %v5496, %v5679
      %v5702 = vadd.f32 %v5497, %v5682
      %v5703 = vld [vmem:[%s273 + $0x88] sm:$0xf]
      %v5704 = vld [vmem:[%s273 + $0x8c] sm:$0xf]
      %v5705 = vld [vmem:[%s273 + $0x90] sm:$0xf]
      %v5706 = vld [vmem:[%s273 + $0x94] sm:$0xf]
      %v5707 = vld [vmem:[%s273 + $0x98] sm:$0xf]
      %v5708 = vld [vmem:[%s273 + $0x9c] sm:$0xf]
      %v5709 = vld [vmem:[%s273 + $0xa0] sm:$0xf]
      %v5710 = vld [vmem:[%s273 + $0xa4] sm:$0xf]
      %v5711 = vld [vmem:[%s273 + $0xa8] sm:$0xf]
      %v5712 = vld [vmem:[%s273 + $0xac] sm:$0xf]
      %v5713 = vld [vmem:[%s273 + $0xb0] sm:$0xf]
      %v5714 = vld [vmem:[%s273 + $0xb4] sm:$0xf]
      %v5715 = vld [vmem:[%s273 + $0xb8] sm:$0xf]
      %v5716 = vld [vmem:[%s273 + $0xbc] sm:$0xf]
      %v5717 = vld [vmem:[%s273 + $0xc0] sm:$0xf]
      %v5718 = vld [vmem:[%s273 + $0xc4] sm:$0xf]
      %v5719 = vld [vmem:[%s273 + $0xc8] sm:$0xf]
      %v5720 = vld [vmem:[%s273 + $0xcc] sm:$0xf]
      %v5721 = vld [vmem:[%s273 + $0xd0] sm:$0x1]
      %v5722 = vld [vmem:[%s2355] sm:$0xf]
      %v5723 = vld [vmem:[%s2355 + $0x4] sm:$0xf]
      %v5724 = vld [vmem:[%s2355 + $0x8] sm:$0xf]
      %v5725 = vld [vmem:[%s2355 + $0xc] sm:$0xf]
      %v5726 = vld [vmem:[%s2355 + $0x10] sm:$0xf]
      %v5727 = vld [vmem:[%s2355 + $0x14] sm:$0xf]
      %v5728 = vld [vmem:[%s2355 + $0x18] sm:$0xf]
      %v5729 = vld [vmem:[%s2355 + $0x1c] sm:$0xf]
      %v5730 = vld [vmem:[%s2355 + $0x20] sm:$0xf]
      %v5731 = vld [vmem:[%s2355 + $0x24] sm:$0xf]
      %v5732 = vld [vmem:[%s2355 + $0x28] sm:$0xf]
      %v5733 = vld [vmem:[%s2355 + $0x2c] sm:$0xf]
      %v5734 = vld [vmem:[%s2355 + $0x30] sm:$0xf]
      %v5735 = vld [vmem:[%s2355 + $0x34] sm:$0xf]
      %v5736 = vld [vmem:[%s2355 + $0x38] sm:$0xf]
      %v5737 = vld [vmem:[%s2355 + $0x3c] sm:$0xf]
      %v5757 = vunpack.c.l.b16 %v5703
      %v5758 = vunpack.c.l.b16 %v5704
      %v5759 = vunpack.c.l.b16 %v5705
      %v5760 = vunpack.c.l.b16 %v5706
      %v5761 = vunpack.c.l.b16 %v5707
      %v5762 = vunpack.c.l.b16 %v5708
      %v5763 = vunpack.c.l.b16 %v5709
      %v5764 = vunpack.c.l.b16 %v5710
      %v5765 = vunpack.c.l.b16 %v5711
      %v5766 = vunpack.c.l.b16 %v5712
      %v5767 = vunpack.c.l.b16 %v5713
      %v5768 = vunpack.c.l.b16 %v5714
      %v5769 = vunpack.c.l.b16 %v5715
      %v5770 = vunpack.c.l.b16 %v5716
      %v5771 = vunpack.c.l.b16 %v5717
      %v5772 = vunpack.c.l.b16 %v5718
      %v5773 = vunpack.c.l.b16 %v5719
      %v5774 = vunpack.c.l.b16 %v5720
      %v5775 = vunpack.c.l.b16 %v5721
      %v5776 = vpack.c.b16 %v5758, %v5757
      %v5777 = vpack.c.b16 %v5760, %v5759
      %v5778 = vpack.c.b16 %v5762, %v5761
      %v5779 = vpack.c.b16 %v5764, %v5763
      %v5780 = vpack.c.b16 %v5766, %v5765
      %v5781 = vpack.c.b16 %v5768, %v5767
      %v5782 = vpack.c.b16 %v5770, %v5769
      %v5783 = vpack.c.b16 %v5772, %v5771
      %v5784 = vpack.c.b16 %v5774, %v5773
      %v5785 = vpack.c.b16 %v5775, %v5775
      %v5787 = vshrl.u32 %v5776, 16
      %v5789 = vshll.u32 %v5776, 16
      %v5791 = vrot.slane %v5789, 1
      %v5792 = vor.u32 %v5787, %v5791
      %v5794 = vshll.u32 %v5777, 16
      %v5796 = vrot.slane %v5794, 1
      %v5797 = vsel %vm1160, %v5792, %v5796
      %v5798 = vshrl.u32 %v5777, 16
      %v5800 = vor.u32 %v5798, %v5796
      %v5802 = vshll.u32 %v5778, 16
      %v5804 = vrot.slane %v5802, 1
      %v5805 = vsel %vm1160, %v5800, %v5804
      %v5806 = vshrl.u32 %v5778, 16
      %v5808 = vor.u32 %v5806, %v5804
      %v5810 = vshll.u32 %v5779, 16
      %v5812 = vrot.slane %v5810, 1
      %v5813 = vsel %vm1160, %v5808, %v5812
      %v5814 = vshrl.u32 %v5779, 16
      %v5816 = vor.u32 %v5814, %v5812
      %v5818 = vshll.u32 %v5780, 16
      %v5820 = vrot.slane %v5818, 1
      %v5821 = vsel %vm1160, %v5816, %v5820
      %v5822 = vshrl.u32 %v5780, 16
      %v5824 = vor.u32 %v5822, %v5820
      %v5826 = vshll.u32 %v5781, 16
      %v5828 = vrot.slane %v5826, 1
      %v5829 = vsel %vm1160, %v5824, %v5828
      %v5830 = vshrl.u32 %v5781, 16
      %v5832 = vor.u32 %v5830, %v5828
      %v5834 = vshll.u32 %v5782, 16
      %v5836 = vrot.slane %v5834, 1
      %v5837 = vsel %vm1160, %v5832, %v5836
      %v5838 = vshrl.u32 %v5782, 16
      %v5840 = vor.u32 %v5838, %v5836
      %v5842 = vshll.u32 %v5783, 16
      %v5844 = vrot.slane %v5842, 1
      %v5845 = vsel %vm1160, %v5840, %v5844
      %v5846 = vshrl.u32 %v5783, 16
      %v5848 = vor.u32 %v5846, %v5844
      %v5850 = vshll.u32 %v5784, 16
      %v5852 = vrot.slane %v5850, 1
      %v5853 = vsel %vm1160, %v5848, %v5852
      %v5854 = vshrl.u32 %v5784, 16
      %v5856 = vor.u32 %v5854, %v5852
      %v5858 = vshll.u32 %v5785, 16
      %v5860 = vrot.slane %v5858, 1
      %v5861 = vsel %vm1160, %v5856, %v5860
      %v5887 = vunpack.c.l.b16 %v5722
      %v5888 = vunpack.c.l.b16 %v5723
      %v5889 = vunpack.c.l.b16 %v5724
      %v5890 = vunpack.c.l.b16 %v5725
      %v5891 = vunpack.c.l.b16 %v5726
      %v5892 = vunpack.c.l.b16 %v5727
      %v5893 = vunpack.c.l.b16 %v5728
      %v5894 = vunpack.c.l.b16 %v5729
      %v5895 = vunpack.c.l.b16 %v5730
      %v5896 = vunpack.c.l.b16 %v5731
      %v5897 = vunpack.c.l.b16 %v5732
      %v5898 = vunpack.c.l.b16 %v5733
      %v5899 = vunpack.c.l.b16 %v5734
      %v5900 = vunpack.c.l.b16 %v5735
      %v5901 = vunpack.c.l.b16 %v5736
      %v5902 = vunpack.c.l.b16 %v5737
      %v5903 = vpack.c.b16 %v5888, %v5887
      %v5904 = vpack.c.b16 %v5890, %v5889
      %v5905 = vpack.c.b16 %v5892, %v5891
      %v5906 = vpack.c.b16 %v5894, %v5893
      %v5907 = vpack.c.b16 %v5896, %v5895
      %v5908 = vpack.c.b16 %v5898, %v5897
      %v5909 = vpack.c.b16 %v5900, %v5899
      %v5910 = vpack.c.b16 %v5902, %v5901
      %5919 = vmatprep.subr.bf16.mxu0 0
      %5920 = vmatpush1.bf16.msra.mxu0 %v5903
      %5921 = vmatprep.subr.bf16.mxu0 0
      %5922 = vmatpush1.bf16.msra.mxu0 %v5904
      %5923 = vmatprep.subr.bf16.mxu0 0
      %5924 = vmatpush1.bf16.msra.mxu0 %v5905
      %5925 = vmatprep.subr.bf16.mxu0 0
      %5926 = vmatpush1.bf16.msra.mxu0 %v5906
      %5927 = vmatprep.subr.bf16.mxu0 0
      %5928 = vmatpush1.bf16.msra.mxu0 %v5907
      %5929 = vmatprep.subr.bf16.mxu0 0
      %5930 = vmatpush1.bf16.msra.mxu0 %v5908
      %5931 = vmatprep.subr.bf16.mxu0 0
      %5932 = vmatpush1.bf16.msra.mxu0 %v5909
      %5933 = vmatprep.subr.bf16.mxu0 0
      %5934 = vmatpush1.bf16.msra.mxu0 %v5910
      %5935 = vmatprep.subr.bf16.mxu0 0
      %5936 = vmatpush1.bf16.msra.mxu0 0
      %5937 = vmatprep.subr.bf16.mxu0 0
      %5938 = vmatpush1.bf16.msra.mxu0 0
      %5939 = vmatprep.subr.bf16.mxu0 0
      %5940 = vmatpush1.bf16.msra.mxu0 0
      %5941 = vmatprep.subr.bf16.mxu0 0
      %5942 = vmatpush1.bf16.msra.mxu0 0
      %5943 = vmatprep.subr.bf16.mxu0 0
      %5944 = vmatpush1.bf16.msra.mxu0 0
      %5945 = vmatprep.subr.bf16.mxu0 0
      %5946 = vmatpush1.bf16.msra.mxu0 0
      %5947 = vmatprep.subr.bf16.mxu0 0
      %5948 = vmatpush1.bf16.msra.mxu0 0
      %5949 = vmatprep.subr.bf16.mxu0 0
      %5950 = vmatpush1.bf16.msra.mxu0 0
      %5951 = vmatprep.mubr.bf16.mxu0 0
      %5952 = vmatmul.mubr.bf16.gmra.mrb[0].mxu0 %v5797
      %v5953 = vpop.f32.mrb[0].mxu0
      %v5954 = vadd.f32 0.0, %v5953
      %v5955 = vpop.f32.mrb[0].mxu0
      %v5956 = vpop.f32.mrb[0].mxu0
      %v5957 = vadd.f32 0.0, %v5956
      %v5958 = vpop.f32.mrb[0].mxu0
      %5959 = vmatprep.mubr.bf16.mxu0 0
      %5960 = vmatmul.mubr.bf16.gmra.mrb[0].mxu0 %v5805
      %v5961 = vpop.f32.mrb[0].mxu0
      %v5962 = vadd.f32 0.0, %v5961
      %v5963 = vpop.f32.mrb[0].mxu0
      %v5964 = vpop.f32.mrb[0].mxu0
      %v5965 = vadd.f32 0.0, %v5964
      %v5966 = vpop.f32.mrb[0].mxu0
      %5967 = vmatprep.mubr.bf16.mxu0 0
      %5968 = vmatmul.mubr.bf16.gmra.mrb[0].mxu0 %v5813
      %v5969 = vpop.f32.mrb[0].mxu0
      %v5970 = vadd.f32 0.0, %v5969
      %v5971 = vpop.f32.mrb[0].mxu0
      %v5972 = vpop.f32.mrb[0].mxu0
      %v5973 = vadd.f32 0.0, %v5972
      %v5974 = vpop.f32.mrb[0].mxu0
      %5975 = vmatprep.mubr.bf16.mxu0 0
      %5976 = vmatmul.mubr.bf16.gmra.mrb[0].mxu0 %v5821
      %v5977 = vpop.f32.mrb[0].mxu0
      %v5978 = vadd.f32 0.0, %v5977
      %v5979 = vpop.f32.mrb[0].mxu0
      %v5980 = vpop.f32.mrb[0].mxu0
      %v5981 = vadd.f32 0.0, %v5980
      %v5982 = vpop.f32.mrb[0].mxu0
      %5983 = vmatprep.mubr.bf16.mxu0 0
      %5984 = vmatmul.mubr.bf16.gmra.mrb[0].mxu0 %v5829
      %v5985 = vpop.f32.mrb[0].mxu0
      %v5986 = vadd.f32 0.0, %v5985
      %v5987 = vpop.f32.mrb[0].mxu0
      %v5988 = vpop.f32.mrb[0].mxu0
      %v5989 = vadd.f32 0.0, %v5988
      %v5990 = vpop.f32.mrb[0].mxu0
      %5991 = vmatprep.mubr.bf16.mxu0 0
      %5992 = vmatmul.mubr.bf16.gmra.mrb[0].mxu0 %v5837
      %v5993 = vpop.f32.mrb[0].mxu0
      %v5994 = vadd.f32 0.0, %v5993
      %v5995 = vpop.f32.mrb[0].mxu0
      %v5996 = vpop.f32.mrb[0].mxu0
      %v5997 = vadd.f32 0.0, %v5996
      %v5998 = vpop.f32.mrb[0].mxu0
      %5999 = vmatprep.mubr.bf16.mxu0 0
      %6000 = vmatmul.mubr.bf16.gmra.mrb[0].mxu0 %v5845
      %v6001 = vpop.f32.mrb[0].mxu0
      %v6002 = vadd.f32 0.0, %v6001
      %v6003 = vpop.f32.mrb[0].mxu0
      %v6004 = vpop.f32.mrb[0].mxu0
      %v6005 = vadd.f32 0.0, %v6004
      %v6006 = vpop.f32.mrb[0].mxu0
      %6007 = vmatprep.mubr.bf16.mxu0 0
      %6008 = vmatmul.mubr.bf16.gmra.mrb[0].mxu0 %v5853
      %v6009 = vpop.f32.mrb[0].mxu0
      %v6010 = vadd.f32 0.0, %v6009
      %v6011 = vpop.f32.mrb[0].mxu0
      %v6012 = vpop.f32.mrb[0].mxu0
      %v6013 = vadd.f32 0.0, %v6012
      %v6014 = vpop.f32.mrb[0].mxu0
      %6015 = vmatprep.mubr.bf16.mxu0 0
      %6016 = vmatmul.mubr.bf16.gmra.mrb[0].mxu0 %v5861
      %v6017 = vpop.f32.mrb[0].mxu0
      %v6018 = vadd.f32 0.0, %v6017
      %v6019 = vpop.f32.mrb[0].mxu0
      %v6020 = vpop.f32.mrb[0].mxu0
      %v6021 = vadd.f32 0.0, %v6020
      %v6022 = vpop.f32.mrb[0].mxu0
      %6023 = vdwg.mxu0
      %v6024 = vadd.f32 %v5685, %v5954
      %v6025 = vadd.f32 %v5686, %v5957
      %v6026 = vadd.f32 %v5687, %v5962
      %v6027 = vadd.f32 %v5688, %v5965
      %v6028 = vadd.f32 %v5689, %v5970
      %v6029 = vadd.f32 %v5690, %v5973
      %v6030 = vadd.f32 %v5691, %v5978
      %v6031 = vadd.f32 %v5692, %v5981
      %v6032 = vadd.f32 %v5693, %v5986
      %v6033 = vadd.f32 %v5694, %v5989
      %v6034 = vadd.f32 %v5695, %v5994
      %v6035 = vadd.f32 %v5696, %v5997
      %v6036 = vadd.f32 %v5697, %v6002
      %v6037 = vadd.f32 %v5698, %v6005
      %v6038 = vadd.f32 %v5699, %v6010
      %v6039 = vadd.f32 %v5700, %v6013
      %v6040 = vadd.f32 %v5701, %v6018
      %v6041 = vadd.f32 %v5702, %v6021
      %v6042 = vld [vmem:[%s273 + $0x90] sm:$0x8]
      %v6043 = vld [vmem:[%s273 + $0x94] sm:$0xf]
      %v6044 = vld [vmem:[%s273 + $0x98] sm:$0xf]
      %v6045 = vld [vmem:[%s273 + $0x9c] sm:$0xf]
      %v6046 = vld [vmem:[%s273 + $0xa0] sm:$0xf]
      %v6047 = vld [vmem:[%s273 + $0xa4] sm:$0xf]
      %v6048 = vld [vmem:[%s273 + $0xa8] sm:$0xf]
      %v6049 = vld [vmem:[%s273 + $0xac] sm:$0xf]
      %v6050 = vld [vmem:[%s273 + $0xb0] sm:$0xf]
      %v6051 = vld [vmem:[%s273 + $0xb4] sm:$0xf]
      %v6052 = vld [vmem:[%s273 + $0xb8] sm:$0xf]
      %v6053 = vld [vmem:[%s273 + $0xbc] sm:$0xf]
      %v6054 = vld [vmem:[%s273 + $0xc0] sm:$0xf]
      %v6055 = vld [vmem:[%s273 + $0xc4] sm:$0xf]
      %v6056 = vld [vmem:[%s273 + $0xc8] sm:$0xf]
      %v6057 = vld [vmem:[%s273 + $0xcc] sm:$0xf]
      %v6058 = vld [vmem:[%s273 + $0xd0] sm:$0xf]
      %v6059 = vld [vmem:[%s273 + $0xd4] sm:$0xf]
      %v6060 = vld [vmem:[%s273 + $0xd8] sm:$0xf]
      %v6061 = vld [vmem:[%s2851] sm:$0xf]
      %v6062 = vld [vmem:[%s2851 + $0x4] sm:$0xf]
      %v6063 = vld [vmem:[%s2851 + $0x8] sm:$0xf]
      %v6064 = vld [vmem:[%s2851 + $0xc] sm:$0xf]
      %v6065 = vld [vmem:[%s2851 + $0x10] sm:$0xf]
      %v6066 = vld [vmem:[%s2851 + $0x14] sm:$0xf]
      %v6067 = vld [vmem:[%s2851 + $0x18] sm:$0xf]
      %v6068 = vld [vmem:[%s2851 + $0x1c] sm:$0xf]
      %v6069 = vld [vmem:[%s2851 + $0x20] sm:$0xf]
      %v6070 = vld [vmem:[%s2851 + $0x24] sm:$0xf]
      %v6071 = vld [vmem:[%s2851 + $0x28] sm:$0xf]
      %v6072 = vld [vmem:[%s2851 + $0x2c] sm:$0xf]
      %v6073 = vld [vmem:[%s2851 + $0x30] sm:$0xf]
      %v6074 = vld [vmem:[%s2851 + $0x34] sm:$0xf]
      %v6075 = vld [vmem:[%s2851 + $0x38] sm:$0xf]
      %v6076 = vld [vmem:[%s2851 + $0x3c] sm:$0xf]
      %v6096 = vunpack.c.l.b16 %v6042
      %v6097 = vunpack.c.l.b16 %v6043
      %v6098 = vunpack.c.l.b16 %v6044
      %v6099 = vunpack.c.l.b16 %v6045
      %v6100 = vunpack.c.l.b16 %v6046
      %v6101 = vunpack.c.l.b16 %v6047
      %v6102 = vunpack.c.l.b16 %v6048
      %v6103 = vunpack.c.l.b16 %v6049
      %v6104 = vunpack.c.l.b16 %v6050
      %v6105 = vunpack.c.l.b16 %v6051
      %v6106 = vunpack.c.l.b16 %v6052
      %v6107 = vunpack.c.l.b16 %v6053
      %v6108 = vunpack.c.l.b16 %v6054
      %v6109 = vunpack.c.l.b16 %v6055
      %v6110 = vunpack.c.l.b16 %v6056
      %v6111 = vunpack.c.l.b16 %v6057
      %v6112 = vunpack.c.l.b16 %v6058
      %v6113 = vunpack.c.l.b16 %v6059
      %v6114 = vunpack.c.l.b16 %v6060
      %v6115 = vpack.c.b16 %v6097, %v6096
      %v6116 = vpack.c.b16 %v6099, %v6098
      %v6117 = vpack.c.b16 %v6101, %v6100
      %v6118 = vpack.c.b16 %v6103, %v6102
      %v6119 = vpack.c.b16 %v6105, %v6104
      %v6120 = vpack.c.b16 %v6107, %v6106
      %v6121 = vpack.c.b16 %v6109, %v6108
      %v6122 = vpack.c.b16 %v6111, %v6110
      %v6123 = vpack.c.b16 %v6113, %v6112
      %v6124 = vpack.c.b16 %v6114, %v6114
      %v6126 = vshrl.u32 %v6115, 16
      %v6128 = vrot.slane %v6126, 3
      %v6129 = vshll.u32 %v6115, 16
      %v6131 = vrot.slane %v6129, 4
      %v6132 = vor.u32 %v6128, %v6131
      %v6134 = vshrl.u32 %v6116, 16
      %v6136 = vrot.slane %v6134, 3
      %v6137 = vshll.u32 %v6116, 16
      %v6139 = vrot.slane %v6137, 4
      %v6140 = vor.u32 %v6136, %v6139
      %v6141 = vsel %vm674, %v6132, %v6140
      %v6143 = vshrl.u32 %v6117, 16
      %v6145 = vrot.slane %v6143, 3
      %v6146 = vshll.u32 %v6117, 16
      %v6148 = vrot.slane %v6146, 4
      %v6149 = vor.u32 %v6145, %v6148
      %v6150 = vsel %vm674, %v6140, %v6149
      %v6152 = vshrl.u32 %v6118, 16
      %v6154 = vrot.slane %v6152, 3
      %v6155 = vshll.u32 %v6118, 16
      %v6157 = vrot.slane %v6155, 4
      %v6158 = vor.u32 %v6154, %v6157
      %v6159 = vsel %vm674, %v6149, %v6158
      %v6161 = vshrl.u32 %v6119, 16
      %v6163 = vrot.slane %v6161, 3
      %v6164 = vshll.u32 %v6119, 16
      %v6166 = vrot.slane %v6164, 4
      %v6167 = vor.u32 %v6163, %v6166
      %v6168 = vsel %vm674, %v6158, %v6167
      %v6170 = vshrl.u32 %v6120, 16
      %v6172 = vrot.slane %v6170, 3
      %v6173 = vshll.u32 %v6120, 16
      %v6175 = vrot.slane %v6173, 4
      %v6176 = vor.u32 %v6172, %v6175
      %v6177 = vsel %vm674, %v6167, %v6176
      %v6179 = vshrl.u32 %v6121, 16
      %v6181 = vrot.slane %v6179, 3
      %v6182 = vshll.u32 %v6121, 16
      %v6184 = vrot.slane %v6182, 4
      %v6185 = vor.u32 %v6181, %v6184
      %v6186 = vsel %vm674, %v6176, %v6185
      %v6188 = vshrl.u32 %v6122, 16
      %v6190 = vrot.slane %v6188, 3
      %v6191 = vshll.u32 %v6122, 16
      %v6193 = vrot.slane %v6191, 4
      %v6194 = vor.u32 %v6190, %v6193
      %v6195 = vsel %vm674, %v6185, %v6194
      %v6197 = vshrl.u32 %v6123, 16
      %v6199 = vrot.slane %v6197, 3
      %v6200 = vshll.u32 %v6123, 16
      %v6202 = vrot.slane %v6200, 4
      %v6203 = vor.u32 %v6199, %v6202
      %v6204 = vsel %vm674, %v6194, %v6203
      %v6206 = vshrl.u32 %v6124, 16
      %v6208 = vrot.slane %v6206, 3
      %v6209 = vshll.u32 %v6124, 16
      %v6211 = vrot.slane %v6209, 4
      %v6212 = vor.u32 %v6208, %v6211
      %v6213 = vsel %vm674, %v6203, %v6212
      %v6239 = vunpack.c.l.b16 %v6061
      %v6240 = vunpack.c.l.b16 %v6062
      %v6241 = vunpack.c.l.b16 %v6063
      %v6242 = vunpack.c.l.b16 %v6064
      %v6243 = vunpack.c.l.b16 %v6065
      %v6244 = vunpack.c.l.b16 %v6066
      %v6245 = vunpack.c.l.b16 %v6067
      %v6246 = vunpack.c.l.b16 %v6068
      %v6247 = vunpack.c.l.b16 %v6069
      %v6248 = vunpack.c.l.b16 %v6070
      %v6249 = vunpack.c.l.b16 %v6071
      %v6250 = vunpack.c.l.b16 %v6072
      %v6251 = vunpack.c.l.b16 %v6073
      %v6252 = vunpack.c.l.b16 %v6074
      %v6253 = vunpack.c.l.b16 %v6075
      %v6254 = vunpack.c.l.b16 %v6076
      %v6255 = vpack.c.b16 %v6240, %v6239
      %v6256 = vpack.c.b16 %v6242, %v6241
      %v6257 = vpack.c.b16 %v6244, %v6243
      %v6258 = vpack.c.b16 %v6246, %v6245
      %v6259 = vpack.c.b16 %v6248, %v6247
      %v6260 = vpack.c.b16 %v6250, %v6249
      %v6261 = vpack.c.b16 %v6252, %v6251
      %v6262 = vpack.c.b16 %v6254, %v6253
      %6271 = vmatprep.subr.bf16.mxu0 0
      %6272 = vmatpush1.bf16.msra.mxu0 %v6255
      %6273 = vmatprep.subr.bf16.mxu0 0
      %6274 = vmatpush1.bf16.msra.mxu0 %v6256
      %6275 = vmatprep.subr.bf16.mxu0 0
      %6276 = vmatpush1.bf16.msra.mxu0 %v6257
      %6277 = vmatprep.subr.bf16.mxu0 0
      %6278 = vmatpush1.bf16.msra.mxu0 %v6258
      %6279 = vmatprep.subr.bf16.mxu0 0
      %6280 = vmatpush1.bf16.msra.mxu0 %v6259
      %6281 = vmatprep.subr.bf16.mxu0 0
      %6282 = vmatpush1.bf16.msra.mxu0 %v6260
      %6283 = vmatprep.subr.bf16.mxu0 0
      %6284 = vmatpush1.bf16.msra.mxu0 %v6261
      %6285 = vmatprep.subr.bf16.mxu0 0
      %6286 = vmatpush1.bf16.msra.mxu0 %v6262
      %6287 = vmatprep.subr.bf16.mxu0 0
      %6288 = vmatpush1.bf16.msra.mxu0 0
      %6289 = vmatprep.subr.bf16.mxu0 0
      %6290 = vmatpush1.bf16.msra.mxu0 0
      %6291 = vmatprep.subr.bf16.mxu0 0
      %6292 = vmatpush1.bf16.msra.mxu0 0
      %6293 = vmatprep.subr.bf16.mxu0 0
      %6294 = vmatpush1.bf16.msra.mxu0 0
      %6295 = vmatprep.subr.bf16.mxu0 0
      %6296 = vmatpush1.bf16.msra.mxu0 0
      %6297 = vmatprep.subr.bf16.mxu0 0
      %6298 = vmatpush1.bf16.msra.mxu0 0
      %6299 = vmatprep.subr.bf16.mxu0 0
      %6300 = vmatpush1.bf16.msra.mxu0 0
      %6301 = vmatprep.subr.bf16.mxu0 0
      %6302 = vmatpush1.bf16.msra.mxu0 0
      %6303 = vmatprep.mubr.bf16.mxu0 0
      %6304 = vmatmul.mubr.bf16.gmra.mrb[0].mxu0 %v6141
      %v6305 = vpop.f32.mrb[0].mxu0
      %v6306 = vadd.f32 0.0, %v6305
      %v6307 = vpop.f32.mrb[0].mxu0
      %v6308 = vpop.f32.mrb[0].mxu0
      %v6309 = vadd.f32 0.0, %v6308
      %v6310 = vpop.f32.mrb[0].mxu0
      %6311 = vmatprep.mubr.bf16.mxu0 0
      %6312 = vmatmul.mubr.bf16.gmra.mrb[0].mxu0 %v6150
      %v6313 = vpop.f32.mrb[0].mxu0
      %v6314 = vadd.f32 0.0, %v6313
      %v6315 = vpop.f32.mrb[0].mxu0
      %v6316 = vpop.f32.mrb[0].mxu0
      %v6317 = vadd.f32 0.0, %v6316
      %v6318 = vpop.f32.mrb[0].mxu0
      %6319 = vmatprep.mubr.bf16.mxu0 0
      %6320 = vmatmul.mubr.bf16.gmra.mrb[0].mxu0 %v6159
      %v6321 = vpop.f32.mrb[0].mxu0
      %v6322 = vadd.f32 0.0, %v6321
      %v6323 = vpop.f32.mrb[0].mxu0
      %v6324 = vpop.f32.mrb[0].mxu0
      %v6325 = vadd.f32 0.0, %v6324
      %v6326 = vpop.f32.mrb[0].mxu0
      %6327 = vmatprep.mubr.bf16.mxu0 0
      %6328 = vmatmul.mubr.bf16.gmra.mrb[0].mxu0 %v6168
      %v6329 = vpop.f32.mrb[0].mxu0
      %v6330 = vadd.f32 0.0, %v6329
      %v6331 = vpop.f32.mrb[0].mxu0
      %v6332 = vpop.f32.mrb[0].mxu0
      %v6333 = vadd.f32 0.0, %v6332
      %v6334 = vpop.f32.mrb[0].mxu0
      %6335 = vmatprep.mubr.bf16.mxu0 0
      %6336 = vmatmul.mubr.bf16.gmra.mrb[0].mxu0 %v6177
      %v6337 = vpop.f32.mrb[0].mxu0
      %v6338 = vadd.f32 0.0, %v6337
      %v6339 = vpop.f32.mrb[0].mxu0
      %v6340 = vpop.f32.mrb[0].mxu0
      %v6341 = vadd.f32 0.0, %v6340
      %v6342 = vpop.f32.mrb[0].mxu0
      %6343 = vmatprep.mubr.bf16.mxu0 0
      %6344 = vmatmul.mubr.bf16.gmra.mrb[0].mxu0 %v6186
      %v6345 = vpop.f32.mrb[0].mxu0
      %v6346 = vadd.f32 0.0, %v6345
      %v6347 = vpop.f32.mrb[0].mxu0
      %v6348 = vpop.f32.mrb[0].mxu0
      %v6349 = vadd.f32 0.0, %v6348
      %v6350 = vpop.f32.mrb[0].mxu0
      %6351 = vmatprep.mubr.bf16.mxu0 0
      %6352 = vmatmul.mubr.bf16.gmra.mrb[0].mxu0 %v6195
      %v6353 = vpop.f32.mrb[0].mxu0
      %v6354 = vadd.f32 0.0, %v6353
      %v6355 = vpop.f32.mrb[0].mxu0
      %v6356 = vpop.f32.mrb[0].mxu0
      %v6357 = vadd.f32 0.0, %v6356
      %v6358 = vpop.f32.mrb[0].mxu0
      %6359 = vmatprep.mubr.bf16.mxu0 0
      %6360 = vmatmul.mubr.bf16.gmra.mrb[0].mxu0 %v6204
      %v6361 = vpop.f32.mrb[0].mxu0
      %v6362 = vadd.f32 0.0, %v6361
      %v6363 = vpop.f32.mrb[0].mxu0
      %v6364 = vpop.f32.mrb[0].mxu0
      %v6365 = vadd.f32 0.0, %v6364
      %v6366 = vpop.f32.mrb[0].mxu0
      %6367 = vmatprep.mubr.bf16.mxu0 0
      %6368 = vmatmul.mubr.bf16.gmra.mrb[0].mxu0 %v6213
      %v6369 = vpop.f32.mrb[0].mxu0
      %v6370 = vadd.f32 0.0, %v6369
      %v6371 = vpop.f32.mrb[0].mxu0
      %v6372 = vpop.f32.mrb[0].mxu0
      %v6373 = vadd.f32 0.0, %v6372
      %v6374 = vpop.f32.mrb[0].mxu0
      %6375 = vdwg.mxu0
      %v6376 = vadd.f32 %v6024, %v6306
      %v6377 = vadd.f32 %v6025, %v6309
      %v6378 = vadd.f32 %v6026, %v6314
      %v6379 = vadd.f32 %v6027, %v6317
      %v6380 = vadd.f32 %v6028, %v6322
      %v6381 = vadd.f32 %v6029, %v6325
      %v6382 = vadd.f32 %v6030, %v6330
      %v6383 = vadd.f32 %v6031, %v6333
      %v6384 = vadd.f32 %v6032, %v6338
      %v6385 = vadd.f32 %v6033, %v6341
      %v6386 = vadd.f32 %v6034, %v6346
      %v6387 = vadd.f32 %v6035, %v6349
      %v6388 = vadd.f32 %v6036, %v6354
      %v6389 = vadd.f32 %v6037, %v6357
      %v6390 = vadd.f32 %v6038, %v6362
      %v6391 = vadd.f32 %v6039, %v6365
      %v6392 = vadd.f32 %v6040, %v6370
      %v6393 = vadd.f32 %v6041, %v6373
      %v6394 = vld [vmem:[%s3335] sm:$0xf]
      %v6395 = vld [vmem:[%s3335 + $0x4] sm:$0xf]
      %v6396 = vld [vmem:[%s3335 + $0x8] sm:$0xf]
      %v6397 = vld [vmem:[%s3335 + $0xc] sm:$0xf]
      %v6398 = vld [vmem:[%s3335 + $0x10] sm:$0xf]
      %v6399 = vld [vmem:[%s3335 + $0x14] sm:$0xf]
      %v6400 = vld [vmem:[%s3335 + $0x18] sm:$0xf]
      %v6401 = vld [vmem:[%s3335 + $0x1c] sm:$0xf]
      %v6402 = vld [vmem:[%s3335 + $0x20] sm:$0xf]
      %v6403 = vld [vmem:[%s3335 + $0x24] sm:$0xf]
      %v6404 = vld [vmem:[%s3335 + $0x28] sm:$0xf]
      %v6405 = vld [vmem:[%s3335 + $0x2c] sm:$0xf]
      %v6406 = vld [vmem:[%s3335 + $0x30] sm:$0xf]
      %v6407 = vld [vmem:[%s3335 + $0x34] sm:$0xf]
      %v6408 = vld [vmem:[%s3335 + $0x38] sm:$0xf]
      %v6409 = vld [vmem:[%s3335 + $0x3c] sm:$0xf]
      %v6410 = vpack.c.b16 %v6098, %v6097
      %v6411 = vpack.c.b16 %v6100, %v6099
      %v6412 = vpack.c.b16 %v6102, %v6101
      %v6413 = vpack.c.b16 %v6104, %v6103
      %v6414 = vpack.c.b16 %v6106, %v6105
      %v6415 = vpack.c.b16 %v6108, %v6107
      %v6416 = vpack.c.b16 %v6110, %v6109
      %v6417 = vpack.c.b16 %v6112, %v6111
      %v6418 = vpack.c.b16 %v6114, %v6113
      %v6444 = vunpack.c.l.b16 %v6394
      %v6445 = vunpack.c.l.b16 %v6395
      %v6446 = vunpack.c.l.b16 %v6396
      %v6447 = vunpack.c.l.b16 %v6397
      %v6448 = vunpack.c.l.b16 %v6398
      %v6449 = vunpack.c.l.b16 %v6399
      %v6450 = vunpack.c.l.b16 %v6400
      %v6451 = vunpack.c.l.b16 %v6401
      %v6452 = vunpack.c.l.b16 %v6402
      %v6453 = vunpack.c.l.b16 %v6403
      %v6454 = vunpack.c.l.b16 %v6404
      %v6455 = vunpack.c.l.b16 %v6405
      %v6456 = vunpack.c.l.b16 %v6406
      %v6457 = vunpack.c.l.b16 %v6407
      %v6458 = vunpack.c.l.b16 %v6408
      %v6459 = vunpack.c.l.b16 %v6409
      %v6460 = vpack.c.b16 %v6445, %v6444
      %v6461 = vpack.c.b16 %v6447, %v6446
      %v6462 = vpack.c.b16 %v6449, %v6448
      %v6463 = vpack.c.b16 %v6451, %v6450
      %v6464 = vpack.c.b16 %v6453, %v6452
      %v6465 = vpack.c.b16 %v6455, %v6454
      %v6466 = vpack.c.b16 %v6457, %v6456
      %v6467 = vpack.c.b16 %v6459, %v6458
      %6476 = vmatprep.subr.bf16.mxu0 0
      %6477 = vmatpush1.bf16.msra.mxu0 %v6460
      %6478 = vmatprep.subr.bf16.mxu0 0
      %6479 = vmatpush1.bf16.msra.mxu0 %v6461
      %6480 = vmatprep.subr.bf16.mxu0 0
      %6481 = vmatpush1.bf16.msra.mxu0 %v6462
      %6482 = vmatprep.subr.bf16.mxu0 0
      %6483 = vmatpush1.bf16.msra.mxu0 %v6463
      %6484 = vmatprep.subr.bf16.mxu0 0
      %6485 = vmatpush1.bf16.msra.mxu0 %v6464
      %6486 = vmatprep.subr.bf16.mxu0 0
      %6487 = vmatpush1.bf16.msra.mxu0 %v6465
      %6488 = vmatprep.subr.bf16.mxu0 0
      %6489 = vmatpush1.bf16.msra.mxu0 %v6466
      %6490 = vmatprep.subr.bf16.mxu0 0
      %6491 = vmatpush1.bf16.msra.mxu0 %v6467
      %6492 = vmatprep.subr.bf16.mxu0 0
      %6493 = vmatpush1.bf16.msra.mxu0 0
      %6494 = vmatprep.subr.bf16.mxu0 0
      %6495 = vmatpush1.bf16.msra.mxu0 0
      %6496 = vmatprep.subr.bf16.mxu0 0
      %6497 = vmatpush1.bf16.msra.mxu0 0
      %6498 = vmatprep.subr.bf16.mxu0 0
      %6499 = vmatpush1.bf16.msra.mxu0 0
      %6500 = vmatprep.subr.bf16.mxu0 0
      %6501 = vmatpush1.bf16.msra.mxu0 0
      %6502 = vmatprep.subr.bf16.mxu0 0
      %6503 = vmatpush1.bf16.msra.mxu0 0
      %6504 = vmatprep.subr.bf16.mxu0 0
      %6505 = vmatpush1.bf16.msra.mxu0 0
      %6506 = vmatprep.subr.bf16.mxu0 0
      %6507 = vmatpush1.bf16.msra.mxu0 0
      %6508 = vmatprep.mubr.bf16.mxu0 0
      %6509 = vmatmul.mubr.bf16.gmra.mrb[0].mxu0 %v6410
      %v6510 = vpop.f32.mrb[0].mxu0
      %v6511 = vadd.f32 0.0, %v6510
      %v6512 = vpop.f32.mrb[0].mxu0
      %v6513 = vpop.f32.mrb[0].mxu0
      %v6514 = vadd.f32 0.0, %v6513
      %v6515 = vpop.f32.mrb[0].mxu0
      %6516 = vmatprep.mubr.bf16.mxu0 0
      %6517 = vmatmul.mubr.bf16.gmra.mrb[0].mxu0 %v6411
      %v6518 = vpop.f32.mrb[0].mxu0
      %v6519 = vadd.f32 0.0, %v6518
      %v6520 = vpop.f32.mrb[0].mxu0
      %v6521 = vpop.f32.mrb[0].mxu0
      %v6522 = vadd.f32 0.0, %v6521
      %v6523 = vpop.f32.mrb[0].mxu0
      %6524 = vmatprep.mubr.bf16.mxu0 0
      %6525 = vmatmul.mubr.bf16.gmra.mrb[0].mxu0 %v6412
      %v6526 = vpop.f32.mrb[0].mxu0
      %v6527 = vadd.f32 0.0, %v6526
      %v6528 = vpop.f32.mrb[0].mxu0
      %v6529 = vpop.f32.mrb[0].mxu0
      %v6530 = vadd.f32 0.0, %v6529
      %v6531 = vpop.f32.mrb[0].mxu0
      %6532 = vmatprep.mubr.bf16.mxu0 0
      %6533 = vmatmul.mubr.bf16.gmra.mrb[0].mxu0 %v6413
      %v6534 = vpop.f32.mrb[0].mxu0
      %v6535 = vadd.f32 0.0, %v6534
      %v6536 = vpop.f32.mrb[0].mxu0
      %v6537 = vpop.f32.mrb[0].mxu0
      %v6538 = vadd.f32 0.0, %v6537
      %v6539 = vpop.f32.mrb[0].mxu0
      %6540 = vmatprep.mubr.bf16.mxu0 0
      %6541 = vmatmul.mubr.bf16.gmra.mrb[0].mxu0 %v6414
      %v6542 = vpop.f32.mrb[0].mxu0
      %v6543 = vadd.f32 0.0, %v6542
      %v6544 = vpop.f32.mrb[0].mxu0
      %v6545 = vpop.f32.mrb[0].mxu0
      %v6546 = vadd.f32 0.0, %v6545
      %v6547 = vpop.f32.mrb[0].mxu0
      %6548 = vmatprep.mubr.bf16.mxu0 0
      %6549 = vmatmul.mubr.bf16.gmra.mrb[0].mxu0 %v6415
      %v6550 = vpop.f32.mrb[0].mxu0
      %v6551 = vadd.f32 0.0, %v6550
      %v6552 = vpop.f32.mrb[0].mxu0
      %v6553 = vpop.f32.mrb[0].mxu0
      %v6554 = vadd.f32 0.0, %v6553
      %v6555 = vpop.f32.mrb[0].mxu0
      %6556 = vmatprep.mubr.bf16.mxu0 0
      %6557 = vmatmul.mubr.bf16.gmra.mrb[0].mxu0 %v6416
      %v6558 = vpop.f32.mrb[0].mxu0
      %v6559 = vadd.f32 0.0, %v6558
      %v6560 = vpop.f32.mrb[0].mxu0
      %v6561 = vpop.f32.mrb[0].mxu0
      %v6562 = vadd.f32 0.0, %v6561
      %v6563 = vpop.f32.mrb[0].mxu0
      %6564 = vmatprep.mubr.bf16.mxu0 0
      %6565 = vmatmul.mubr.bf16.gmra.mrb[0].mxu0 %v6417
      %v6566 = vpop.f32.mrb[0].mxu0
      %v6567 = vadd.f32 0.0, %v6566
      %v6568 = vpop.f32.mrb[0].mxu0
      %v6569 = vpop.f32.mrb[0].mxu0
      %v6570 = vadd.f32 0.0, %v6569
      %v6571 = vpop.f32.mrb[0].mxu0
      %6572 = vmatprep.mubr.bf16.mxu0 0
      %6573 = vmatmul.mubr.bf16.gmra.mrb[0].mxu0 %v6418
      %v6574 = vpop.f32.mrb[0].mxu0
      %v6575 = vadd.f32 0.0, %v6574
      %v6576 = vpop.f32.mrb[0].mxu0
      %v6577 = vpop.f32.mrb[0].mxu0
      %v6578 = vadd.f32 0.0, %v6577
      %v6579 = vpop.f32.mrb[0].mxu0
      %6580 = vdwg.mxu0
      %v6581 = vadd.f32 %v6376, %v6511
      %v6582 = vadd.f32 %v6377, %v6514
      %v6583 = vadd.f32 %v6378, %v6519
      %v6584 = vadd.f32 %v6379, %v6522
      %v6585 = vadd.f32 %v6380, %v6527
      %v6586 = vadd.f32 %v6381, %v6530
      %v6587 = vadd.f32 %v6382, %v6535
      %v6588 = vadd.f32 %v6383, %v6538
      %v6589 = vadd.f32 %v6384, %v6543
      %v6590 = vadd.f32 %v6385, %v6546
      %v6591 = vadd.f32 %v6386, %v6551
      %v6592 = vadd.f32 %v6387, %v6554
      %v6593 = vadd.f32 %v6388, %v6559
      %v6594 = vadd.f32 %v6389, %v6562
      %v6595 = vadd.f32 %v6390, %v6567
      %v6596 = vadd.f32 %v6391, %v6570
      %v6597 = vadd.f32 %v6392, %v6575
      %v6598 = vadd.f32 %v6393, %v6578
      %v6599 = vld [vmem:[%s273 + $0x94] sm:$0xf]
      %v6600 = vld [vmem:[%s273 + $0x98] sm:$0xf]
      %v6601 = vld [vmem:[%s273 + $0x9c] sm:$0xf]
      %v6602 = vld [vmem:[%s273 + $0xa0] sm:$0xf]
      %v6603 = vld [vmem:[%s273 + $0xa4] sm:$0xf]
      %v6604 = vld [vmem:[%s273 + $0xa8] sm:$0xf]
      %v6605 = vld [vmem:[%s273 + $0xac] sm:$0xf]
      %v6606 = vld [vmem:[%s273 + $0xb0] sm:$0xf]
      %v6607 = vld [vmem:[%s273 + $0xb4] sm:$0xf]
      %v6608 = vld [vmem:[%s273 + $0xb8] sm:$0xf]
      %v6609 = vld [vmem:[%s273 + $0xbc] sm:$0xf]
      %v6610 = vld [vmem:[%s273 + $0xc0] sm:$0xf]
      %v6611 = vld [vmem:[%s273 + $0xc4] sm:$0xf]
      %v6612 = vld [vmem:[%s273 + $0xc8] sm:$0xf]
      %v6613 = vld [vmem:[%s273 + $0xcc] sm:$0xf]
      %v6614 = vld [vmem:[%s273 + $0xd0] sm:$0xf]
      %v6615 = vld [vmem:[%s273 + $0xd4] sm:$0xf]
      %v6616 = vld [vmem:[%s273 + $0xd8] sm:$0xf]
      %v6617 = vld [vmem:[%s273 + $0xdc] sm:$0x1]
      %v6618 = vld [vmem:[%s3644] sm:$0xf]
      %v6619 = vld [vmem:[%s3644 + $0x4] sm:$0xf]
      %v6620 = vld [vmem:[%s3644 + $0x8] sm:$0xf]
      %v6621 = vld [vmem:[%s3644 + $0xc] sm:$0xf]
      %v6622 = vld [vmem:[%s3644 + $0x10] sm:$0xf]
      %v6623 = vld [vmem:[%s3644 + $0x14] sm:$0xf]
      %v6624 = vld [vmem:[%s3644 + $0x18] sm:$0xf]
      %v6625 = vld [vmem:[%s3644 + $0x1c] sm:$0xf]
      %v6626 = vld [vmem:[%s3644 + $0x20] sm:$0xf]
      %v6627 = vld [vmem:[%s3644 + $0x24] sm:$0xf]
      %v6628 = vld [vmem:[%s3644 + $0x28] sm:$0xf]
      %v6629 = vld [vmem:[%s3644 + $0x2c] sm:$0xf]
      %v6630 = vld [vmem:[%s3644 + $0x30] sm:$0xf]
      %v6631 = vld [vmem:[%s3644 + $0x34] sm:$0xf]
      %v6632 = vld [vmem:[%s3644 + $0x38] sm:$0xf]
      %v6633 = vld [vmem:[%s3644 + $0x3c] sm:$0xf]
      %v6653 = vunpack.c.l.b16 %v6599
      %v6654 = vunpack.c.l.b16 %v6600
      %v6655 = vunpack.c.l.b16 %v6601
      %v6656 = vunpack.c.l.b16 %v6602
      %v6657 = vunpack.c.l.b16 %v6603
      %v6658 = vunpack.c.l.b16 %v6604
      %v6659 = vunpack.c.l.b16 %v6605
      %v6660 = vunpack.c.l.b16 %v6606
      %v6661 = vunpack.c.l.b16 %v6607
      %v6662 = vunpack.c.l.b16 %v6608
      %v6663 = vunpack.c.l.b16 %v6609
      %v6664 = vunpack.c.l.b16 %v6610
      %v6665 = vunpack.c.l.b16 %v6611
      %v6666 = vunpack.c.l.b16 %v6612
      %v6667 = vunpack.c.l.b16 %v6613
      %v6668 = vunpack.c.l.b16 %v6614
      %v6669 = vunpack.c.l.b16 %v6615
      %v6670 = vunpack.c.l.b16 %v6616
      %v6671 = vunpack.c.l.b16 %v6617
      %v6672 = vpack.c.b16 %v6654, %v6653
      %v6673 = vpack.c.b16 %v6656, %v6655
      %v6674 = vpack.c.b16 %v6658, %v6657
      %v6675 = vpack.c.b16 %v6660, %v6659
      %v6676 = vpack.c.b16 %v6662, %v6661
      %v6677 = vpack.c.b16 %v6664, %v6663
      %v6678 = vpack.c.b16 %v6666, %v6665
      %v6679 = vpack.c.b16 %v6668, %v6667
      %v6680 = vpack.c.b16 %v6670, %v6669
      %v6681 = vpack.c.b16 %v6671, %v6671
      %v6683 = vshrl.u32 %v6672, 16
      %v6685 = vshll.u32 %v6672, 16
      %v6687 = vrot.slane %v6685, 1
      %v6688 = vor.u32 %v6683, %v6687
      %v6690 = vshll.u32 %v6673, 16
      %v6692 = vrot.slane %v6690, 1
      %v6693 = vsel %vm1160, %v6688, %v6692
      %v6694 = vshrl.u32 %v6673, 16
      %v6696 = vor.u32 %v6694, %v6692
      %v6698 = vshll.u32 %v6674, 16
      %v6700 = vrot.slane %v6698, 1
      %v6701 = vsel %vm1160, %v6696, %v6700
      %v6702 = vshrl.u32 %v6674, 16
      %v6704 = vor.u32 %v6702, %v6700
      %v6706 = vshll.u32 %v6675, 16
      %v6708 = vrot.slane %v6706, 1
      %v6709 = vsel %vm1160, %v6704, %v6708
      %v6710 = vshrl.u32 %v6675, 16
      %v6712 = vor.u32 %v6710, %v6708
      %v6714 = vshll.u32 %v6676, 16
      %v6716 = vrot.slane %v6714, 1
      %v6717 = vsel %vm1160, %v6712, %v6716
      %v6718 = vshrl.u32 %v6676, 16
      %v6720 = vor.u32 %v6718, %v6716
      %v6722 = vshll.u32 %v6677, 16
      %v6724 = vrot.slane %v6722, 1
      %v6725 = vsel %vm1160, %v6720, %v6724
      %v6726 = vshrl.u32 %v6677, 16
      %v6728 = vor.u32 %v6726, %v6724
      %v6730 = vshll.u32 %v6678, 16
      %v6732 = vrot.slane %v6730, 1
      %v6733 = vsel %vm1160, %v6728, %v6732
      %v6734 = vshrl.u32 %v6678, 16
      %v6736 = vor.u32 %v6734, %v6732
      %v6738 = vshll.u32 %v6679, 16
      %v6740 = vrot.slane %v6738, 1
      %v6741 = vsel %vm1160, %v6736, %v6740
      %v6742 = vshrl.u32 %v6679, 16
      %v6744 = vor.u32 %v6742, %v6740
      %v6746 = vshll.u32 %v6680, 16
      %v6748 = vrot.slane %v6746, 1
      %v6749 = vsel %vm1160, %v6744, %v6748
      %v6750 = vshrl.u32 %v6680, 16
      %v6752 = vor.u32 %v6750, %v6748
      %v6754 = vshll.u32 %v6681, 16
      %v6756 = vrot.slane %v6754, 1
      %v6757 = vsel %vm1160, %v6752, %v6756
      %v6783 = vunpack.c.l.b16 %v6618
      %v6784 = vunpack.c.l.b16 %v6619
      %v6785 = vunpack.c.l.b16 %v6620
      %v6786 = vunpack.c.l.b16 %v6621
      %v6787 = vunpack.c.l.b16 %v6622
      %v6788 = vunpack.c.l.b16 %v6623
      %v6789 = vunpack.c.l.b16 %v6624
      %v6790 = vunpack.c.l.b16 %v6625
      %v6791 = vunpack.c.l.b16 %v6626
      %v6792 = vunpack.c.l.b16 %v6627
      %v6793 = vunpack.c.l.b16 %v6628
      %v6794 = vunpack.c.l.b16 %v6629
      %v6795 = vunpack.c.l.b16 %v6630
      %v6796 = vunpack.c.l.b16 %v6631
      %v6797 = vunpack.c.l.b16 %v6632
      %v6798 = vunpack.c.l.b16 %v6633
      %v6799 = vpack.c.b16 %v6784, %v6783
      %v6800 = vpack.c.b16 %v6786, %v6785
      %v6801 = vpack.c.b16 %v6788, %v6787
      %v6802 = vpack.c.b16 %v6790, %v6789
      %v6803 = vpack.c.b16 %v6792, %v6791
      %v6804 = vpack.c.b16 %v6794, %v6793
      %v6805 = vpack.c.b16 %v6796, %v6795
      %v6806 = vpack.c.b16 %v6798, %v6797
      %6815 = vmatprep.subr.bf16.mxu0 0
      %6816 = vmatpush1.bf16.msra.mxu0 %v6799
      %6817 = vmatprep.subr.bf16.mxu0 0
      %6818 = vmatpush1.bf16.msra.mxu0 %v6800
      %6819 = vmatprep.subr.bf16.mxu0 0
      %6820 = vmatpush1.bf16.msra.mxu0 %v6801
      %6821 = vmatprep.subr.bf16.mxu0 0
      %6822 = vmatpush1.bf16.msra.mxu0 %v6802
      %6823 = vmatprep.subr.bf16.mxu0 0
      %6824 = vmatpush1.bf16.msra.mxu0 %v6803
      %6825 = vmatprep.subr.bf16.mxu0 0
      %6826 = vmatpush1.bf16.msra.mxu0 %v6804
      %6827 = vmatprep.subr.bf16.mxu0 0
      %6828 = vmatpush1.bf16.msra.mxu0 %v6805
      %6829 = vmatprep.subr.bf16.mxu0 0
      %6830 = vmatpush1.bf16.msra.mxu0 %v6806
      %6831 = vmatprep.subr.bf16.mxu0 0
      %6832 = vmatpush1.bf16.msra.mxu0 0
      %6833 = vmatprep.subr.bf16.mxu0 0
      %6834 = vmatpush1.bf16.msra.mxu0 0
      %6835 = vmatprep.subr.bf16.mxu0 0
      %6836 = vmatpush1.bf16.msra.mxu0 0
      %6837 = vmatprep.subr.bf16.mxu0 0
      %6838 = vmatpush1.bf16.msra.mxu0 0
      %6839 = vmatprep.subr.bf16.mxu0 0
      %6840 = vmatpush1.bf16.msra.mxu0 0
      %6841 = vmatprep.subr.bf16.mxu0 0
      %6842 = vmatpush1.bf16.msra.mxu0 0
      %6843 = vmatprep.subr.bf16.mxu0 0
      %6844 = vmatpush1.bf16.msra.mxu0 0
      %6845 = vmatprep.subr.bf16.mxu0 0
      %6846 = vmatpush1.bf16.msra.mxu0 0
      %6847 = vmatprep.mubr.bf16.mxu0 0
      %6848 = vmatmul.mubr.bf16.gmra.mrb[0].mxu0 %v6693
      %v6849 = vpop.f32.mrb[0].mxu0
      %v6850 = vadd.f32 0.0, %v6849
      %v6851 = vpop.f32.mrb[0].mxu0
      %v6852 = vpop.f32.mrb[0].mxu0
      %v6853 = vadd.f32 0.0, %v6852
      %v6854 = vpop.f32.mrb[0].mxu0
      %6855 = vmatprep.mubr.bf16.mxu0 0
      %6856 = vmatmul.mubr.bf16.gmra.mrb[0].mxu0 %v6701
      %v6857 = vpop.f32.mrb[0].mxu0
      %v6858 = vadd.f32 0.0, %v6857
      %v6859 = vpop.f32.mrb[0].mxu0
      %v6860 = vpop.f32.mrb[0].mxu0
      %v6861 = vadd.f32 0.0, %v6860
      %v6862 = vpop.f32.mrb[0].mxu0
      %6863 = vmatprep.mubr.bf16.mxu0 0
      %6864 = vmatmul.mubr.bf16.gmra.mrb[0].mxu0 %v6709
      %v6865 = vpop.f32.mrb[0].mxu0
      %v6866 = vadd.f32 0.0, %v6865
      %v6867 = vpop.f32.mrb[0].mxu0
      %v6868 = vpop.f32.mrb[0].mxu0
      %v6869 = vadd.f32 0.0, %v6868
      %v6870 = vpop.f32.mrb[0].mxu0
      %6871 = vmatprep.mubr.bf16.mxu0 0
      %6872 = vmatmul.mubr.bf16.gmra.mrb[0].mxu0 %v6717
      %v6873 = vpop.f32.mrb[0].mxu0
      %v6874 = vadd.f32 0.0, %v6873
      %v6875 = vpop.f32.mrb[0].mxu0
      %v6876 = vpop.f32.mrb[0].mxu0
      %v6877 = vadd.f32 0.0, %v6876
      %v6878 = vpop.f32.mrb[0].mxu0
      %6879 = vmatprep.mubr.bf16.mxu0 0
      %6880 = vmatmul.mubr.bf16.gmra.mrb[0].mxu0 %v6725
      %v6881 = vpop.f32.mrb[0].mxu0
      %v6882 = vadd.f32 0.0, %v6881
      %v6883 = vpop.f32.mrb[0].mxu0
      %v6884 = vpop.f32.mrb[0].mxu0
      %v6885 = vadd.f32 0.0, %v6884
      %v6886 = vpop.f32.mrb[0].mxu0
      %6887 = vmatprep.mubr.bf16.mxu0 0
      %6888 = vmatmul.mubr.bf16.gmra.mrb[0].mxu0 %v6733
      %v6889 = vpop.f32.mrb[0].mxu0
      %v6890 = vadd.f32 0.0, %v6889
      %v6891 = vpop.f32.mrb[0].mxu0
      %v6892 = vpop.f32.mrb[0].mxu0
      %v6893 = vadd.f32 0.0, %v6892
      %v6894 = vpop.f32.mrb[0].mxu0
      %6895 = vmatprep.mubr.bf16.mxu0 0
      %6896 = vmatmul.mubr.bf16.gmra.mrb[0].mxu0 %v6741
      %v6897 = vpop.f32.mrb[0].mxu0
      %v6898 = vadd.f32 0.0, %v6897
      %v6899 = vpop.f32.mrb[0].mxu0
      %v6900 = vpop.f32.mrb[0].mxu0
      %v6901 = vadd.f32 0.0, %v6900
      %v6902 = vpop.f32.mrb[0].mxu0
      %6903 = vmatprep.mubr.bf16.mxu0 0
      %6904 = vmatmul.mubr.bf16.gmra.mrb[0].mxu0 %v6749
      %v6905 = vpop.f32.mrb[0].mxu0
      %v6906 = vadd.f32 0.0, %v6905
      %v6907 = vpop.f32.mrb[0].mxu0
      %v6908 = vpop.f32.mrb[0].mxu0
      %v6909 = vadd.f32 0.0, %v6908
      %v6910 = vpop.f32.mrb[0].mxu0
      %6911 = vmatprep.mubr.bf16.mxu0 0
      %6912 = vmatmul.mubr.bf16.gmra.mrb[0].mxu0 %v6757
      %v6913 = vpop.f32.mrb[0].mxu0
      %v6914 = vadd.f32 0.0, %v6913
      %v6915 = vpop.f32.mrb[0].mxu0
      %v6916 = vpop.f32.mrb[0].mxu0
      %v6917 = vadd.f32 0.0, %v6916
      %v6918 = vpop.f32.mrb[0].mxu0
      %6919 = vdwg.mxu0
      %v6920 = vadd.f32 %v6581, %v6850
      %v6921 = vadd.f32 %v6582, %v6853
      %v6922 = vadd.f32 %v6583, %v6858
      %v6923 = vadd.f32 %v6584, %v6861
      %v6924 = vadd.f32 %v6585, %v6866
      %v6925 = vadd.f32 %v6586, %v6869
      %v6926 = vadd.f32 %v6587, %v6874
      %v6927 = vadd.f32 %v6588, %v6877
      %v6928 = vadd.f32 %v6589, %v6882
      %v6929 = vadd.f32 %v6590, %v6885
      %v6930 = vadd.f32 %v6591, %v6890
      %v6931 = vadd.f32 %v6592, %v6893
      %v6932 = vadd.f32 %v6593, %v6898
      %v6933 = vadd.f32 %v6594, %v6901
      %v6934 = vadd.f32 %v6595, %v6906
      %v6935 = vadd.f32 %v6596, %v6909
      %v6936 = vadd.f32 %v6597, %v6914
      %v6937 = vadd.f32 %v6598, %v6917
      %v6938 = vmul.f32 %v6920, %v4113
      %v6939 = vmul.f32 %v6921, %v4113
      %v6940 = vmul.f32 %v6922, %v4113
      %v6941 = vmul.f32 %v6923, %v4113
      %v6942 = vmul.f32 %v6924, %v4113
      %v6943 = vmul.f32 %v6925, %v4113
      %v6944 = vmul.f32 %v6926, %v4113
      %v6945 = vmul.f32 %v6927, %v4113
      %v6946 = vmul.f32 %v6928, %v4113
      %v6947 = vmul.f32 %v6929, %v4113
      %v6948 = vmul.f32 %v6930, %v4113
      %v6949 = vmul.f32 %v6931, %v4113
      %v6950 = vmul.f32 %v6932, %v4113
      %v6951 = vmul.f32 %v6933, %v4113
      %v6952 = vmul.f32 %v6934, %v4113
      %v6953 = vmul.f32 %v6935, %v4113
      %v6954 = vmul.f32 %v6936, %v4113
      %v6955 = vmul.f32 %v6937, %v4113
      %v6956 = vadd.f32 %v6938, %v4149
      %v6957 = vadd.f32 %v6939, %v4149
      %v6958 = vadd.f32 %v6940, %v4149
      %v6959 = vadd.f32 %v6941, %v4149
      %v6960 = vadd.f32 %v6942, %v4149
      %v6961 = vadd.f32 %v6943, %v4149
      %v6962 = vadd.f32 %v6944, %v4149
      %v6963 = vadd.f32 %v6945, %v4149
      %v6964 = vadd.f32 %v6946, %v4149
      %v6965 = vadd.f32 %v6947, %v4149
      %v6966 = vadd.f32 %v6948, %v4149
      %v6967 = vadd.f32 %v6949, %v4149
      %v6968 = vadd.f32 %v6950, %v4149
      %v6969 = vadd.f32 %v6951, %v4149
      %v6970 = vadd.f32 %v6952, %v4149
      %v6971 = vadd.f32 %v6953, %v4149
      %v6972 = vadd.f32 %v6954, %v4149
      %v6973 = vadd.f32 %v6955, %v4149
      %v6974 = vmax.f32 %v6956, 0.0
      %v6975 = vmax.f32 %v6957, 0.0
      %v6976 = vmax.f32 %v6958, 0.0
      %v6977 = vmax.f32 %v6959, 0.0
      %v6978 = vmax.f32 %v6960, 0.0
      %v6979 = vmax.f32 %v6961, 0.0
      %v6980 = vmax.f32 %v6962, 0.0
      %v6981 = vmax.f32 %v6963, 0.0
      %v6982 = vmax.f32 %v6964, 0.0
      %v6983 = vmax.f32 %v6965, 0.0
      %v6984 = vmax.f32 %v6966, 0.0
      %v6985 = vmax.f32 %v6967, 0.0
      %v6986 = vmax.f32 %v6968, 0.0
      %v6987 = vmax.f32 %v6969, 0.0
      %v6988 = vmax.f32 %v6970, 0.0
      %v6989 = vmax.f32 %v6971, 0.0
      %v6990 = vmax.f32 %v6972, 0.0
      %v6991 = vmax.f32 %v6973, 0.0
      %v6992 = vmul.f32 %v6974, %v4214
      %v6993 = vmul.f32 %v6975, %v4219
      %v6994 = vmul.f32 %v6976, %v4224
      %v6995 = vmul.f32 %v6977, %v4214
      %v6996 = vmul.f32 %v6978, %v4219
      %v6997 = vmul.f32 %v6979, %v4224
      %v6998 = vmul.f32 %v6980, %v4214
      %v6999 = vmul.f32 %v6981, %v4219
      %v7000 = vmul.f32 %v6982, %v4224
      %v7001 = vmul.f32 %v6983, %v4214
      %v7002 = vmul.f32 %v6984, %v4219
      %v7003 = vmul.f32 %v6985, %v4224
      %v7004 = vmul.f32 %v6986, %v4214
      %v7005 = vmul.f32 %v6987, %v4219
      %v7006 = vmul.f32 %v6988, %v4224
      %v7007 = vmul.f32 %v6989, %v4214
      %v7008 = vmul.f32 %v6990, %v4219
      %v7009 = vmul.f32 %v6991, %v4224
      %v7010 = vpack.c.bf16 %v6993, %v6992
      %v7011 = vpack.c.bf16 %v6995, %v6994
      %v7012 = vpack.c.bf16 %v6997, %v6996
      %v7013 = vpack.c.bf16 %v6999, %v6998
      %v7014 = vpack.c.bf16 %v7001, %v7000
      %v7015 = vpack.c.bf16 %v7003, %v7002
      %v7016 = vpack.c.bf16 %v7005, %v7004
      %v7017 = vpack.c.bf16 %v7007, %v7006
      %v7018 = vpack.c.bf16 %v7009, %v7008
      %7019 = vst [vmem:[#allocation2 + $0x88] sm:$0xff] %v7010
      %7020 = vst [vmem:[#allocation2 + $0x90] sm:$0xff] %v7011
      %7021 = vst [vmem:[#allocation2 + $0x98] sm:$0xff] %v7012
      %7022 = vst [vmem:[#allocation2 + $0xa0] sm:$0xff] %v7013
      %7023 = vst [vmem:[#allocation2 + $0xa8] sm:$0xff] %v7014
      %7024 = vst [vmem:[#allocation2 + $0xb0] sm:$0xff] %v7015
      %7025 = vst [vmem:[#allocation2 + $0xb8] sm:$0xff] %v7016
      %7026 = vst [vmem:[#allocation2 + $0xc0] sm:$0xff] %v7017
      %7027 = vst [vmem:[#allocation2 + $0xc8] sm:$0xff] %v7018
      %v7028 = vld [vmem:[#allocation2] sm:$0xf8]
      %v7029 = vld [vmem:[#allocation2 + $0x8] sm:$0xff]
      %v7030 = vld [vmem:[#allocation2 + $0x10] sm:$0xff]
      %v7031 = vld [vmem:[#allocation2 + $0x18] sm:$0xff]
      %v7032 = vld [vmem:[#allocation2 + $0x20] sm:$0xff]
      %v7033 = vld [vmem:[#allocation2 + $0x28] sm:$0xff]
      %v7034 = vld [vmem:[#allocation2 + $0x30] sm:$0xff]
      %v7035 = vld [vmem:[#allocation2 + $0x38] sm:$0xff]
      %v7036 = vld [vmem:[#allocation2 + $0x40] sm:$0xff]
      %v7037 = vld [vmem:[#allocation2 + $0x48] sm:$0xff]
      %v7038 = vld [vmem:[#allocation2 + $0x50] sm:$0xff]
      %v7039 = vld [vmem:[#allocation2 + $0x58] sm:$0xff]
      %v7040 = vld [vmem:[#allocation2 + $0x60] sm:$0xff]
      %v7041 = vld [vmem:[#allocation2 + $0x68] sm:$0xff]
      %v7042 = vld [vmem:[#allocation2 + $0x70] sm:$0xff]
      %v7043 = vld [vmem:[#allocation2 + $0x78] sm:$0xf]
      %v7044 = vld [vmem:[%s4] sm:$0xf]
      %v7045 = vld [vmem:[%s4 + $0x4] sm:$0xf]
      %v7046 = vld [vmem:[%s4 + $0x8] sm:$0xf]
      %v7047 = vld [vmem:[%s4 + $0xc] sm:$0xf]
      %v7048 = vld [vmem:[%s4 + $0x10] sm:$0xf]
      %v7049 = vld [vmem:[%s4 + $0x14] sm:$0xf]
      %v7050 = vld [vmem:[%s4 + $0x18] sm:$0xf]
      %v7051 = vld [vmem:[%s4 + $0x1c] sm:$0xf]
      %v7052 = vld [vmem:[%s4 + $0x20] sm:$0xf]
      %v7053 = vld [vmem:[%s4 + $0x24] sm:$0xf]
      %v7054 = vld [vmem:[%s4 + $0x28] sm:$0xf]
      %v7055 = vld [vmem:[%s4 + $0x2c] sm:$0xf]
      %v7056 = vld [vmem:[%s4 + $0x30] sm:$0xf]
      %v7057 = vld [vmem:[%s4 + $0x34] sm:$0xf]
      %v7058 = vld [vmem:[%s4 + $0x38] sm:$0xf]
      %v7059 = vld [vmem:[%s4 + $0x3c] sm:$0xf]
      %v7060 = vld [vmem:[#allocation2] sm:$0xf0]
      %s7061 = scalar_lea.vmem %s4, 64
      %v7062 = vld [vmem:[%s7061] sm:$0xf]
      %v7063 = vld [vmem:[%s7061 + $0x4] sm:$0xf]
      %v7064 = vld [vmem:[%s7061 + $0x8] sm:$0xf]
      %v7065 = vld [vmem:[%s7061 + $0xc] sm:$0xf]
      %v7066 = vld [vmem:[%s7061 + $0x10] sm:$0xf]
      %v7067 = vld [vmem:[%s7061 + $0x14] sm:$0xf]
      %v7068 = vld [vmem:[%s7061 + $0x18] sm:$0xf]
      %v7069 = vld [vmem:[%s7061 + $0x1c] sm:$0xf]
      %v7070 = vld [vmem:[%s7061 + $0x20] sm:$0xf]
      %v7071 = vld [vmem:[%s7061 + $0x24] sm:$0xf]
      %v7072 = vld [vmem:[%s7061 + $0x28] sm:$0xf]
      %v7073 = vld [vmem:[%s7061 + $0x2c] sm:$0xf]
      %v7074 = vld [vmem:[%s7061 + $0x30] sm:$0xf]
      %v7075 = vld [vmem:[%s7061 + $0x34] sm:$0xf]
      %v7076 = vld [vmem:[%s7061 + $0x38] sm:$0xf]
      %v7077 = vld [vmem:[%s7061 + $0x3c] sm:$0xf]
      %vm7094 = vcmask 1043456
      %v7095 = vrot.slane %v7060, 4
      %v7096 = vrot.slane %v7029, 4
      %v7097 = vsel %vm7094, %v7095, %v7096
      %v7098 = vrot.slane %v7030, 4
      %v7099 = vsel %vm7094, %v7096, %v7098
      %v7100 = vrot.slane %v7031, 4
      %v7101 = vsel %vm7094, %v7098, %v7100
      %v7102 = vrot.slane %v7032, 4
      %v7103 = vsel %vm7094, %v7100, %v7102
      %v7104 = vrot.slane %v7033, 4
      %v7105 = vsel %vm7094, %v7102, %v7104
      %v7106 = vrot.slane %v7034, 4
      %v7107 = vsel %vm7094, %v7104, %v7106
      %v7108 = vrot.slane %v7035, 4
      %v7109 = vsel %vm7094, %v7106, %v7108
      %v7110 = vrot.slane %v7036, 4
      %v7111 = vsel %vm7094, %v7108, %v7110
      %v7112 = vrot.slane %v7037, 4
      %v7113 = vsel %vm7094, %v7110, %v7112
      %v7114 = vrot.slane %v7038, 4
      %v7115 = vsel %vm7094, %v7112, %v7114
      %v7116 = vrot.slane %v7039, 4
      %v7117 = vsel %vm7094, %v7114, %v7116
      %v7118 = vrot.slane %v7040, 4
      %v7119 = vsel %vm7094, %v7116, %v7118
      %v7120 = vrot.slane %v7041, 4
      %v7121 = vsel %vm7094, %v7118, %v7120
      %v7122 = vrot.slane %v7042, 4
      %v7123 = vsel %vm7094, %v7120, %v7122
      %v7124 = vrot.slane %v7043, 4
      %v7125 = vsel %vm7094, %v7122, %v7124
      %v7157 = vunpack.c.l.b16 %v7062
      %v7158 = vunpack.c.l.b16 %v7063
      %v7159 = vunpack.c.l.b16 %v7064
      %v7160 = vunpack.c.l.b16 %v7065
      %v7161 = vunpack.c.l.b16 %v7066
      %v7162 = vunpack.c.l.b16 %v7067
      %v7163 = vunpack.c.l.b16 %v7068
      %v7164 = vunpack.c.l.b16 %v7069
      %v7165 = vunpack.c.l.b16 %v7070
      %v7166 = vunpack.c.l.b16 %v7071
      %v7167 = vunpack.c.l.b16 %v7072
      %v7168 = vunpack.c.l.b16 %v7073
      %v7169 = vunpack.c.l.b16 %v7074
      %v7170 = vunpack.c.l.b16 %v7075
      %v7171 = vunpack.c.l.b16 %v7076
      %v7172 = vunpack.c.l.b16 %v7077
      %v7173 = vpack.c.b16 %v7158, %v7157
      %v7174 = vpack.c.b16 %v7160, %v7159
      %v7175 = vpack.c.b16 %v7162, %v7161
      %v7176 = vpack.c.b16 %v7164, %v7163
      %v7177 = vpack.c.b16 %v7166, %v7165
      %v7178 = vpack.c.b16 %v7168, %v7167
      %v7179 = vpack.c.b16 %v7170, %v7169
      %v7180 = vpack.c.b16 %v7172, %v7171
      %7189 = vmatprep.subr.bf16.mxu0 0
      %7190 = vmatpush1.bf16.msra.mxu0 %v7173
      %7191 = vmatprep.subr.bf16.mxu0 0
      %7192 = vmatpush1.bf16.msra.mxu0 %v7174
      %7193 = vmatprep.subr.bf16.mxu0 0
      %7194 = vmatpush1.bf16.msra.mxu0 %v7175
      %7195 = vmatprep.subr.bf16.mxu0 0
      %7196 = vmatpush1.bf16.msra.mxu0 %v7176
      %7197 = vmatprep.subr.bf16.mxu0 0
      %7198 = vmatpush1.bf16.msra.mxu0 %v7177
      %7199 = vmatprep.subr.bf16.mxu0 0
      %7200 = vmatpush1.bf16.msra.mxu0 %v7178
      %7201 = vmatprep.subr.bf16.mxu0 0
      %7202 = vmatpush1.bf16.msra.mxu0 %v7179
      %7203 = vmatprep.subr.bf16.mxu0 0
      %7204 = vmatpush1.bf16.msra.mxu0 %v7180
      %7205 = vmatprep.subr.bf16.mxu0 0
      %7206 = vmatpush1.bf16.msra.mxu0 0
      %7207 = vmatprep.subr.bf16.mxu0 0
      %7208 = vmatpush1.bf16.msra.mxu0 0
      %7209 = vmatprep.subr.bf16.mxu0 0
      %7210 = vmatpush1.bf16.msra.mxu0 0
      %7211 = vmatprep.subr.bf16.mxu0 0
      %7212 = vmatpush1.bf16.msra.mxu0 0
      %7213 = vmatprep.subr.bf16.mxu0 0
      %7214 = vmatpush1.bf16.msra.mxu0 0
      %7215 = vmatprep.subr.bf16.mxu0 0
      %7216 = vmatpush1.bf16.msra.mxu0 0
      %7217 = vmatprep.subr.bf16.mxu0 0
      %7218 = vmatpush1.bf16.msra.mxu0 0
      %7219 = vmatprep.subr.bf16.mxu0 0
      %7220 = vmatpush1.bf16.msra.mxu0 0
      %7221 = vmatprep.mubr.bf16.mxu0 0
      %7222 = vmatmul.mubr.bf16.gmra.mrb[0].mxu0 %v7097
      %v7223 = vpop.f32.mrb[0].mxu0
      %v7224 = vadd.f32 0.0, %v7223
      %v7225 = vpop.f32.mrb[0].mxu0
      %v7226 = vpop.f32.mrb[0].mxu0
      %v7227 = vadd.f32 0.0, %v7226
      %v7228 = vpop.f32.mrb[0].mxu0
      %7229 = vmatprep.mubr.bf16.mxu0 0
      %7230 = vmatmul.mubr.bf16.gmra.mrb[0].mxu0 %v7099
      %v7231 = vpop.f32.mrb[0].mxu0
      %v7232 = vadd.f32 0.0, %v7231
      %v7233 = vpop.f32.mrb[0].mxu0
      %v7234 = vpop.f32.mrb[0].mxu0
      %v7235 = vadd.f32 0.0, %v7234
      %v7236 = vpop.f32.mrb[0].mxu0
      %7237 = vmatprep.mubr.bf16.mxu0 0
      %7238 = vmatmul.mubr.bf16.gmra.mrb[0].mxu0 %v7101
      %v7239 = vpop.f32.mrb[0].mxu0
      %v7240 = vadd.f32 0.0, %v7239
      %v7241 = vpop.f32.mrb[0].mxu0
      %v7242 = vpop.f32.mrb[0].mxu0
      %v7243 = vadd.f32 0.0, %v7242
      %v7244 = vpop.f32.mrb[0].mxu0
      %7245 = vmatprep.mubr.bf16.mxu0 0
      %7246 = vmatmul.mubr.bf16.gmra.mrb[0].mxu0 %v7103
      %v7247 = vpop.f32.mrb[0].mxu0
      %v7248 = vadd.f32 0.0, %v7247
      %v7249 = vpop.f32.mrb[0].mxu0
      %v7250 = vpop.f32.mrb[0].mxu0
      %v7251 = vadd.f32 0.0, %v7250
      %v7252 = vpop.f32.mrb[0].mxu0
      %7253 = vmatprep.mubr.bf16.mxu0 0
      %7254 = vmatmul.mubr.bf16.gmra.mrb[0].mxu0 %v7105
      %v7255 = vpop.f32.mrb[0].mxu0
      %v7256 = vadd.f32 0.0, %v7255
      %v7257 = vpop.f32.mrb[0].mxu0
      %v7258 = vpop.f32.mrb[0].mxu0
      %v7259 = vadd.f32 0.0, %v7258
      %v7260 = vpop.f32.mrb[0].mxu0
      %7261 = vmatprep.mubr.bf16.mxu0 0
      %7262 = vmatmul.mubr.bf16.gmra.mrb[0].mxu0 %v7107
      %v7263 = vpop.f32.mrb[0].mxu0
      %v7264 = vadd.f32 0.0, %v7263
      %v7265 = vpop.f32.mrb[0].mxu0
      %v7266 = vpop.f32.mrb[0].mxu0
      %v7267 = vadd.f32 0.0, %v7266
      %v7268 = vpop.f32.mrb[0].mxu0
      %7269 = vmatprep.mubr.bf16.mxu0 0
      %7270 = vmatmul.mubr.bf16.gmra.mrb[0].mxu0 %v7109
      %v7271 = vpop.f32.mrb[0].mxu0
      %v7272 = vadd.f32 0.0, %v7271
      %v7273 = vpop.f32.mrb[0].mxu0
      %v7274 = vpop.f32.mrb[0].mxu0
      %v7275 = vadd.f32 0.0, %v7274
      %v7276 = vpop.f32.mrb[0].mxu0
      %7277 = vmatprep.mubr.bf16.mxu0 0
      %7278 = vmatmul.mubr.bf16.gmra.mrb[0].mxu0 %v7111
      %v7279 = vpop.f32.mrb[0].mxu0
      %v7280 = vadd.f32 0.0, %v7279
      %v7281 = vpop.f32.mrb[0].mxu0
      %v7282 = vpop.f32.mrb[0].mxu0
      %v7283 = vadd.f32 0.0, %v7282
      %v7284 = vpop.f32.mrb[0].mxu0
      %7285 = vmatprep.mubr.bf16.mxu0 0
      %7286 = vmatmul.mubr.bf16.gmra.mrb[0].mxu0 %v7113
      %v7287 = vpop.f32.mrb[0].mxu0
      %v7288 = vadd.f32 0.0, %v7287
      %v7289 = vpop.f32.mrb[0].mxu0
      %v7290 = vpop.f32.mrb[0].mxu0
      %v7291 = vadd.f32 0.0, %v7290
      %v7292 = vpop.f32.mrb[0].mxu0
      %7293 = vmatprep.mubr.bf16.mxu0 0
      %7294 = vmatmul.mubr.bf16.gmra.mrb[0].mxu0 %v7115
      %v7295 = vpop.f32.mrb[0].mxu0
      %v7296 = vadd.f32 0.0, %v7295
      %v7297 = vpop.f32.mrb[0].mxu0
      %v7298 = vpop.f32.mrb[0].mxu0
      %v7299 = vadd.f32 0.0, %v7298
      %v7300 = vpop.f32.mrb[0].mxu0
      %7301 = vmatprep.mubr.bf16.mxu0 0
      %7302 = vmatmul.mubr.bf16.gmra.mrb[0].mxu0 %v7117
      %v7303 = vpop.f32.mrb[0].mxu0
      %v7304 = vadd.f32 0.0, %v7303
      %v7305 = vpop.f32.mrb[0].mxu0
      %v7306 = vpop.f32.mrb[0].mxu0
      %v7307 = vadd.f32 0.0, %v7306
      %v7308 = vpop.f32.mrb[0].mxu0
      %7309 = vmatprep.mubr.bf16.mxu0 0
      %7310 = vmatmul.mubr.bf16.gmra.mrb[0].mxu0 %v7119
      %v7311 = vpop.f32.mrb[0].mxu0
      %v7312 = vadd.f32 0.0, %v7311
      %v7313 = vpop.f32.mrb[0].mxu0
      %v7314 = vpop.f32.mrb[0].mxu0
      %v7315 = vadd.f32 0.0, %v7314
      %v7316 = vpop.f32.mrb[0].mxu0
      %7317 = vmatprep.mubr.bf16.mxu0 0
      %7318 = vmatmul.mubr.bf16.gmra.mrb[0].mxu0 %v7121
      %v7319 = vpop.f32.mrb[0].mxu0
      %v7320 = vadd.f32 0.0, %v7319
      %v7321 = vpop.f32.mrb[0].mxu0
      %v7322 = vpop.f32.mrb[0].mxu0
      %v7323 = vadd.f32 0.0, %v7322
      %v7324 = vpop.f32.mrb[0].mxu0
      %7325 = vmatprep.mubr.bf16.mxu0 0
      %7326 = vmatmul.mubr.bf16.gmra.mrb[0].mxu0 %v7123
      %v7327 = vpop.f32.mrb[0].mxu0
      %v7328 = vadd.f32 0.0, %v7327
      %v7329 = vpop.f32.mrb[0].mxu0
      %v7330 = vpop.f32.mrb[0].mxu0
      %v7331 = vadd.f32 0.0, %v7330
      %v7332 = vpop.f32.mrb[0].mxu0
      %7333 = vmatprep.mubr.bf16.mxu0 0
      %7334 = vmatmul.mubr.bf16.gmra.mrb[0].mxu0 %v7125
      %v7335 = vpop.f32.mrb[0].mxu0
      %v7336 = vadd.f32 0.0, %v7335
      %v7337 = vpop.f32.mrb[0].mxu0
      %v7338 = vpop.f32.mrb[0].mxu0
      %v7339 = vadd.f32 0.0, %v7338
      %v7340 = vpop.f32.mrb[0].mxu0
      %7341 = vdwg.mxu0
      %v7343 = vshrl.u32 %v7028, 16
      %v7345 = vrot.slane %v7343, 3
      %v7346 = vshll.u32 %v7028, 16
      %v7348 = vrot.slane %v7346, 4
      %v7349 = vor.u32 %v7345, %v7348
      %v7351 = vshrl.u32 %v7029, 16
      %v7353 = vrot.slane %v7351, 3
      %v7354 = vshll.u32 %v7029, 16
      %v7356 = vrot.slane %v7354, 4
      %v7357 = vor.u32 %v7353, %v7356
      %v7358 = vsel %vm674, %v7349, %v7357
      %v7360 = vshrl.u32 %v7030, 16
      %v7362 = vrot.slane %v7360, 3
      %v7363 = vshll.u32 %v7030, 16
      %v7365 = vrot.slane %v7363, 4
      %v7366 = vor.u32 %v7362, %v7365
      %v7367 = vsel %vm674, %v7357, %v7366
      %v7369 = vshrl.u32 %v7031, 16
      %v7371 = vrot.slane %v7369, 3
      %v7372 = vshll.u32 %v7031, 16
      %v7374 = vrot.slane %v7372, 4
      %v7375 = vor.u32 %v7371, %v7374
      %v7376 = vsel %vm674, %v7366, %v7375
      %v7378 = vshrl.u32 %v7032, 16
      %v7380 = vrot.slane %v7378, 3
      %v7381 = vshll.u32 %v7032, 16
      %v7383 = vrot.slane %v7381, 4
      %v7384 = vor.u32 %v7380, %v7383
      %v7385 = vsel %vm674, %v7375, %v7384
      %v7387 = vshrl.u32 %v7033, 16
      %v7389 = vrot.slane %v7387, 3
      %v7390 = vshll.u32 %v7033, 16
      %v7392 = vrot.slane %v7390, 4
      %v7393 = vor.u32 %v7389, %v7392
      %v7394 = vsel %vm674, %v7384, %v7393
      %v7396 = vshrl.u32 %v7034, 16
      %v7398 = vrot.slane %v7396, 3
      %v7399 = vshll.u32 %v7034, 16
      %v7401 = vrot.slane %v7399, 4
      %v7402 = vor.u32 %v7398, %v7401
      %v7403 = vsel %vm674, %v7393, %v7402
      %v7405 = vshrl.u32 %v7035, 16
      %v7407 = vrot.slane %v7405, 3
      %v7408 = vshll.u32 %v7035, 16
      %v7410 = vrot.slane %v7408, 4
      %v7411 = vor.u32 %v7407, %v7410
      %v7412 = vsel %vm674, %v7402, %v7411
      %v7414 = vshrl.u32 %v7036, 16
      %v7416 = vrot.slane %v7414, 3
      %v7417 = vshll.u32 %v7036, 16
      %v7419 = vrot.slane %v7417, 4
      %v7420 = vor.u32 %v7416, %v7419
      %v7421 = vsel %vm674, %v7411, %v7420
      %v7423 = vshrl.u32 %v7037, 16
      %v7425 = vrot.slane %v7423, 3
      %v7426 = vshll.u32 %v7037, 16
      %v7428 = vrot.slane %v7426, 4
      %v7429 = vor.u32 %v7425, %v7428
      %v7430 = vsel %vm674, %v7420, %v7429
      %v7432 = vshrl.u32 %v7038, 16
      %v7434 = vrot.slane %v7432, 3
      %v7435 = vshll.u32 %v7038, 16
      %v7437 = vrot.slane %v7435, 4
      %v7438 = vor.u32 %v7434, %v7437
      %v7439 = vsel %vm674, %v7429, %v7438
      %v7441 = vshrl.u32 %v7039, 16
      %v7443 = vrot.slane %v7441, 3
      %v7444 = vshll.u32 %v7039, 16
      %v7446 = vrot.slane %v7444, 4
      %v7447 = vor.u32 %v7443, %v7446
      %v7448 = vsel %vm674, %v7438, %v7447
      %v7450 = vshrl.u32 %v7040, 16
      %v7452 = vrot.slane %v7450, 3
      %v7453 = vshll.u32 %v7040, 16
      %v7455 = vrot.slane %v7453, 4
      %v7456 = vor.u32 %v7452, %v7455
      %v7457 = vsel %vm674, %v7447, %v7456
      %v7459 = vshrl.u32 %v7041, 16
      %v7461 = vrot.slane %v7459, 3
      %v7462 = vshll.u32 %v7041, 16
      %v7464 = vrot.slane %v7462, 4
      %v7465 = vor.u32 %v7461, %v7464
      %v7466 = vsel %vm674, %v7456, %v7465
      %v7468 = vshrl.u32 %v7042, 16
      %v7470 = vrot.slane %v7468, 3
      %v7471 = vshll.u32 %v7042, 16
      %v7473 = vrot.slane %v7471, 4
      %v7474 = vor.u32 %v7470, %v7473
      %v7475 = vsel %vm674, %v7465, %v7474
      %v7477 = vshrl.u32 %v7043, 16
      %v7479 = vrot.slane %v7477, 3
      %v7480 = vshll.u32 %v7043, 16
      %v7482 = vrot.slane %v7480, 4
      %v7483 = vor.u32 %v7479, %v7482
      %v7484 = vsel %vm674, %v7474, %v7483
      %v7516 = vunpack.c.l.b16 %v7044
      %v7517 = vunpack.c.l.b16 %v7045
      %v7518 = vunpack.c.l.b16 %v7046
      %v7519 = vunpack.c.l.b16 %v7047
      %v7520 = vunpack.c.l.b16 %v7048
      %v7521 = vunpack.c.l.b16 %v7049
      %v7522 = vunpack.c.l.b16 %v7050
      %v7523 = vunpack.c.l.b16 %v7051
      %v7524 = vunpack.c.l.b16 %v7052
      %v7525 = vunpack.c.l.b16 %v7053
      %v7526 = vunpack.c.l.b16 %v7054
      %v7527 = vunpack.c.l.b16 %v7055
      %v7528 = vunpack.c.l.b16 %v7056
      %v7529 = vunpack.c.l.b16 %v7057
      %v7530 = vunpack.c.l.b16 %v7058
      %v7531 = vunpack.c.l.b16 %v7059
      %v7532 = vpack.c.b16 %v7517, %v7516
      %v7533 = vpack.c.b16 %v7519, %v7518
      %v7534 = vpack.c.b16 %v7521, %v7520
      %v7535 = vpack.c.b16 %v7523, %v7522
      %v7536 = vpack.c.b16 %v7525, %v7524
      %v7537 = vpack.c.b16 %v7527, %v7526
      %v7538 = vpack.c.b16 %v7529, %v7528
      %v7539 = vpack.c.b16 %v7531, %v7530
      %7548 = vmatprep.subr.bf16.mxu0 0
      %7549 = vmatpush1.bf16.msra.mxu0 %v7532
      %7550 = vmatprep.subr.bf16.mxu0 0
      %7551 = vmatpush1.bf16.msra.mxu0 %v7533
      %7552 = vmatprep.subr.bf16.mxu0 0
      %7553 = vmatpush1.bf16.msra.mxu0 %v7534
      %7554 = vmatprep.subr.bf16.mxu0 0
      %7555 = vmatpush1.bf16.msra.mxu0 %v7535
      %7556 = vmatprep.subr.bf16.mxu0 0
      %7557 = vmatpush1.bf16.msra.mxu0 %v7536
      %7558 = vmatprep.subr.bf16.mxu0 0
      %7559 = vmatpush1.bf16.msra.mxu0 %v7537
      %7560 = vmatprep.subr.bf16.mxu0 0
      %7561 = vmatpush1.bf16.msra.mxu0 %v7538
      %7562 = vmatprep.subr.bf16.mxu0 0
      %7563 = vmatpush1.bf16.msra.mxu0 %v7539
      %7564 = vmatprep.subr.bf16.mxu0 0
      %7565 = vmatpush1.bf16.msra.mxu0 0
      %7566 = vmatprep.subr.bf16.mxu0 0
      %7567 = vmatpush1.bf16.msra.mxu0 0
      %7568 = vmatprep.subr.bf16.mxu0 0
      %7569 = vmatpush1.bf16.msra.mxu0 0
      %7570 = vmatprep.subr.bf16.mxu0 0
      %7571 = vmatpush1.bf16.msra.mxu0 0
      %7572 = vmatprep.subr.bf16.mxu0 0
      %7573 = vmatpush1.bf16.msra.mxu0 0
      %7574 = vmatprep.subr.bf16.mxu0 0
      %7575 = vmatpush1.bf16.msra.mxu0 0
      %7576 = vmatprep.subr.bf16.mxu0 0
      %7577 = vmatpush1.bf16.msra.mxu0 0
      %7578 = vmatprep.subr.bf16.mxu0 0
      %7579 = vmatpush1.bf16.msra.mxu0 0
      %7580 = vmatprep.mubr.bf16.mxu0 0
      %7581 = vmatmul.mubr.bf16.gmra.mrb[0].mxu0 %v7358
      %v7582 = vpop.f32.mrb[0].mxu0
      %v7583 = vadd.f32 %v7224, %v7582
      %v7584 = vpop.f32.mrb[0].mxu0
      %v7585 = vpop.f32.mrb[0].mxu0
      %v7586 = vadd.f32 %v7227, %v7585
      %v7587 = vpop.f32.mrb[0].mxu0
      %7588 = vmatprep.mubr.bf16.mxu0 0
      %7589 = vmatmul.mubr.bf16.gmra.mrb[0].mxu0 %v7367
      %v7590 = vpop.f32.mrb[0].mxu0
      %v7591 = vadd.f32 %v7232, %v7590
      %v7592 = vpop.f32.mrb[0].mxu0
      %v7593 = vpop.f32.mrb[0].mxu0
      %v7594 = vadd.f32 %v7235, %v7593
      %v7595 = vpop.f32.mrb[0].mxu0
      %7596 = vmatprep.mubr.bf16.mxu0 0
      %7597 = vmatmul.mubr.bf16.gmra.mrb[0].mxu0 %v7376
      %v7598 = vpop.f32.mrb[0].mxu0
      %v7599 = vadd.f32 %v7240, %v7598
      %v7600 = vpop.f32.mrb[0].mxu0
      %v7601 = vpop.f32.mrb[0].mxu0
      %v7602 = vadd.f32 %v7243, %v7601
      %v7603 = vpop.f32.mrb[0].mxu0
      %7604 = vmatprep.mubr.bf16.mxu0 0
      %7605 = vmatmul.mubr.bf16.gmra.mrb[0].mxu0 %v7385
      %v7606 = vpop.f32.mrb[0].mxu0
      %v7607 = vadd.f32 %v7248, %v7606
      %v7608 = vpop.f32.mrb[0].mxu0
      %v7609 = vpop.f32.mrb[0].mxu0
      %v7610 = vadd.f32 %v7251, %v7609
      %v7611 = vpop.f32.mrb[0].mxu0
      %7612 = vmatprep.mubr.bf16.mxu0 0
      %7613 = vmatmul.mubr.bf16.gmra.mrb[0].mxu0 %v7394
      %v7614 = vpop.f32.mrb[0].mxu0
      %v7615 = vadd.f32 %v7256, %v7614
      %v7616 = vpop.f32.mrb[0].mxu0
      %v7617 = vpop.f32.mrb[0].mxu0
      %v7618 = vadd.f32 %v7259, %v7617
      %v7619 = vpop.f32.mrb[0].mxu0
      %7620 = vmatprep.mubr.bf16.mxu0 0
      %7621 = vmatmul.mubr.bf16.gmra.mrb[0].mxu0 %v7403
      %v7622 = vpop.f32.mrb[0].mxu0
      %v7623 = vadd.f32 %v7264, %v7622
      %v7624 = vpop.f32.mrb[0].mxu0
      %v7625 = vpop.f32.mrb[0].mxu0
      %v7626 = vadd.f32 %v7267, %v7625
      %v7627 = vpop.f32.mrb[0].mxu0
      %7628 = vmatprep.mubr.bf16.mxu0 0
      %7629 = vmatmul.mubr.bf16.gmra.mrb[0].mxu0 %v7412
      %v7630 = vpop.f32.mrb[0].mxu0
      %v7631 = vadd.f32 %v7272, %v7630
      %v7632 = vpop.f32.mrb[0].mxu0
      %v7633 = vpop.f32.mrb[0].mxu0
      %v7634 = vadd.f32 %v7275, %v7633
      %v7635 = vpop.f32.mrb[0].mxu0
      %7636 = vmatprep.mubr.bf16.mxu0 0
      %7637 = vmatmul.mubr.bf16.gmra.mrb[0].mxu0 %v7421
      %v7638 = vpop.f32.mrb[0].mxu0
      %v7639 = vadd.f32 %v7280, %v7638
      %v7640 = vpop.f32.mrb[0].mxu0
      %v7641 = vpop.f32.mrb[0].mxu0
      %v7642 = vadd.f32 %v7283, %v7641
      %v7643 = vpop.f32.mrb[0].mxu0
      %7644 = vmatprep.mubr.bf16.mxu0 0
      %7645 = vmatmul.mubr.bf16.gmra.mrb[0].mxu0 %v7430
      %v7646 = vpop.f32.mrb[0].mxu0
      %v7647 = vadd.f32 %v7288, %v7646
      %v7648 = vpop.f32.mrb[0].mxu0
      %v7649 = vpop.f32.mrb[0].mxu0
      %v7650 = vadd.f32 %v7291, %v7649
      %v7651 = vpop.f32.mrb[0].mxu0
      %7652 = vmatprep.mubr.bf16.mxu0 0
      %7653 = vmatmul.mubr.bf16.gmra.mrb[0].mxu0 %v7439
      %v7654 = vpop.f32.mrb[0].mxu0
      %v7655 = vadd.f32 %v7296, %v7654
      %v7656 = vpop.f32.mrb[0].mxu0
      %v7657 = vpop.f32.mrb[0].mxu0
      %v7658 = vadd.f32 %v7299, %v7657
      %v7659 = vpop.f32.mrb[0].mxu0
      %7660 = vmatprep.mubr.bf16.mxu0 0
      %7661 = vmatmul.mubr.bf16.gmra.mrb[0].mxu0 %v7448
      %v7662 = vpop.f32.mrb[0].mxu0
      %v7663 = vadd.f32 %v7304, %v7662
      %v7664 = vpop.f32.mrb[0].mxu0
      %v7665 = vpop.f32.mrb[0].mxu0
      %v7666 = vadd.f32 %v7307, %v7665
      %v7667 = vpop.f32.mrb[0].mxu0
      %7668 = vmatprep.mubr.bf16.mxu0 0
      %7669 = vmatmul.mubr.bf16.gmra.mrb[0].mxu0 %v7457
      %v7670 = vpop.f32.mrb[0].mxu0
      %v7671 = vadd.f32 %v7312, %v7670
      %v7672 = vpop.f32.mrb[0].mxu0
      %v7673 = vpop.f32.mrb[0].mxu0
      %v7674 = vadd.f32 %v7315, %v7673
      %v7675 = vpop.f32.mrb[0].mxu0
      %7676 = vmatprep.mubr.bf16.mxu0 0
      %7677 = vmatmul.mubr.bf16.gmra.mrb[0].mxu0 %v7466
      %v7678 = vpop.f32.mrb[0].mxu0
      %v7679 = vadd.f32 %v7320, %v7678
      %v7680 = vpop.f32.mrb[0].mxu0
      %v7681 = vpop.f32.mrb[0].mxu0
      %v7682 = vadd.f32 %v7323, %v7681
      %v7683 = vpop.f32.mrb[0].mxu0
      %7684 = vmatprep.mubr.bf16.mxu0 0
      %7685 = vmatmul.mubr.bf16.gmra.mrb[0].mxu0 %v7475
      %v7686 = vpop.f32.mrb[0].mxu0
      %v7687 = vadd.f32 %v7328, %v7686
      %v7688 = vpop.f32.mrb[0].mxu0
      %v7689 = vpop.f32.mrb[0].mxu0
      %v7690 = vadd.f32 %v7331, %v7689
      %v7691 = vpop.f32.mrb[0].mxu0
      %7692 = vmatprep.mubr.bf16.mxu0 0
      %7693 = vmatmul.mubr.bf16.gmra.mrb[0].mxu0 %v7484
      %v7694 = vpop.f32.mrb[0].mxu0
      %v7695 = vadd.f32 %v7336, %v7694
      %v7696 = vpop.f32.mrb[0].mxu0
      %v7697 = vpop.f32.mrb[0].mxu0
      %v7698 = vadd.f32 %v7339, %v7697
      %v7699 = vpop.f32.mrb[0].mxu0
      %7700 = vdwg.mxu0
      %v7701 = vld [vmem:[#allocation2 + $0x78] sm:$0x1f]
      %s7702 = scalar_lea.vmem %s4, 128
      %v7703 = vld [vmem:[%s7702] sm:$0xf]
      %v7704 = vld [vmem:[%s7702 + $0x4] sm:$0xf]
      %v7705 = vld [vmem:[%s7702 + $0x8] sm:$0xf]
      %v7706 = vld [vmem:[%s7702 + $0xc] sm:$0xf]
      %v7707 = vld [vmem:[%s7702 + $0x10] sm:$0xf]
      %v7708 = vld [vmem:[%s7702 + $0x14] sm:$0xf]
      %v7709 = vld [vmem:[%s7702 + $0x18] sm:$0xf]
      %v7710 = vld [vmem:[%s7702 + $0x1c] sm:$0xf]
      %v7711 = vld [vmem:[%s7702 + $0x20] sm:$0xf]
      %v7712 = vld [vmem:[%s7702 + $0x24] sm:$0xf]
      %v7713 = vld [vmem:[%s7702 + $0x28] sm:$0xf]
      %v7714 = vld [vmem:[%s7702 + $0x2c] sm:$0xf]
      %v7715 = vld [vmem:[%s7702 + $0x30] sm:$0xf]
      %v7716 = vld [vmem:[%s7702 + $0x34] sm:$0xf]
      %v7717 = vld [vmem:[%s7702 + $0x38] sm:$0xf]
      %v7718 = vld [vmem:[%s7702 + $0x3c] sm:$0xf]
      %vm7719 = vsmask.f32 3328
      %v7721 = vshrl.u32 %v7060, 16
      %v7723 = vrot.slane %v7721, 4
      %v7724 = vshll.u32 %v7060, 16
      %v7726 = vrot.slane %v7724, 5
      %v7727 = vor.u32 %v7723, %v7726
      %v7728 = vrot.slane %v7351, 4
      %v7729 = vrot.slane %v7354, 5
      %v7730 = vor.u32 %v7728, %v7729
      %v7731 = vsel %vm7719, %v7727, %v7730
      %v7732 = vrot.slane %v7360, 4
      %v7733 = vrot.slane %v7363, 5
      %v7734 = vor.u32 %v7732, %v7733
      %v7735 = vsel %vm7719, %v7730, %v7734
      %v7736 = vrot.slane %v7369, 4
      %v7737 = vrot.slane %v7372, 5
      %v7738 = vor.u32 %v7736, %v7737
      %v7739 = vsel %vm7719, %v7734, %v7738
      %v7740 = vrot.slane %v7378, 4
      %v7741 = vrot.slane %v7381, 5
      %v7742 = vor.u32 %v7740, %v7741
      %v7743 = vsel %vm7719, %v7738, %v7742
      %v7744 = vrot.slane %v7387, 4
      %v7745 = vrot.slane %v7390, 5
      %v7746 = vor.u32 %v7744, %v7745
      %v7747 = vsel %vm7719, %v7742, %v7746
      %v7748 = vrot.slane %v7396, 4
      %v7749 = vrot.slane %v7399, 5
      %v7750 = vor.u32 %v7748, %v7749
      %v7751 = vsel %vm7719, %v7746, %v7750
      %v7752 = vrot.slane %v7405, 4
      %v7753 = vrot.slane %v7408, 5
      %v7754 = vor.u32 %v7752, %v7753
      %v7755 = vsel %vm7719, %v7750, %v7754
      %v7756 = vrot.slane %v7414, 4
      %v7757 = vrot.slane %v7417, 5
      %v7758 = vor.u32 %v7756, %v7757
      %v7759 = vsel %vm7719, %v7754, %v7758
      %v7760 = vrot.slane %v7423, 4
      %v7761 = vrot.slane %v7426, 5
      %v7762 = vor.u32 %v7760, %v7761
      %v7763 = vsel %vm7719, %v7758, %v7762
      %v7764 = vrot.slane %v7432, 4
      %v7765 = vrot.slane %v7435, 5
      %v7766 = vor.u32 %v7764, %v7765
      %v7767 = vsel %vm7719, %v7762, %v7766
      %v7768 = vrot.slane %v7441, 4
      %v7769 = vrot.slane %v7444, 5
      %v7770 = vor.u32 %v7768, %v7769
      %v7771 = vsel %vm7719, %v7766, %v7770
      %v7772 = vrot.slane %v7450, 4
      %v7773 = vrot.slane %v7453, 5
      %v7774 = vor.u32 %v7772, %v7773
      %v7775 = vsel %vm7719, %v7770, %v7774
      %v7776 = vrot.slane %v7459, 4
      %v7777 = vrot.slane %v7462, 5
      %v7778 = vor.u32 %v7776, %v7777
      %v7779 = vsel %vm7719, %v7774, %v7778
      %v7780 = vrot.slane %v7468, 4
      %v7781 = vrot.slane %v7471, 5
      %v7782 = vor.u32 %v7780, %v7781
      %v7783 = vsel %vm7719, %v7778, %v7782
      %v7785 = vshrl.u32 %v7701, 16
      %v7787 = vrot.slane %v7785, 4
      %v7788 = vshll.u32 %v7701, 16
      %v7790 = vrot.slane %v7788, 5
      %v7791 = vor.u32 %v7787, %v7790
      %v7792 = vsel %vm7719, %v7782, %v7791
      %v7824 = vunpack.c.l.b16 %v7703
      %v7825 = vunpack.c.l.b16 %v7704
      %v7826 = vunpack.c.l.b16 %v7705
      %v7827 = vunpack.c.l.b16 %v7706
      %v7828 = vunpack.c.l.b16 %v7707
      %v7829 = vunpack.c.l.b16 %v7708
      %v7830 = vunpack.c.l.b16 %v7709
      %v7831 = vunpack.c.l.b16 %v7710
      %v7832 = vunpack.c.l.b16 %v7711
      %v7833 = vunpack.c.l.b16 %v7712
      %v7834 = vunpack.c.l.b16 %v7713
      %v7835 = vunpack.c.l.b16 %v7714
      %v7836 = vunpack.c.l.b16 %v7715
      %v7837 = vunpack.c.l.b16 %v7716
      %v7838 = vunpack.c.l.b16 %v7717
      %v7839 = vunpack.c.l.b16 %v7718
      %v7840 = vpack.c.b16 %v7825, %v7824
      %v7841 = vpack.c.b16 %v7827, %v7826
      %v7842 = vpack.c.b16 %v7829, %v7828
      %v7843 = vpack.c.b16 %v7831, %v7830
      %v7844 = vpack.c.b16 %v7833, %v7832
      %v7845 = vpack.c.b16 %v7835, %v7834
      %v7846 = vpack.c.b16 %v7837, %v7836
      %v7847 = vpack.c.b16 %v7839, %v7838
      %7856 = vmatprep.subr.bf16.mxu0 0
      %7857 = vmatpush1.bf16.msra.mxu0 %v7840
      %7858 = vmatprep.subr.bf16.mxu0 0
      %7859 = vmatpush1.bf16.msra.mxu0 %v7841
      %7860 = vmatprep.subr.bf16.mxu0 0
      %7861 = vmatpush1.bf16.msra.mxu0 %v7842
      %7862 = vmatprep.subr.bf16.mxu0 0
      %7863 = vmatpush1.bf16.msra.mxu0 %v7843
      %7864 = vmatprep.subr.bf16.mxu0 0
      %7865 = vmatpush1.bf16.msra.mxu0 %v7844
      %7866 = vmatprep.subr.bf16.mxu0 0
      %7867 = vmatpush1.bf16.msra.mxu0 %v7845
      %7868 = vmatprep.subr.bf16.mxu0 0
      %7869 = vmatpush1.bf16.msra.mxu0 %v7846
      %7870 = vmatprep.subr.bf16.mxu0 0
      %7871 = vmatpush1.bf16.msra.mxu0 %v7847
      %7872 = vmatprep.subr.bf16.mxu0 0
      %7873 = vmatpush1.bf16.msra.mxu0 0
      %7874 = vmatprep.subr.bf16.mxu0 0
      %7875 = vmatpush1.bf16.msra.mxu0 0
      %7876 = vmatprep.subr.bf16.mxu0 0
      %7877 = vmatpush1.bf16.msra.mxu0 0
      %7878 = vmatprep.subr.bf16.mxu0 0
      %7879 = vmatpush1.bf16.msra.mxu0 0
      %7880 = vmatprep.subr.bf16.mxu0 0
      %7881 = vmatpush1.bf16.msra.mxu0 0
      %7882 = vmatprep.subr.bf16.mxu0 0
      %7883 = vmatpush1.bf16.msra.mxu0 0
      %7884 = vmatprep.subr.bf16.mxu0 0
      %7885 = vmatpush1.bf16.msra.mxu0 0
      %7886 = vmatprep.subr.bf16.mxu0 0
      %7887 = vmatpush1.bf16.msra.mxu0 0
      %7888 = vmatprep.mubr.bf16.mxu0 0
      %7889 = vmatmul.mubr.bf16.gmra.mrb[0].mxu0 %v7731
      %v7890 = vpop.f32.mrb[0].mxu0
      %v7891 = vadd.f32 0.0, %v7890
      %v7892 = vpop.f32.mrb[0].mxu0
      %v7893 = vpop.f32.mrb[0].mxu0
      %v7894 = vadd.f32 0.0, %v7893
      %v7895 = vpop.f32.mrb[0].mxu0
      %7896 = vmatprep.mubr.bf16.mxu0 0
      %7897 = vmatmul.mubr.bf16.gmra.mrb[0].mxu0 %v7735
      %v7898 = vpop.f32.mrb[0].mxu0
      %v7899 = vadd.f32 0.0, %v7898
      %v7900 = vpop.f32.mrb[0].mxu0
      %v7901 = vpop.f32.mrb[0].mxu0
      %v7902 = vadd.f32 0.0, %v7901
      %v7903 = vpop.f32.mrb[0].mxu0
      %7904 = vmatprep.mubr.bf16.mxu0 0
      %7905 = vmatmul.mubr.bf16.gmra.mrb[0].mxu0 %v7739
      %v7906 = vpop.f32.mrb[0].mxu0
      %v7907 = vadd.f32 0.0, %v7906
      %v7908 = vpop.f32.mrb[0].mxu0
      %v7909 = vpop.f32.mrb[0].mxu0
      %v7910 = vadd.f32 0.0, %v7909
      %v7911 = vpop.f32.mrb[0].mxu0
      %7912 = vmatprep.mubr.bf16.mxu0 0
      %7913 = vmatmul.mubr.bf16.gmra.mrb[0].mxu0 %v7743
      %v7914 = vpop.f32.mrb[0].mxu0
      %v7915 = vadd.f32 0.0, %v7914
      %v7916 = vpop.f32.mrb[0].mxu0
      %v7917 = vpop.f32.mrb[0].mxu0
      %v7918 = vadd.f32 0.0, %v7917
      %v7919 = vpop.f32.mrb[0].mxu0
      %7920 = vmatprep.mubr.bf16.mxu0 0
      %7921 = vmatmul.mubr.bf16.gmra.mrb[0].mxu0 %v7747
      %v7922 = vpop.f32.mrb[0].mxu0
      %v7923 = vadd.f32 0.0, %v7922
      %v7924 = vpop.f32.mrb[0].mxu0
      %v7925 = vpop.f32.mrb[0].mxu0
      %v7926 = vadd.f32 0.0, %v7925
      %v7927 = vpop.f32.mrb[0].mxu0
      %7928 = vmatprep.mubr.bf16.mxu0 0
      %7929 = vmatmul.mubr.bf16.gmra.mrb[0].mxu0 %v7751
      %v7930 = vpop.f32.mrb[0].mxu0
      %v7931 = vadd.f32 0.0, %v7930
      %v7932 = vpop.f32.mrb[0].mxu0
      %v7933 = vpop.f32.mrb[0].mxu0
      %v7934 = vadd.f32 0.0, %v7933
      %v7935 = vpop.f32.mrb[0].mxu0
      %7936 = vmatprep.mubr.bf16.mxu0 0
      %7937 = vmatmul.mubr.bf16.gmra.mrb[0].mxu0 %v7755
      %v7938 = vpop.f32.mrb[0].mxu0
      %v7939 = vadd.f32 0.0, %v7938
      %v7940 = vpop.f32.mrb[0].mxu0
      %v7941 = vpop.f32.mrb[0].mxu0
      %v7942 = vadd.f32 0.0, %v7941
      %v7943 = vpop.f32.mrb[0].mxu0
      %7944 = vmatprep.mubr.bf16.mxu0 0
      %7945 = vmatmul.mubr.bf16.gmra.mrb[0].mxu0 %v7759
      %v7946 = vpop.f32.mrb[0].mxu0
      %v7947 = vadd.f32 0.0, %v7946
      %v7948 = vpop.f32.mrb[0].mxu0
      %v7949 = vpop.f32.mrb[0].mxu0
      %v7950 = vadd.f32 0.0, %v7949
      %v7951 = vpop.f32.mrb[0].mxu0
      %7952 = vmatprep.mubr.bf16.mxu0 0
      %7953 = vmatmul.mubr.bf16.gmra.mrb[0].mxu0 %v7763
      %v7954 = vpop.f32.mrb[0].mxu0
      %v7955 = vadd.f32 0.0, %v7954
      %v7956 = vpop.f32.mrb[0].mxu0
      %v7957 = vpop.f32.mrb[0].mxu0
      %v7958 = vadd.f32 0.0, %v7957
      %v7959 = vpop.f32.mrb[0].mxu0
      %7960 = vmatprep.mubr.bf16.mxu0 0
      %7961 = vmatmul.mubr.bf16.gmra.mrb[0].mxu0 %v7767
      %v7962 = vpop.f32.mrb[0].mxu0
      %v7963 = vadd.f32 0.0, %v7962
      %v7964 = vpop.f32.mrb[0].mxu0
      %v7965 = vpop.f32.mrb[0].mxu0
      %v7966 = vadd.f32 0.0, %v7965
      %v7967 = vpop.f32.mrb[0].mxu0
      %7968 = vmatprep.mubr.bf16.mxu0 0
      %7969 = vmatmul.mubr.bf16.gmra.mrb[0].mxu0 %v7771
      %v7970 = vpop.f32.mrb[0].mxu0
      %v7971 = vadd.f32 0.0, %v7970
      %v7972 = vpop.f32.mrb[0].mxu0
      %v7973 = vpop.f32.mrb[0].mxu0
      %v7974 = vadd.f32 0.0, %v7973
      %v7975 = vpop.f32.mrb[0].mxu0
      %7976 = vmatprep.mubr.bf16.mxu0 0
      %7977 = vmatmul.mubr.bf16.gmra.mrb[0].mxu0 %v7775
      %v7978 = vpop.f32.mrb[0].mxu0
      %v7979 = vadd.f32 0.0, %v7978
      %v7980 = vpop.f32.mrb[0].mxu0
      %v7981 = vpop.f32.mrb[0].mxu0
      %v7982 = vadd.f32 0.0, %v7981
      %v7983 = vpop.f32.mrb[0].mxu0
      %7984 = vmatprep.mubr.bf16.mxu0 0
      %7985 = vmatmul.mubr.bf16.gmra.mrb[0].mxu0 %v7779
      %v7986 = vpop.f32.mrb[0].mxu0
      %v7987 = vadd.f32 0.0, %v7986
      %v7988 = vpop.f32.mrb[0].mxu0
      %v7989 = vpop.f32.mrb[0].mxu0
      %v7990 = vadd.f32 0.0, %v7989
      %v7991 = vpop.f32.mrb[0].mxu0
      %7992 = vmatprep.mubr.bf16.mxu0 0
      %7993 = vmatmul.mubr.bf16.gmra.mrb[0].mxu0 %v7783
      %v7994 = vpop.f32.mrb[0].mxu0
      %v7995 = vadd.f32 0.0, %v7994
      %v7996 = vpop.f32.mrb[0].mxu0
      %v7997 = vpop.f32.mrb[0].mxu0
      %v7998 = vadd.f32 0.0, %v7997
      %v7999 = vpop.f32.mrb[0].mxu0
      %8000 = vmatprep.mubr.bf16.mxu0 0
      %8001 = vmatmul.mubr.bf16.gmra.mrb[0].mxu0 %v7792
      %v8002 = vpop.f32.mrb[0].mxu0
      %v8003 = vadd.f32 0.0, %v8002
      %v8004 = vpop.f32.mrb[0].mxu0
      %v8005 = vpop.f32.mrb[0].mxu0
      %v8006 = vadd.f32 0.0, %v8005
      %v8007 = vpop.f32.mrb[0].mxu0
      %8008 = vdwg.mxu0
      %v8009 = vadd.f32 %v7583, %v7891
      %v8010 = vadd.f32 %v7586, %v7894
      %v8011 = vadd.f32 %v7591, %v7899
      %v8012 = vadd.f32 %v7594, %v7902
      %v8013 = vadd.f32 %v7599, %v7907
      %v8014 = vadd.f32 %v7602, %v7910
      %v8015 = vadd.f32 %v7607, %v7915
      %v8016 = vadd.f32 %v7610, %v7918
      %v8017 = vadd.f32 %v7615, %v7923
      %v8018 = vadd.f32 %v7618, %v7926
      %v8019 = vadd.f32 %v7623, %v7931
      %v8020 = vadd.f32 %v7626, %v7934
      %v8021 = vadd.f32 %v7631, %v7939
      %v8022 = vadd.f32 %v7634, %v7942
      %v8023 = vadd.f32 %v7639, %v7947
      %v8024 = vadd.f32 %v7642, %v7950
      %v8025 = vadd.f32 %v7647, %v7955
      %v8026 = vadd.f32 %v7650, %v7958
      %v8027 = vadd.f32 %v7655, %v7963
      %v8028 = vadd.f32 %v7658, %v7966
      %v8029 = vadd.f32 %v7663, %v7971
      %v8030 = vadd.f32 %v7666, %v7974
      %v8031 = vadd.f32 %v7671, %v7979
      %v8032 = vadd.f32 %v7674, %v7982
      %v8033 = vadd.f32 %v7679, %v7987
      %v8034 = vadd.f32 %v7682, %v7990
      %v8035 = vadd.f32 %v7687, %v7995
      %v8036 = vadd.f32 %v7690, %v7998
      %v8037 = vadd.f32 %v7695, %v8003
      %v8038 = vadd.f32 %v7698, %v8006
      %v8039 = vld [vmem:[#allocation2 + $0x8] sm:$0x80]
      %v8040 = vld [vmem:[#allocation2 + $0x10] sm:$0xff]
      %v8041 = vld [vmem:[#allocation2 + $0x18] sm:$0xff]
      %v8042 = vld [vmem:[#allocation2 + $0x20] sm:$0xff]
      %v8043 = vld [vmem:[#allocation2 + $0x28] sm:$0xff]
      %v8044 = vld [vmem:[#allocation2 + $0x30] sm:$0xff]
      %v8045 = vld [vmem:[#allocation2 + $0x38] sm:$0xff]
      %v8046 = vld [vmem:[#allocation2 + $0x40] sm:$0xff]
      %v8047 = vld [vmem:[#allocation2 + $0x48] sm:$0xff]
      %v8048 = vld [vmem:[#allocation2 + $0x50] sm:$0xff]
      %v8049 = vld [vmem:[#allocation2 + $0x58] sm:$0xff]
      %v8050 = vld [vmem:[#allocation2 + $0x60] sm:$0xff]
      %v8051 = vld [vmem:[#allocation2 + $0x68] sm:$0xff]
      %v8052 = vld [vmem:[#allocation2 + $0x70] sm:$0xff]
      %v8053 = vld [vmem:[#allocation2 + $0x78] sm:$0xff]
      %v8054 = vld [vmem:[#allocation2 + $0x80] sm:$0xff]
      %s8055 = scalar_lea.vmem %s4, 192
      %v8056 = vld [vmem:[%s8055] sm:$0xf]
      %v8057 = vld [vmem:[%s8055 + $0x4] sm:$0xf]
      %v8058 = vld [vmem:[%s8055 + $0x8] sm:$0xf]
      %v8059 = vld [vmem:[%s8055 + $0xc] sm:$0xf]
      %v8060 = vld [vmem:[%s8055 + $0x10] sm:$0xf]
      %v8061 = vld [vmem:[%s8055 + $0x14] sm:$0xf]
      %v8062 = vld [vmem:[%s8055 + $0x18] sm:$0xf]
      %v8063 = vld [vmem:[%s8055 + $0x1c] sm:$0xf]
      %v8064 = vld [vmem:[%s8055 + $0x20] sm:$0xf]
      %v8065 = vld [vmem:[%s8055 + $0x24] sm:$0xf]
      %v8066 = vld [vmem:[%s8055 + $0x28] sm:$0xf]
      %v8067 = vld [vmem:[%s8055 + $0x2c] sm:$0xf]
      %v8068 = vld [vmem:[%s8055 + $0x30] sm:$0xf]
      %v8069 = vld [vmem:[%s8055 + $0x34] sm:$0xf]
      %v8070 = vld [vmem:[%s8055 + $0x38] sm:$0xf]
      %v8071 = vld [vmem:[%s8055 + $0x3c] sm:$0xf]
      %vm8072 = vsmask.f32 256
      %v8074 = vshrl.u32 %v8039, 16
      %v8076 = vrot.slane %v8074, 7
      %v8078 = vshrl.u32 %v8040, 16
      %v8080 = vrot.slane %v8078, 7
      %v8081 = vshll.u32 %v8040, 16
      %v8083 = vor.u32 %v8080, %v8081
      %v8084 = vsel %vm8072, %v8076, %v8083
      %v8086 = vshrl.u32 %v8041, 16
      %v8088 = vrot.slane %v8086, 7
      %v8089 = vshll.u32 %v8041, 16
      %v8091 = vor.u32 %v8088, %v8089
      %v8092 = vsel %vm8072, %v8080, %v8091
      %v8094 = vshrl.u32 %v8042, 16
      %v8096 = vrot.slane %v8094, 7
      %v8097 = vshll.u32 %v8042, 16
      %v8099 = vor.u32 %v8096, %v8097
      %v8100 = vsel %vm8072, %v8088, %v8099
      %v8102 = vshrl.u32 %v8043, 16
      %v8104 = vrot.slane %v8102, 7
      %v8105 = vshll.u32 %v8043, 16
      %v8107 = vor.u32 %v8104, %v8105
      %v8108 = vsel %vm8072, %v8096, %v8107
      %v8110 = vshrl.u32 %v8044, 16
      %v8112 = vrot.slane %v8110, 7
      %v8113 = vshll.u32 %v8044, 16
      %v8115 = vor.u32 %v8112, %v8113
      %v8116 = vsel %vm8072, %v8104, %v8115
      %v8118 = vshrl.u32 %v8045, 16
      %v8120 = vrot.slane %v8118, 7
      %v8121 = vshll.u32 %v8045, 16
      %v8123 = vor.u32 %v8120, %v8121
      %v8124 = vsel %vm8072, %v8112, %v8123
      %v8126 = vshrl.u32 %v8046, 16
      %v8128 = vrot.slane %v8126, 7
      %v8129 = vshll.u32 %v8046, 16
      %v8131 = vor.u32 %v8128, %v8129
      %v8132 = vsel %vm8072, %v8120, %v8131
      %v8134 = vshrl.u32 %v8047, 16
      %v8136 = vrot.slane %v8134, 7
      %v8137 = vshll.u32 %v8047, 16
      %v8139 = vor.u32 %v8136, %v8137
      %v8140 = vsel %vm8072, %v8128, %v8139
      %v8142 = vshrl.u32 %v8048, 16
      %v8144 = vrot.slane %v8142, 7
      %v8145 = vshll.u32 %v8048, 16
      %v8147 = vor.u32 %v8144, %v8145
      %v8148 = vsel %vm8072, %v8136, %v8147
      %v8150 = vshrl.u32 %v8049, 16
      %v8152 = vrot.slane %v8150, 7
      %v8153 = vshll.u32 %v8049, 16
      %v8155 = vor.u32 %v8152, %v8153
      %v8156 = vsel %vm8072, %v8144, %v8155
      %v8158 = vshrl.u32 %v8050, 16
      %v8160 = vrot.slane %v8158, 7
      %v8161 = vshll.u32 %v8050, 16
      %v8163 = vor.u32 %v8160, %v8161
      %v8164 = vsel %vm8072, %v8152, %v8163
      %v8166 = vshrl.u32 %v8051, 16
      %v8168 = vrot.slane %v8166, 7
      %v8169 = vshll.u32 %v8051, 16
      %v8171 = vor.u32 %v8168, %v8169
      %v8172 = vsel %vm8072, %v8160, %v8171
      %v8174 = vshrl.u32 %v8052, 16
      %v8176 = vrot.slane %v8174, 7
      %v8177 = vshll.u32 %v8052, 16
      %v8179 = vor.u32 %v8176, %v8177
      %v8180 = vsel %vm8072, %v8168, %v8179
      %v8182 = vshrl.u32 %v8053, 16
      %v8184 = vrot.slane %v8182, 7
      %v8185 = vshll.u32 %v8053, 16
      %v8187 = vor.u32 %v8184, %v8185
      %v8188 = vsel %vm8072, %v8176, %v8187
      %v8190 = vshrl.u32 %v8054, 16
      %v8192 = vrot.slane %v8190, 7
      %v8193 = vshll.u32 %v8054, 16
      %v8195 = vor.u32 %v8192, %v8193
      %v8196 = vsel %vm8072, %v8184, %v8195
      %v8228 = vunpack.c.l.b16 %v8056
      %v8229 = vunpack.c.l.b16 %v8057
      %v8230 = vunpack.c.l.b16 %v8058
      %v8231 = vunpack.c.l.b16 %v8059
      %v8232 = vunpack.c.l.b16 %v8060
      %v8233 = vunpack.c.l.b16 %v8061
      %v8234 = vunpack.c.l.b16 %v8062
      %v8235 = vunpack.c.l.b16 %v8063
      %v8236 = vunpack.c.l.b16 %v8064
      %v8237 = vunpack.c.l.b16 %v8065
      %v8238 = vunpack.c.l.b16 %v8066
      %v8239 = vunpack.c.l.b16 %v8067
      %v8240 = vunpack.c.l.b16 %v8068
      %v8241 = vunpack.c.l.b16 %v8069
      %v8242 = vunpack.c.l.b16 %v8070
      %v8243 = vunpack.c.l.b16 %v8071
      %v8244 = vpack.c.b16 %v8229, %v8228
      %v8245 = vpack.c.b16 %v8231, %v8230
      %v8246 = vpack.c.b16 %v8233, %v8232
      %v8247 = vpack.c.b16 %v8235, %v8234
      %v8248 = vpack.c.b16 %v8237, %v8236
      %v8249 = vpack.c.b16 %v8239, %v8238
      %v8250 = vpack.c.b16 %v8241, %v8240
      %v8251 = vpack.c.b16 %v8243, %v8242
      %8260 = vmatprep.subr.bf16.mxu0 0
      %8261 = vmatpush1.bf16.msra.mxu0 %v8244
      %8262 = vmatprep.subr.bf16.mxu0 0
      %8263 = vmatpush1.bf16.msra.mxu0 %v8245
      %8264 = vmatprep.subr.bf16.mxu0 0
      %8265 = vmatpush1.bf16.msra.mxu0 %v8246
      %8266 = vmatprep.subr.bf16.mxu0 0
      %8267 = vmatpush1.bf16.msra.mxu0 %v8247
      %8268 = vmatprep.subr.bf16.mxu0 0
      %8269 = vmatpush1.bf16.msra.mxu0 %v8248
      %8270 = vmatprep.subr.bf16.mxu0 0
      %8271 = vmatpush1.bf16.msra.mxu0 %v8249
      %8272 = vmatprep.subr.bf16.mxu0 0
      %8273 = vmatpush1.bf16.msra.mxu0 %v8250
      %8274 = vmatprep.subr.bf16.mxu0 0
      %8275 = vmatpush1.bf16.msra.mxu0 %v8251
      %8276 = vmatprep.subr.bf16.mxu0 0
      %8277 = vmatpush1.bf16.msra.mxu0 0
      %8278 = vmatprep.subr.bf16.mxu0 0
      %8279 = vmatpush1.bf16.msra.mxu0 0
      %8280 = vmatprep.subr.bf16.mxu0 0
      %8281 = vmatpush1.bf16.msra.mxu0 0
      %8282 = vmatprep.subr.bf16.mxu0 0
      %8283 = vmatpush1.bf16.msra.mxu0 0
      %8284 = vmatprep.subr.bf16.mxu0 0
      %8285 = vmatpush1.bf16.msra.mxu0 0
      %8286 = vmatprep.subr.bf16.mxu0 0
      %8287 = vmatpush1.bf16.msra.mxu0 0
      %8288 = vmatprep.subr.bf16.mxu0 0
      %8289 = vmatpush1.bf16.msra.mxu0 0
      %8290 = vmatprep.subr.bf16.mxu0 0
      %8291 = vmatpush1.bf16.msra.mxu0 0
      %8292 = vmatprep.mubr.bf16.mxu0 0
      %8293 = vmatmul.mubr.bf16.gmra.mrb[0].mxu0 %v8084
      %v8294 = vpop.f32.mrb[0].mxu0
      %v8295 = vadd.f32 0.0, %v8294
      %v8296 = vpop.f32.mrb[0].mxu0
      %v8297 = vpop.f32.mrb[0].mxu0
      %v8298 = vadd.f32 0.0, %v8297
      %v8299 = vpop.f32.mrb[0].mxu0
      %8300 = vmatprep.mubr.bf16.mxu0 0
      %8301 = vmatmul.mubr.bf16.gmra.mrb[0].mxu0 %v8092
      %v8302 = vpop.f32.mrb[0].mxu0
      %v8303 = vadd.f32 0.0, %v8302
      %v8304 = vpop.f32.mrb[0].mxu0
      %v8305 = vpop.f32.mrb[0].mxu0
      %v8306 = vadd.f32 0.0, %v8305
      %v8307 = vpop.f32.mrb[0].mxu0
      %8308 = vmatprep.mubr.bf16.mxu0 0
      %8309 = vmatmul.mubr.bf16.gmra.mrb[0].mxu0 %v8100
      %v8310 = vpop.f32.mrb[0].mxu0
      %v8311 = vadd.f32 0.0, %v8310
      %v8312 = vpop.f32.mrb[0].mxu0
      %v8313 = vpop.f32.mrb[0].mxu0
      %v8314 = vadd.f32 0.0, %v8313
      %v8315 = vpop.f32.mrb[0].mxu0
      %8316 = vmatprep.mubr.bf16.mxu0 0
      %8317 = vmatmul.mubr.bf16.gmra.mrb[0].mxu0 %v8108
      %v8318 = vpop.f32.mrb[0].mxu0
      %v8319 = vadd.f32 0.0, %v8318
      %v8320 = vpop.f32.mrb[0].mxu0
      %v8321 = vpop.f32.mrb[0].mxu0
      %v8322 = vadd.f32 0.0, %v8321
      %v8323 = vpop.f32.mrb[0].mxu0
      %8324 = vmatprep.mubr.bf16.mxu0 0
      %8325 = vmatmul.mubr.bf16.gmra.mrb[0].mxu0 %v8116
      %v8326 = vpop.f32.mrb[0].mxu0
      %v8327 = vadd.f32 0.0, %v8326
      %v8328 = vpop.f32.mrb[0].mxu0
      %v8329 = vpop.f32.mrb[0].mxu0
      %v8330 = vadd.f32 0.0, %v8329
      %v8331 = vpop.f32.mrb[0].mxu0
      %8332 = vmatprep.mubr.bf16.mxu0 0
      %8333 = vmatmul.mubr.bf16.gmra.mrb[0].mxu0 %v8124
      %v8334 = vpop.f32.mrb[0].mxu0
      %v8335 = vadd.f32 0.0, %v8334
      %v8336 = vpop.f32.mrb[0].mxu0
      %v8337 = vpop.f32.mrb[0].mxu0
      %v8338 = vadd.f32 0.0, %v8337
      %v8339 = vpop.f32.mrb[0].mxu0
      %8340 = vmatprep.mubr.bf16.mxu0 0
      %8341 = vmatmul.mubr.bf16.gmra.mrb[0].mxu0 %v8132
      %v8342 = vpop.f32.mrb[0].mxu0
      %v8343 = vadd.f32 0.0, %v8342
      %v8344 = vpop.f32.mrb[0].mxu0
      %v8345 = vpop.f32.mrb[0].mxu0
      %v8346 = vadd.f32 0.0, %v8345
      %v8347 = vpop.f32.mrb[0].mxu0
      %8348 = vmatprep.mubr.bf16.mxu0 0
      %8349 = vmatmul.mubr.bf16.gmra.mrb[0].mxu0 %v8140
      %v8350 = vpop.f32.mrb[0].mxu0
      %v8351 = vadd.f32 0.0, %v8350
      %v8352 = vpop.f32.mrb[0].mxu0
      %v8353 = vpop.f32.mrb[0].mxu0
      %v8354 = vadd.f32 0.0, %v8353
      %v8355 = vpop.f32.mrb[0].mxu0
      %8356 = vmatprep.mubr.bf16.mxu0 0
      %8357 = vmatmul.mubr.bf16.gmra.mrb[0].mxu0 %v8148
      %v8358 = vpop.f32.mrb[0].mxu0
      %v8359 = vadd.f32 0.0, %v8358
      %v8360 = vpop.f32.mrb[0].mxu0
      %v8361 = vpop.f32.mrb[0].mxu0
      %v8362 = vadd.f32 0.0, %v8361
      %v8363 = vpop.f32.mrb[0].mxu0
      %8364 = vmatprep.mubr.bf16.mxu0 0
      %8365 = vmatmul.mubr.bf16.gmra.mrb[0].mxu0 %v8156
      %v8366 = vpop.f32.mrb[0].mxu0
      %v8367 = vadd.f32 0.0, %v8366
      %v8368 = vpop.f32.mrb[0].mxu0
      %v8369 = vpop.f32.mrb[0].mxu0
      %v8370 = vadd.f32 0.0, %v8369
      %v8371 = vpop.f32.mrb[0].mxu0
      %8372 = vmatprep.mubr.bf16.mxu0 0
      %8373 = vmatmul.mubr.bf16.gmra.mrb[0].mxu0 %v8164
      %v8374 = vpop.f32.mrb[0].mxu0
      %v8375 = vadd.f32 0.0, %v8374
      %v8376 = vpop.f32.mrb[0].mxu0
      %v8377 = vpop.f32.mrb[0].mxu0
      %v8378 = vadd.f32 0.0, %v8377
      %v8379 = vpop.f32.mrb[0].mxu0
      %8380 = vmatprep.mubr.bf16.mxu0 0
      %8381 = vmatmul.mubr.bf16.gmra.mrb[0].mxu0 %v8172
      %v8382 = vpop.f32.mrb[0].mxu0
      %v8383 = vadd.f32 0.0, %v8382
      %v8384 = vpop.f32.mrb[0].mxu0
      %v8385 = vpop.f32.mrb[0].mxu0
      %v8386 = vadd.f32 0.0, %v8385
      %v8387 = vpop.f32.mrb[0].mxu0
      %8388 = vmatprep.mubr.bf16.mxu0 0
      %8389 = vmatmul.mubr.bf16.gmra.mrb[0].mxu0 %v8180
      %v8390 = vpop.f32.mrb[0].mxu0
      %v8391 = vadd.f32 0.0, %v8390
      %v8392 = vpop.f32.mrb[0].mxu0
      %v8393 = vpop.f32.mrb[0].mxu0
      %v8394 = vadd.f32 0.0, %v8393
      %v8395 = vpop.f32.mrb[0].mxu0
      %8396 = vmatprep.mubr.bf16.mxu0 0
      %8397 = vmatmul.mubr.bf16.gmra.mrb[0].mxu0 %v8188
      %v8398 = vpop.f32.mrb[0].mxu0
      %v8399 = vadd.f32 0.0, %v8398
      %v8400 = vpop.f32.mrb[0].mxu0
      %v8401 = vpop.f32.mrb[0].mxu0
      %v8402 = vadd.f32 0.0, %v8401
      %v8403 = vpop.f32.mrb[0].mxu0
      %8404 = vmatprep.mubr.bf16.mxu0 0
      %8405 = vmatmul.mubr.bf16.gmra.mrb[0].mxu0 %v8196
      %v8406 = vpop.f32.mrb[0].mxu0
      %v8407 = vadd.f32 0.0, %v8406
      %v8408 = vpop.f32.mrb[0].mxu0
      %v8409 = vpop.f32.mrb[0].mxu0
      %v8410 = vadd.f32 0.0, %v8409
      %v8411 = vpop.f32.mrb[0].mxu0
      %8412 = vdwg.mxu0
      %v8413 = vadd.f32 %v8009, %v8295
      %v8414 = vadd.f32 %v8010, %v8298
      %v8415 = vadd.f32 %v8011, %v8303
      %v8416 = vadd.f32 %v8012, %v8306
      %v8417 = vadd.f32 %v8013, %v8311
      %v8418 = vadd.f32 %v8014, %v8314
      %v8419 = vadd.f32 %v8015, %v8319
      %v8420 = vadd.f32 %v8016, %v8322
      %v8421 = vadd.f32 %v8017, %v8327
      %v8422 = vadd.f32 %v8018, %v8330
      %v8423 = vadd.f32 %v8019, %v8335
      %v8424 = vadd.f32 %v8020, %v8338
      %v8425 = vadd.f32 %v8021, %v8343
      %v8426 = vadd.f32 %v8022, %v8346
      %v8427 = vadd.f32 %v8023, %v8351
      %v8428 = vadd.f32 %v8024, %v8354
      %v8429 = vadd.f32 %v8025, %v8359
      %v8430 = vadd.f32 %v8026, %v8362
      %v8431 = vadd.f32 %v8027, %v8367
      %v8432 = vadd.f32 %v8028, %v8370
      %v8433 = vadd.f32 %v8029, %v8375
      %v8434 = vadd.f32 %v8030, %v8378
      %v8435 = vadd.f32 %v8031, %v8383
      %v8436 = vadd.f32 %v8032, %v8386
      %v8437 = vadd.f32 %v8033, %v8391
      %v8438 = vadd.f32 %v8034, %v8394
      %v8439 = vadd.f32 %v8035, %v8399
      %v8440 = vadd.f32 %v8036, %v8402
      %v8441 = vadd.f32 %v8037, %v8407
      %v8442 = vadd.f32 %v8038, %v8410
      %s8443 = scalar_lea.vmem %s4, 256
      %v8444 = vld [vmem:[%s8443] sm:$0xf]
      %v8445 = vld [vmem:[%s8443 + $0x4] sm:$0xf]
      %v8446 = vld [vmem:[%s8443 + $0x8] sm:$0xf]
      %v8447 = vld [vmem:[%s8443 + $0xc] sm:$0xf]
      %v8448 = vld [vmem:[%s8443 + $0x10] sm:$0xf]
      %v8449 = vld [vmem:[%s8443 + $0x14] sm:$0xf]
      %v8450 = vld [vmem:[%s8443 + $0x18] sm:$0xf]
      %v8451 = vld [vmem:[%s8443 + $0x1c] sm:$0xf]
      %v8452 = vld [vmem:[%s8443 + $0x20] sm:$0xf]
      %v8453 = vld [vmem:[%s8443 + $0x24] sm:$0xf]
      %v8454 = vld [vmem:[%s8443 + $0x28] sm:$0xf]
      %v8455 = vld [vmem:[%s8443 + $0x2c] sm:$0xf]
      %v8456 = vld [vmem:[%s8443 + $0x30] sm:$0xf]
      %v8457 = vld [vmem:[%s8443 + $0x34] sm:$0xf]
      %v8458 = vld [vmem:[%s8443 + $0x38] sm:$0xf]
      %v8459 = vld [vmem:[%s8443 + $0x3c] sm:$0xf]
      %v8476 = vunpack.c.l.b16 %v8444
      %v8477 = vunpack.c.l.b16 %v8445
      %v8478 = vunpack.c.l.b16 %v8446
      %v8479 = vunpack.c.l.b16 %v8447
      %v8480 = vunpack.c.l.b16 %v8448
      %v8481 = vunpack.c.l.b16 %v8449
      %v8482 = vunpack.c.l.b16 %v8450
      %v8483 = vunpack.c.l.b16 %v8451
      %v8484 = vunpack.c.l.b16 %v8452
      %v8485 = vunpack.c.l.b16 %v8453
      %v8486 = vunpack.c.l.b16 %v8454
      %v8487 = vunpack.c.l.b16 %v8455
      %v8488 = vunpack.c.l.b16 %v8456
      %v8489 = vunpack.c.l.b16 %v8457
      %v8490 = vunpack.c.l.b16 %v8458
      %v8491 = vunpack.c.l.b16 %v8459
      %v8492 = vpack.c.b16 %v8477, %v8476
      %v8493 = vpack.c.b16 %v8479, %v8478
      %v8494 = vpack.c.b16 %v8481, %v8480
      %v8495 = vpack.c.b16 %v8483, %v8482
      %v8496 = vpack.c.b16 %v8485, %v8484
      %v8497 = vpack.c.b16 %v8487, %v8486
      %v8498 = vpack.c.b16 %v8489, %v8488
      %v8499 = vpack.c.b16 %v8491, %v8490
      %8508 = vmatprep.subr.bf16.mxu0 0
      %8509 = vmatpush1.bf16.msra.mxu0 %v8492
      %8510 = vmatprep.subr.bf16.mxu0 0
      %8511 = vmatpush1.bf16.msra.mxu0 %v8493
      %8512 = vmatprep.subr.bf16.mxu0 0
      %8513 = vmatpush1.bf16.msra.mxu0 %v8494
      %8514 = vmatprep.subr.bf16.mxu0 0
      %8515 = vmatpush1.bf16.msra.mxu0 %v8495
      %8516 = vmatprep.subr.bf16.mxu0 0
      %8517 = vmatpush1.bf16.msra.mxu0 %v8496
      %8518 = vmatprep.subr.bf16.mxu0 0
      %8519 = vmatpush1.bf16.msra.mxu0 %v8497
      %8520 = vmatprep.subr.bf16.mxu0 0
      %8521 = vmatpush1.bf16.msra.mxu0 %v8498
      %8522 = vmatprep.subr.bf16.mxu0 0
      %8523 = vmatpush1.bf16.msra.mxu0 %v8499
      %8524 = vmatprep.subr.bf16.mxu0 0
      %8525 = vmatpush1.bf16.msra.mxu0 0
      %8526 = vmatprep.subr.bf16.mxu0 0
      %8527 = vmatpush1.bf16.msra.mxu0 0
      %8528 = vmatprep.subr.bf16.mxu0 0
      %8529 = vmatpush1.bf16.msra.mxu0 0
      %8530 = vmatprep.subr.bf16.mxu0 0
      %8531 = vmatpush1.bf16.msra.mxu0 0
      %8532 = vmatprep.subr.bf16.mxu0 0
      %8533 = vmatpush1.bf16.msra.mxu0 0
      %8534 = vmatprep.subr.bf16.mxu0 0
      %8535 = vmatpush1.bf16.msra.mxu0 0
      %8536 = vmatprep.subr.bf16.mxu0 0
      %8537 = vmatpush1.bf16.msra.mxu0 0
      %8538 = vmatprep.subr.bf16.mxu0 0
      %8539 = vmatpush1.bf16.msra.mxu0 0
      %8540 = vmatprep.mubr.bf16.mxu0 0
      %8541 = vmatmul.mubr.bf16.gmra.mrb[0].mxu0 %v8040
      %v8542 = vpop.f32.mrb[0].mxu0
      %v8543 = vadd.f32 0.0, %v8542
      %v8544 = vpop.f32.mrb[0].mxu0
      %v8545 = vpop.f32.mrb[0].mxu0
      %v8546 = vadd.f32 0.0, %v8545
      %v8547 = vpop.f32.mrb[0].mxu0
      %8548 = vmatprep.mubr.bf16.mxu0 0
      %8549 = vmatmul.mubr.bf16.gmra.mrb[0].mxu0 %v8041
      %v8550 = vpop.f32.mrb[0].mxu0
      %v8551 = vadd.f32 0.0, %v8550
      %v8552 = vpop.f32.mrb[0].mxu0
      %v8553 = vpop.f32.mrb[0].mxu0
      %v8554 = vadd.f32 0.0, %v8553
      %v8555 = vpop.f32.mrb[0].mxu0
      %8556 = vmatprep.mubr.bf16.mxu0 0
      %8557 = vmatmul.mubr.bf16.gmra.mrb[0].mxu0 %v8042
      %v8558 = vpop.f32.mrb[0].mxu0
      %v8559 = vadd.f32 0.0, %v8558
      %v8560 = vpop.f32.mrb[0].mxu0
      %v8561 = vpop.f32.mrb[0].mxu0
      %v8562 = vadd.f32 0.0, %v8561
      %v8563 = vpop.f32.mrb[0].mxu0
      %8564 = vmatprep.mubr.bf16.mxu0 0
      %8565 = vmatmul.mubr.bf16.gmra.mrb[0].mxu0 %v8043
      %v8566 = vpop.f32.mrb[0].mxu0
      %v8567 = vadd.f32 0.0, %v8566
      %v8568 = vpop.f32.mrb[0].mxu0
      %v8569 = vpop.f32.mrb[0].mxu0
      %v8570 = vadd.f32 0.0, %v8569
      %v8571 = vpop.f32.mrb[0].mxu0
      %8572 = vmatprep.mubr.bf16.mxu0 0
      %8573 = vmatmul.mubr.bf16.gmra.mrb[0].mxu0 %v8044
      %v8574 = vpop.f32.mrb[0].mxu0
      %v8575 = vadd.f32 0.0, %v8574
      %v8576 = vpop.f32.mrb[0].mxu0
      %v8577 = vpop.f32.mrb[0].mxu0
      %v8578 = vadd.f32 0.0, %v8577
      %v8579 = vpop.f32.mrb[0].mxu0
      %8580 = vmatprep.mubr.bf16.mxu0 0
      %8581 = vmatmul.mubr.bf16.gmra.mrb[0].mxu0 %v8045
      %v8582 = vpop.f32.mrb[0].mxu0
      %v8583 = vadd.f32 0.0, %v8582
      %v8584 = vpop.f32.mrb[0].mxu0
      %v8585 = vpop.f32.mrb[0].mxu0
      %v8586 = vadd.f32 0.0, %v8585
      %v8587 = vpop.f32.mrb[0].mxu0
      %8588 = vmatprep.mubr.bf16.mxu0 0
      %8589 = vmatmul.mubr.bf16.gmra.mrb[0].mxu0 %v8046
      %v8590 = vpop.f32.mrb[0].mxu0
      %v8591 = vadd.f32 0.0, %v8590
      %v8592 = vpop.f32.mrb[0].mxu0
      %v8593 = vpop.f32.mrb[0].mxu0
      %v8594 = vadd.f32 0.0, %v8593
      %v8595 = vpop.f32.mrb[0].mxu0
      %8596 = vmatprep.mubr.bf16.mxu0 0
      %8597 = vmatmul.mubr.bf16.gmra.mrb[0].mxu0 %v8047
      %v8598 = vpop.f32.mrb[0].mxu0
      %v8599 = vadd.f32 0.0, %v8598
      %v8600 = vpop.f32.mrb[0].mxu0
      %v8601 = vpop.f32.mrb[0].mxu0
      %v8602 = vadd.f32 0.0, %v8601
      %v8603 = vpop.f32.mrb[0].mxu0
      %8604 = vmatprep.mubr.bf16.mxu0 0
      %8605 = vmatmul.mubr.bf16.gmra.mrb[0].mxu0 %v8048
      %v8606 = vpop.f32.mrb[0].mxu0
      %v8607 = vadd.f32 0.0, %v8606
      %v8608 = vpop.f32.mrb[0].mxu0
      %v8609 = vpop.f32.mrb[0].mxu0
      %v8610 = vadd.f32 0.0, %v8609
      %v8611 = vpop.f32.mrb[0].mxu0
      %8612 = vmatprep.mubr.bf16.mxu0 0
      %8613 = vmatmul.mubr.bf16.gmra.mrb[0].mxu0 %v8049
      %v8614 = vpop.f32.mrb[0].mxu0
      %v8615 = vadd.f32 0.0, %v8614
      %v8616 = vpop.f32.mrb[0].mxu0
      %v8617 = vpop.f32.mrb[0].mxu0
      %v8618 = vadd.f32 0.0, %v8617
      %v8619 = vpop.f32.mrb[0].mxu0
      %8620 = vmatprep.mubr.bf16.mxu0 0
      %8621 = vmatmul.mubr.bf16.gmra.mrb[0].mxu0 %v8050
      %v8622 = vpop.f32.mrb[0].mxu0
      %v8623 = vadd.f32 0.0, %v8622
      %v8624 = vpop.f32.mrb[0].mxu0
      %v8625 = vpop.f32.mrb[0].mxu0
      %v8626 = vadd.f32 0.0, %v8625
      %v8627 = vpop.f32.mrb[0].mxu0
      %8628 = vmatprep.mubr.bf16.mxu0 0
      %8629 = vmatmul.mubr.bf16.gmra.mrb[0].mxu0 %v8051
      %v8630 = vpop.f32.mrb[0].mxu0
      %v8631 = vadd.f32 0.0, %v8630
      %v8632 = vpop.f32.mrb[0].mxu0
      %v8633 = vpop.f32.mrb[0].mxu0
      %v8634 = vadd.f32 0.0, %v8633
      %v8635 = vpop.f32.mrb[0].mxu0
      %8636 = vmatprep.mubr.bf16.mxu0 0
      %8637 = vmatmul.mubr.bf16.gmra.mrb[0].mxu0 %v8052
      %v8638 = vpop.f32.mrb[0].mxu0
      %v8639 = vadd.f32 0.0, %v8638
      %v8640 = vpop.f32.mrb[0].mxu0
      %v8641 = vpop.f32.mrb[0].mxu0
      %v8642 = vadd.f32 0.0, %v8641
      %v8643 = vpop.f32.mrb[0].mxu0
      %8644 = vmatprep.mubr.bf16.mxu0 0
      %8645 = vmatmul.mubr.bf16.gmra.mrb[0].mxu0 %v8053
      %v8646 = vpop.f32.mrb[0].mxu0
      %v8647 = vadd.f32 0.0, %v8646
      %v8648 = vpop.f32.mrb[0].mxu0
      %v8649 = vpop.f32.mrb[0].mxu0
      %v8650 = vadd.f32 0.0, %v8649
      %v8651 = vpop.f32.mrb[0].mxu0
      %8652 = vmatprep.mubr.bf16.mxu0 0
      %8653 = vmatmul.mubr.bf16.gmra.mrb[0].mxu0 %v8054
      %v8654 = vpop.f32.mrb[0].mxu0
      %v8655 = vadd.f32 0.0, %v8654
      %v8656 = vpop.f32.mrb[0].mxu0
      %v8657 = vpop.f32.mrb[0].mxu0
      %v8658 = vadd.f32 0.0, %v8657
      %v8659 = vpop.f32.mrb[0].mxu0
      %8660 = vdwg.mxu0
      %v8661 = vadd.f32 %v8413, %v8543
      %v8662 = vadd.f32 %v8414, %v8546
      %v8663 = vadd.f32 %v8415, %v8551
      %v8664 = vadd.f32 %v8416, %v8554
      %v8665 = vadd.f32 %v8417, %v8559
      %v8666 = vadd.f32 %v8418, %v8562
      %v8667 = vadd.f32 %v8419, %v8567
      %v8668 = vadd.f32 %v8420, %v8570
      %v8669 = vadd.f32 %v8421, %v8575
      %v8670 = vadd.f32 %v8422, %v8578
      %v8671 = vadd.f32 %v8423, %v8583
      %v8672 = vadd.f32 %v8424, %v8586
      %v8673 = vadd.f32 %v8425, %v8591
      %v8674 = vadd.f32 %v8426, %v8594
      %v8675 = vadd.f32 %v8427, %v8599
      %v8676 = vadd.f32 %v8428, %v8602
      %v8677 = vadd.f32 %v8429, %v8607
      %v8678 = vadd.f32 %v8430, %v8610
      %v8679 = vadd.f32 %v8431, %v8615
      %v8680 = vadd.f32 %v8432, %v8618
      %v8681 = vadd.f32 %v8433, %v8623
      %v8682 = vadd.f32 %v8434, %v8626
      %v8683 = vadd.f32 %v8435, %v8631
      %v8684 = vadd.f32 %v8436, %v8634
      %v8685 = vadd.f32 %v8437, %v8639
      %v8686 = vadd.f32 %v8438, %v8642
      %v8687 = vadd.f32 %v8439, %v8647
      %v8688 = vadd.f32 %v8440, %v8650
      %v8689 = vadd.f32 %v8441, %v8655
      %v8690 = vadd.f32 %v8442, %v8658
      %v8691 = vld [vmem:[#allocation2 + $0x10] sm:$0xff]
      %v8692 = vld [vmem:[#allocation2 + $0x18] sm:$0xff]
      %v8693 = vld [vmem:[#allocation2 + $0x20] sm:$0xff]
      %v8694 = vld [vmem:[#allocation2 + $0x28] sm:$0xff]
      %v8695 = vld [vmem:[#allocation2 + $0x30] sm:$0xff]
      %v8696 = vld [vmem:[#allocation2 + $0x38] sm:$0xff]
      %v8697 = vld [vmem:[#allocation2 + $0x40] sm:$0xff]
      %v8698 = vld [vmem:[#allocation2 + $0x48] sm:$0xff]
      %v8699 = vld [vmem:[#allocation2 + $0x50] sm:$0xff]
      %v8700 = vld [vmem:[#allocation2 + $0x58] sm:$0xff]
      %v8701 = vld [vmem:[#allocation2 + $0x60] sm:$0xff]
      %v8702 = vld [vmem:[#allocation2 + $0x68] sm:$0xff]
      %v8703 = vld [vmem:[#allocation2 + $0x70] sm:$0xff]
      %v8704 = vld [vmem:[#allocation2 + $0x78] sm:$0xff]
      %v8705 = vld [vmem:[#allocation2 + $0x80] sm:$0xff]
      %v8706 = vld [vmem:[#allocation2 + $0x88] sm:$0x1]
      %s8707 = scalar_lea.vmem %s4, 320
      %v8708 = vld [vmem:[%s8707] sm:$0xf]
      %v8709 = vld [vmem:[%s8707 + $0x4] sm:$0xf]
      %v8710 = vld [vmem:[%s8707 + $0x8] sm:$0xf]
      %v8711 = vld [vmem:[%s8707 + $0xc] sm:$0xf]
      %v8712 = vld [vmem:[%s8707 + $0x10] sm:$0xf]
      %v8713 = vld [vmem:[%s8707 + $0x14] sm:$0xf]
      %v8714 = vld [vmem:[%s8707 + $0x18] sm:$0xf]
      %v8715 = vld [vmem:[%s8707 + $0x1c] sm:$0xf]
      %v8716 = vld [vmem:[%s8707 + $0x20] sm:$0xf]
      %v8717 = vld [vmem:[%s8707 + $0x24] sm:$0xf]
      %v8718 = vld [vmem:[%s8707 + $0x28] sm:$0xf]
      %v8719 = vld [vmem:[%s8707 + $0x2c] sm:$0xf]
      %v8720 = vld [vmem:[%s8707 + $0x30] sm:$0xf]
      %v8721 = vld [vmem:[%s8707 + $0x34] sm:$0xf]
      %v8722 = vld [vmem:[%s8707 + $0x38] sm:$0xf]
      %v8723 = vld [vmem:[%s8707 + $0x3c] sm:$0xf]
      %v8725 = vshrl.u32 %v8691, 16
      %v8727 = vshll.u32 %v8691, 16
      %v8729 = vrot.slane %v8727, 1
      %v8730 = vor.u32 %v8725, %v8729
      %v8732 = vshll.u32 %v8692, 16
      %v8734 = vrot.slane %v8732, 1
      %v8735 = vsel %vm1160, %v8730, %v8734
      %v8736 = vshrl.u32 %v8692, 16
      %v8738 = vor.u32 %v8736, %v8734
      %v8740 = vshll.u32 %v8693, 16
      %v8742 = vrot.slane %v8740, 1
      %v8743 = vsel %vm1160, %v8738, %v8742
      %v8744 = vshrl.u32 %v8693, 16
      %v8746 = vor.u32 %v8744, %v8742
      %v8748 = vshll.u32 %v8694, 16
      %v8750 = vrot.slane %v8748, 1
      %v8751 = vsel %vm1160, %v8746, %v8750
      %v8752 = vshrl.u32 %v8694, 16
      %v8754 = vor.u32 %v8752, %v8750
      %v8756 = vshll.u32 %v8695, 16
      %v8758 = vrot.slane %v8756, 1
      %v8759 = vsel %vm1160, %v8754, %v8758
      %v8760 = vshrl.u32 %v8695, 16
      %v8762 = vor.u32 %v8760, %v8758
      %v8764 = vshll.u32 %v8696, 16
      %v8766 = vrot.slane %v8764, 1
      %v8767 = vsel %vm1160, %v8762, %v8766
      %v8768 = vshrl.u32 %v8696, 16
      %v8770 = vor.u32 %v8768, %v8766
      %v8772 = vshll.u32 %v8697, 16
      %v8774 = vrot.slane %v8772, 1
      %v8775 = vsel %vm1160, %v8770, %v8774
      %v8776 = vshrl.u32 %v8697, 16
      %v8778 = vor.u32 %v8776, %v8774
      %v8780 = vshll.u32 %v8698, 16
      %v8782 = vrot.slane %v8780, 1
      %v8783 = vsel %vm1160, %v8778, %v8782
      %v8784 = vshrl.u32 %v8698, 16
      %v8786 = vor.u32 %v8784, %v8782
      %v8788 = vshll.u32 %v8699, 16
      %v8790 = vrot.slane %v8788, 1
      %v8791 = vsel %vm1160, %v8786, %v8790
      %v8792 = vshrl.u32 %v8699, 16
      %v8794 = vor.u32 %v8792, %v8790
      %v8796 = vshll.u32 %v8700, 16
      %v8798 = vrot.slane %v8796, 1
      %v8799 = vsel %vm1160, %v8794, %v8798
      %v8800 = vshrl.u32 %v8700, 16
      %v8802 = vor.u32 %v8800, %v8798
      %v8804 = vshll.u32 %v8701, 16
      %v8806 = vrot.slane %v8804, 1
      %v8807 = vsel %vm1160, %v8802, %v8806
      %v8808 = vshrl.u32 %v8701, 16
      %v8810 = vor.u32 %v8808, %v8806
      %v8812 = vshll.u32 %v8702, 16
      %v8814 = vrot.slane %v8812, 1
      %v8815 = vsel %vm1160, %v8810, %v8814
      %v8816 = vshrl.u32 %v8702, 16
      %v8818 = vor.u32 %v8816, %v8814
      %v8820 = vshll.u32 %v8703, 16
      %v8822 = vrot.slane %v8820, 1
      %v8823 = vsel %vm1160, %v8818, %v8822
      %v8824 = vshrl.u32 %v8703, 16
      %v8826 = vor.u32 %v8824, %v8822
      %v8828 = vshll.u32 %v8704, 16
      %v8830 = vrot.slane %v8828, 1
      %v8831 = vsel %vm1160, %v8826, %v8830
      %v8832 = vshrl.u32 %v8704, 16
      %v8834 = vor.u32 %v8832, %v8830
      %v8836 = vshll.u32 %v8705, 16
      %v8838 = vrot.slane %v8836, 1
      %v8839 = vsel %vm1160, %v8834, %v8838
      %v8840 = vshrl.u32 %v8705, 16
      %v8842 = vor.u32 %v8840, %v8838
      %v8844 = vshll.u32 %v8706, 16
      %v8846 = vrot.slane %v8844, 1
      %v8847 = vsel %vm1160, %v8842, %v8846
      %v8879 = vunpack.c.l.b16 %v8708
      %v8880 = vunpack.c.l.b16 %v8709
      %v8881 = vunpack.c.l.b16 %v8710
      %v8882 = vunpack.c.l.b16 %v8711
      %v8883 = vunpack.c.l.b16 %v8712
      %v8884 = vunpack.c.l.b16 %v8713
      %v8885 = vunpack.c.l.b16 %v8714
      %v8886 = vunpack.c.l.b16 %v8715
      %v8887 = vunpack.c.l.b16 %v8716
      %v8888 = vunpack.c.l.b16 %v8717
      %v8889 = vunpack.c.l.b16 %v8718
      %v8890 = vunpack.c.l.b16 %v8719
      %v8891 = vunpack.c.l.b16 %v8720
      %v8892 = vunpack.c.l.b16 %v8721
      %v8893 = vunpack.c.l.b16 %v8722
      %v8894 = vunpack.c.l.b16 %v8723
      %v8895 = vpack.c.b16 %v8880, %v8879
      %v8896 = vpack.c.b16 %v8882, %v8881
      %v8897 = vpack.c.b16 %v8884, %v8883
      %v8898 = vpack.c.b16 %v8886, %v8885
      %v8899 = vpack.c.b16 %v8888, %v8887
      %v8900 = vpack.c.b16 %v8890, %v8889
      %v8901 = vpack.c.b16 %v8892, %v8891
      %v8902 = vpack.c.b16 %v8894, %v8893
      %8911 = vmatprep.subr.bf16.mxu0 0
      %8912 = vmatpush1.bf16.msra.mxu0 %v8895
      %8913 = vmatprep.subr.bf16.mxu0 0
      %8914 = vmatpush1.bf16.msra.mxu0 %v8896
      %8915 = vmatprep.subr.bf16.mxu0 0
      %8916 = vmatpush1.bf16.msra.mxu0 %v8897
      %8917 = vmatprep.subr.bf16.mxu0 0
      %8918 = vmatpush1.bf16.msra.mxu0 %v8898
      %8919 = vmatprep.subr.bf16.mxu0 0
      %8920 = vmatpush1.bf16.msra.mxu0 %v8899
      %8921 = vmatprep.subr.bf16.mxu0 0
      %8922 = vmatpush1.bf16.msra.mxu0 %v8900
      %8923 = vmatprep.subr.bf16.mxu0 0
      %8924 = vmatpush1.bf16.msra.mxu0 %v8901
      %8925 = vmatprep.subr.bf16.mxu0 0
      %8926 = vmatpush1.bf16.msra.mxu0 %v8902
      %8927 = vmatprep.subr.bf16.mxu0 0
      %8928 = vmatpush1.bf16.msra.mxu0 0
      %8929 = vmatprep.subr.bf16.mxu0 0
      %8930 = vmatpush1.bf16.msra.mxu0 0
      %8931 = vmatprep.subr.bf16.mxu0 0
      %8932 = vmatpush1.bf16.msra.mxu0 0
      %8933 = vmatprep.subr.bf16.mxu0 0
      %8934 = vmatpush1.bf16.msra.mxu0 0
      %8935 = vmatprep.subr.bf16.mxu0 0
      %8936 = vmatpush1.bf16.msra.mxu0 0
      %8937 = vmatprep.subr.bf16.mxu0 0
      %8938 = vmatpush1.bf16.msra.mxu0 0
      %8939 = vmatprep.subr.bf16.mxu0 0
      %8940 = vmatpush1.bf16.msra.mxu0 0
      %8941 = vmatprep.subr.bf16.mxu0 0
      %8942 = vmatpush1.bf16.msra.mxu0 0
      %8943 = vmatprep.mubr.bf16.mxu0 0
      %8944 = vmatmul.mubr.bf16.gmra.mrb[0].mxu0 %v8735
      %v8945 = vpop.f32.mrb[0].mxu0
      %v8946 = vadd.f32 0.0, %v8945
      %v8947 = vpop.f32.mrb[0].mxu0
      %v8948 = vpop.f32.mrb[0].mxu0
      %v8949 = vadd.f32 0.0, %v8948
      %v8950 = vpop.f32.mrb[0].mxu0
      %8951 = vmatprep.mubr.bf16.mxu0 0
      %8952 = vmatmul.mubr.bf16.gmra.mrb[0].mxu0 %v8743
      %v8953 = vpop.f32.mrb[0].mxu0
      %v8954 = vadd.f32 0.0, %v8953
      %v8955 = vpop.f32.mrb[0].mxu0
      %v8956 = vpop.f32.mrb[0].mxu0
      %v8957 = vadd.f32 0.0, %v8956
      %v8958 = vpop.f32.mrb[0].mxu0
      %8959 = vmatprep.mubr.bf16.mxu0 0
      %8960 = vmatmul.mubr.bf16.gmra.mrb[0].mxu0 %v8751
      %v8961 = vpop.f32.mrb[0].mxu0
      %v8962 = vadd.f32 0.0, %v8961
      %v8963 = vpop.f32.mrb[0].mxu0
      %v8964 = vpop.f32.mrb[0].mxu0
      %v8965 = vadd.f32 0.0, %v8964
      %v8966 = vpop.f32.mrb[0].mxu0
      %8967 = vmatprep.mubr.bf16.mxu0 0
      %8968 = vmatmul.mubr.bf16.gmra.mrb[0].mxu0 %v8759
      %v8969 = vpop.f32.mrb[0].mxu0
      %v8970 = vadd.f32 0.0, %v8969
      %v8971 = vpop.f32.mrb[0].mxu0
      %v8972 = vpop.f32.mrb[0].mxu0
      %v8973 = vadd.f32 0.0, %v8972
      %v8974 = vpop.f32.mrb[0].mxu0
      %8975 = vmatprep.mubr.bf16.mxu0 0
      %8976 = vmatmul.mubr.bf16.gmra.mrb[0].mxu0 %v8767
      %v8977 = vpop.f32.mrb[0].mxu0
      %v8978 = vadd.f32 0.0, %v8977
      %v8979 = vpop.f32.mrb[0].mxu0
      %v8980 = vpop.f32.mrb[0].mxu0
      %v8981 = vadd.f32 0.0, %v8980
      %v8982 = vpop.f32.mrb[0].mxu0
      %8983 = vmatprep.mubr.bf16.mxu0 0
      %8984 = vmatmul.mubr.bf16.gmra.mrb[0].mxu0 %v8775
      %v8985 = vpop.f32.mrb[0].mxu0
      %v8986 = vadd.f32 0.0, %v8985
      %v8987 = vpop.f32.mrb[0].mxu0
      %v8988 = vpop.f32.mrb[0].mxu0
      %v8989 = vadd.f32 0.0, %v8988
      %v8990 = vpop.f32.mrb[0].mxu0
      %8991 = vmatprep.mubr.bf16.mxu0 0
      %8992 = vmatmul.mubr.bf16.gmra.mrb[0].mxu0 %v8783
      %v8993 = vpop.f32.mrb[0].mxu0
      %v8994 = vadd.f32 0.0, %v8993
      %v8995 = vpop.f32.mrb[0].mxu0
      %v8996 = vpop.f32.mrb[0].mxu0
      %v8997 = vadd.f32 0.0, %v8996
      %v8998 = vpop.f32.mrb[0].mxu0
      %8999 = vmatprep.mubr.bf16.mxu0 0
      %9000 = vmatmul.mubr.bf16.gmra.mrb[0].mxu0 %v8791
      %v9001 = vpop.f32.mrb[0].mxu0
      %v9002 = vadd.f32 0.0, %v9001
      %v9003 = vpop.f32.mrb[0].mxu0
      %v9004 = vpop.f32.mrb[0].mxu0
      %v9005 = vadd.f32 0.0, %v9004
      %v9006 = vpop.f32.mrb[0].mxu0
      %9007 = vmatprep.mubr.bf16.mxu0 0
      %9008 = vmatmul.mubr.bf16.gmra.mrb[0].mxu0 %v8799
      %v9009 = vpop.f32.mrb[0].mxu0
      %v9010 = vadd.f32 0.0, %v9009
      %v9011 = vpop.f32.mrb[0].mxu0
      %v9012 = vpop.f32.mrb[0].mxu0
      %v9013 = vadd.f32 0.0, %v9012
      %v9014 = vpop.f32.mrb[0].mxu0
      %9015 = vmatprep.mubr.bf16.mxu0 0
      %9016 = vmatmul.mubr.bf16.gmra.mrb[0].mxu0 %v8807
      %v9017 = vpop.f32.mrb[0].mxu0
      %v9018 = vadd.f32 0.0, %v9017
      %v9019 = vpop.f32.mrb[0].mxu0
      %v9020 = vpop.f32.mrb[0].mxu0
      %v9021 = vadd.f32 0.0, %v9020
      %v9022 = vpop.f32.mrb[0].mxu0
      %9023 = vmatprep.mubr.bf16.mxu0 0
      %9024 = vmatmul.mubr.bf16.gmra.mrb[0].mxu0 %v8815
      %v9025 = vpop.f32.mrb[0].mxu0
      %v9026 = vadd.f32 0.0, %v9025
      %v9027 = vpop.f32.mrb[0].mxu0
      %v9028 = vpop.f32.mrb[0].mxu0
      %v9029 = vadd.f32 0.0, %v9028
      %v9030 = vpop.f32.mrb[0].mxu0
      %9031 = vmatprep.mubr.bf16.mxu0 0
      %9032 = vmatmul.mubr.bf16.gmra.mrb[0].mxu0 %v8823
      %v9033 = vpop.f32.mrb[0].mxu0
      %v9034 = vadd.f32 0.0, %v9033
      %v9035 = vpop.f32.mrb[0].mxu0
      %v9036 = vpop.f32.mrb[0].mxu0
      %v9037 = vadd.f32 0.0, %v9036
      %v9038 = vpop.f32.mrb[0].mxu0
      %9039 = vmatprep.mubr.bf16.mxu0 0
      %9040 = vmatmul.mubr.bf16.gmra.mrb[0].mxu0 %v8831
      %v9041 = vpop.f32.mrb[0].mxu0
      %v9042 = vadd.f32 0.0, %v9041
      %v9043 = vpop.f32.mrb[0].mxu0
      %v9044 = vpop.f32.mrb[0].mxu0
      %v9045 = vadd.f32 0.0, %v9044
      %v9046 = vpop.f32.mrb[0].mxu0
      %9047 = vmatprep.mubr.bf16.mxu0 0
      %9048 = vmatmul.mubr.bf16.gmra.mrb[0].mxu0 %v8839
      %v9049 = vpop.f32.mrb[0].mxu0
      %v9050 = vadd.f32 0.0, %v9049
      %v9051 = vpop.f32.mrb[0].mxu0
      %v9052 = vpop.f32.mrb[0].mxu0
      %v9053 = vadd.f32 0.0, %v9052
      %v9054 = vpop.f32.mrb[0].mxu0
      %9055 = vmatprep.mubr.bf16.mxu0 0
      %9056 = vmatmul.mubr.bf16.gmra.mrb[0].mxu0 %v8847
      %v9057 = vpop.f32.mrb[0].mxu0
      %v9058 = vadd.f32 0.0, %v9057
      %v9059 = vpop.f32.mrb[0].mxu0
      %v9060 = vpop.f32.mrb[0].mxu0
      %v9061 = vadd.f32 0.0, %v9060
      %v9062 = vpop.f32.mrb[0].mxu0
      %9063 = vdwg.mxu0
      %v9064 = vadd.f32 %v8661, %v8946
      %v9065 = vadd.f32 %v8662, %v8949
      %v9066 = vadd.f32 %v8663, %v8954
      %v9067 = vadd.f32 %v8664, %v8957
      %v9068 = vadd.f32 %v8665, %v8962
      %v9069 = vadd.f32 %v8666, %v8965
      %v9070 = vadd.f32 %v8667, %v8970
      %v9071 = vadd.f32 %v8668, %v8973
      %v9072 = vadd.f32 %v8669, %v8978
      %v9073 = vadd.f32 %v8670, %v8981
      %v9074 = vadd.f32 %v8671, %v8986
      %v9075 = vadd.f32 %v8672, %v8989
      %v9076 = vadd.f32 %v8673, %v8994
      %v9077 = vadd.f32 %v8674, %v8997
      %v9078 = vadd.f32 %v8675, %v9002
      %v9079 = vadd.f32 %v8676, %v9005
      %v9080 = vadd.f32 %v8677, %v9010
      %v9081 = vadd.f32 %v8678, %v9013
      %v9082 = vadd.f32 %v8679, %v9018
      %v9083 = vadd.f32 %v8680, %v9021
      %v9084 = vadd.f32 %v8681, %v9026
      %v9085 = vadd.f32 %v8682, %v9029
      %v9086 = vadd.f32 %v8683, %v9034
      %v9087 = vadd.f32 %v8684, %v9037
      %v9088 = vadd.f32 %v8685, %v9042
      %v9089 = vadd.f32 %v8686, %v9045
      %v9090 = vadd.f32 %v8687, %v9050
      %v9091 = vadd.f32 %v8688, %v9053
      %v9092 = vadd.f32 %v8689, %v9058
      %v9093 = vadd.f32 %v8690, %v9061
      %v9094 = vld [vmem:[#allocation2 + $0x18] sm:$0xf8]
      %v9095 = vld [vmem:[#allocation2 + $0x20] sm:$0xff]
      %v9096 = vld [vmem:[#allocation2 + $0x28] sm:$0xff]
      %v9097 = vld [vmem:[#allocation2 + $0x30] sm:$0xff]
      %v9098 = vld [vmem:[#allocation2 + $0x38] sm:$0xff]
      %v9099 = vld [vmem:[#allocation2 + $0x40] sm:$0xff]
      %v9100 = vld [vmem:[#allocation2 + $0x48] sm:$0xff]
      %v9101 = vld [vmem:[#allocation2 + $0x50] sm:$0xff]
      %v9102 = vld [vmem:[#allocation2 + $0x58] sm:$0xff]
      %v9103 = vld [vmem:[#allocation2 + $0x60] sm:$0xff]
      %v9104 = vld [vmem:[#allocation2 + $0x68] sm:$0xff]
      %v9105 = vld [vmem:[#allocation2 + $0x70] sm:$0xff]
      %v9106 = vld [vmem:[#allocation2 + $0x78] sm:$0xff]
      %v9107 = vld [vmem:[#allocation2 + $0x80] sm:$0xff]
      %v9108 = vld [vmem:[#allocation2 + $0x88] sm:$0xff]
      %v9109 = vld [vmem:[#allocation2 + $0x90] sm:$0xf]
      %s9110 = scalar_lea.vmem %s4, 384
      %v9111 = vld [vmem:[%s9110] sm:$0xf]
      %v9112 = vld [vmem:[%s9110 + $0x4] sm:$0xf]
      %v9113 = vld [vmem:[%s9110 + $0x8] sm:$0xf]
      %v9114 = vld [vmem:[%s9110 + $0xc] sm:$0xf]
      %v9115 = vld [vmem:[%s9110 + $0x10] sm:$0xf]
      %v9116 = vld [vmem:[%s9110 + $0x14] sm:$0xf]
      %v9117 = vld [vmem:[%s9110 + $0x18] sm:$0xf]
      %v9118 = vld [vmem:[%s9110 + $0x1c] sm:$0xf]
      %v9119 = vld [vmem:[%s9110 + $0x20] sm:$0xf]
      %v9120 = vld [vmem:[%s9110 + $0x24] sm:$0xf]
      %v9121 = vld [vmem:[%s9110 + $0x28] sm:$0xf]
      %v9122 = vld [vmem:[%s9110 + $0x2c] sm:$0xf]
      %v9123 = vld [vmem:[%s9110 + $0x30] sm:$0xf]
      %v9124 = vld [vmem:[%s9110 + $0x34] sm:$0xf]
      %v9125 = vld [vmem:[%s9110 + $0x38] sm:$0xf]
      %v9126 = vld [vmem:[%s9110 + $0x3c] sm:$0xf]
      %v9128 = vshrl.u32 %v9094, 16
      %v9130 = vrot.slane %v9128, 3
      %v9131 = vshll.u32 %v9094, 16
      %v9133 = vrot.slane %v9131, 4
      %v9134 = vor.u32 %v9130, %v9133
      %v9136 = vshrl.u32 %v9095, 16
      %v9138 = vrot.slane %v9136, 3
      %v9139 = vshll.u32 %v9095, 16
      %v9141 = vrot.slane %v9139, 4
      %v9142 = vor.u32 %v9138, %v9141
      %v9143 = vsel %vm674, %v9134, %v9142
      %v9145 = vshrl.u32 %v9096, 16
      %v9147 = vrot.slane %v9145, 3
      %v9148 = vshll.u32 %v9096, 16
      %v9150 = vrot.slane %v9148, 4
      %v9151 = vor.u32 %v9147, %v9150
      %v9152 = vsel %vm674, %v9142, %v9151
      %v9154 = vshrl.u32 %v9097, 16
      %v9156 = vrot.slane %v9154, 3
      %v9157 = vshll.u32 %v9097, 16
      %v9159 = vrot.slane %v9157, 4
      %v9160 = vor.u32 %v9156, %v9159
      %v9161 = vsel %vm674, %v9151, %v9160
      %v9163 = vshrl.u32 %v9098, 16
      %v9165 = vrot.slane %v9163, 3
      %v9166 = vshll.u32 %v9098, 16
      %v9168 = vrot.slane %v9166, 4
      %v9169 = vor.u32 %v9165, %v9168
      %v9170 = vsel %vm674, %v9160, %v9169
      %v9172 = vshrl.u32 %v9099, 16
      %v9174 = vrot.slane %v9172, 3
      %v9175 = vshll.u32 %v9099, 16
      %v9177 = vrot.slane %v9175, 4
      %v9178 = vor.u32 %v9174, %v9177
      %v9179 = vsel %vm674, %v9169, %v9178
      %v9181 = vshrl.u32 %v9100, 16
      %v9183 = vrot.slane %v9181, 3
      %v9184 = vshll.u32 %v9100, 16
      %v9186 = vrot.slane %v9184, 4
      %v9187 = vor.u32 %v9183, %v9186
      %v9188 = vsel %vm674, %v9178, %v9187
      %v9190 = vshrl.u32 %v9101, 16
      %v9192 = vrot.slane %v9190, 3
      %v9193 = vshll.u32 %v9101, 16
      %v9195 = vrot.slane %v9193, 4
      %v9196 = vor.u32 %v9192, %v9195
      %v9197 = vsel %vm674, %v9187, %v9196
      %v9199 = vshrl.u32 %v9102, 16
      %v9201 = vrot.slane %v9199, 3
      %v9202 = vshll.u32 %v9102, 16
      %v9204 = vrot.slane %v9202, 4
      %v9205 = vor.u32 %v9201, %v9204
      %v9206 = vsel %vm674, %v9196, %v9205
      %v9208 = vshrl.u32 %v9103, 16
      %v9210 = vrot.slane %v9208, 3
      %v9211 = vshll.u32 %v9103, 16
      %v9213 = vrot.slane %v9211, 4
      %v9214 = vor.u32 %v9210, %v9213
      %v9215 = vsel %vm674, %v9205, %v9214
      %v9217 = vshrl.u32 %v9104, 16
      %v9219 = vrot.slane %v9217, 3
      %v9220 = vshll.u32 %v9104, 16
      %v9222 = vrot.slane %v9220, 4
      %v9223 = vor.u32 %v9219, %v9222
      %v9224 = vsel %vm674, %v9214, %v9223
      %v9226 = vshrl.u32 %v9105, 16
      %v9228 = vrot.slane %v9226, 3
      %v9229 = vshll.u32 %v9105, 16
      %v9231 = vrot.slane %v9229, 4
      %v9232 = vor.u32 %v9228, %v9231
      %v9233 = vsel %vm674, %v9223, %v9232
      %v9235 = vshrl.u32 %v9106, 16
      %v9237 = vrot.slane %v9235, 3
      %v9238 = vshll.u32 %v9106, 16
      %v9240 = vrot.slane %v9238, 4
      %v9241 = vor.u32 %v9237, %v9240
      %v9242 = vsel %vm674, %v9232, %v9241
      %v9244 = vshrl.u32 %v9107, 16
      %v9246 = vrot.slane %v9244, 3
      %v9247 = vshll.u32 %v9107, 16
      %v9249 = vrot.slane %v9247, 4
      %v9250 = vor.u32 %v9246, %v9249
      %v9251 = vsel %vm674, %v9241, %v9250
      %v9253 = vshrl.u32 %v9108, 16
      %v9255 = vrot.slane %v9253, 3
      %v9256 = vshll.u32 %v9108, 16
      %v9258 = vrot.slane %v9256, 4
      %v9259 = vor.u32 %v9255, %v9258
      %v9260 = vsel %vm674, %v9250, %v9259
      %v9262 = vshrl.u32 %v9109, 16
      %v9264 = vrot.slane %v9262, 3
      %v9265 = vshll.u32 %v9109, 16
      %v9267 = vrot.slane %v9265, 4
      %v9268 = vor.u32 %v9264, %v9267
      %v9269 = vsel %vm674, %v9259, %v9268
      %v9301 = vunpack.c.l.b16 %v9111
      %v9302 = vunpack.c.l.b16 %v9112
      %v9303 = vunpack.c.l.b16 %v9113
      %v9304 = vunpack.c.l.b16 %v9114
      %v9305 = vunpack.c.l.b16 %v9115
      %v9306 = vunpack.c.l.b16 %v9116
      %v9307 = vunpack.c.l.b16 %v9117
      %v9308 = vunpack.c.l.b16 %v9118
      %v9309 = vunpack.c.l.b16 %v9119
      %v9310 = vunpack.c.l.b16 %v9120
      %v9311 = vunpack.c.l.b16 %v9121
      %v9312 = vunpack.c.l.b16 %v9122
      %v9313 = vunpack.c.l.b16 %v9123
      %v9314 = vunpack.c.l.b16 %v9124
      %v9315 = vunpack.c.l.b16 %v9125
      %v9316 = vunpack.c.l.b16 %v9126
      %v9317 = vpack.c.b16 %v9302, %v9301
      %v9318 = vpack.c.b16 %v9304, %v9303
      %v9319 = vpack.c.b16 %v9306, %v9305
      %v9320 = vpack.c.b16 %v9308, %v9307
      %v9321 = vpack.c.b16 %v9310, %v9309
      %v9322 = vpack.c.b16 %v9312, %v9311
      %v9323 = vpack.c.b16 %v9314, %v9313
      %v9324 = vpack.c.b16 %v9316, %v9315
      %9333 = vmatprep.subr.bf16.mxu0 0
      %9334 = vmatpush1.bf16.msra.mxu0 %v9317
      %9335 = vmatprep.subr.bf16.mxu0 0
      %9336 = vmatpush1.bf16.msra.mxu0 %v9318
      %9337 = vmatprep.subr.bf16.mxu0 0
      %9338 = vmatpush1.bf16.msra.mxu0 %v9319
      %9339 = vmatprep.subr.bf16.mxu0 0
      %9340 = vmatpush1.bf16.msra.mxu0 %v9320
      %9341 = vmatprep.subr.bf16.mxu0 0
      %9342 = vmatpush1.bf16.msra.mxu0 %v9321
      %9343 = vmatprep.subr.bf16.mxu0 0
      %9344 = vmatpush1.bf16.msra.mxu0 %v9322
      %9345 = vmatprep.subr.bf16.mxu0 0
      %9346 = vmatpush1.bf16.msra.mxu0 %v9323
      %9347 = vmatprep.subr.bf16.mxu0 0
      %9348 = vmatpush1.bf16.msra.mxu0 %v9324
      %9349 = vmatprep.subr.bf16.mxu0 0
      %9350 = vmatpush1.bf16.msra.mxu0 0
      %9351 = vmatprep.subr.bf16.mxu0 0
      %9352 = vmatpush1.bf16.msra.mxu0 0
      %9353 = vmatprep.subr.bf16.mxu0 0
      %9354 = vmatpush1.bf16.msra.mxu0 0
      %9355 = vmatprep.subr.bf16.mxu0 0
      %9356 = vmatpush1.bf16.msra.mxu0 0
      %9357 = vmatprep.subr.bf16.mxu0 0
      %9358 = vmatpush1.bf16.msra.mxu0 0
      %9359 = vmatprep.subr.bf16.mxu0 0
      %9360 = vmatpush1.bf16.msra.mxu0 0
      %9361 = vmatprep.subr.bf16.mxu0 0
      %9362 = vmatpush1.bf16.msra.mxu0 0
      %9363 = vmatprep.subr.bf16.mxu0 0
      %9364 = vmatpush1.bf16.msra.mxu0 0
      %9365 = vmatprep.mubr.bf16.mxu0 0
      %9366 = vmatmul.mubr.bf16.gmra.mrb[0].mxu0 %v9143
      %v9367 = vpop.f32.mrb[0].mxu0
      %v9368 = vadd.f32 0.0, %v9367
      %v9369 = vpop.f32.mrb[0].mxu0
      %v9370 = vpop.f32.mrb[0].mxu0
      %v9371 = vadd.f32 0.0, %v9370
      %v9372 = vpop.f32.mrb[0].mxu0
      %9373 = vmatprep.mubr.bf16.mxu0 0
      %9374 = vmatmul.mubr.bf16.gmra.mrb[0].mxu0 %v9152
      %v9375 = vpop.f32.mrb[0].mxu0
      %v9376 = vadd.f32 0.0, %v9375
      %v9377 = vpop.f32.mrb[0].mxu0
      %v9378 = vpop.f32.mrb[0].mxu0
      %v9379 = vadd.f32 0.0, %v9378
      %v9380 = vpop.f32.mrb[0].mxu0
      %9381 = vmatprep.mubr.bf16.mxu0 0
      %9382 = vmatmul.mubr.bf16.gmra.mrb[0].mxu0 %v9161
      %v9383 = vpop.f32.mrb[0].mxu0
      %v9384 = vadd.f32 0.0, %v9383
      %v9385 = vpop.f32.mrb[0].mxu0
      %v9386 = vpop.f32.mrb[0].mxu0
      %v9387 = vadd.f32 0.0, %v9386
      %v9388 = vpop.f32.mrb[0].mxu0
      %9389 = vmatprep.mubr.bf16.mxu0 0
      %9390 = vmatmul.mubr.bf16.gmra.mrb[0].mxu0 %v9170
      %v9391 = vpop.f32.mrb[0].mxu0
      %v9392 = vadd.f32 0.0, %v9391
      %v9393 = vpop.f32.mrb[0].mxu0
      %v9394 = vpop.f32.mrb[0].mxu0
      %v9395 = vadd.f32 0.0, %v9394
      %v9396 = vpop.f32.mrb[0].mxu0
      %9397 = vmatprep.mubr.bf16.mxu0 0
      %9398 = vmatmul.mubr.bf16.gmra.mrb[0].mxu0 %v9179
      %v9399 = vpop.f32.mrb[0].mxu0
      %v9400 = vadd.f32 0.0, %v9399
      %v9401 = vpop.f32.mrb[0].mxu0
      %v9402 = vpop.f32.mrb[0].mxu0
      %v9403 = vadd.f32 0.0, %v9402
      %v9404 = vpop.f32.mrb[0].mxu0
      %9405 = vmatprep.mubr.bf16.mxu0 0
      %9406 = vmatmul.mubr.bf16.gmra.mrb[0].mxu0 %v9188
      %v9407 = vpop.f32.mrb[0].mxu0
      %v9408 = vadd.f32 0.0, %v9407
      %v9409 = vpop.f32.mrb[0].mxu0
      %v9410 = vpop.f32.mrb[0].mxu0
      %v9411 = vadd.f32 0.0, %v9410
      %v9412 = vpop.f32.mrb[0].mxu0
      %9413 = vmatprep.mubr.bf16.mxu0 0
      %9414 = vmatmul.mubr.bf16.gmra.mrb[0].mxu0 %v9197
      %v9415 = vpop.f32.mrb[0].mxu0
      %v9416 = vadd.f32 0.0, %v9415
      %v9417 = vpop.f32.mrb[0].mxu0
      %v9418 = vpop.f32.mrb[0].mxu0
      %v9419 = vadd.f32 0.0, %v9418
      %v9420 = vpop.f32.mrb[0].mxu0
      %9421 = vmatprep.mubr.bf16.mxu0 0
      %9422 = vmatmul.mubr.bf16.gmra.mrb[0].mxu0 %v9206
      %v9423 = vpop.f32.mrb[0].mxu0
      %v9424 = vadd.f32 0.0, %v9423
      %v9425 = vpop.f32.mrb[0].mxu0
      %v9426 = vpop.f32.mrb[0].mxu0
      %v9427 = vadd.f32 0.0, %v9426
      %v9428 = vpop.f32.mrb[0].mxu0
      %9429 = vmatprep.mubr.bf16.mxu0 0
      %9430 = vmatmul.mubr.bf16.gmra.mrb[0].mxu0 %v9215
      %v9431 = vpop.f32.mrb[0].mxu0
      %v9432 = vadd.f32 0.0, %v9431
      %v9433 = vpop.f32.mrb[0].mxu0
      %v9434 = vpop.f32.mrb[0].mxu0
      %v9435 = vadd.f32 0.0, %v9434
      %v9436 = vpop.f32.mrb[0].mxu0
      %9437 = vmatprep.mubr.bf16.mxu0 0
      %9438 = vmatmul.mubr.bf16.gmra.mrb[0].mxu0 %v9224
      %v9439 = vpop.f32.mrb[0].mxu0
      %v9440 = vadd.f32 0.0, %v9439
      %v9441 = vpop.f32.mrb[0].mxu0
      %v9442 = vpop.f32.mrb[0].mxu0
      %v9443 = vadd.f32 0.0, %v9442
      %v9444 = vpop.f32.mrb[0].mxu0
      %9445 = vmatprep.mubr.bf16.mxu0 0
      %9446 = vmatmul.mubr.bf16.gmra.mrb[0].mxu0 %v9233
      %v9447 = vpop.f32.mrb[0].mxu0
      %v9448 = vadd.f32 0.0, %v9447
      %v9449 = vpop.f32.mrb[0].mxu0
      %v9450 = vpop.f32.mrb[0].mxu0
      %v9451 = vadd.f32 0.0, %v9450
      %v9452 = vpop.f32.mrb[0].mxu0
      %9453 = vmatprep.mubr.bf16.mxu0 0
      %9454 = vmatmul.mubr.bf16.gmra.mrb[0].mxu0 %v9242
      %v9455 = vpop.f32.mrb[0].mxu0
      %v9456 = vadd.f32 0.0, %v9455
      %v9457 = vpop.f32.mrb[0].mxu0
      %v9458 = vpop.f32.mrb[0].mxu0
      %v9459 = vadd.f32 0.0, %v9458
      %v9460 = vpop.f32.mrb[0].mxu0
      %9461 = vmatprep.mubr.bf16.mxu0 0
      %9462 = vmatmul.mubr.bf16.gmra.mrb[0].mxu0 %v9251
      %v9463 = vpop.f32.mrb[0].mxu0
      %v9464 = vadd.f32 0.0, %v9463
      %v9465 = vpop.f32.mrb[0].mxu0
      %v9466 = vpop.f32.mrb[0].mxu0
      %v9467 = vadd.f32 0.0, %v9466
      %v9468 = vpop.f32.mrb[0].mxu0
      %9469 = vmatprep.mubr.bf16.mxu0 0
      %9470 = vmatmul.mubr.bf16.gmra.mrb[0].mxu0 %v9260
      %v9471 = vpop.f32.mrb[0].mxu0
      %v9472 = vadd.f32 0.0, %v9471
      %v9473 = vpop.f32.mrb[0].mxu0
      %v9474 = vpop.f32.mrb[0].mxu0
      %v9475 = vadd.f32 0.0, %v9474
      %v9476 = vpop.f32.mrb[0].mxu0
      %9477 = vmatprep.mubr.bf16.mxu0 0
      %9478 = vmatmul.mubr.bf16.gmra.mrb[0].mxu0 %v9269
      %v9479 = vpop.f32.mrb[0].mxu0
      %v9480 = vadd.f32 0.0, %v9479
      %v9481 = vpop.f32.mrb[0].mxu0
      %v9482 = vpop.f32.mrb[0].mxu0
      %v9483 = vadd.f32 0.0, %v9482
      %v9484 = vpop.f32.mrb[0].mxu0
      %9485 = vdwg.mxu0
      %v9486 = vadd.f32 %v9064, %v9368
      %v9487 = vadd.f32 %v9065, %v9371
      %v9488 = vadd.f32 %v9066, %v9376
      %v9489 = vadd.f32 %v9067, %v9379
      %v9490 = vadd.f32 %v9068, %v9384
      %v9491 = vadd.f32 %v9069, %v9387
      %v9492 = vadd.f32 %v9070, %v9392
      %v9493 = vadd.f32 %v9071, %v9395
      %v9494 = vadd.f32 %v9072, %v9400
      %v9495 = vadd.f32 %v9073, %v9403
      %v9496 = vadd.f32 %v9074, %v9408
      %v9497 = vadd.f32 %v9075, %v9411
      %v9498 = vadd.f32 %v9076, %v9416
      %v9499 = vadd.f32 %v9077, %v9419
      %v9500 = vadd.f32 %v9078, %v9424
      %v9501 = vadd.f32 %v9079, %v9427
      %v9502 = vadd.f32 %v9080, %v9432
      %v9503 = vadd.f32 %v9081, %v9435
      %v9504 = vadd.f32 %v9082, %v9440
      %v9505 = vadd.f32 %v9083, %v9443
      %v9506 = vadd.f32 %v9084, %v9448
      %v9507 = vadd.f32 %v9085, %v9451
      %v9508 = vadd.f32 %v9086, %v9456
      %v9509 = vadd.f32 %v9087, %v9459
      %v9510 = vadd.f32 %v9088, %v9464
      %v9511 = vadd.f32 %v9089, %v9467
      %v9512 = vadd.f32 %v9090, %v9472
      %v9513 = vadd.f32 %v9091, %v9475
      %v9514 = vadd.f32 %v9092, %v9480
      %v9515 = vadd.f32 %v9093, %v9483
      %v9516 = vld [vmem:[#allocation2 + $0x18] sm:$0xf0]
      %s9517 = scalar_lea.vmem %s4, 448
      %v9518 = vld [vmem:[%s9517] sm:$0xf]
      %v9519 = vld [vmem:[%s9517 + $0x4] sm:$0xf]
      %v9520 = vld [vmem:[%s9517 + $0x8] sm:$0xf]
      %v9521 = vld [vmem:[%s9517 + $0xc] sm:$0xf]
      %v9522 = vld [vmem:[%s9517 + $0x10] sm:$0xf]
      %v9523 = vld [vmem:[%s9517 + $0x14] sm:$0xf]
      %v9524 = vld [vmem:[%s9517 + $0x18] sm:$0xf]
      %v9525 = vld [vmem:[%s9517 + $0x1c] sm:$0xf]
      %v9526 = vld [vmem:[%s9517 + $0x20] sm:$0xf]
      %v9527 = vld [vmem:[%s9517 + $0x24] sm:$0xf]
      %v9528 = vld [vmem:[%s9517 + $0x28] sm:$0xf]
      %v9529 = vld [vmem:[%s9517 + $0x2c] sm:$0xf]
      %v9530 = vld [vmem:[%s9517 + $0x30] sm:$0xf]
      %v9531 = vld [vmem:[%s9517 + $0x34] sm:$0xf]
      %v9532 = vld [vmem:[%s9517 + $0x38] sm:$0xf]
      %v9533 = vld [vmem:[%s9517 + $0x3c] sm:$0xf]
      %v9550 = vrot.slane %v9516, 4
      %v9551 = vrot.slane %v9095, 4
      %v9552 = vsel %vm7094, %v9550, %v9551
      %v9553 = vrot.slane %v9096, 4
      %v9554 = vsel %vm7094, %v9551, %v9553
      %v9555 = vrot.slane %v9097, 4
      %v9556 = vsel %vm7094, %v9553, %v9555
      %v9557 = vrot.slane %v9098, 4
      %v9558 = vsel %vm7094, %v9555, %v9557
      %v9559 = vrot.slane %v9099, 4
      %v9560 = vsel %vm7094, %v9557, %v9559
      %v9561 = vrot.slane %v9100, 4
      %v9562 = vsel %vm7094, %v9559, %v9561
      %v9563 = vrot.slane %v9101, 4
      %v9564 = vsel %vm7094, %v9561, %v9563
      %v9565 = vrot.slane %v9102, 4
      %v9566 = vsel %vm7094, %v9563, %v9565
      %v9567 = vrot.slane %v9103, 4
      %v9568 = vsel %vm7094, %v9565, %v9567
      %v9569 = vrot.slane %v9104, 4
      %v9570 = vsel %vm7094, %v9567, %v9569
      %v9571 = vrot.slane %v9105, 4
      %v9572 = vsel %vm7094, %v9569, %v9571
      %v9573 = vrot.slane %v9106, 4
      %v9574 = vsel %vm7094, %v9571, %v9573
      %v9575 = vrot.slane %v9107, 4
      %v9576 = vsel %vm7094, %v9573, %v9575
      %v9577 = vrot.slane %v9108, 4
      %v9578 = vsel %vm7094, %v9575, %v9577
      %v9579 = vrot.slane %v9109, 4
      %v9580 = vsel %vm7094, %v9577, %v9579
      %v9612 = vunpack.c.l.b16 %v9518
      %v9613 = vunpack.c.l.b16 %v9519
      %v9614 = vunpack.c.l.b16 %v9520
      %v9615 = vunpack.c.l.b16 %v9521
      %v9616 = vunpack.c.l.b16 %v9522
      %v9617 = vunpack.c.l.b16 %v9523
      %v9618 = vunpack.c.l.b16 %v9524
      %v9619 = vunpack.c.l.b16 %v9525
      %v9620 = vunpack.c.l.b16 %v9526
      %v9621 = vunpack.c.l.b16 %v9527
      %v9622 = vunpack.c.l.b16 %v9528
      %v9623 = vunpack.c.l.b16 %v9529
      %v9624 = vunpack.c.l.b16 %v9530
      %v9625 = vunpack.c.l.b16 %v9531
      %v9626 = vunpack.c.l.b16 %v9532
      %v9627 = vunpack.c.l.b16 %v9533
      %v9628 = vpack.c.b16 %v9613, %v9612
      %v9629 = vpack.c.b16 %v9615, %v9614
      %v9630 = vpack.c.b16 %v9617, %v9616
      %v9631 = vpack.c.b16 %v9619, %v9618
      %v9632 = vpack.c.b16 %v9621, %v9620
      %v9633 = vpack.c.b16 %v9623, %v9622
      %v9634 = vpack.c.b16 %v9625, %v9624
      %v9635 = vpack.c.b16 %v9627, %v9626
      %9644 = vmatprep.subr.bf16.mxu0 0
      %9645 = vmatpush1.bf16.msra.mxu0 %v9628
      %9646 = vmatprep.subr.bf16.mxu0 0
      %9647 = vmatpush1.bf16.msra.mxu0 %v9629
      %9648 = vmatprep.subr.bf16.mxu0 0
      %9649 = vmatpush1.bf16.msra.mxu0 %v9630
      %9650 = vmatprep.subr.bf16.mxu0 0
      %9651 = vmatpush1.bf16.msra.mxu0 %v9631
      %9652 = vmatprep.subr.bf16.mxu0 0
      %9653 = vmatpush1.bf16.msra.mxu0 %v9632
      %9654 = vmatprep.subr.bf16.mxu0 0
      %9655 = vmatpush1.bf16.msra.mxu0 %v9633
      %9656 = vmatprep.subr.bf16.mxu0 0
      %9657 = vmatpush1.bf16.msra.mxu0 %v9634
      %9658 = vmatprep.subr.bf16.mxu0 0
      %9659 = vmatpush1.bf16.msra.mxu0 %v9635
      %9660 = vmatprep.subr.bf16.mxu0 0
      %9661 = vmatpush1.bf16.msra.mxu0 0
      %9662 = vmatprep.subr.bf16.mxu0 0
      %9663 = vmatpush1.bf16.msra.mxu0 0
      %9664 = vmatprep.subr.bf16.mxu0 0
      %9665 = vmatpush1.bf16.msra.mxu0 0
      %9666 = vmatprep.subr.bf16.mxu0 0
      %9667 = vmatpush1.bf16.msra.mxu0 0
      %9668 = vmatprep.subr.bf16.mxu0 0
      %9669 = vmatpush1.bf16.msra.mxu0 0
      %9670 = vmatprep.subr.bf16.mxu0 0
      %9671 = vmatpush1.bf16.msra.mxu0 0
      %9672 = vmatprep.subr.bf16.mxu0 0
      %9673 = vmatpush1.bf16.msra.mxu0 0
      %9674 = vmatprep.subr.bf16.mxu0 0
      %9675 = vmatpush1.bf16.msra.mxu0 0
      %9676 = vmatprep.mubr.bf16.mxu0 0
      %9677 = vmatmul.mubr.bf16.gmra.mrb[0].mxu0 %v9552
      %v9678 = vpop.f32.mrb[0].mxu0
      %v9679 = vadd.f32 0.0, %v9678
      %v9680 = vpop.f32.mrb[0].mxu0
      %v9681 = vpop.f32.mrb[0].mxu0
      %v9682 = vadd.f32 0.0, %v9681
      %v9683 = vpop.f32.mrb[0].mxu0
      %9684 = vmatprep.mubr.bf16.mxu0 0
      %9685 = vmatmul.mubr.bf16.gmra.mrb[0].mxu0 %v9554
      %v9686 = vpop.f32.mrb[0].mxu0
      %v9687 = vadd.f32 0.0, %v9686
      %v9688 = vpop.f32.mrb[0].mxu0
      %v9689 = vpop.f32.mrb[0].mxu0
      %v9690 = vadd.f32 0.0, %v9689
      %v9691 = vpop.f32.mrb[0].mxu0
      %9692 = vmatprep.mubr.bf16.mxu0 0
      %9693 = vmatmul.mubr.bf16.gmra.mrb[0].mxu0 %v9556
      %v9694 = vpop.f32.mrb[0].mxu0
      %v9695 = vadd.f32 0.0, %v9694
      %v9696 = vpop.f32.mrb[0].mxu0
      %v9697 = vpop.f32.mrb[0].mxu0
      %v9698 = vadd.f32 0.0, %v9697
      %v9699 = vpop.f32.mrb[0].mxu0
      %9700 = vmatprep.mubr.bf16.mxu0 0
      %9701 = vmatmul.mubr.bf16.gmra.mrb[0].mxu0 %v9558
      %v9702 = vpop.f32.mrb[0].mxu0
      %v9703 = vadd.f32 0.0, %v9702
      %v9704 = vpop.f32.mrb[0].mxu0
      %v9705 = vpop.f32.mrb[0].mxu0
      %v9706 = vadd.f32 0.0, %v9705
      %v9707 = vpop.f32.mrb[0].mxu0
      %9708 = vmatprep.mubr.bf16.mxu0 0
      %9709 = vmatmul.mubr.bf16.gmra.mrb[0].mxu0 %v9560
      %v9710 = vpop.f32.mrb[0].mxu0
      %v9711 = vadd.f32 0.0, %v9710
      %v9712 = vpop.f32.mrb[0].mxu0
      %v9713 = vpop.f32.mrb[0].mxu0
      %v9714 = vadd.f32 0.0, %v9713
      %v9715 = vpop.f32.mrb[0].mxu0
      %9716 = vmatprep.mubr.bf16.mxu0 0
      %9717 = vmatmul.mubr.bf16.gmra.mrb[0].mxu0 %v9562
      %v9718 = vpop.f32.mrb[0].mxu0
      %v9719 = vadd.f32 0.0, %v9718
      %v9720 = vpop.f32.mrb[0].mxu0
      %v9721 = vpop.f32.mrb[0].mxu0
      %v9722 = vadd.f32 0.0, %v9721
      %v9723 = vpop.f32.mrb[0].mxu0
      %9724 = vmatprep.mubr.bf16.mxu0 0
      %9725 = vmatmul.mubr.bf16.gmra.mrb[0].mxu0 %v9564
      %v9726 = vpop.f32.mrb[0].mxu0
      %v9727 = vadd.f32 0.0, %v9726
      %v9728 = vpop.f32.mrb[0].mxu0
      %v9729 = vpop.f32.mrb[0].mxu0
      %v9730 = vadd.f32 0.0, %v9729
      %v9731 = vpop.f32.mrb[0].mxu0
      %9732 = vmatprep.mubr.bf16.mxu0 0
      %9733 = vmatmul.mubr.bf16.gmra.mrb[0].mxu0 %v9566
      %v9734 = vpop.f32.mrb[0].mxu0
      %v9735 = vadd.f32 0.0, %v9734
      %v9736 = vpop.f32.mrb[0].mxu0
      %v9737 = vpop.f32.mrb[0].mxu0
      %v9738 = vadd.f32 0.0, %v9737
      %v9739 = vpop.f32.mrb[0].mxu0
      %9740 = vmatprep.mubr.bf16.mxu0 0
      %9741 = vmatmul.mubr.bf16.gmra.mrb[0].mxu0 %v9568
      %v9742 = vpop.f32.mrb[0].mxu0
      %v9743 = vadd.f32 0.0, %v9742
      %v9744 = vpop.f32.mrb[0].mxu0
      %v9745 = vpop.f32.mrb[0].mxu0
      %v9746 = vadd.f32 0.0, %v9745
      %v9747 = vpop.f32.mrb[0].mxu0
      %9748 = vmatprep.mubr.bf16.mxu0 0
      %9749 = vmatmul.mubr.bf16.gmra.mrb[0].mxu0 %v9570
      %v9750 = vpop.f32.mrb[0].mxu0
      %v9751 = vadd.f32 0.0, %v9750
      %v9752 = vpop.f32.mrb[0].mxu0
      %v9753 = vpop.f32.mrb[0].mxu0
      %v9754 = vadd.f32 0.0, %v9753
      %v9755 = vpop.f32.mrb[0].mxu0
      %9756 = vmatprep.mubr.bf16.mxu0 0
      %9757 = vmatmul.mubr.bf16.gmra.mrb[0].mxu0 %v9572
      %v9758 = vpop.f32.mrb[0].mxu0
      %v9759 = vadd.f32 0.0, %v9758
      %v9760 = vpop.f32.mrb[0].mxu0
      %v9761 = vpop.f32.mrb[0].mxu0
      %v9762 = vadd.f32 0.0, %v9761
      %v9763 = vpop.f32.mrb[0].mxu0
      %9764 = vmatprep.mubr.bf16.mxu0 0
      %9765 = vmatmul.mubr.bf16.gmra.mrb[0].mxu0 %v9574
      %v9766 = vpop.f32.mrb[0].mxu0
      %v9767 = vadd.f32 0.0, %v9766
      %v9768 = vpop.f32.mrb[0].mxu0
      %v9769 = vpop.f32.mrb[0].mxu0
      %v9770 = vadd.f32 0.0, %v9769
      %v9771 = vpop.f32.mrb[0].mxu0
      %9772 = vmatprep.mubr.bf16.mxu0 0
      %9773 = vmatmul.mubr.bf16.gmra.mrb[0].mxu0 %v9576
      %v9774 = vpop.f32.mrb[0].mxu0
      %v9775 = vadd.f32 0.0, %v9774
      %v9776 = vpop.f32.mrb[0].mxu0
      %v9777 = vpop.f32.mrb[0].mxu0
      %v9778 = vadd.f32 0.0, %v9777
      %v9779 = vpop.f32.mrb[0].mxu0
      %9780 = vmatprep.mubr.bf16.mxu0 0
      %9781 = vmatmul.mubr.bf16.gmra.mrb[0].mxu0 %v9578
      %v9782 = vpop.f32.mrb[0].mxu0
      %v9783 = vadd.f32 0.0, %v9782
      %v9784 = vpop.f32.mrb[0].mxu0
      %v9785 = vpop.f32.mrb[0].mxu0
      %v9786 = vadd.f32 0.0, %v9785
      %v9787 = vpop.f32.mrb[0].mxu0
      %9788 = vmatprep.mubr.bf16.mxu0 0
      %9789 = vmatmul.mubr.bf16.gmra.mrb[0].mxu0 %v9580
      %v9790 = vpop.f32.mrb[0].mxu0
      %v9791 = vadd.f32 0.0, %v9790
      %v9792 = vpop.f32.mrb[0].mxu0
      %v9793 = vpop.f32.mrb[0].mxu0
      %v9794 = vadd.f32 0.0, %v9793
      %v9795 = vpop.f32.mrb[0].mxu0
      %9796 = vdwg.mxu0
      %v9797 = vadd.f32 %v9486, %v9679
      %v9798 = vadd.f32 %v9487, %v9682
      %v9799 = vadd.f32 %v9488, %v9687
      %v9800 = vadd.f32 %v9489, %v9690
      %v9801 = vadd.f32 %v9490, %v9695
      %v9802 = vadd.f32 %v9491, %v9698
      %v9803 = vadd.f32 %v9492, %v9703
      %v9804 = vadd.f32 %v9493, %v9706
      %v9805 = vadd.f32 %v9494, %v9711
      %v9806 = vadd.f32 %v9495, %v9714
      %v9807 = vadd.f32 %v9496, %v9719
      %v9808 = vadd.f32 %v9497, %v9722
      %v9809 = vadd.f32 %v9498, %v9727
      %v9810 = vadd.f32 %v9499, %v9730
      %v9811 = vadd.f32 %v9500, %v9735
      %v9812 = vadd.f32 %v9501, %v9738
      %v9813 = vadd.f32 %v9502, %v9743
      %v9814 = vadd.f32 %v9503, %v9746
      %v9815 = vadd.f32 %v9504, %v9751
      %v9816 = vadd.f32 %v9505, %v9754
      %v9817 = vadd.f32 %v9506, %v9759
      %v9818 = vadd.f32 %v9507, %v9762
      %v9819 = vadd.f32 %v9508, %v9767
      %v9820 = vadd.f32 %v9509, %v9770
      %v9821 = vadd.f32 %v9510, %v9775
      %v9822 = vadd.f32 %v9511, %v9778
      %v9823 = vadd.f32 %v9512, %v9783
      %v9824 = vadd.f32 %v9513, %v9786
      %v9825 = vadd.f32 %v9514, %v9791
      %v9826 = vadd.f32 %v9515, %v9794
      %v9827 = vld [vmem:[#allocation2 + $0x90] sm:$0x1f]
      %s9828 = scalar_lea.vmem %s4, 512
      %v9829 = vld [vmem:[%s9828] sm:$0xf]
      %v9830 = vld [vmem:[%s9828 + $0x4] sm:$0xf]
      %v9831 = vld [vmem:[%s9828 + $0x8] sm:$0xf]
      %v9832 = vld [vmem:[%s9828 + $0xc] sm:$0xf]
      %v9833 = vld [vmem:[%s9828 + $0x10] sm:$0xf]
      %v9834 = vld [vmem:[%s9828 + $0x14] sm:$0xf]
      %v9835 = vld [vmem:[%s9828 + $0x18] sm:$0xf]
      %v9836 = vld [vmem:[%s9828 + $0x1c] sm:$0xf]
      %v9837 = vld [vmem:[%s9828 + $0x20] sm:$0xf]
      %v9838 = vld [vmem:[%s9828 + $0x24] sm:$0xf]
      %v9839 = vld [vmem:[%s9828 + $0x28] sm:$0xf]
      %v9840 = vld [vmem:[%s9828 + $0x2c] sm:$0xf]
      %v9841 = vld [vmem:[%s9828 + $0x30] sm:$0xf]
      %v9842 = vld [vmem:[%s9828 + $0x34] sm:$0xf]
      %v9843 = vld [vmem:[%s9828 + $0x38] sm:$0xf]
      %v9844 = vld [vmem:[%s9828 + $0x3c] sm:$0xf]
      %v9846 = vshrl.u32 %v9516, 16
      %v9848 = vrot.slane %v9846, 4
      %v9849 = vshll.u32 %v9516, 16
      %v9851 = vrot.slane %v9849, 5
      %v9852 = vor.u32 %v9848, %v9851
      %v9853 = vrot.slane %v9136, 4
      %v9854 = vrot.slane %v9139, 5
      %v9855 = vor.u32 %v9853, %v9854
      %v9856 = vsel %vm7719, %v9852, %v9855
      %v9857 = vrot.slane %v9145, 4
      %v9858 = vrot.slane %v9148, 5
      %v9859 = vor.u32 %v9857, %v9858
      %v9860 = vsel %vm7719, %v9855, %v9859
      %v9861 = vrot.slane %v9154, 4
      %v9862 = vrot.slane %v9157, 5
      %v9863 = vor.u32 %v9861, %v9862
      %v9864 = vsel %vm7719, %v9859, %v9863
      %v9865 = vrot.slane %v9163, 4
      %v9866 = vrot.slane %v9166, 5
      %v9867 = vor.u32 %v9865, %v9866
      %v9868 = vsel %vm7719, %v9863, %v9867
      %v9869 = vrot.slane %v9172, 4
      %v9870 = vrot.slane %v9175, 5
      %v9871 = vor.u32 %v9869, %v9870
      %v9872 = vsel %vm7719, %v9867, %v9871
      %v9873 = vrot.slane %v9181, 4
      %v9874 = vrot.slane %v9184, 5
      %v9875 = vor.u32 %v9873, %v9874
      %v9876 = vsel %vm7719, %v9871, %v9875
      %v9877 = vrot.slane %v9190, 4
      %v9878 = vrot.slane %v9193, 5
      %v9879 = vor.u32 %v9877, %v9878
      %v9880 = vsel %vm7719, %v9875, %v9879
      %v9881 = vrot.slane %v9199, 4
      %v9882 = vrot.slane %v9202, 5
      %v9883 = vor.u32 %v9881, %v9882
      %v9884 = vsel %vm7719, %v9879, %v9883
      %v9885 = vrot.slane %v9208, 4
      %v9886 = vrot.slane %v9211, 5
      %v9887 = vor.u32 %v9885, %v9886
      %v9888 = vsel %vm7719, %v9883, %v9887
      %v9889 = vrot.slane %v9217, 4
      %v9890 = vrot.slane %v9220, 5
      %v9891 = vor.u32 %v9889, %v9890
      %v9892 = vsel %vm7719, %v9887, %v9891
      %v9893 = vrot.slane %v9226, 4
      %v9894 = vrot.slane %v9229, 5
      %v9895 = vor.u32 %v9893, %v9894
      %v9896 = vsel %vm7719, %v9891, %v9895
      %v9897 = vrot.slane %v9235, 4
      %v9898 = vrot.slane %v9238, 5
      %v9899 = vor.u32 %v9897, %v9898
      %v9900 = vsel %vm7719, %v9895, %v9899
      %v9901 = vrot.slane %v9244, 4
      %v9902 = vrot.slane %v9247, 5
      %v9903 = vor.u32 %v9901, %v9902
      %v9904 = vsel %vm7719, %v9899, %v9903
      %v9905 = vrot.slane %v9253, 4
      %v9906 = vrot.slane %v9256, 5
      %v9907 = vor.u32 %v9905, %v9906
      %v9908 = vsel %vm7719, %v9903, %v9907
      %v9910 = vshrl.u32 %v9827, 16
      %v9912 = vrot.slane %v9910, 4
      %v9913 = vshll.u32 %v9827, 16
      %v9915 = vrot.slane %v9913, 5
      %v9916 = vor.u32 %v9912, %v9915
      %v9917 = vsel %vm7719, %v9907, %v9916
      %v9949 = vunpack.c.l.b16 %v9829
      %v9950 = vunpack.c.l.b16 %v9830
      %v9951 = vunpack.c.l.b16 %v9831
      %v9952 = vunpack.c.l.b16 %v9832
      %v9953 = vunpack.c.l.b16 %v9833
      %v9954 = vunpack.c.l.b16 %v9834
      %v9955 = vunpack.c.l.b16 %v9835
      %v9956 = vunpack.c.l.b16 %v9836
      %v9957 = vunpack.c.l.b16 %v9837
      %v9958 = vunpack.c.l.b16 %v9838
      %v9959 = vunpack.c.l.b16 %v9839
      %v9960 = vunpack.c.l.b16 %v9840
      %v9961 = vunpack.c.l.b16 %v9841
      %v9962 = vunpack.c.l.b16 %v9842
      %v9963 = vunpack.c.l.b16 %v9843
      %v9964 = vunpack.c.l.b16 %v9844
      %v9965 = vpack.c.b16 %v9950, %v9949
      %v9966 = vpack.c.b16 %v9952, %v9951
      %v9967 = vpack.c.b16 %v9954, %v9953
      %v9968 = vpack.c.b16 %v9956, %v9955
      %v9969 = vpack.c.b16 %v9958, %v9957
      %v9970 = vpack.c.b16 %v9960, %v9959
      %v9971 = vpack.c.b16 %v9962, %v9961
      %v9972 = vpack.c.b16 %v9964, %v9963
      %9981 = vmatprep.subr.bf16.mxu0 0
      %9982 = vmatpush1.bf16.msra.mxu0 %v9965
      %9983 = vmatprep.subr.bf16.mxu0 0
      %9984 = vmatpush1.bf16.msra.mxu0 %v9966
      %9985 = vmatprep.subr.bf16.mxu0 0
      %9986 = vmatpush1.bf16.msra.mxu0 %v9967
      %9987 = vmatprep.subr.bf16.mxu0 0
      %9988 = vmatpush1.bf16.msra.mxu0 %v9968
      %9989 = vmatprep.subr.bf16.mxu0 0
      %9990 = vmatpush1.bf16.msra.mxu0 %v9969
      %9991 = vmatprep.subr.bf16.mxu0 0
      %9992 = vmatpush1.bf16.msra.mxu0 %v9970
      %9993 = vmatprep.subr.bf16.mxu0 0
      %9994 = vmatpush1.bf16.msra.mxu0 %v9971
      %9995 = vmatprep.subr.bf16.mxu0 0
      %9996 = vmatpush1.bf16.msra.mxu0 %v9972
      %9997 = vmatprep.subr.bf16.mxu0 0
      %9998 = vmatpush1.bf16.msra.mxu0 0
      %9999 = vmatprep.subr.bf16.mxu0 0
      %10000 = vmatpush1.bf16.msra.mxu0 0
      %10001 = vmatprep.subr.bf16.mxu0 0
      %10002 = vmatpush1.bf16.msra.mxu0 0
      %10003 = vmatprep.subr.bf16.mxu0 0
      %10004 = vmatpush1.bf16.msra.mxu0 0
      %10005 = vmatprep.subr.bf16.mxu0 0
      %10006 = vmatpush1.bf16.msra.mxu0 0
      %10007 = vmatprep.subr.bf16.mxu0 0
      %10008 = vmatpush1.bf16.msra.mxu0 0
      %10009 = vmatprep.subr.bf16.mxu0 0
      %10010 = vmatpush1.bf16.msra.mxu0 0
      %10011 = vmatprep.subr.bf16.mxu0 0
      %10012 = vmatpush1.bf16.msra.mxu0 0
      %10013 = vmatprep.mubr.bf16.mxu0 0
      %10014 = vmatmul.mubr.bf16.gmra.mrb[0].mxu0 %v9856
      %v10015 = vpop.f32.mrb[0].mxu0
      %v10016 = vadd.f32 0.0, %v10015
      %v10017 = vpop.f32.mrb[0].mxu0
      %v10018 = vpop.f32.mrb[0].mxu0
      %v10019 = vadd.f32 0.0, %v10018
      %v10020 = vpop.f32.mrb[0].mxu0
      %10021 = vmatprep.mubr.bf16.mxu0 0
      %10022 = vmatmul.mubr.bf16.gmra.mrb[0].mxu0 %v9860
      %v10023 = vpop.f32.mrb[0].mxu0
      %v10024 = vadd.f32 0.0, %v10023
      %v10025 = vpop.f32.mrb[0].mxu0
      %v10026 = vpop.f32.mrb[0].mxu0
      %v10027 = vadd.f32 0.0, %v10026
      %v10028 = vpop.f32.mrb[0].mxu0
      %10029 = vmatprep.mubr.bf16.mxu0 0
      %10030 = vmatmul.mubr.bf16.gmra.mrb[0].mxu0 %v9864
      %v10031 = vpop.f32.mrb[0].mxu0
      %v10032 = vadd.f32 0.0, %v10031
      %v10033 = vpop.f32.mrb[0].mxu0
      %v10034 = vpop.f32.mrb[0].mxu0
      %v10035 = vadd.f32 0.0, %v10034
      %v10036 = vpop.f32.mrb[0].mxu0
      %10037 = vmatprep.mubr.bf16.mxu0 0
      %10038 = vmatmul.mubr.bf16.gmra.mrb[0].mxu0 %v9868
      %v10039 = vpop.f32.mrb[0].mxu0
      %v10040 = vadd.f32 0.0, %v10039
      %v10041 = vpop.f32.mrb[0].mxu0
      %v10042 = vpop.f32.mrb[0].mxu0
      %v10043 = vadd.f32 0.0, %v10042
      %v10044 = vpop.f32.mrb[0].mxu0
      %10045 = vmatprep.mubr.bf16.mxu0 0
      %10046 = vmatmul.mubr.bf16.gmra.mrb[0].mxu0 %v9872
      %v10047 = vpop.f32.mrb[0].mxu0
      %v10048 = vadd.f32 0.0, %v10047
      %v10049 = vpop.f32.mrb[0].mxu0
      %v10050 = vpop.f32.mrb[0].mxu0
      %v10051 = vadd.f32 0.0, %v10050
      %v10052 = vpop.f32.mrb[0].mxu0
      %10053 = vmatprep.mubr.bf16.mxu0 0
      %10054 = vmatmul.mubr.bf16.gmra.mrb[0].mxu0 %v9876
      %v10055 = vpop.f32.mrb[0].mxu0
      %v10056 = vadd.f32 0.0, %v10055
      %v10057 = vpop.f32.mrb[0].mxu0
      %v10058 = vpop.f32.mrb[0].mxu0
      %v10059 = vadd.f32 0.0, %v10058
      %v10060 = vpop.f32.mrb[0].mxu0
      %10061 = vmatprep.mubr.bf16.mxu0 0
      %10062 = vmatmul.mubr.bf16.gmra.mrb[0].mxu0 %v9880
      %v10063 = vpop.f32.mrb[0].mxu0
      %v10064 = vadd.f32 0.0, %v10063
      %v10065 = vpop.f32.mrb[0].mxu0
      %v10066 = vpop.f32.mrb[0].mxu0
      %v10067 = vadd.f32 0.0, %v10066
      %v10068 = vpop.f32.mrb[0].mxu0
      %10069 = vmatprep.mubr.bf16.mxu0 0
      %10070 = vmatmul.mubr.bf16.gmra.mrb[0].mxu0 %v9884
      %v10071 = vpop.f32.mrb[0].mxu0
      %v10072 = vadd.f32 0.0, %v10071
      %v10073 = vpop.f32.mrb[0].mxu0
      %v10074 = vpop.f32.mrb[0].mxu0
      %v10075 = vadd.f32 0.0, %v10074
      %v10076 = vpop.f32.mrb[0].mxu0
      %10077 = vmatprep.mubr.bf16.mxu0 0
      %10078 = vmatmul.mubr.bf16.gmra.mrb[0].mxu0 %v9888
      %v10079 = vpop.f32.mrb[0].mxu0
      %v10080 = vadd.f32 0.0, %v10079
      %v10081 = vpop.f32.mrb[0].mxu0
      %v10082 = vpop.f32.mrb[0].mxu0
      %v10083 = vadd.f32 0.0, %v10082
      %v10084 = vpop.f32.mrb[0].mxu0
      %10085 = vmatprep.mubr.bf16.mxu0 0
      %10086 = vmatmul.mubr.bf16.gmra.mrb[0].mxu0 %v9892
      %v10087 = vpop.f32.mrb[0].mxu0
      %v10088 = vadd.f32 0.0, %v10087
      %v10089 = vpop.f32.mrb[0].mxu0
      %v10090 = vpop.f32.mrb[0].mxu0
      %v10091 = vadd.f32 0.0, %v10090
      %v10092 = vpop.f32.mrb[0].mxu0
      %10093 = vmatprep.mubr.bf16.mxu0 0
      %10094 = vmatmul.mubr.bf16.gmra.mrb[0].mxu0 %v9896
      %v10095 = vpop.f32.mrb[0].mxu0
      %v10096 = vadd.f32 0.0, %v10095
      %v10097 = vpop.f32.mrb[0].mxu0
      %v10098 = vpop.f32.mrb[0].mxu0
      %v10099 = vadd.f32 0.0, %v10098
      %v10100 = vpop.f32.mrb[0].mxu0
      %10101 = vmatprep.mubr.bf16.mxu0 0
      %10102 = vmatmul.mubr.bf16.gmra.mrb[0].mxu0 %v9900
      %v10103 = vpop.f32.mrb[0].mxu0
      %v10104 = vadd.f32 0.0, %v10103
      %v10105 = vpop.f32.mrb[0].mxu0
      %v10106 = vpop.f32.mrb[0].mxu0
      %v10107 = vadd.f32 0.0, %v10106
      %v10108 = vpop.f32.mrb[0].mxu0
      %10109 = vmatprep.mubr.bf16.mxu0 0
      %10110 = vmatmul.mubr.bf16.gmra.mrb[0].mxu0 %v9904
      %v10111 = vpop.f32.mrb[0].mxu0
      %v10112 = vadd.f32 0.0, %v10111
      %v10113 = vpop.f32.mrb[0].mxu0
      %v10114 = vpop.f32.mrb[0].mxu0
      %v10115 = vadd.f32 0.0, %v10114
      %v10116 = vpop.f32.mrb[0].mxu0
      %10117 = vmatprep.mubr.bf16.mxu0 0
      %10118 = vmatmul.mubr.bf16.gmra.mrb[0].mxu0 %v9908
      %v10119 = vpop.f32.mrb[0].mxu0
      %v10120 = vadd.f32 0.0, %v10119
      %v10121 = vpop.f32.mrb[0].mxu0
      %v10122 = vpop.f32.mrb[0].mxu0
      %v10123 = vadd.f32 0.0, %v10122
      %v10124 = vpop.f32.mrb[0].mxu0
      %10125 = vmatprep.mubr.bf16.mxu0 0
      %10126 = vmatmul.mubr.bf16.gmra.mrb[0].mxu0 %v9917
      %v10127 = vpop.f32.mrb[0].mxu0
      %v10128 = vadd.f32 0.0, %v10127
      %v10129 = vpop.f32.mrb[0].mxu0
      %v10130 = vpop.f32.mrb[0].mxu0
      %v10131 = vadd.f32 0.0, %v10130
      %v10132 = vpop.f32.mrb[0].mxu0
      %10133 = vdwg.mxu0
      %v10134 = vadd.f32 %v9797, %v10016
      %v10135 = vadd.f32 %v9798, %v10019
      %v10136 = vadd.f32 %v9799, %v10024
      %v10137 = vadd.f32 %v9800, %v10027
      %v10138 = vadd.f32 %v9801, %v10032
      %v10139 = vadd.f32 %v9802, %v10035
      %v10140 = vadd.f32 %v9803, %v10040
      %v10141 = vadd.f32 %v9804, %v10043
      %v10142 = vadd.f32 %v9805, %v10048
      %v10143 = vadd.f32 %v9806, %v10051
      %v10144 = vadd.f32 %v9807, %v10056
      %v10145 = vadd.f32 %v9808, %v10059
      %v10146 = vadd.f32 %v9809, %v10064
      %v10147 = vadd.f32 %v9810, %v10067
      %v10148 = vadd.f32 %v9811, %v10072
      %v10149 = vadd.f32 %v9812, %v10075
      %v10150 = vadd.f32 %v9813, %v10080
      %v10151 = vadd.f32 %v9814, %v10083
      %v10152 = vadd.f32 %v9815, %v10088
      %v10153 = vadd.f32 %v9816, %v10091
      %v10154 = vadd.f32 %v9817, %v10096
      %v10155 = vadd.f32 %v9818, %v10099
      %v10156 = vadd.f32 %v9819, %v10104
      %v10157 = vadd.f32 %v9820, %v10107
      %v10158 = vadd.f32 %v9821, %v10112
      %v10159 = vadd.f32 %v9822, %v10115
      %v10160 = vadd.f32 %v9823, %v10120
      %v10161 = vadd.f32 %v9824, %v10123
      %v10162 = vadd.f32 %v9825, %v10128
      %v10163 = vadd.f32 %v9826, %v10131
      %v10165 = vlaneseq
      %v10166 = vshrl.u32 %v10165, 7
      %v10167 = vsub.s32 0, %v10166
      %v10168 = vrot.slane %v299, %v10167
      %v10170 = vmul.f32 %v10134, %v10168
      %v10171 = vmul.f32 %v10135, %v10168
      %v10172 = vmul.f32 %v10136, %v10168
      %v10173 = vmul.f32 %v10137, %v10168
      %v10174 = vmul.f32 %v10138, %v10168
      %v10175 = vmul.f32 %v10139, %v10168
      %v10176 = vmul.f32 %v10140, %v10168
      %v10177 = vmul.f32 %v10141, %v10168
      %v10178 = vmul.f32 %v10142, %v10168
      %v10179 = vmul.f32 %v10143, %v10168
      %v10180 = vmul.f32 %v10144, %v10168
      %v10181 = vmul.f32 %v10145, %v10168
      %v10182 = vmul.f32 %v10146, %v10168
      %v10183 = vmul.f32 %v10147, %v10168
      %v10184 = vmul.f32 %v10148, %v10168
      %v10185 = vmul.f32 %v10149, %v10168
      %v10186 = vmul.f32 %v10150, %v10168
      %v10187 = vmul.f32 %v10151, %v10168
      %v10188 = vmul.f32 %v10152, %v10168
      %v10189 = vmul.f32 %v10153, %v10168
      %v10190 = vmul.f32 %v10154, %v10168
      %v10191 = vmul.f32 %v10155, %v10168
      %v10192 = vmul.f32 %v10156, %v10168
      %v10193 = vmul.f32 %v10157, %v10168
      %v10194 = vmul.f32 %v10158, %v10168
      %v10195 = vmul.f32 %v10159, %v10168
      %v10196 = vmul.f32 %v10160, %v10168
      %v10197 = vmul.f32 %v10161, %v10168
      %v10198 = vmul.f32 %v10162, %v10168
      %v10199 = vmul.f32 %v10163, %v10168
      %v10201 = vlaneseq
      %v10202 = vshrl.u32 %v10201, 7
      %v10203 = vsub.s32 0, %v10202
      %v10204 = vrot.slane %v300, %v10203
      %v10206 = vadd.f32 %v10170, %v10204
      %v10207 = vadd.f32 %v10171, %v10204
      %v10208 = vadd.f32 %v10172, %v10204
      %v10209 = vadd.f32 %v10173, %v10204
      %v10210 = vadd.f32 %v10174, %v10204
      %v10211 = vadd.f32 %v10175, %v10204
      %v10212 = vadd.f32 %v10176, %v10204
      %v10213 = vadd.f32 %v10177, %v10204
      %v10214 = vadd.f32 %v10178, %v10204
      %v10215 = vadd.f32 %v10179, %v10204
      %v10216 = vadd.f32 %v10180, %v10204
      %v10217 = vadd.f32 %v10181, %v10204
      %v10218 = vadd.f32 %v10182, %v10204
      %v10219 = vadd.f32 %v10183, %v10204
      %v10220 = vadd.f32 %v10184, %v10204
      %v10221 = vadd.f32 %v10185, %v10204
      %v10222 = vadd.f32 %v10186, %v10204
      %v10223 = vadd.f32 %v10187, %v10204
      %v10224 = vadd.f32 %v10188, %v10204
      %v10225 = vadd.f32 %v10189, %v10204
      %v10226 = vadd.f32 %v10190, %v10204
      %v10227 = vadd.f32 %v10191, %v10204
      %v10228 = vadd.f32 %v10192, %v10204
      %v10229 = vadd.f32 %v10193, %v10204
      %v10230 = vadd.f32 %v10194, %v10204
      %v10231 = vadd.f32 %v10195, %v10204
      %v10232 = vadd.f32 %v10196, %v10204
      %v10233 = vadd.f32 %v10197, %v10204
      %v10234 = vadd.f32 %v10198, %v10204
      %v10235 = vadd.f32 %v10199, %v10204
      %v10236 = vmax.f32 %v10206, 0.0
      %v10237 = vmax.f32 %v10207, 0.0
      %v10238 = vmax.f32 %v10208, 0.0
      %v10239 = vmax.f32 %v10209, 0.0
      %v10240 = vmax.f32 %v10210, 0.0
      %v10241 = vmax.f32 %v10211, 0.0
      %v10242 = vmax.f32 %v10212, 0.0
      %v10243 = vmax.f32 %v10213, 0.0
      %v10244 = vmax.f32 %v10214, 0.0
      %v10245 = vmax.f32 %v10215, 0.0
      %v10246 = vmax.f32 %v10216, 0.0
      %v10247 = vmax.f32 %v10217, 0.0
      %v10248 = vmax.f32 %v10218, 0.0
      %v10249 = vmax.f32 %v10219, 0.0
      %v10250 = vmax.f32 %v10220, 0.0
      %v10251 = vmax.f32 %v10221, 0.0
      %v10252 = vmax.f32 %v10222, 0.0
      %v10253 = vmax.f32 %v10223, 0.0
      %v10254 = vmax.f32 %v10224, 0.0
      %v10255 = vmax.f32 %v10225, 0.0
      %v10256 = vmax.f32 %v10226, 0.0
      %v10257 = vmax.f32 %v10227, 0.0
      %v10258 = vmax.f32 %v10228, 0.0
      %v10259 = vmax.f32 %v10229, 0.0
      %v10260 = vmax.f32 %v10230, 0.0
      %v10261 = vmax.f32 %v10231, 0.0
      %v10262 = vmax.f32 %v10232, 0.0
      %v10263 = vmax.f32 %v10233, 0.0
      %v10264 = vmax.f32 %v10234, 0.0
      %v10265 = vmax.f32 %v10235, 0.0
      %v10266 = vpack.c.bf16 %v10237, %v10236
      %v10267 = vpack.c.bf16 %v10239, %v10238
      %v10268 = vpack.c.bf16 %v10241, %v10240
      %v10269 = vpack.c.bf16 %v10243, %v10242
      %v10270 = vpack.c.bf16 %v10245, %v10244
      %v10271 = vpack.c.bf16 %v10247, %v10246
      %v10272 = vpack.c.bf16 %v10249, %v10248
      %v10273 = vpack.c.bf16 %v10251, %v10250
      %v10274 = vpack.c.bf16 %v10253, %v10252
      %v10275 = vpack.c.bf16 %v10255, %v10254
      %v10276 = vpack.c.bf16 %v10257, %v10256
      %v10277 = vpack.c.bf16 %v10259, %v10258
      %v10278 = vpack.c.bf16 %v10261, %v10260
      %v10279 = vpack.c.bf16 %v10263, %v10262
      %v10280 = vpack.c.bf16 %v10265, %v10264
      %v10296 = vunpack.c.l.b16 %v10266
      %v10297 = vunpack.c.h.b16 %v10266
      %v10298 = vunpack.c.l.b16 %v10267
      %v10299 = vunpack.c.h.b16 %v10267
      %v10300 = vunpack.c.l.b16 %v10268
      %v10301 = vunpack.c.h.b16 %v10268
      %v10302 = vunpack.c.l.b16 %v10269
      %v10303 = vunpack.c.h.b16 %v10269
      %v10304 = vunpack.c.l.b16 %v10270
      %v10305 = vunpack.c.h.b16 %v10270
      %v10306 = vunpack.c.l.b16 %v10271
      %v10307 = vunpack.c.h.b16 %v10271
      %v10308 = vunpack.c.l.b16 %v10272
      %v10309 = vunpack.c.h.b16 %v10272
      %v10310 = vunpack.c.l.b16 %v10273
      %v10311 = vunpack.c.h.b16 %v10273
      %v10312 = vunpack.c.l.b16 %v10274
      %v10313 = vunpack.c.h.b16 %v10274
      %v10314 = vunpack.c.l.b16 %v10275
      %v10315 = vunpack.c.h.b16 %v10275
      %v10316 = vunpack.c.l.b16 %v10276
      %v10317 = vunpack.c.h.b16 %v10276
      %v10318 = vunpack.c.l.b16 %v10277
      %v10319 = vunpack.c.h.b16 %v10277
      %v10320 = vunpack.c.l.b16 %v10278
      %v10321 = vunpack.c.h.b16 %v10278
      %v10322 = vunpack.c.l.b16 %v10279
      %v10323 = vunpack.c.h.b16 %v10279
      %v10324 = vunpack.c.l.b16 %v10280
      %v10325 = vunpack.c.h.b16 %v10280
      %v10326 = vpack.c.b16 %v10296, %v10296
      %v10327 = vpack.c.b16 %v10297, %v10297
      %v10328 = vpack.c.b16 %v10298, %v10298
      %v10329 = vpack.c.b16 %v10299, %v10299
      %v10330 = vpack.c.b16 %v10300, %v10300
      %v10331 = vpack.c.b16 %v10301, %v10301
      %v10332 = vpack.c.b16 %v10302, %v10302
      %v10333 = vpack.c.b16 %v10303, %v10303
      %v10334 = vpack.c.b16 %v10304, %v10304
      %v10335 = vpack.c.b16 %v10305, %v10305
      %v10336 = vpack.c.b16 %v10306, %v10306
      %v10337 = vpack.c.b16 %v10307, %v10307
      %v10338 = vpack.c.b16 %v10308, %v10308
      %v10339 = vpack.c.b16 %v10309, %v10309
      %v10340 = vpack.c.b16 %v10310, %v10310
      %v10341 = vpack.c.b16 %v10311, %v10311
      %v10342 = vpack.c.b16 %v10312, %v10312
      %v10343 = vpack.c.b16 %v10313, %v10313
      %v10344 = vpack.c.b16 %v10314, %v10314
      %v10345 = vpack.c.b16 %v10315, %v10315
      %v10346 = vpack.c.b16 %v10316, %v10316
      %v10347 = vpack.c.b16 %v10317, %v10317
      %v10348 = vpack.c.b16 %v10318, %v10318
      %v10349 = vpack.c.b16 %v10319, %v10319
      %v10350 = vpack.c.b16 %v10320, %v10320
      %v10351 = vpack.c.b16 %v10321, %v10321
      %v10352 = vpack.c.b16 %v10322, %v10322
      %v10353 = vpack.c.b16 %v10323, %v10323
      %v10354 = vpack.c.b16 %v10324, %v10324
      %v10355 = vpack.c.b16 %v10325, %v10325
      %10386 = vst [vmem:[%s278] sm:$0xf] %v10326
      %10387 = vst [vmem:[%s278 + $0x4] sm:$0xf] %v10327
      %10388 = vst [vmem:[%s278 + $0x8] sm:$0xf] %v10328
      %10389 = vst [vmem:[%s278 + $0xc] sm:$0xf] %v10329
      %10390 = vst [vmem:[%s278 + $0x10] sm:$0xf] %v10330
      %10391 = vst [vmem:[%s278 + $0x14] sm:$0xf] %v10331
      %10392 = vst [vmem:[%s278 + $0x18] sm:$0xf] %v10332
      %10393 = vst [vmem:[%s278 + $0x1c] sm:$0xf] %v10333
      %10394 = vst [vmem:[%s278 + $0x20] sm:$0xf] %v10334
      %10395 = vst [vmem:[%s278 + $0x24] sm:$0xf] %v10335
      %10396 = vst [vmem:[%s278 + $0x28] sm:$0xf] %v10336
      %10397 = vst [vmem:[%s278 + $0x2c] sm:$0xf] %v10337
      %10398 = vst [vmem:[%s278 + $0x30] sm:$0xf] %v10338
      %10399 = vst [vmem:[%s278 + $0x34] sm:$0xf] %v10339
      %10400 = vst [vmem:[%s278 + $0x38] sm:$0xf] %v10340
      %10401 = vst [vmem:[%s278 + $0x3c] sm:$0xf] %v10341
      %10402 = vst [vmem:[%s278 + $0x40] sm:$0xf] %v10342
      %10403 = vst [vmem:[%s278 + $0x44] sm:$0xf] %v10343
      %10404 = vst [vmem:[%s278 + $0x48] sm:$0xf] %v10344
      %10405 = vst [vmem:[%s278 + $0x4c] sm:$0xf] %v10345
      %10406 = vst [vmem:[%s278 + $0x50] sm:$0xf] %v10346
      %10407 = vst [vmem:[%s278 + $0x54] sm:$0xf] %v10347
      %10408 = vst [vmem:[%s278 + $0x58] sm:$0xf] %v10348
      %10409 = vst [vmem:[%s278 + $0x5c] sm:$0xf] %v10349
      %10410 = vst [vmem:[%s278 + $0x60] sm:$0xf] %v10350
      %10411 = vst [vmem:[%s278 + $0x64] sm:$0xf] %v10351
      %10412 = vst [vmem:[%s278 + $0x68] sm:$0xf] %v10352
      %10413 = vst [vmem:[%s278 + $0x6c] sm:$0xf] %v10353
      %10414 = vst [vmem:[%s278 + $0x70] sm:$0xf] %v10354
      %10415 = vst [vmem:[%s278 + $0x74] sm:$0xf] %v10355
      %v10416 = vld [vmem:[#allocation2 + $0x78] sm:$0xf8]
      %v10417 = vld [vmem:[#allocation2 + $0x80] sm:$0xff]
      %v10418 = vld [vmem:[#allocation2 + $0x88] sm:$0xff]
      %v10419 = vld [vmem:[#allocation2 + $0x90] sm:$0xff]
      %v10420 = vld [vmem:[#allocation2 + $0x98] sm:$0xff]
      %v10421 = vld [vmem:[#allocation2 + $0xa0] sm:$0xff]
      %v10422 = vld [vmem:[#allocation2 + $0xa8] sm:$0xff]
      %v10423 = vld [vmem:[#allocation2 + $0xb0] sm:$0xff]
      %v10424 = vld [vmem:[#allocation2 + $0xb8] sm:$0xff]
      %v10425 = vld [vmem:[#allocation2 + $0xc0] sm:$0xf]
      %v10426 = vld [vmem:[%s4] sm:$0xf]
      %v10427 = vld [vmem:[%s4 + $0x4] sm:$0xf]
      %v10428 = vld [vmem:[%s4 + $0x8] sm:$0xf]
      %v10429 = vld [vmem:[%s4 + $0xc] sm:$0xf]
      %v10430 = vld [vmem:[%s4 + $0x10] sm:$0xf]
      %v10431 = vld [vmem:[%s4 + $0x14] sm:$0xf]
      %v10432 = vld [vmem:[%s4 + $0x18] sm:$0xf]
      %v10433 = vld [vmem:[%s4 + $0x1c] sm:$0xf]
      %v10434 = vld [vmem:[%s4 + $0x20] sm:$0xf]
      %v10435 = vld [vmem:[%s4 + $0x24] sm:$0xf]
      %v10436 = vld [vmem:[%s4 + $0x28] sm:$0xf]
      %v10437 = vld [vmem:[%s4 + $0x2c] sm:$0xf]
      %v10438 = vld [vmem:[%s4 + $0x30] sm:$0xf]
      %v10439 = vld [vmem:[%s4 + $0x34] sm:$0xf]
      %v10440 = vld [vmem:[%s4 + $0x38] sm:$0xf]
      %v10441 = vld [vmem:[%s4 + $0x3c] sm:$0xf]
      %v10442 = vld [vmem:[#allocation2 + $0x78] sm:$0xf0]
      %v10443 = vld [vmem:[%s7061] sm:$0xf]
      %v10444 = vld [vmem:[%s7061 + $0x4] sm:$0xf]
      %v10445 = vld [vmem:[%s7061 + $0x8] sm:$0xf]
      %v10446 = vld [vmem:[%s7061 + $0xc] sm:$0xf]
      %v10447 = vld [vmem:[%s7061 + $0x10] sm:$0xf]
      %v10448 = vld [vmem:[%s7061 + $0x14] sm:$0xf]
      %v10449 = vld [vmem:[%s7061 + $0x18] sm:$0xf]
      %v10450 = vld [vmem:[%s7061 + $0x1c] sm:$0xf]
      %v10451 = vld [vmem:[%s7061 + $0x20] sm:$0xf]
      %v10452 = vld [vmem:[%s7061 + $0x24] sm:$0xf]
      %v10453 = vld [vmem:[%s7061 + $0x28] sm:$0xf]
      %v10454 = vld [vmem:[%s7061 + $0x2c] sm:$0xf]
      %v10455 = vld [vmem:[%s7061 + $0x30] sm:$0xf]
      %v10456 = vld [vmem:[%s7061 + $0x34] sm:$0xf]
      %v10457 = vld [vmem:[%s7061 + $0x38] sm:$0xf]
      %v10458 = vld [vmem:[%s7061 + $0x3c] sm:$0xf]
      %v10469 = vrot.slane %v10442, 4
      %v10470 = vrot.slane %v10417, 4
      %v10471 = vsel %vm7094, %v10469, %v10470
      %v10472 = vrot.slane %v10418, 4
      %v10473 = vsel %vm7094, %v10470, %v10472
      %v10474 = vrot.slane %v10419, 4
      %v10475 = vsel %vm7094, %v10472, %v10474
      %v10476 = vrot.slane %v10420, 4
      %v10477 = vsel %vm7094, %v10474, %v10476
      %v10478 = vrot.slane %v10421, 4
      %v10479 = vsel %vm7094, %v10476, %v10478
      %v10480 = vrot.slane %v10422, 4
      %v10481 = vsel %vm7094, %v10478, %v10480
      %v10482 = vrot.slane %v10423, 4
      %v10483 = vsel %vm7094, %v10480, %v10482
      %v10484 = vrot.slane %v10424, 4
      %v10485 = vsel %vm7094, %v10482, %v10484
      %v10486 = vrot.slane %v10425, 4
      %v10487 = vsel %vm7094, %v10484, %v10486
      %v10513 = vunpack.c.l.b16 %v10443
      %v10514 = vunpack.c.l.b16 %v10444
      %v10515 = vunpack.c.l.b16 %v10445
      %v10516 = vunpack.c.l.b16 %v10446
      %v10517 = vunpack.c.l.b16 %v10447
      %v10518 = vunpack.c.l.b16 %v10448
      %v10519 = vunpack.c.l.b16 %v10449
      %v10520 = vunpack.c.l.b16 %v10450
      %v10521 = vunpack.c.l.b16 %v10451
      %v10522 = vunpack.c.l.b16 %v10452
      %v10523 = vunpack.c.l.b16 %v10453
      %v10524 = vunpack.c.l.b16 %v10454
      %v10525 = vunpack.c.l.b16 %v10455
      %v10526 = vunpack.c.l.b16 %v10456
      %v10527 = vunpack.c.l.b16 %v10457
      %v10528 = vunpack.c.l.b16 %v10458
      %v10529 = vpack.c.b16 %v10514, %v10513
      %v10530 = vpack.c.b16 %v10516, %v10515
      %v10531 = vpack.c.b16 %v10518, %v10517
      %v10532 = vpack.c.b16 %v10520, %v10519
      %v10533 = vpack.c.b16 %v10522, %v10521
      %v10534 = vpack.c.b16 %v10524, %v10523
      %v10535 = vpack.c.b16 %v10526, %v10525
      %v10536 = vpack.c.b16 %v10528, %v10527
      %10545 = vmatprep.subr.bf16.mxu0 0
      %10546 = vmatpush1.bf16.msra.mxu0 %v10529
      %10547 = vmatprep.subr.bf16.mxu0 0
      %10548 = vmatpush1.bf16.msra.mxu0 %v10530
      %10549 = vmatprep.subr.bf16.mxu0 0
      %10550 = vmatpush1.bf16.msra.mxu0 %v10531
      %10551 = vmatprep.subr.bf16.mxu0 0
      %10552 = vmatpush1.bf16.msra.mxu0 %v10532
      %10553 = vmatprep.subr.bf16.mxu0 0
      %10554 = vmatpush1.bf16.msra.mxu0 %v10533
      %10555 = vmatprep.subr.bf16.mxu0 0
      %10556 = vmatpush1.bf16.msra.mxu0 %v10534
      %10557 = vmatprep.subr.bf16.mxu0 0
      %10558 = vmatpush1.bf16.msra.mxu0 %v10535
      %10559 = vmatprep.subr.bf16.mxu0 0
      %10560 = vmatpush1.bf16.msra.mxu0 %v10536
      %10561 = vmatprep.subr.bf16.mxu0 0
      %10562 = vmatpush1.bf16.msra.mxu0 0
      %10563 = vmatprep.subr.bf16.mxu0 0
      %10564 = vmatpush1.bf16.msra.mxu0 0
      %10565 = vmatprep.subr.bf16.mxu0 0
      %10566 = vmatpush1.bf16.msra.mxu0 0
      %10567 = vmatprep.subr.bf16.mxu0 0
      %10568 = vmatpush1.bf16.msra.mxu0 0
      %10569 = vmatprep.subr.bf16.mxu0 0
      %10570 = vmatpush1.bf16.msra.mxu0 0
      %10571 = vmatprep.subr.bf16.mxu0 0
      %10572 = vmatpush1.bf16.msra.mxu0 0
      %10573 = vmatprep.subr.bf16.mxu0 0
      %10574 = vmatpush1.bf16.msra.mxu0 0
      %10575 = vmatprep.subr.bf16.mxu0 0
      %10576 = vmatpush1.bf16.msra.mxu0 0
      %10577 = vmatprep.mubr.bf16.mxu0 0
      %10578 = vmatmul.mubr.bf16.gmra.mrb[0].mxu0 %v10471
      %v10579 = vpop.f32.mrb[0].mxu0
      %v10580 = vadd.f32 0.0, %v10579
      %v10581 = vpop.f32.mrb[0].mxu0
      %v10582 = vpop.f32.mrb[0].mxu0
      %v10583 = vadd.f32 0.0, %v10582
      %v10584 = vpop.f32.mrb[0].mxu0
      %10585 = vmatprep.mubr.bf16.mxu0 0
      %10586 = vmatmul.mubr.bf16.gmra.mrb[0].mxu0 %v10473
      %v10587 = vpop.f32.mrb[0].mxu0
      %v10588 = vadd.f32 0.0, %v10587
      %v10589 = vpop.f32.mrb[0].mxu0
      %v10590 = vpop.f32.mrb[0].mxu0
      %v10591 = vadd.f32 0.0, %v10590
      %v10592 = vpop.f32.mrb[0].mxu0
      %10593 = vmatprep.mubr.bf16.mxu0 0
      %10594 = vmatmul.mubr.bf16.gmra.mrb[0].mxu0 %v10475
      %v10595 = vpop.f32.mrb[0].mxu0
      %v10596 = vadd.f32 0.0, %v10595
      %v10597 = vpop.f32.mrb[0].mxu0
      %v10598 = vpop.f32.mrb[0].mxu0
      %v10599 = vadd.f32 0.0, %v10598
      %v10600 = vpop.f32.mrb[0].mxu0
      %10601 = vmatprep.mubr.bf16.mxu0 0
      %10602 = vmatmul.mubr.bf16.gmra.mrb[0].mxu0 %v10477
      %v10603 = vpop.f32.mrb[0].mxu0
      %v10604 = vadd.f32 0.0, %v10603
      %v10605 = vpop.f32.mrb[0].mxu0
      %v10606 = vpop.f32.mrb[0].mxu0
      %v10607 = vadd.f32 0.0, %v10606
      %v10608 = vpop.f32.mrb[0].mxu0
      %10609 = vmatprep.mubr.bf16.mxu0 0
      %10610 = vmatmul.mubr.bf16.gmra.mrb[0].mxu0 %v10479
      %v10611 = vpop.f32.mrb[0].mxu0
      %v10612 = vadd.f32 0.0, %v10611
      %v10613 = vpop.f32.mrb[0].mxu0
      %v10614 = vpop.f32.mrb[0].mxu0
      %v10615 = vadd.f32 0.0, %v10614
      %v10616 = vpop.f32.mrb[0].mxu0
      %10617 = vmatprep.mubr.bf16.mxu0 0
      %10618 = vmatmul.mubr.bf16.gmra.mrb[0].mxu0 %v10481
      %v10619 = vpop.f32.mrb[0].mxu0
      %v10620 = vadd.f32 0.0, %v10619
      %v10621 = vpop.f32.mrb[0].mxu0
      %v10622 = vpop.f32.mrb[0].mxu0
      %v10623 = vadd.f32 0.0, %v10622
      %v10624 = vpop.f32.mrb[0].mxu0
      %10625 = vmatprep.mubr.bf16.mxu0 0
      %10626 = vmatmul.mubr.bf16.gmra.mrb[0].mxu0 %v10483
      %v10627 = vpop.f32.mrb[0].mxu0
      %v10628 = vadd.f32 0.0, %v10627
      %v10629 = vpop.f32.mrb[0].mxu0
      %v10630 = vpop.f32.mrb[0].mxu0
      %v10631 = vadd.f32 0.0, %v10630
      %v10632 = vpop.f32.mrb[0].mxu0
      %10633 = vmatprep.mubr.bf16.mxu0 0
      %10634 = vmatmul.mubr.bf16.gmra.mrb[0].mxu0 %v10485
      %v10635 = vpop.f32.mrb[0].mxu0
      %v10636 = vadd.f32 0.0, %v10635
      %v10637 = vpop.f32.mrb[0].mxu0
      %v10638 = vpop.f32.mrb[0].mxu0
      %v10639 = vadd.f32 0.0, %v10638
      %v10640 = vpop.f32.mrb[0].mxu0
      %10641 = vmatprep.mubr.bf16.mxu0 0
      %10642 = vmatmul.mubr.bf16.gmra.mrb[0].mxu0 %v10487
      %v10643 = vpop.f32.mrb[0].mxu0
      %v10644 = vadd.f32 0.0, %v10643
      %v10645 = vpop.f32.mrb[0].mxu0
      %v10646 = vpop.f32.mrb[0].mxu0
      %v10647 = vadd.f32 0.0, %v10646
      %v10648 = vpop.f32.mrb[0].mxu0
      %10649 = vdwg.mxu0
      %v10651 = vshrl.u32 %v10416, 16
      %v10653 = vrot.slane %v10651, 3
      %v10654 = vshll.u32 %v10416, 16
      %v10656 = vrot.slane %v10654, 4
      %v10657 = vor.u32 %v10653, %v10656
      %v10659 = vshrl.u32 %v10417, 16
      %v10661 = vrot.slane %v10659, 3
      %v10662 = vshll.u32 %v10417, 16
      %v10664 = vrot.slane %v10662, 4
      %v10665 = vor.u32 %v10661, %v10664
      %v10666 = vsel %vm674, %v10657, %v10665
      %v10668 = vshrl.u32 %v10418, 16
      %v10670 = vrot.slane %v10668, 3
      %v10671 = vshll.u32 %v10418, 16
      %v10673 = vrot.slane %v10671, 4
      %v10674 = vor.u32 %v10670, %v10673
      %v10675 = vsel %vm674, %v10665, %v10674
      %v10677 = vshrl.u32 %v10419, 16
      %v10679 = vrot.slane %v10677, 3
      %v10680 = vshll.u32 %v10419, 16
      %v10682 = vrot.slane %v10680, 4
      %v10683 = vor.u32 %v10679, %v10682
      %v10684 = vsel %vm674, %v10674, %v10683
      %v10686 = vshrl.u32 %v10420, 16
      %v10688 = vrot.slane %v10686, 3
      %v10689 = vshll.u32 %v10420, 16
      %v10691 = vrot.slane %v10689, 4
      %v10692 = vor.u32 %v10688, %v10691
      %v10693 = vsel %vm674, %v10683, %v10692
      %v10695 = vshrl.u32 %v10421, 16
      %v10697 = vrot.slane %v10695, 3
      %v10698 = vshll.u32 %v10421, 16
      %v10700 = vrot.slane %v10698, 4
      %v10701 = vor.u32 %v10697, %v10700
      %v10702 = vsel %vm674, %v10692, %v10701
      %v10704 = vshrl.u32 %v10422, 16
      %v10706 = vrot.slane %v10704, 3
      %v10707 = vshll.u32 %v10422, 16
      %v10709 = vrot.slane %v10707, 4
      %v10710 = vor.u32 %v10706, %v10709
      %v10711 = vsel %vm674, %v10701, %v10710
      %v10713 = vshrl.u32 %v10423, 16
      %v10715 = vrot.slane %v10713, 3
      %v10716 = vshll.u32 %v10423, 16
      %v10718 = vrot.slane %v10716, 4
      %v10719 = vor.u32 %v10715, %v10718
      %v10720 = vsel %vm674, %v10710, %v10719
      %v10722 = vshrl.u32 %v10424, 16
      %v10724 = vrot.slane %v10722, 3
      %v10725 = vshll.u32 %v10424, 16
      %v10727 = vrot.slane %v10725, 4
      %v10728 = vor.u32 %v10724, %v10727
      %v10729 = vsel %vm674, %v10719, %v10728
      %v10731 = vshrl.u32 %v10425, 16
      %v10733 = vrot.slane %v10731, 3
      %v10734 = vshll.u32 %v10425, 16
      %v10736 = vrot.slane %v10734, 4
      %v10737 = vor.u32 %v10733, %v10736
      %v10738 = vsel %vm674, %v10728, %v10737
      %v10764 = vunpack.c.l.b16 %v10426
      %v10765 = vunpack.c.l.b16 %v10427
      %v10766 = vunpack.c.l.b16 %v10428
      %v10767 = vunpack.c.l.b16 %v10429
      %v10768 = vunpack.c.l.b16 %v10430
      %v10769 = vunpack.c.l.b16 %v10431
      %v10770 = vunpack.c.l.b16 %v10432
      %v10771 = vunpack.c.l.b16 %v10433
      %v10772 = vunpack.c.l.b16 %v10434
      %v10773 = vunpack.c.l.b16 %v10435
      %v10774 = vunpack.c.l.b16 %v10436
      %v10775 = vunpack.c.l.b16 %v10437
      %v10776 = vunpack.c.l.b16 %v10438
      %v10777 = vunpack.c.l.b16 %v10439
      %v10778 = vunpack.c.l.b16 %v10440
      %v10779 = vunpack.c.l.b16 %v10441
      %v10780 = vpack.c.b16 %v10765, %v10764
      %v10781 = vpack.c.b16 %v10767, %v10766
      %v10782 = vpack.c.b16 %v10769, %v10768
      %v10783 = vpack.c.b16 %v10771, %v10770
      %v10784 = vpack.c.b16 %v10773, %v10772
      %v10785 = vpack.c.b16 %v10775, %v10774
      %v10786 = vpack.c.b16 %v10777, %v10776
      %v10787 = vpack.c.b16 %v10779, %v10778
      %10796 = vmatprep.subr.bf16.mxu0 0
      %10797 = vmatpush1.bf16.msra.mxu0 %v10780
      %10798 = vmatprep.subr.bf16.mxu0 0
      %10799 = vmatpush1.bf16.msra.mxu0 %v10781
      %10800 = vmatprep.subr.bf16.mxu0 0
      %10801 = vmatpush1.bf16.msra.mxu0 %v10782
      %10802 = vmatprep.subr.bf16.mxu0 0
      %10803 = vmatpush1.bf16.msra.mxu0 %v10783
      %10804 = vmatprep.subr.bf16.mxu0 0
      %10805 = vmatpush1.bf16.msra.mxu0 %v10784
      %10806 = vmatprep.subr.bf16.mxu0 0
      %10807 = vmatpush1.bf16.msra.mxu0 %v10785
      %10808 = vmatprep.subr.bf16.mxu0 0
      %10809 = vmatpush1.bf16.msra.mxu0 %v10786
      %10810 = vmatprep.subr.bf16.mxu0 0
      %10811 = vmatpush1.bf16.msra.mxu0 %v10787
      %10812 = vmatprep.subr.bf16.mxu0 0
      %10813 = vmatpush1.bf16.msra.mxu0 0
      %10814 = vmatprep.subr.bf16.mxu0 0
      %10815 = vmatpush1.bf16.msra.mxu0 0
      %10816 = vmatprep.subr.bf16.mxu0 0
      %10817 = vmatpush1.bf16.msra.mxu0 0
      %10818 = vmatprep.subr.bf16.mxu0 0
      %10819 = vmatpush1.bf16.msra.mxu0 0
      %10820 = vmatprep.subr.bf16.mxu0 0
      %10821 = vmatpush1.bf16.msra.mxu0 0
      %10822 = vmatprep.subr.bf16.mxu0 0
      %10823 = vmatpush1.bf16.msra.mxu0 0
      %10824 = vmatprep.subr.bf16.mxu0 0
      %10825 = vmatpush1.bf16.msra.mxu0 0
      %10826 = vmatprep.subr.bf16.mxu0 0
      %10827 = vmatpush1.bf16.msra.mxu0 0
      %10828 = vmatprep.mubr.bf16.mxu0 0
      %10829 = vmatmul.mubr.bf16.gmra.mrb[0].mxu0 %v10666
      %v10830 = vpop.f32.mrb[0].mxu0
      %v10831 = vadd.f32 %v10580, %v10830
      %v10832 = vpop.f32.mrb[0].mxu0
      %v10833 = vpop.f32.mrb[0].mxu0
      %v10834 = vadd.f32 %v10583, %v10833
      %v10835 = vpop.f32.mrb[0].mxu0
      %10836 = vmatprep.mubr.bf16.mxu0 0
      %10837 = vmatmul.mubr.bf16.gmra.mrb[0].mxu0 %v10675
      %v10838 = vpop.f32.mrb[0].mxu0
      %v10839 = vadd.f32 %v10588, %v10838
      %v10840 = vpop.f32.mrb[0].mxu0
      %v10841 = vpop.f32.mrb[0].mxu0
      %v10842 = vadd.f32 %v10591, %v10841
      %v10843 = vpop.f32.mrb[0].mxu0
      %10844 = vmatprep.mubr.bf16.mxu0 0
      %10845 = vmatmul.mubr.bf16.gmra.mrb[0].mxu0 %v10684
      %v10846 = vpop.f32.mrb[0].mxu0
      %v10847 = vadd.f32 %v10596, %v10846
      %v10848 = vpop.f32.mrb[0].mxu0
      %v10849 = vpop.f32.mrb[0].mxu0
      %v10850 = vadd.f32 %v10599, %v10849
      %v10851 = vpop.f32.mrb[0].mxu0
      %10852 = vmatprep.mubr.bf16.mxu0 0
      %10853 = vmatmul.mubr.bf16.gmra.mrb[0].mxu0 %v10693
      %v10854 = vpop.f32.mrb[0].mxu0
      %v10855 = vadd.f32 %v10604, %v10854
      %v10856 = vpop.f32.mrb[0].mxu0
      %v10857 = vpop.f32.mrb[0].mxu0
      %v10858 = vadd.f32 %v10607, %v10857
      %v10859 = vpop.f32.mrb[0].mxu0
      %10860 = vmatprep.mubr.bf16.mxu0 0
      %10861 = vmatmul.mubr.bf16.gmra.mrb[0].mxu0 %v10702
      %v10862 = vpop.f32.mrb[0].mxu0
      %v10863 = vadd.f32 %v10612, %v10862
      %v10864 = vpop.f32.mrb[0].mxu0
      %v10865 = vpop.f32.mrb[0].mxu0
      %v10866 = vadd.f32 %v10615, %v10865
      %v10867 = vpop.f32.mrb[0].mxu0
      %10868 = vmatprep.mubr.bf16.mxu0 0
      %10869 = vmatmul.mubr.bf16.gmra.mrb[0].mxu0 %v10711
      %v10870 = vpop.f32.mrb[0].mxu0
      %v10871 = vadd.f32 %v10620, %v10870
      %v10872 = vpop.f32.mrb[0].mxu0
      %v10873 = vpop.f32.mrb[0].mxu0
      %v10874 = vadd.f32 %v10623, %v10873
      %v10875 = vpop.f32.mrb[0].mxu0
      %10876 = vmatprep.mubr.bf16.mxu0 0
      %10877 = vmatmul.mubr.bf16.gmra.mrb[0].mxu0 %v10720
      %v10878 = vpop.f32.mrb[0].mxu0
      %v10879 = vadd.f32 %v10628, %v10878
      %v10880 = vpop.f32.mrb[0].mxu0
      %v10881 = vpop.f32.mrb[0].mxu0
      %v10882 = vadd.f32 %v10631, %v10881
      %v10883 = vpop.f32.mrb[0].mxu0
      %10884 = vmatprep.mubr.bf16.mxu0 0
      %10885 = vmatmul.mubr.bf16.gmra.mrb[0].mxu0 %v10729
      %v10886 = vpop.f32.mrb[0].mxu0
      %v10887 = vadd.f32 %v10636, %v10886
      %v10888 = vpop.f32.mrb[0].mxu0
      %v10889 = vpop.f32.mrb[0].mxu0
      %v10890 = vadd.f32 %v10639, %v10889
      %v10891 = vpop.f32.mrb[0].mxu0
      %10892 = vmatprep.mubr.bf16.mxu0 0
      %10893 = vmatmul.mubr.bf16.gmra.mrb[0].mxu0 %v10738
      %v10894 = vpop.f32.mrb[0].mxu0
      %v10895 = vadd.f32 %v10644, %v10894
      %v10896 = vpop.f32.mrb[0].mxu0
      %v10897 = vpop.f32.mrb[0].mxu0
      %v10898 = vadd.f32 %v10647, %v10897
      %v10899 = vpop.f32.mrb[0].mxu0
      %10900 = vdwg.mxu0
      %v10901 = vld [vmem:[#allocation2 + $0xc0] sm:$0x1f]
      %v10902 = vld [vmem:[%s7702] sm:$0xf]
      %v10903 = vld [vmem:[%s7702 + $0x4] sm:$0xf]
      %v10904 = vld [vmem:[%s7702 + $0x8] sm:$0xf]
      %v10905 = vld [vmem:[%s7702 + $0xc] sm:$0xf]
      %v10906 = vld [vmem:[%s7702 + $0x10] sm:$0xf]
      %v10907 = vld [vmem:[%s7702 + $0x14] sm:$0xf]
      %v10908 = vld [vmem:[%s7702 + $0x18] sm:$0xf]
      %v10909 = vld [vmem:[%s7702 + $0x1c] sm:$0xf]
      %v10910 = vld [vmem:[%s7702 + $0x20] sm:$0xf]
      %v10911 = vld [vmem:[%s7702 + $0x24] sm:$0xf]
      %v10912 = vld [vmem:[%s7702 + $0x28] sm:$0xf]
      %v10913 = vld [vmem:[%s7702 + $0x2c] sm:$0xf]
      %v10914 = vld [vmem:[%s7702 + $0x30] sm:$0xf]
      %v10915 = vld [vmem:[%s7702 + $0x34] sm:$0xf]
      %v10916 = vld [vmem:[%s7702 + $0x38] sm:$0xf]
      %v10917 = vld [vmem:[%s7702 + $0x3c] sm:$0xf]
      %v10919 = vshrl.u32 %v10442, 16
      %v10921 = vrot.slane %v10919, 4
      %v10922 = vshll.u32 %v10442, 16
      %v10924 = vrot.slane %v10922, 5
      %v10925 = vor.u32 %v10921, %v10924
      %v10926 = vrot.slane %v10659, 4
      %v10927 = vrot.slane %v10662, 5
      %v10928 = vor.u32 %v10926, %v10927
      %v10929 = vsel %vm7719, %v10925, %v10928
      %v10930 = vrot.slane %v10668, 4
      %v10931 = vrot.slane %v10671, 5
      %v10932 = vor.u32 %v10930, %v10931
      %v10933 = vsel %vm7719, %v10928, %v10932
      %v10934 = vrot.slane %v10677, 4
      %v10935 = vrot.slane %v10680, 5
      %v10936 = vor.u32 %v10934, %v10935
      %v10937 = vsel %vm7719, %v10932, %v10936
      %v10938 = vrot.slane %v10686, 4
      %v10939 = vrot.slane %v10689, 5
      %v10940 = vor.u32 %v10938, %v10939
      %v10941 = vsel %vm7719, %v10936, %v10940
      %v10942 = vrot.slane %v10695, 4
      %v10943 = vrot.slane %v10698, 5
      %v10944 = vor.u32 %v10942, %v10943
      %v10945 = vsel %vm7719, %v10940, %v10944
      %v10946 = vrot.slane %v10704, 4
      %v10947 = vrot.slane %v10707, 5
      %v10948 = vor.u32 %v10946, %v10947
      %v10949 = vsel %vm7719, %v10944, %v10948
      %v10950 = vrot.slane %v10713, 4
      %v10951 = vrot.slane %v10716, 5
      %v10952 = vor.u32 %v10950, %v10951
      %v10953 = vsel %vm7719, %v10948, %v10952
      %v10954 = vrot.slane %v10722, 4
      %v10955 = vrot.slane %v10725, 5
      %v10956 = vor.u32 %v10954, %v10955
      %v10957 = vsel %vm7719, %v10952, %v10956
      %v10959 = vshrl.u32 %v10901, 16
      %v10961 = vrot.slane %v10959, 4
      %v10962 = vshll.u32 %v10901, 16
      %v10964 = vrot.slane %v10962, 5
      %v10965 = vor.u32 %v10961, %v10964
      %v10966 = vsel %vm7719, %v10956, %v10965
      %v10992 = vunpack.c.l.b16 %v10902
      %v10993 = vunpack.c.l.b16 %v10903
      %v10994 = vunpack.c.l.b16 %v10904
      %v10995 = vunpack.c.l.b16 %v10905
      %v10996 = vunpack.c.l.b16 %v10906
      %v10997 = vunpack.c.l.b16 %v10907
      %v10998 = vunpack.c.l.b16 %v10908
      %v10999 = vunpack.c.l.b16 %v10909
      %v11000 = vunpack.c.l.b16 %v10910
      %v11001 = vunpack.c.l.b16 %v10911
      %v11002 = vunpack.c.l.b16 %v10912
      %v11003 = vunpack.c.l.b16 %v10913
      %v11004 = vunpack.c.l.b16 %v10914
      %v11005 = vunpack.c.l.b16 %v10915
      %v11006 = vunpack.c.l.b16 %v10916
      %v11007 = vunpack.c.l.b16 %v10917
      %v11008 = vpack.c.b16 %v10993, %v10992
      %v11009 = vpack.c.b16 %v10995, %v10994
      %v11010 = vpack.c.b16 %v10997, %v10996
      %v11011 = vpack.c.b16 %v10999, %v10998
      %v11012 = vpack.c.b16 %v11001, %v11000
      %v11013 = vpack.c.b16 %v11003, %v11002
      %v11014 = vpack.c.b16 %v11005, %v11004
      %v11015 = vpack.c.b16 %v11007, %v11006
      %11024 = vmatprep.subr.bf16.mxu0 0
      %11025 = vmatpush1.bf16.msra.mxu0 %v11008
      %11026 = vmatprep.subr.bf16.mxu0 0
      %11027 = vmatpush1.bf16.msra.mxu0 %v11009
      %11028 = vmatprep.subr.bf16.mxu0 0
      %11029 = vmatpush1.bf16.msra.mxu0 %v11010
      %11030 = vmatprep.subr.bf16.mxu0 0
      %11031 = vmatpush1.bf16.msra.mxu0 %v11011
      %11032 = vmatprep.subr.bf16.mxu0 0
      %11033 = vmatpush1.bf16.msra.mxu0 %v11012
      %11034 = vmatprep.subr.bf16.mxu0 0
      %11035 = vmatpush1.bf16.msra.mxu0 %v11013
      %11036 = vmatprep.subr.bf16.mxu0 0
      %11037 = vmatpush1.bf16.msra.mxu0 %v11014
      %11038 = vmatprep.subr.bf16.mxu0 0
      %11039 = vmatpush1.bf16.msra.mxu0 %v11015
      %11040 = vmatprep.subr.bf16.mxu0 0
      %11041 = vmatpush1.bf16.msra.mxu0 0
      %11042 = vmatprep.subr.bf16.mxu0 0
      %11043 = vmatpush1.bf16.msra.mxu0 0
      %11044 = vmatprep.subr.bf16.mxu0 0
      %11045 = vmatpush1.bf16.msra.mxu0 0
      %11046 = vmatprep.subr.bf16.mxu0 0
      %11047 = vmatpush1.bf16.msra.mxu0 0
      %11048 = vmatprep.subr.bf16.mxu0 0
      %11049 = vmatpush1.bf16.msra.mxu0 0
      %11050 = vmatprep.subr.bf16.mxu0 0
      %11051 = vmatpush1.bf16.msra.mxu0 0
      %11052 = vmatprep.subr.bf16.mxu0 0
      %11053 = vmatpush1.bf16.msra.mxu0 0
      %11054 = vmatprep.subr.bf16.mxu0 0
      %11055 = vmatpush1.bf16.msra.mxu0 0
      %11056 = vmatprep.mubr.bf16.mxu0 0
      %11057 = vmatmul.mubr.bf16.gmra.mrb[0].mxu0 %v10929
      %v11058 = vpop.f32.mrb[0].mxu0
      %v11059 = vadd.f32 0.0, %v11058
      %v11060 = vpop.f32.mrb[0].mxu0
      %v11061 = vpop.f32.mrb[0].mxu0
      %v11062 = vadd.f32 0.0, %v11061
      %v11063 = vpop.f32.mrb[0].mxu0
      %11064 = vmatprep.mubr.bf16.mxu0 0
      %11065 = vmatmul.mubr.bf16.gmra.mrb[0].mxu0 %v10933
      %v11066 = vpop.f32.mrb[0].mxu0
      %v11067 = vadd.f32 0.0, %v11066
      %v11068 = vpop.f32.mrb[0].mxu0
      %v11069 = vpop.f32.mrb[0].mxu0
      %v11070 = vadd.f32 0.0, %v11069
      %v11071 = vpop.f32.mrb[0].mxu0
      %11072 = vmatprep.mubr.bf16.mxu0 0
      %11073 = vmatmul.mubr.bf16.gmra.mrb[0].mxu0 %v10937
      %v11074 = vpop.f32.mrb[0].mxu0
      %v11075 = vadd.f32 0.0, %v11074
      %v11076 = vpop.f32.mrb[0].mxu0
      %v11077 = vpop.f32.mrb[0].mxu0
      %v11078 = vadd.f32 0.0, %v11077
      %v11079 = vpop.f32.mrb[0].mxu0
      %11080 = vmatprep.mubr.bf16.mxu0 0
      %11081 = vmatmul.mubr.bf16.gmra.mrb[0].mxu0 %v10941
      %v11082 = vpop.f32.mrb[0].mxu0
      %v11083 = vadd.f32 0.0, %v11082
      %v11084 = vpop.f32.mrb[0].mxu0
      %v11085 = vpop.f32.mrb[0].mxu0
      %v11086 = vadd.f32 0.0, %v11085
      %v11087 = vpop.f32.mrb[0].mxu0
      %11088 = vmatprep.mubr.bf16.mxu0 0
      %11089 = vmatmul.mubr.bf16.gmra.mrb[0].mxu0 %v10945
      %v11090 = vpop.f32.mrb[0].mxu0
      %v11091 = vadd.f32 0.0, %v11090
      %v11092 = vpop.f32.mrb[0].mxu0
      %v11093 = vpop.f32.mrb[0].mxu0
      %v11094 = vadd.f32 0.0, %v11093
      %v11095 = vpop.f32.mrb[0].mxu0
      %11096 = vmatprep.mubr.bf16.mxu0 0
      %11097 = vmatmul.mubr.bf16.gmra.mrb[0].mxu0 %v10949
      %v11098 = vpop.f32.mrb[0].mxu0
      %v11099 = vadd.f32 0.0, %v11098
      %v11100 = vpop.f32.mrb[0].mxu0
      %v11101 = vpop.f32.mrb[0].mxu0
      %v11102 = vadd.f32 0.0, %v11101
      %v11103 = vpop.f32.mrb[0].mxu0
      %11104 = vmatprep.mubr.bf16.mxu0 0
      %11105 = vmatmul.mubr.bf16.gmra.mrb[0].mxu0 %v10953
      %v11106 = vpop.f32.mrb[0].mxu0
      %v11107 = vadd.f32 0.0, %v11106
      %v11108 = vpop.f32.mrb[0].mxu0
      %v11109 = vpop.f32.mrb[0].mxu0
      %v11110 = vadd.f32 0.0, %v11109
      %v11111 = vpop.f32.mrb[0].mxu0
      %11112 = vmatprep.mubr.bf16.mxu0 0
      %11113 = vmatmul.mubr.bf16.gmra.mrb[0].mxu0 %v10957
      %v11114 = vpop.f32.mrb[0].mxu0
      %v11115 = vadd.f32 0.0, %v11114
      %v11116 = vpop.f32.mrb[0].mxu0
      %v11117 = vpop.f32.mrb[0].mxu0
      %v11118 = vadd.f32 0.0, %v11117
      %v11119 = vpop.f32.mrb[0].mxu0
      %11120 = vmatprep.mubr.bf16.mxu0 0
      %11121 = vmatmul.mubr.bf16.gmra.mrb[0].mxu0 %v10966
      %v11122 = vpop.f32.mrb[0].mxu0
      %v11123 = vadd.f32 0.0, %v11122
      %v11124 = vpop.f32.mrb[0].mxu0
      %v11125 = vpop.f32.mrb[0].mxu0
      %v11126 = vadd.f32 0.0, %v11125
      %v11127 = vpop.f32.mrb[0].mxu0
      %11128 = vdwg.mxu0
      %v11129 = vadd.f32 %v10831, %v11059
      %v11130 = vadd.f32 %v10834, %v11062
      %v11131 = vadd.f32 %v10839, %v11067
      %v11132 = vadd.f32 %v10842, %v11070
      %v11133 = vadd.f32 %v10847, %v11075
      %v11134 = vadd.f32 %v10850, %v11078
      %v11135 = vadd.f32 %v10855, %v11083
      %v11136 = vadd.f32 %v10858, %v11086
      %v11137 = vadd.f32 %v10863, %v11091
      %v11138 = vadd.f32 %v10866, %v11094
      %v11139 = vadd.f32 %v10871, %v11099
      %v11140 = vadd.f32 %v10874, %v11102
      %v11141 = vadd.f32 %v10879, %v11107
      %v11142 = vadd.f32 %v10882, %v11110
      %v11143 = vadd.f32 %v10887, %v11115
      %v11144 = vadd.f32 %v10890, %v11118
      %v11145 = vadd.f32 %v10895, %v11123
      %v11146 = vadd.f32 %v10898, %v11126
      %v11147 = vld [vmem:[#allocation2 + $0x80] sm:$0x80]
      %v11148 = vld [vmem:[#allocation2 + $0x88] sm:$0xff]
      %v11149 = vld [vmem:[#allocation2 + $0x90] sm:$0xff]
      %v11150 = vld [vmem:[#allocation2 + $0x98] sm:$0xff]
      %v11151 = vld [vmem:[#allocation2 + $0xa0] sm:$0xff]
      %v11152 = vld [vmem:[#allocation2 + $0xa8] sm:$0xff]
      %v11153 = vld [vmem:[#allocation2 + $0xb0] sm:$0xff]
      %v11154 = vld [vmem:[#allocation2 + $0xb8] sm:$0xff]
      %v11155 = vld [vmem:[#allocation2 + $0xc0] sm:$0xff]
      %v11156 = vld [vmem:[#allocation2 + $0xc8] sm:$0xff]
      %v11157 = vld [vmem:[%s8055] sm:$0xf]
      %v11158 = vld [vmem:[%s8055 + $0x4] sm:$0xf]
      %v11159 = vld [vmem:[%s8055 + $0x8] sm:$0xf]
      %v11160 = vld [vmem:[%s8055 + $0xc] sm:$0xf]
      %v11161 = vld [vmem:[%s8055 + $0x10] sm:$0xf]
      %v11162 = vld [vmem:[%s8055 + $0x14] sm:$0xf]
      %v11163 = vld [vmem:[%s8055 + $0x18] sm:$0xf]
      %v11164 = vld [vmem:[%s8055 + $0x1c] sm:$0xf]
      %v11165 = vld [vmem:[%s8055 + $0x20] sm:$0xf]
      %v11166 = vld [vmem:[%s8055 + $0x24] sm:$0xf]
      %v11167 = vld [vmem:[%s8055 + $0x28] sm:$0xf]
      %v11168 = vld [vmem:[%s8055 + $0x2c] sm:$0xf]
      %v11169 = vld [vmem:[%s8055 + $0x30] sm:$0xf]
      %v11170 = vld [vmem:[%s8055 + $0x34] sm:$0xf]
      %v11171 = vld [vmem:[%s8055 + $0x38] sm:$0xf]
      %v11172 = vld [vmem:[%s8055 + $0x3c] sm:$0xf]
      %v11174 = vshrl.u32 %v11147, 16
      %v11176 = vrot.slane %v11174, 7
      %v11178 = vshrl.u32 %v11148, 16
      %v11180 = vrot.slane %v11178, 7
      %v11181 = vshll.u32 %v11148, 16
      %v11183 = vor.u32 %v11180, %v11181
      %v11184 = vsel %vm8072, %v11176, %v11183
      %v11186 = vshrl.u32 %v11149, 16
      %v11188 = vrot.slane %v11186, 7
      %v11189 = vshll.u32 %v11149, 16
      %v11191 = vor.u32 %v11188, %v11189
      %v11192 = vsel %vm8072, %v11180, %v11191
      %v11194 = vshrl.u32 %v11150, 16
      %v11196 = vrot.slane %v11194, 7
      %v11197 = vshll.u32 %v11150, 16
      %v11199 = vor.u32 %v11196, %v11197
      %v11200 = vsel %vm8072, %v11188, %v11199
      %v11202 = vshrl.u32 %v11151, 16
      %v11204 = vrot.slane %v11202, 7
      %v11205 = vshll.u32 %v11151, 16
      %v11207 = vor.u32 %v11204, %v11205
      %v11208 = vsel %vm8072, %v11196, %v11207
      %v11210 = vshrl.u32 %v11152, 16
      %v11212 = vrot.slane %v11210, 7
      %v11213 = vshll.u32 %v11152, 16
      %v11215 = vor.u32 %v11212, %v11213
      %v11216 = vsel %vm8072, %v11204, %v11215
      %v11218 = vshrl.u32 %v11153, 16
      %v11220 = vrot.slane %v11218, 7
      %v11221 = vshll.u32 %v11153, 16
      %v11223 = vor.u32 %v11220, %v11221
      %v11224 = vsel %vm8072, %v11212, %v11223
      %v11226 = vshrl.u32 %v11154, 16
      %v11228 = vrot.slane %v11226, 7
      %v11229 = vshll.u32 %v11154, 16
      %v11231 = vor.u32 %v11228, %v11229
      %v11232 = vsel %vm8072, %v11220, %v11231
      %v11234 = vshrl.u32 %v11155, 16
      %v11236 = vrot.slane %v11234, 7
      %v11237 = vshll.u32 %v11155, 16
      %v11239 = vor.u32 %v11236, %v11237
      %v11240 = vsel %vm8072, %v11228, %v11239
      %v11242 = vshrl.u32 %v11156, 16
      %v11244 = vrot.slane %v11242, 7
      %v11245 = vshll.u32 %v11156, 16
      %v11247 = vor.u32 %v11244, %v11245
      %v11248 = vsel %vm8072, %v11236, %v11247
      %v11274 = vunpack.c.l.b16 %v11157
      %v11275 = vunpack.c.l.b16 %v11158
      %v11276 = vunpack.c.l.b16 %v11159
      %v11277 = vunpack.c.l.b16 %v11160
      %v11278 = vunpack.c.l.b16 %v11161
      %v11279 = vunpack.c.l.b16 %v11162
      %v11280 = vunpack.c.l.b16 %v11163
      %v11281 = vunpack.c.l.b16 %v11164
      %v11282 = vunpack.c.l.b16 %v11165
      %v11283 = vunpack.c.l.b16 %v11166
      %v11284 = vunpack.c.l.b16 %v11167
      %v11285 = vunpack.c.l.b16 %v11168
      %v11286 = vunpack.c.l.b16 %v11169
      %v11287 = vunpack.c.l.b16 %v11170
      %v11288 = vunpack.c.l.b16 %v11171
      %v11289 = vunpack.c.l.b16 %v11172
      %v11290 = vpack.c.b16 %v11275, %v11274
      %v11291 = vpack.c.b16 %v11277, %v11276
      %v11292 = vpack.c.b16 %v11279, %v11278
      %v11293 = vpack.c.b16 %v11281, %v11280
      %v11294 = vpack.c.b16 %v11283, %v11282
      %v11295 = vpack.c.b16 %v11285, %v11284
      %v11296 = vpack.c.b16 %v11287, %v11286
      %v11297 = vpack.c.b16 %v11289, %v11288
      %11306 = vmatprep.subr.bf16.mxu0 0
      %11307 = vmatpush1.bf16.msra.mxu0 %v11290
      %11308 = vmatprep.subr.bf16.mxu0 0
      %11309 = vmatpush1.bf16.msra.mxu0 %v11291
      %11310 = vmatprep.subr.bf16.mxu0 0
      %11311 = vmatpush1.bf16.msra.mxu0 %v11292
      %11312 = vmatprep.subr.bf16.mxu0 0
      %11313 = vmatpush1.bf16.msra.mxu0 %v11293
      %11314 = vmatprep.subr.bf16.mxu0 0
      %11315 = vmatpush1.bf16.msra.mxu0 %v11294
      %11316 = vmatprep.subr.bf16.mxu0 0
      %11317 = vmatpush1.bf16.msra.mxu0 %v11295
      %11318 = vmatprep.subr.bf16.mxu0 0
      %11319 = vmatpush1.bf16.msra.mxu0 %v11296
      %11320 = vmatprep.subr.bf16.mxu0 0
      %11321 = vmatpush1.bf16.msra.mxu0 %v11297
      %11322 = vmatprep.subr.bf16.mxu0 0
      %11323 = vmatpush1.bf16.msra.mxu0 0
      %11324 = vmatprep.subr.bf16.mxu0 0
      %11325 = vmatpush1.bf16.msra.mxu0 0
      %11326 = vmatprep.subr.bf16.mxu0 0
      %11327 = vmatpush1.bf16.msra.mxu0 0
      %11328 = vmatprep.subr.bf16.mxu0 0
      %11329 = vmatpush1.bf16.msra.mxu0 0
      %11330 = vmatprep.subr.bf16.mxu0 0
      %11331 = vmatpush1.bf16.msra.mxu0 0
      %11332 = vmatprep.subr.bf16.mxu0 0
      %11333 = vmatpush1.bf16.msra.mxu0 0
      %11334 = vmatprep.subr.bf16.mxu0 0
      %11335 = vmatpush1.bf16.msra.mxu0 0
      %11336 = vmatprep.subr.bf16.mxu0 0
      %11337 = vmatpush1.bf16.msra.mxu0 0
      %11338 = vmatprep.mubr.bf16.mxu0 0
      %11339 = vmatmul.mubr.bf16.gmra.mrb[0].mxu0 %v11184
      %v11340 = vpop.f32.mrb[0].mxu0
      %v11341 = vadd.f32 0.0, %v11340
      %v11342 = vpop.f32.mrb[0].mxu0
      %v11343 = vpop.f32.mrb[0].mxu0
      %v11344 = vadd.f32 0.0, %v11343
      %v11345 = vpop.f32.mrb[0].mxu0
      %11346 = vmatprep.mubr.bf16.mxu0 0
      %11347 = vmatmul.mubr.bf16.gmra.mrb[0].mxu0 %v11192
      %v11348 = vpop.f32.mrb[0].mxu0
      %v11349 = vadd.f32 0.0, %v11348
      %v11350 = vpop.f32.mrb[0].mxu0
      %v11351 = vpop.f32.mrb[0].mxu0
      %v11352 = vadd.f32 0.0, %v11351
      %v11353 = vpop.f32.mrb[0].mxu0
      %11354 = vmatprep.mubr.bf16.mxu0 0
      %11355 = vmatmul.mubr.bf16.gmra.mrb[0].mxu0 %v11200
      %v11356 = vpop.f32.mrb[0].mxu0
      %v11357 = vadd.f32 0.0, %v11356
      %v11358 = vpop.f32.mrb[0].mxu0
      %v11359 = vpop.f32.mrb[0].mxu0
      %v11360 = vadd.f32 0.0, %v11359
      %v11361 = vpop.f32.mrb[0].mxu0
      %11362 = vmatprep.mubr.bf16.mxu0 0
      %11363 = vmatmul.mubr.bf16.gmra.mrb[0].mxu0 %v11208
      %v11364 = vpop.f32.mrb[0].mxu0
      %v11365 = vadd.f32 0.0, %v11364
      %v11366 = vpop.f32.mrb[0].mxu0
      %v11367 = vpop.f32.mrb[0].mxu0
      %v11368 = vadd.f32 0.0, %v11367
      %v11369 = vpop.f32.mrb[0].mxu0
      %11370 = vmatprep.mubr.bf16.mxu0 0
      %11371 = vmatmul.mubr.bf16.gmra.mrb[0].mxu0 %v11216
      %v11372 = vpop.f32.mrb[0].mxu0
      %v11373 = vadd.f32 0.0, %v11372
      %v11374 = vpop.f32.mrb[0].mxu0
      %v11375 = vpop.f32.mrb[0].mxu0
      %v11376 = vadd.f32 0.0, %v11375
      %v11377 = vpop.f32.mrb[0].mxu0
      %11378 = vmatprep.mubr.bf16.mxu0 0
      %11379 = vmatmul.mubr.bf16.gmra.mrb[0].mxu0 %v11224
      %v11380 = vpop.f32.mrb[0].mxu0
      %v11381 = vadd.f32 0.0, %v11380
      %v11382 = vpop.f32.mrb[0].mxu0
      %v11383 = vpop.f32.mrb[0].mxu0
      %v11384 = vadd.f32 0.0, %v11383
      %v11385 = vpop.f32.mrb[0].mxu0
      %11386 = vmatprep.mubr.bf16.mxu0 0
      %11387 = vmatmul.mubr.bf16.gmra.mrb[0].mxu0 %v11232
      %v11388 = vpop.f32.mrb[0].mxu0
      %v11389 = vadd.f32 0.0, %v11388
      %v11390 = vpop.f32.mrb[0].mxu0
      %v11391 = vpop.f32.mrb[0].mxu0
      %v11392 = vadd.f32 0.0, %v11391
      %v11393 = vpop.f32.mrb[0].mxu0
      %11394 = vmatprep.mubr.bf16.mxu0 0
      %11395 = vmatmul.mubr.bf16.gmra.mrb[0].mxu0 %v11240
      %v11396 = vpop.f32.mrb[0].mxu0
      %v11397 = vadd.f32 0.0, %v11396
      %v11398 = vpop.f32.mrb[0].mxu0
      %v11399 = vpop.f32.mrb[0].mxu0
      %v11400 = vadd.f32 0.0, %v11399
      %v11401 = vpop.f32.mrb[0].mxu0
      %11402 = vmatprep.mubr.bf16.mxu0 0
      %11403 = vmatmul.mubr.bf16.gmra.mrb[0].mxu0 %v11248
      %v11404 = vpop.f32.mrb[0].mxu0
      %v11405 = vadd.f32 0.0, %v11404
      %v11406 = vpop.f32.mrb[0].mxu0
      %v11407 = vpop.f32.mrb[0].mxu0
      %v11408 = vadd.f32 0.0, %v11407
      %v11409 = vpop.f32.mrb[0].mxu0
      %11410 = vdwg.mxu0
      %v11411 = vadd.f32 %v11129, %v11341
      %v11412 = vadd.f32 %v11130, %v11344
      %v11413 = vadd.f32 %v11131, %v11349
      %v11414 = vadd.f32 %v11132, %v11352
      %v11415 = vadd.f32 %v11133, %v11357
      %v11416 = vadd.f32 %v11134, %v11360
      %v11417 = vadd.f32 %v11135, %v11365
      %v11418 = vadd.f32 %v11136, %v11368
      %v11419 = vadd.f32 %v11137, %v11373
      %v11420 = vadd.f32 %v11138, %v11376
      %v11421 = vadd.f32 %v11139, %v11381
      %v11422 = vadd.f32 %v11140, %v11384
      %v11423 = vadd.f32 %v11141, %v11389
      %v11424 = vadd.f32 %v11142, %v11392
      %v11425 = vadd.f32 %v11143, %v11397
      %v11426 = vadd.f32 %v11144, %v11400
      %v11427 = vadd.f32 %v11145, %v11405
      %v11428 = vadd.f32 %v11146, %v11408
      %v11429 = vld [vmem:[%s8443] sm:$0xf]
      %v11430 = vld [vmem:[%s8443 + $0x4] sm:$0xf]
      %v11431 = vld [vmem:[%s8443 + $0x8] sm:$0xf]
      %v11432 = vld [vmem:[%s8443 + $0xc] sm:$0xf]
      %v11433 = vld [vmem:[%s8443 + $0x10] sm:$0xf]
      %v11434 = vld [vmem:[%s8443 + $0x14] sm:$0xf]
      %v11435 = vld [vmem:[%s8443 + $0x18] sm:$0xf]
      %v11436 = vld [vmem:[%s8443 + $0x1c] sm:$0xf]
      %v11437 = vld [vmem:[%s8443 + $0x20] sm:$0xf]
      %v11438 = vld [vmem:[%s8443 + $0x24] sm:$0xf]
      %v11439 = vld [vmem:[%s8443 + $0x28] sm:$0xf]
      %v11440 = vld [vmem:[%s8443 + $0x2c] sm:$0xf]
      %v11441 = vld [vmem:[%s8443 + $0x30] sm:$0xf]
      %v11442 = vld [vmem:[%s8443 + $0x34] sm:$0xf]
      %v11443 = vld [vmem:[%s8443 + $0x38] sm:$0xf]
      %v11444 = vld [vmem:[%s8443 + $0x3c] sm:$0xf]
      %v11461 = vunpack.c.l.b16 %v11429
      %v11462 = vunpack.c.l.b16 %v11430
      %v11463 = vunpack.c.l.b16 %v11431
      %v11464 = vunpack.c.l.b16 %v11432
      %v11465 = vunpack.c.l.b16 %v11433
      %v11466 = vunpack.c.l.b16 %v11434
      %v11467 = vunpack.c.l.b16 %v11435
      %v11468 = vunpack.c.l.b16 %v11436
      %v11469 = vunpack.c.l.b16 %v11437
      %v11470 = vunpack.c.l.b16 %v11438
      %v11471 = vunpack.c.l.b16 %v11439
      %v11472 = vunpack.c.l.b16 %v11440
      %v11473 = vunpack.c.l.b16 %v11441
      %v11474 = vunpack.c.l.b16 %v11442
      %v11475 = vunpack.c.l.b16 %v11443
      %v11476 = vunpack.c.l.b16 %v11444
      %v11477 = vpack.c.b16 %v11462, %v11461
      %v11478 = vpack.c.b16 %v11464, %v11463
      %v11479 = vpack.c.b16 %v11466, %v11465
      %v11480 = vpack.c.b16 %v11468, %v11467
      %v11481 = vpack.c.b16 %v11470, %v11469
      %v11482 = vpack.c.b16 %v11472, %v11471
      %v11483 = vpack.c.b16 %v11474, %v11473
      %v11484 = vpack.c.b16 %v11476, %v11475
      %11493 = vmatprep.subr.bf16.mxu0 0
      %11494 = vmatpush1.bf16.msra.mxu0 %v11477
      %11495 = vmatprep.subr.bf16.mxu0 0
      %11496 = vmatpush1.bf16.msra.mxu0 %v11478
      %11497 = vmatprep.subr.bf16.mxu0 0
      %11498 = vmatpush1.bf16.msra.mxu0 %v11479
      %11499 = vmatprep.subr.bf16.mxu0 0
      %11500 = vmatpush1.bf16.msra.mxu0 %v11480
      %11501 = vmatprep.subr.bf16.mxu0 0
      %11502 = vmatpush1.bf16.msra.mxu0 %v11481
      %11503 = vmatprep.subr.bf16.mxu0 0
      %11504 = vmatpush1.bf16.msra.mxu0 %v11482
      %11505 = vmatprep.subr.bf16.mxu0 0
      %11506 = vmatpush1.bf16.msra.mxu0 %v11483
      %11507 = vmatprep.subr.bf16.mxu0 0
      %11508 = vmatpush1.bf16.msra.mxu0 %v11484
      %11509 = vmatprep.subr.bf16.mxu0 0
      %11510 = vmatpush1.bf16.msra.mxu0 0
      %11511 = vmatprep.subr.bf16.mxu0 0
      %11512 = vmatpush1.bf16.msra.mxu0 0
      %11513 = vmatprep.subr.bf16.mxu0 0
      %11514 = vmatpush1.bf16.msra.mxu0 0
      %11515 = vmatprep.subr.bf16.mxu0 0
      %11516 = vmatpush1.bf16.msra.mxu0 0
      %11517 = vmatprep.subr.bf16.mxu0 0
      %11518 = vmatpush1.bf16.msra.mxu0 0
      %11519 = vmatprep.subr.bf16.mxu0 0
      %11520 = vmatpush1.bf16.msra.mxu0 0
      %11521 = vmatprep.subr.bf16.mxu0 0
      %11522 = vmatpush1.bf16.msra.mxu0 0
      %11523 = vmatprep.subr.bf16.mxu0 0
      %11524 = vmatpush1.bf16.msra.mxu0 0
      %11525 = vmatprep.mubr.bf16.mxu0 0
      %11526 = vmatmul.mubr.bf16.gmra.mrb[0].mxu0 %v11148
      %v11527 = vpop.f32.mrb[0].mxu0
      %v11528 = vadd.f32 0.0, %v11527
      %v11529 = vpop.f32.mrb[0].mxu0
      %v11530 = vpop.f32.mrb[0].mxu0
      %v11531 = vadd.f32 0.0, %v11530
      %v11532 = vpop.f32.mrb[0].mxu0
      %11533 = vmatprep.mubr.bf16.mxu0 0
      %11534 = vmatmul.mubr.bf16.gmra.mrb[0].mxu0 %v11149
      %v11535 = vpop.f32.mrb[0].mxu0
      %v11536 = vadd.f32 0.0, %v11535
      %v11537 = vpop.f32.mrb[0].mxu0
      %v11538 = vpop.f32.mrb[0].mxu0
      %v11539 = vadd.f32 0.0, %v11538
      %v11540 = vpop.f32.mrb[0].mxu0
      %11541 = vmatprep.mubr.bf16.mxu0 0
      %11542 = vmatmul.mubr.bf16.gmra.mrb[0].mxu0 %v11150
      %v11543 = vpop.f32.mrb[0].mxu0
      %v11544 = vadd.f32 0.0, %v11543
      %v11545 = vpop.f32.mrb[0].mxu0
      %v11546 = vpop.f32.mrb[0].mxu0
      %v11547 = vadd.f32 0.0, %v11546
      %v11548 = vpop.f32.mrb[0].mxu0
      %11549 = vmatprep.mubr.bf16.mxu0 0
      %11550 = vmatmul.mubr.bf16.gmra.mrb[0].mxu0 %v11151
      %v11551 = vpop.f32.mrb[0].mxu0
      %v11552 = vadd.f32 0.0, %v11551
      %v11553 = vpop.f32.mrb[0].mxu0
      %v11554 = vpop.f32.mrb[0].mxu0
      %v11555 = vadd.f32 0.0, %v11554
      %v11556 = vpop.f32.mrb[0].mxu0
      %11557 = vmatprep.mubr.bf16.mxu0 0
      %11558 = vmatmul.mubr.bf16.gmra.mrb[0].mxu0 %v11152
      %v11559 = vpop.f32.mrb[0].mxu0
      %v11560 = vadd.f32 0.0, %v11559
      %v11561 = vpop.f32.mrb[0].mxu0
      %v11562 = vpop.f32.mrb[0].mxu0
      %v11563 = vadd.f32 0.0, %v11562
      %v11564 = vpop.f32.mrb[0].mxu0
      %11565 = vmatprep.mubr.bf16.mxu0 0
      %11566 = vmatmul.mubr.bf16.gmra.mrb[0].mxu0 %v11153
      %v11567 = vpop.f32.mrb[0].mxu0
      %v11568 = vadd.f32 0.0, %v11567
      %v11569 = vpop.f32.mrb[0].mxu0
      %v11570 = vpop.f32.mrb[0].mxu0
      %v11571 = vadd.f32 0.0, %v11570
      %v11572 = vpop.f32.mrb[0].mxu0
      %11573 = vmatprep.mubr.bf16.mxu0 0
      %11574 = vmatmul.mubr.bf16.gmra.mrb[0].mxu0 %v11154
      %v11575 = vpop.f32.mrb[0].mxu0
      %v11576 = vadd.f32 0.0, %v11575
      %v11577 = vpop.f32.mrb[0].mxu0
      %v11578 = vpop.f32.mrb[0].mxu0
      %v11579 = vadd.f32 0.0, %v11578
      %v11580 = vpop.f32.mrb[0].mxu0
      %11581 = vmatprep.mubr.bf16.mxu0 0
      %11582 = vmatmul.mubr.bf16.gmra.mrb[0].mxu0 %v11155
      %v11583 = vpop.f32.mrb[0].mxu0
      %v11584 = vadd.f32 0.0, %v11583
      %v11585 = vpop.f32.mrb[0].mxu0
      %v11586 = vpop.f32.mrb[0].mxu0
      %v11587 = vadd.f32 0.0, %v11586
      %v11588 = vpop.f32.mrb[0].mxu0
      %11589 = vmatprep.mubr.bf16.mxu0 0
      %11590 = vmatmul.mubr.bf16.gmra.mrb[0].mxu0 %v11156
      %v11591 = vpop.f32.mrb[0].mxu0
      %v11592 = vadd.f32 0.0, %v11591
      %v11593 = vpop.f32.mrb[0].mxu0
      %v11594 = vpop.f32.mrb[0].mxu0
      %v11595 = vadd.f32 0.0, %v11594
      %v11596 = vpop.f32.mrb[0].mxu0
      %11597 = vdwg.mxu0
      %v11598 = vadd.f32 %v11411, %v11528
      %v11599 = vadd.f32 %v11412, %v11531
      %v11600 = vadd.f32 %v11413, %v11536
      %v11601 = vadd.f32 %v11414, %v11539
      %v11602 = vadd.f32 %v11415, %v11544
      %v11603 = vadd.f32 %v11416, %v11547
      %v11604 = vadd.f32 %v11417, %v11552
      %v11605 = vadd.f32 %v11418, %v11555
      %v11606 = vadd.f32 %v11419, %v11560
      %v11607 = vadd.f32 %v11420, %v11563
      %v11608 = vadd.f32 %v11421, %v11568
      %v11609 = vadd.f32 %v11422, %v11571
      %v11610 = vadd.f32 %v11423, %v11576
      %v11611 = vadd.f32 %v11424, %v11579
      %v11612 = vadd.f32 %v11425, %v11584
      %v11613 = vadd.f32 %v11426, %v11587
      %v11614 = vadd.f32 %v11427, %v11592
      %v11615 = vadd.f32 %v11428, %v11595
      %v11616 = vld [vmem:[#allocation2 + $0x88] sm:$0xff]
      %v11617 = vld [vmem:[#allocation2 + $0x90] sm:$0xff]
      %v11618 = vld [vmem:[#allocation2 + $0x98] sm:$0xff]
      %v11619 = vld [vmem:[#allocation2 + $0xa0] sm:$0xff]
      %v11620 = vld [vmem:[#allocation2 + $0xa8] sm:$0xff]
      %v11621 = vld [vmem:[#allocation2 + $0xb0] sm:$0xff]
      %v11622 = vld [vmem:[#allocation2 + $0xb8] sm:$0xff]
      %v11623 = vld [vmem:[#allocation2 + $0xc0] sm:$0xff]
      %v11624 = vld [vmem:[#allocation2 + $0xc8] sm:$0xff]
      %v11625 = vld [vmem:[#allocation2 + $0xd0] sm:$0x1]
      %v11626 = vld [vmem:[%s8707] sm:$0xf]
      %v11627 = vld [vmem:[%s8707 + $0x4] sm:$0xf]
      %v11628 = vld [vmem:[%s8707 + $0x8] sm:$0xf]
      %v11629 = vld [vmem:[%s8707 + $0xc] sm:$0xf]
      %v11630 = vld [vmem:[%s8707 + $0x10] sm:$0xf]
      %v11631 = vld [vmem:[%s8707 + $0x14] sm:$0xf]
      %v11632 = vld [vmem:[%s8707 + $0x18] sm:$0xf]
      %v11633 = vld [vmem:[%s8707 + $0x1c] sm:$0xf]
      %v11634 = vld [vmem:[%s8707 + $0x20] sm:$0xf]
      %v11635 = vld [vmem:[%s8707 + $0x24] sm:$0xf]
      %v11636 = vld [vmem:[%s8707 + $0x28] sm:$0xf]
      %v11637 = vld [vmem:[%s8707 + $0x2c] sm:$0xf]
      %v11638 = vld [vmem:[%s8707 + $0x30] sm:$0xf]
      %v11639 = vld [vmem:[%s8707 + $0x34] sm:$0xf]
      %v11640 = vld [vmem:[%s8707 + $0x38] sm:$0xf]
      %v11641 = vld [vmem:[%s8707 + $0x3c] sm:$0xf]
      %v11643 = vshrl.u32 %v11616, 16
      %v11645 = vshll.u32 %v11616, 16
      %v11647 = vrot.slane %v11645, 1
      %v11648 = vor.u32 %v11643, %v11647
      %v11650 = vshll.u32 %v11617, 16
      %v11652 = vrot.slane %v11650, 1
      %v11653 = vsel %vm1160, %v11648, %v11652
      %v11654 = vshrl.u32 %v11617, 16
      %v11656 = vor.u32 %v11654, %v11652
      %v11658 = vshll.u32 %v11618, 16
      %v11660 = vrot.slane %v11658, 1
      %v11661 = vsel %vm1160, %v11656, %v11660
      %v11662 = vshrl.u32 %v11618, 16
      %v11664 = vor.u32 %v11662, %v11660
      %v11666 = vshll.u32 %v11619, 16
      %v11668 = vrot.slane %v11666, 1
      %v11669 = vsel %vm1160, %v11664, %v11668
      %v11670 = vshrl.u32 %v11619, 16
      %v11672 = vor.u32 %v11670, %v11668
      %v11674 = vshll.u32 %v11620, 16
      %v11676 = vrot.slane %v11674, 1
      %v11677 = vsel %vm1160, %v11672, %v11676
      %v11678 = vshrl.u32 %v11620, 16
      %v11680 = vor.u32 %v11678, %v11676
      %v11682 = vshll.u32 %v11621, 16
      %v11684 = vrot.slane %v11682, 1
      %v11685 = vsel %vm1160, %v11680, %v11684
      %v11686 = vshrl.u32 %v11621, 16
      %v11688 = vor.u32 %v11686, %v11684
      %v11690 = vshll.u32 %v11622, 16
      %v11692 = vrot.slane %v11690, 1
      %v11693 = vsel %vm1160, %v11688, %v11692
      %v11694 = vshrl.u32 %v11622, 16
      %v11696 = vor.u32 %v11694, %v11692
      %v11698 = vshll.u32 %v11623, 16
      %v11700 = vrot.slane %v11698, 1
      %v11701 = vsel %vm1160, %v11696, %v11700
      %v11702 = vshrl.u32 %v11623, 16
      %v11704 = vor.u32 %v11702, %v11700
      %v11706 = vshll.u32 %v11624, 16
      %v11708 = vrot.slane %v11706, 1
      %v11709 = vsel %vm1160, %v11704, %v11708
      %v11710 = vshrl.u32 %v11624, 16
      %v11712 = vor.u32 %v11710, %v11708
      %v11714 = vshll.u32 %v11625, 16
      %v11716 = vrot.slane %v11714, 1
      %v11717 = vsel %vm1160, %v11712, %v11716
      %v11743 = vunpack.c.l.b16 %v11626
      %v11744 = vunpack.c.l.b16 %v11627
      %v11745 = vunpack.c.l.b16 %v11628
      %v11746 = vunpack.c.l.b16 %v11629
      %v11747 = vunpack.c.l.b16 %v11630
      %v11748 = vunpack.c.l.b16 %v11631
      %v11749 = vunpack.c.l.b16 %v11632
      %v11750 = vunpack.c.l.b16 %v11633
      %v11751 = vunpack.c.l.b16 %v11634
      %v11752 = vunpack.c.l.b16 %v11635
      %v11753 = vunpack.c.l.b16 %v11636
      %v11754 = vunpack.c.l.b16 %v11637
      %v11755 = vunpack.c.l.b16 %v11638
      %v11756 = vunpack.c.l.b16 %v11639
      %v11757 = vunpack.c.l.b16 %v11640
      %v11758 = vunpack.c.l.b16 %v11641
      %v11759 = vpack.c.b16 %v11744, %v11743
      %v11760 = vpack.c.b16 %v11746, %v11745
      %v11761 = vpack.c.b16 %v11748, %v11747
      %v11762 = vpack.c.b16 %v11750, %v11749
      %v11763 = vpack.c.b16 %v11752, %v11751
      %v11764 = vpack.c.b16 %v11754, %v11753
      %v11765 = vpack.c.b16 %v11756, %v11755
      %v11766 = vpack.c.b16 %v11758, %v11757
      %11775 = vmatprep.subr.bf16.mxu0 0
      %11776 = vmatpush1.bf16.msra.mxu0 %v11759
      %11777 = vmatprep.subr.bf16.mxu0 0
      %11778 = vmatpush1.bf16.msra.mxu0 %v11760
      %11779 = vmatprep.subr.bf16.mxu0 0
      %11780 = vmatpush1.bf16.msra.mxu0 %v11761
      %11781 = vmatprep.subr.bf16.mxu0 0
      %11782 = vmatpush1.bf16.msra.mxu0 %v11762
      %11783 = vmatprep.subr.bf16.mxu0 0
      %11784 = vmatpush1.bf16.msra.mxu0 %v11763
      %11785 = vmatprep.subr.bf16.mxu0 0
      %11786 = vmatpush1.bf16.msra.mxu0 %v11764
      %11787 = vmatprep.subr.bf16.mxu0 0
      %11788 = vmatpush1.bf16.msra.mxu0 %v11765
      %11789 = vmatprep.subr.bf16.mxu0 0
      %11790 = vmatpush1.bf16.msra.mxu0 %v11766
      %11791 = vmatprep.subr.bf16.mxu0 0
      %11792 = vmatpush1.bf16.msra.mxu0 0
      %11793 = vmatprep.subr.bf16.mxu0 0
      %11794 = vmatpush1.bf16.msra.mxu0 0
      %11795 = vmatprep.subr.bf16.mxu0 0
      %11796 = vmatpush1.bf16.msra.mxu0 0
      %11797 = vmatprep.subr.bf16.mxu0 0
      %11798 = vmatpush1.bf16.msra.mxu0 0
      %11799 = vmatprep.subr.bf16.mxu0 0
      %11800 = vmatpush1.bf16.msra.mxu0 0
      %11801 = vmatprep.subr.bf16.mxu0 0
      %11802 = vmatpush1.bf16.msra.mxu0 0
      %11803 = vmatprep.subr.bf16.mxu0 0
      %11804 = vmatpush1.bf16.msra.mxu0 0
      %11805 = vmatprep.subr.bf16.mxu0 0
      %11806 = vmatpush1.bf16.msra.mxu0 0
      %11807 = vmatprep.mubr.bf16.mxu0 0
      %11808 = vmatmul.mubr.bf16.gmra.mrb[0].mxu0 %v11653
      %v11809 = vpop.f32.mrb[0].mxu0
      %v11810 = vadd.f32 0.0, %v11809
      %v11811 = vpop.f32.mrb[0].mxu0
      %v11812 = vpop.f32.mrb[0].mxu0
      %v11813 = vadd.f32 0.0, %v11812
      %v11814 = vpop.f32.mrb[0].mxu0
      %11815 = vmatprep.mubr.bf16.mxu0 0
      %11816 = vmatmul.mubr.bf16.gmra.mrb[0].mxu0 %v11661
      %v11817 = vpop.f32.mrb[0].mxu0
      %v11818 = vadd.f32 0.0, %v11817
      %v11819 = vpop.f32.mrb[0].mxu0
      %v11820 = vpop.f32.mrb[0].mxu0
      %v11821 = vadd.f32 0.0, %v11820
      %v11822 = vpop.f32.mrb[0].mxu0
      %11823 = vmatprep.mubr.bf16.mxu0 0
      %11824 = vmatmul.mubr.bf16.gmra.mrb[0].mxu0 %v11669
      %v11825 = vpop.f32.mrb[0].mxu0
      %v11826 = vadd.f32 0.0, %v11825
      %v11827 = vpop.f32.mrb[0].mxu0
      %v11828 = vpop.f32.mrb[0].mxu0
      %v11829 = vadd.f32 0.0, %v11828
      %v11830 = vpop.f32.mrb[0].mxu0
      %11831 = vmatprep.mubr.bf16.mxu0 0
      %11832 = vmatmul.mubr.bf16.gmra.mrb[0].mxu0 %v11677
      %v11833 = vpop.f32.mrb[0].mxu0
      %v11834 = vadd.f32 0.0, %v11833
      %v11835 = vpop.f32.mrb[0].mxu0
      %v11836 = vpop.f32.mrb[0].mxu0
      %v11837 = vadd.f32 0.0, %v11836
      %v11838 = vpop.f32.mrb[0].mxu0
      %11839 = vmatprep.mubr.bf16.mxu0 0
      %11840 = vmatmul.mubr.bf16.gmra.mrb[0].mxu0 %v11685
      %v11841 = vpop.f32.mrb[0].mxu0
      %v11842 = vadd.f32 0.0, %v11841
      %v11843 = vpop.f32.mrb[0].mxu0
      %v11844 = vpop.f32.mrb[0].mxu0
      %v11845 = vadd.f32 0.0, %v11844
      %v11846 = vpop.f32.mrb[0].mxu0
      %11847 = vmatprep.mubr.bf16.mxu0 0
      %11848 = vmatmul.mubr.bf16.gmra.mrb[0].mxu0 %v11693
      %v11849 = vpop.f32.mrb[0].mxu0
      %v11850 = vadd.f32 0.0, %v11849
      %v11851 = vpop.f32.mrb[0].mxu0
      %v11852 = vpop.f32.mrb[0].mxu0
      %v11853 = vadd.f32 0.0, %v11852
      %v11854 = vpop.f32.mrb[0].mxu0
      %11855 = vmatprep.mubr.bf16.mxu0 0
      %11856 = vmatmul.mubr.bf16.gmra.mrb[0].mxu0 %v11701
      %v11857 = vpop.f32.mrb[0].mxu0
      %v11858 = vadd.f32 0.0, %v11857
      %v11859 = vpop.f32.mrb[0].mxu0
      %v11860 = vpop.f32.mrb[0].mxu0
      %v11861 = vadd.f32 0.0, %v11860
      %v11862 = vpop.f32.mrb[0].mxu0
      %11863 = vmatprep.mubr.bf16.mxu0 0
      %11864 = vmatmul.mubr.bf16.gmra.mrb[0].mxu0 %v11709
      %v11865 = vpop.f32.mrb[0].mxu0
      %v11866 = vadd.f32 0.0, %v11865
      %v11867 = vpop.f32.mrb[0].mxu0
      %v11868 = vpop.f32.mrb[0].mxu0
      %v11869 = vadd.f32 0.0, %v11868
      %v11870 = vpop.f32.mrb[0].mxu0
      %11871 = vmatprep.mubr.bf16.mxu0 0
      %11872 = vmatmul.mubr.bf16.gmra.mrb[0].mxu0 %v11717
      %v11873 = vpop.f32.mrb[0].mxu0
      %v11874 = vadd.f32 0.0, %v11873
      %v11875 = vpop.f32.mrb[0].mxu0
      %v11876 = vpop.f32.mrb[0].mxu0
      %v11877 = vadd.f32 0.0, %v11876
      %v11878 = vpop.f32.mrb[0].mxu0
      %11879 = vdwg.mxu0
      %v11880 = vadd.f32 %v11598, %v11810
      %v11881 = vadd.f32 %v11599, %v11813
      %v11882 = vadd.f32 %v11600, %v11818
      %v11883 = vadd.f32 %v11601, %v11821
      %v11884 = vadd.f32 %v11602, %v11826
      %v11885 = vadd.f32 %v11603, %v11829
      %v11886 = vadd.f32 %v11604, %v11834
      %v11887 = vadd.f32 %v11605, %v11837
      %v11888 = vadd.f32 %v11606, %v11842
      %v11889 = vadd.f32 %v11607, %v11845
      %v11890 = vadd.f32 %v11608, %v11850
      %v11891 = vadd.f32 %v11609, %v11853
      %v11892 = vadd.f32 %v11610, %v11858
      %v11893 = vadd.f32 %v11611, %v11861
      %v11894 = vadd.f32 %v11612, %v11866
      %v11895 = vadd.f32 %v11613, %v11869
      %v11896 = vadd.f32 %v11614, %v11874
      %v11897 = vadd.f32 %v11615, %v11877
      %v11898 = vld [vmem:[#allocation2 + $0x90] sm:$0xf8]
      %v11899 = vld [vmem:[#allocation2 + $0x98] sm:$0xff]
      %v11900 = vld [vmem:[#allocation2 + $0xa0] sm:$0xff]
      %v11901 = vld [vmem:[#allocation2 + $0xa8] sm:$0xff]
      %v11902 = vld [vmem:[#allocation2 + $0xb0] sm:$0xff]
      %v11903 = vld [vmem:[#allocation2 + $0xb8] sm:$0xff]
      %v11904 = vld [vmem:[#allocation2 + $0xc0] sm:$0xff]
      %v11905 = vld [vmem:[#allocation2 + $0xc8] sm:$0xff]
      %v11906 = vld [vmem:[#allocation2 + $0xd0] sm:$0xff]
      %v11907 = vld [vmem:[#allocation2 + $0xd8] sm:$0xf]
      %v11908 = vld [vmem:[%s9110] sm:$0xf]
      %v11909 = vld [vmem:[%s9110 + $0x4] sm:$0xf]
      %v11910 = vld [vmem:[%s9110 + $0x8] sm:$0xf]
      %v11911 = vld [vmem:[%s9110 + $0xc] sm:$0xf]
      %v11912 = vld [vmem:[%s9110 + $0x10] sm:$0xf]
      %v11913 = vld [vmem:[%s9110 + $0x14] sm:$0xf]
      %v11914 = vld [vmem:[%s9110 + $0x18] sm:$0xf]
      %v11915 = vld [vmem:[%s9110 + $0x1c] sm:$0xf]
      %v11916 = vld [vmem:[%s9110 + $0x20] sm:$0xf]
      %v11917 = vld [vmem:[%s9110 + $0x24] sm:$0xf]
      %v11918 = vld [vmem:[%s9110 + $0x28] sm:$0xf]
      %v11919 = vld [vmem:[%s9110 + $0x2c] sm:$0xf]
      %v11920 = vld [vmem:[%s9110 + $0x30] sm:$0xf]
      %v11921 = vld [vmem:[%s9110 + $0x34] sm:$0xf]
      %v11922 = vld [vmem:[%s9110 + $0x38] sm:$0xf]
      %v11923 = vld [vmem:[%s9110 + $0x3c] sm:$0xf]
      %v11925 = vshrl.u32 %v11898, 16
      %v11927 = vrot.slane %v11925, 3
      %v11928 = vshll.u32 %v11898, 16
      %v11930 = vrot.slane %v11928, 4
      %v11931 = vor.u32 %v11927, %v11930
      %v11933 = vshrl.u32 %v11899, 16
      %v11935 = vrot.slane %v11933, 3
      %v11936 = vshll.u32 %v11899, 16
      %v11938 = vrot.slane %v11936, 4
      %v11939 = vor.u32 %v11935, %v11938
      %v11940 = vsel %vm674, %v11931, %v11939
      %v11942 = vshrl.u32 %v11900, 16
      %v11944 = vrot.slane %v11942, 3
      %v11945 = vshll.u32 %v11900, 16
      %v11947 = vrot.slane %v11945, 4
      %v11948 = vor.u32 %v11944, %v11947
      %v11949 = vsel %vm674, %v11939, %v11948
      %v11951 = vshrl.u32 %v11901, 16
      %v11953 = vrot.slane %v11951, 3
      %v11954 = vshll.u32 %v11901, 16
      %v11956 = vrot.slane %v11954, 4
      %v11957 = vor.u32 %v11953, %v11956
      %v11958 = vsel %vm674, %v11948, %v11957
      %v11960 = vshrl.u32 %v11902, 16
      %v11962 = vrot.slane %v11960, 3
      %v11963 = vshll.u32 %v11902, 16
      %v11965 = vrot.slane %v11963, 4
      %v11966 = vor.u32 %v11962, %v11965
      %v11967 = vsel %vm674, %v11957, %v11966
      %v11969 = vshrl.u32 %v11903, 16
      %v11971 = vrot.slane %v11969, 3
      %v11972 = vshll.u32 %v11903, 16
      %v11974 = vrot.slane %v11972, 4
      %v11975 = vor.u32 %v11971, %v11974
      %v11976 = vsel %vm674, %v11966, %v11975
      %v11978 = vshrl.u32 %v11904, 16
      %v11980 = vrot.slane %v11978, 3
      %v11981 = vshll.u32 %v11904, 16
      %v11983 = vrot.slane %v11981, 4
      %v11984 = vor.u32 %v11980, %v11983
      %v11985 = vsel %vm674, %v11975, %v11984
      %v11987 = vshrl.u32 %v11905, 16
      %v11989 = vrot.slane %v11987, 3
      %v11990 = vshll.u32 %v11905, 16
      %v11992 = vrot.slane %v11990, 4
      %v11993 = vor.u32 %v11989, %v11992
      %v11994 = vsel %vm674, %v11984, %v11993
      %v11996 = vshrl.u32 %v11906, 16
      %v11998 = vrot.slane %v11996, 3
      %v11999 = vshll.u32 %v11906, 16
      %v12001 = vrot.slane %v11999, 4
      %v12002 = vor.u32 %v11998, %v12001
      %v12003 = vsel %vm674, %v11993, %v12002
      %v12005 = vshrl.u32 %v11907, 16
      %v12007 = vrot.slane %v12005, 3
      %v12008 = vshll.u32 %v11907, 16
      %v12010 = vrot.slane %v12008, 4
      %v12011 = vor.u32 %v12007, %v12010
      %v12012 = vsel %vm674, %v12002, %v12011
      %v12038 = vunpack.c.l.b16 %v11908
      %v12039 = vunpack.c.l.b16 %v11909
      %v12040 = vunpack.c.l.b16 %v11910
      %v12041 = vunpack.c.l.b16 %v11911
      %v12042 = vunpack.c.l.b16 %v11912
      %v12043 = vunpack.c.l.b16 %v11913
      %v12044 = vunpack.c.l.b16 %v11914
      %v12045 = vunpack.c.l.b16 %v11915
      %v12046 = vunpack.c.l.b16 %v11916
      %v12047 = vunpack.c.l.b16 %v11917
      %v12048 = vunpack.c.l.b16 %v11918
      %v12049 = vunpack.c.l.b16 %v11919
      %v12050 = vunpack.c.l.b16 %v11920
      %v12051 = vunpack.c.l.b16 %v11921
      %v12052 = vunpack.c.l.b16 %v11922
      %v12053 = vunpack.c.l.b16 %v11923
      %v12054 = vpack.c.b16 %v12039, %v12038
      %v12055 = vpack.c.b16 %v12041, %v12040
      %v12056 = vpack.c.b16 %v12043, %v12042
      %v12057 = vpack.c.b16 %v12045, %v12044
      %v12058 = vpack.c.b16 %v12047, %v12046
      %v12059 = vpack.c.b16 %v12049, %v12048
      %v12060 = vpack.c.b16 %v12051, %v12050
      %v12061 = vpack.c.b16 %v12053, %v12052
      %12070 = vmatprep.subr.bf16.mxu0 0
      %12071 = vmatpush1.bf16.msra.mxu0 %v12054
      %12072 = vmatprep.subr.bf16.mxu0 0
      %12073 = vmatpush1.bf16.msra.mxu0 %v12055
      %12074 = vmatprep.subr.bf16.mxu0 0
      %12075 = vmatpush1.bf16.msra.mxu0 %v12056
      %12076 = vmatprep.subr.bf16.mxu0 0
      %12077 = vmatpush1.bf16.msra.mxu0 %v12057
      %12078 = vmatprep.subr.bf16.mxu0 0
      %12079 = vmatpush1.bf16.msra.mxu0 %v12058
      %12080 = vmatprep.subr.bf16.mxu0 0
      %12081 = vmatpush1.bf16.msra.mxu0 %v12059
      %12082 = vmatprep.subr.bf16.mxu0 0
      %12083 = vmatpush1.bf16.msra.mxu0 %v12060
      %12084 = vmatprep.subr.bf16.mxu0 0
      %12085 = vmatpush1.bf16.msra.mxu0 %v12061
      %12086 = vmatprep.subr.bf16.mxu0 0
      %12087 = vmatpush1.bf16.msra.mxu0 0
      %12088 = vmatprep.subr.bf16.mxu0 0
      %12089 = vmatpush1.bf16.msra.mxu0 0
      %12090 = vmatprep.subr.bf16.mxu0 0
      %12091 = vmatpush1.bf16.msra.mxu0 0
      %12092 = vmatprep.subr.bf16.mxu0 0
      %12093 = vmatpush1.bf16.msra.mxu0 0
      %12094 = vmatprep.subr.bf16.mxu0 0
      %12095 = vmatpush1.bf16.msra.mxu0 0
      %12096 = vmatprep.subr.bf16.mxu0 0
      %12097 = vmatpush1.bf16.msra.mxu0 0
      %12098 = vmatprep.subr.bf16.mxu0 0
      %12099 = vmatpush1.bf16.msra.mxu0 0
      %12100 = vmatprep.subr.bf16.mxu0 0
      %12101 = vmatpush1.bf16.msra.mxu0 0
      %12102 = vmatprep.mubr.bf16.mxu0 0
      %12103 = vmatmul.mubr.bf16.gmra.mrb[0].mxu0 %v11940
      %v12104 = vpop.f32.mrb[0].mxu0
      %v12105 = vadd.f32 0.0, %v12104
      %v12106 = vpop.f32.mrb[0].mxu0
      %v12107 = vpop.f32.mrb[0].mxu0
      %v12108 = vadd.f32 0.0, %v12107
      %v12109 = vpop.f32.mrb[0].mxu0
      %12110 = vmatprep.mubr.bf16.mxu0 0
      %12111 = vmatmul.mubr.bf16.gmra.mrb[0].mxu0 %v11949
      %v12112 = vpop.f32.mrb[0].mxu0
      %v12113 = vadd.f32 0.0, %v12112
      %v12114 = vpop.f32.mrb[0].mxu0
      %v12115 = vpop.f32.mrb[0].mxu0
      %v12116 = vadd.f32 0.0, %v12115
      %v12117 = vpop.f32.mrb[0].mxu0
      %12118 = vmatprep.mubr.bf16.mxu0 0
      %12119 = vmatmul.mubr.bf16.gmra.mrb[0].mxu0 %v11958
      %v12120 = vpop.f32.mrb[0].mxu0
      %v12121 = vadd.f32 0.0, %v12120
      %v12122 = vpop.f32.mrb[0].mxu0
      %v12123 = vpop.f32.mrb[0].mxu0
      %v12124 = vadd.f32 0.0, %v12123
      %v12125 = vpop.f32.mrb[0].mxu0
      %12126 = vmatprep.mubr.bf16.mxu0 0
      %12127 = vmatmul.mubr.bf16.gmra.mrb[0].mxu0 %v11967
      %v12128 = vpop.f32.mrb[0].mxu0
      %v12129 = vadd.f32 0.0, %v12128
      %v12130 = vpop.f32.mrb[0].mxu0
      %v12131 = vpop.f32.mrb[0].mxu0
      %v12132 = vadd.f32 0.0, %v12131
      %v12133 = vpop.f32.mrb[0].mxu0
      %12134 = vmatprep.mubr.bf16.mxu0 0
      %12135 = vmatmul.mubr.bf16.gmra.mrb[0].mxu0 %v11976
      %v12136 = vpop.f32.mrb[0].mxu0
      %v12137 = vadd.f32 0.0, %v12136
      %v12138 = vpop.f32.mrb[0].mxu0
      %v12139 = vpop.f32.mrb[0].mxu0
      %v12140 = vadd.f32 0.0, %v12139
      %v12141 = vpop.f32.mrb[0].mxu0
      %12142 = vmatprep.mubr.bf16.mxu0 0
      %12143 = vmatmul.mubr.bf16.gmra.mrb[0].mxu0 %v11985
      %v12144 = vpop.f32.mrb[0].mxu0
      %v12145 = vadd.f32 0.0, %v12144
      %v12146 = vpop.f32.mrb[0].mxu0
      %v12147 = vpop.f32.mrb[0].mxu0
      %v12148 = vadd.f32 0.0, %v12147
      %v12149 = vpop.f32.mrb[0].mxu0
      %12150 = vmatprep.mubr.bf16.mxu0 0
      %12151 = vmatmul.mubr.bf16.gmra.mrb[0].mxu0 %v11994
      %v12152 = vpop.f32.mrb[0].mxu0
      %v12153 = vadd.f32 0.0, %v12152
      %v12154 = vpop.f32.mrb[0].mxu0
      %v12155 = vpop.f32.mrb[0].mxu0
      %v12156 = vadd.f32 0.0, %v12155
      %v12157 = vpop.f32.mrb[0].mxu0
      %12158 = vmatprep.mubr.bf16.mxu0 0
      %12159 = vmatmul.mubr.bf16.gmra.mrb[0].mxu0 %v12003
      %v12160 = vpop.f32.mrb[0].mxu0
      %v12161 = vadd.f32 0.0, %v12160
      %v12162 = vpop.f32.mrb[0].mxu0
      %v12163 = vpop.f32.mrb[0].mxu0
      %v12164 = vadd.f32 0.0, %v12163
      %v12165 = vpop.f32.mrb[0].mxu0
      %12166 = vmatprep.mubr.bf16.mxu0 0
      %12167 = vmatmul.mubr.bf16.gmra.mrb[0].mxu0 %v12012
      %v12168 = vpop.f32.mrb[0].mxu0
      %v12169 = vadd.f32 0.0, %v12168
      %v12170 = vpop.f32.mrb[0].mxu0
      %v12171 = vpop.f32.mrb[0].mxu0
      %v12172 = vadd.f32 0.0, %v12171
      %v12173 = vpop.f32.mrb[0].mxu0
      %12174 = vdwg.mxu0
      %v12175 = vadd.f32 %v11880, %v12105
      %v12176 = vadd.f32 %v11881, %v12108
      %v12177 = vadd.f32 %v11882, %v12113
      %v12178 = vadd.f32 %v11883, %v12116
      %v12179 = vadd.f32 %v11884, %v12121
      %v12180 = vadd.f32 %v11885, %v12124
      %v12181 = vadd.f32 %v11886, %v12129
      %v12182 = vadd.f32 %v11887, %v12132
      %v12183 = vadd.f32 %v11888, %v12137
      %v12184 = vadd.f32 %v11889, %v12140
      %v12185 = vadd.f32 %v11890, %v12145
      %v12186 = vadd.f32 %v11891, %v12148
      %v12187 = vadd.f32 %v11892, %v12153
      %v12188 = vadd.f32 %v11893, %v12156
      %v12189 = vadd.f32 %v11894, %v12161
      %v12190 = vadd.f32 %v11895, %v12164
      %v12191 = vadd.f32 %v11896, %v12169
      %v12192 = vadd.f32 %v11897, %v12172
      %v12193 = vld [vmem:[#allocation2 + $0x90] sm:$0xf0]
      %v12194 = vld [vmem:[%s9517] sm:$0xf]
      %v12195 = vld [vmem:[%s9517 + $0x4] sm:$0xf]
      %v12196 = vld [vmem:[%s9517 + $0x8] sm:$0xf]
      %v12197 = vld [vmem:[%s9517 + $0xc] sm:$0xf]
      %v12198 = vld [vmem:[%s9517 + $0x10] sm:$0xf]
      %v12199 = vld [vmem:[%s9517 + $0x14] sm:$0xf]
      %v12200 = vld [vmem:[%s9517 + $0x18] sm:$0xf]
      %v12201 = vld [vmem:[%s9517 + $0x1c] sm:$0xf]
      %v12202 = vld [vmem:[%s9517 + $0x20] sm:$0xf]
      %v12203 = vld [vmem:[%s9517 + $0x24] sm:$0xf]
      %v12204 = vld [vmem:[%s9517 + $0x28] sm:$0xf]
      %v12205 = vld [vmem:[%s9517 + $0x2c] sm:$0xf]
      %v12206 = vld [vmem:[%s9517 + $0x30] sm:$0xf]
      %v12207 = vld [vmem:[%s9517 + $0x34] sm:$0xf]
      %v12208 = vld [vmem:[%s9517 + $0x38] sm:$0xf]
      %v12209 = vld [vmem:[%s9517 + $0x3c] sm:$0xf]
      %v12220 = vrot.slane %v12193, 4
      %v12221 = vrot.slane %v11899, 4
      %v12222 = vsel %vm7094, %v12220, %v12221
      %v12223 = vrot.slane %v11900, 4
      %v12224 = vsel %vm7094, %v12221, %v12223
      %v12225 = vrot.slane %v11901, 4
      %v12226 = vsel %vm7094, %v12223, %v12225
      %v12227 = vrot.slane %v11902, 4
      %v12228 = vsel %vm7094, %v12225, %v12227
      %v12229 = vrot.slane %v11903, 4
      %v12230 = vsel %vm7094, %v12227, %v12229
      %v12231 = vrot.slane %v11904, 4
      %v12232 = vsel %vm7094, %v12229, %v12231
      %v12233 = vrot.slane %v11905, 4
      %v12234 = vsel %vm7094, %v12231, %v12233
      %v12235 = vrot.slane %v11906, 4
      %v12236 = vsel %vm7094, %v12233, %v12235
      %v12237 = vrot.slane %v11907, 4
      %v12238 = vsel %vm7094, %v12235, %v12237
      %v12264 = vunpack.c.l.b16 %v12194
      %v12265 = vunpack.c.l.b16 %v12195
      %v12266 = vunpack.c.l.b16 %v12196
      %v12267 = vunpack.c.l.b16 %v12197
      %v12268 = vunpack.c.l.b16 %v12198
      %v12269 = vunpack.c.l.b16 %v12199
      %v12270 = vunpack.c.l.b16 %v12200
      %v12271 = vunpack.c.l.b16 %v12201
      %v12272 = vunpack.c.l.b16 %v12202
      %v12273 = vunpack.c.l.b16 %v12203
      %v12274 = vunpack.c.l.b16 %v12204
      %v12275 = vunpack.c.l.b16 %v12205
      %v12276 = vunpack.c.l.b16 %v12206
      %v12277 = vunpack.c.l.b16 %v12207
      %v12278 = vunpack.c.l.b16 %v12208
      %v12279 = vunpack.c.l.b16 %v12209
      %v12280 = vpack.c.b16 %v12265, %v12264
      %v12281 = vpack.c.b16 %v12267, %v12266
      %v12282 = vpack.c.b16 %v12269, %v12268
      %v12283 = vpack.c.b16 %v12271, %v12270
      %v12284 = vpack.c.b16 %v12273, %v12272
      %v12285 = vpack.c.b16 %v12275, %v12274
      %v12286 = vpack.c.b16 %v12277, %v12276
      %v12287 = vpack.c.b16 %v12279, %v12278
      %12296 = vmatprep.subr.bf16.mxu0 0
      %12297 = vmatpush1.bf16.msra.mxu0 %v12280
      %12298 = vmatprep.subr.bf16.mxu0 0
      %12299 = vmatpush1.bf16.msra.mxu0 %v12281
      %12300 = vmatprep.subr.bf16.mxu0 0
      %12301 = vmatpush1.bf16.msra.mxu0 %v12282
      %12302 = vmatprep.subr.bf16.mxu0 0
      %12303 = vmatpush1.bf16.msra.mxu0 %v12283
      %12304 = vmatprep.subr.bf16.mxu0 0
      %12305 = vmatpush1.bf16.msra.mxu0 %v12284
      %12306 = vmatprep.subr.bf16.mxu0 0
      %12307 = vmatpush1.bf16.msra.mxu0 %v12285
      %12308 = vmatprep.subr.bf16.mxu0 0
      %12309 = vmatpush1.bf16.msra.mxu0 %v12286
      %12310 = vmatprep.subr.bf16.mxu0 0
      %12311 = vmatpush1.bf16.msra.mxu0 %v12287
      %12312 = vmatprep.subr.bf16.mxu0 0
      %12313 = vmatpush1.bf16.msra.mxu0 0
      %12314 = vmatprep.subr.bf16.mxu0 0
      %12315 = vmatpush1.bf16.msra.mxu0 0
      %12316 = vmatprep.subr.bf16.mxu0 0
      %12317 = vmatpush1.bf16.msra.mxu0 0
      %12318 = vmatprep.subr.bf16.mxu0 0
      %12319 = vmatpush1.bf16.msra.mxu0 0
      %12320 = vmatprep.subr.bf16.mxu0 0
      %12321 = vmatpush1.bf16.msra.mxu0 0
      %12322 = vmatprep.subr.bf16.mxu0 0
      %12323 = vmatpush1.bf16.msra.mxu0 0
      %12324 = vmatprep.subr.bf16.mxu0 0
      %12325 = vmatpush1.bf16.msra.mxu0 0
      %12326 = vmatprep.subr.bf16.mxu0 0
      %12327 = vmatpush1.bf16.msra.mxu0 0
      %12328 = vmatprep.mubr.bf16.mxu0 0
      %12329 = vmatmul.mubr.bf16.gmra.mrb[0].mxu0 %v12222
      %v12330 = vpop.f32.mrb[0].mxu0
      %v12331 = vadd.f32 0.0, %v12330
      %v12332 = vpop.f32.mrb[0].mxu0
      %v12333 = vpop.f32.mrb[0].mxu0
      %v12334 = vadd.f32 0.0, %v12333
      %v12335 = vpop.f32.mrb[0].mxu0
      %12336 = vmatprep.mubr.bf16.mxu0 0
      %12337 = vmatmul.mubr.bf16.gmra.mrb[0].mxu0 %v12224
      %v12338 = vpop.f32.mrb[0].mxu0
      %v12339 = vadd.f32 0.0, %v12338
      %v12340 = vpop.f32.mrb[0].mxu0
      %v12341 = vpop.f32.mrb[0].mxu0
      %v12342 = vadd.f32 0.0, %v12341
      %v12343 = vpop.f32.mrb[0].mxu0
      %12344 = vmatprep.mubr.bf16.mxu0 0
      %12345 = vmatmul.mubr.bf16.gmra.mrb[0].mxu0 %v12226
      %v12346 = vpop.f32.mrb[0].mxu0
      %v12347 = vadd.f32 0.0, %v12346
      %v12348 = vpop.f32.mrb[0].mxu0
      %v12349 = vpop.f32.mrb[0].mxu0
      %v12350 = vadd.f32 0.0, %v12349
      %v12351 = vpop.f32.mrb[0].mxu0
      %12352 = vmatprep.mubr.bf16.mxu0 0
      %12353 = vmatmul.mubr.bf16.gmra.mrb[0].mxu0 %v12228
      %v12354 = vpop.f32.mrb[0].mxu0
      %v12355 = vadd.f32 0.0, %v12354
      %v12356 = vpop.f32.mrb[0].mxu0
      %v12357 = vpop.f32.mrb[0].mxu0
      %v12358 = vadd.f32 0.0, %v12357
      %v12359 = vpop.f32.mrb[0].mxu0
      %12360 = vmatprep.mubr.bf16.mxu0 0
      %12361 = vmatmul.mubr.bf16.gmra.mrb[0].mxu0 %v12230
      %v12362 = vpop.f32.mrb[0].mxu0
      %v12363 = vadd.f32 0.0, %v12362
      %v12364 = vpop.f32.mrb[0].mxu0
      %v12365 = vpop.f32.mrb[0].mxu0
      %v12366 = vadd.f32 0.0, %v12365
      %v12367 = vpop.f32.mrb[0].mxu0
      %12368 = vmatprep.mubr.bf16.mxu0 0
      %12369 = vmatmul.mubr.bf16.gmra.mrb[0].mxu0 %v12232
      %v12370 = vpop.f32.mrb[0].mxu0
      %v12371 = vadd.f32 0.0, %v12370
      %v12372 = vpop.f32.mrb[0].mxu0
      %v12373 = vpop.f32.mrb[0].mxu0
      %v12374 = vadd.f32 0.0, %v12373
      %v12375 = vpop.f32.mrb[0].mxu0
      %12376 = vmatprep.mubr.bf16.mxu0 0
      %12377 = vmatmul.mubr.bf16.gmra.mrb[0].mxu0 %v12234
      %v12378 = vpop.f32.mrb[0].mxu0
      %v12379 = vadd.f32 0.0, %v12378
      %v12380 = vpop.f32.mrb[0].mxu0
      %v12381 = vpop.f32.mrb[0].mxu0
      %v12382 = vadd.f32 0.0, %v12381
      %v12383 = vpop.f32.mrb[0].mxu0
      %12384 = vmatprep.mubr.bf16.mxu0 0
      %12385 = vmatmul.mubr.bf16.gmra.mrb[0].mxu0 %v12236
      %v12386 = vpop.f32.mrb[0].mxu0
      %v12387 = vadd.f32 0.0, %v12386
      %v12388 = vpop.f32.mrb[0].mxu0
      %v12389 = vpop.f32.mrb[0].mxu0
      %v12390 = vadd.f32 0.0, %v12389
      %v12391 = vpop.f32.mrb[0].mxu0
      %12392 = vmatprep.mubr.bf16.mxu0 0
      %12393 = vmatmul.mubr.bf16.gmra.mrb[0].mxu0 %v12238
      %v12394 = vpop.f32.mrb[0].mxu0
      %v12395 = vadd.f32 0.0, %v12394
      %v12396 = vpop.f32.mrb[0].mxu0
      %v12397 = vpop.f32.mrb[0].mxu0
      %v12398 = vadd.f32 0.0, %v12397
      %v12399 = vpop.f32.mrb[0].mxu0
      %12400 = vdwg.mxu0
      %v12401 = vadd.f32 %v12175, %v12331
      %v12402 = vadd.f32 %v12176, %v12334
      %v12403 = vadd.f32 %v12177, %v12339
      %v12404 = vadd.f32 %v12178, %v12342
      %v12405 = vadd.f32 %v12179, %v12347
      %v12406 = vadd.f32 %v12180, %v12350
      %v12407 = vadd.f32 %v12181, %v12355
      %v12408 = vadd.f32 %v12182, %v12358
      %v12409 = vadd.f32 %v12183, %v12363
      %v12410 = vadd.f32 %v12184, %v12366
      %v12411 = vadd.f32 %v12185, %v12371
      %v12412 = vadd.f32 %v12186, %v12374
      %v12413 = vadd.f32 %v12187, %v12379
      %v12414 = vadd.f32 %v12188, %v12382
      %v12415 = vadd.f32 %v12189, %v12387
      %v12416 = vadd.f32 %v12190, %v12390
      %v12417 = vadd.f32 %v12191, %v12395
      %v12418 = vadd.f32 %v12192, %v12398
      %v12419 = vld [vmem:[#allocation2 + $0xd8] sm:$0x1f]
      %v12420 = vld [vmem:[%s9828] sm:$0xf]
      %v12421 = vld [vmem:[%s9828 + $0x4] sm:$0xf]
      %v12422 = vld [vmem:[%s9828 + $0x8] sm:$0xf]
      %v12423 = vld [vmem:[%s9828 + $0xc] sm:$0xf]
      %v12424 = vld [vmem:[%s9828 + $0x10] sm:$0xf]
      %v12425 = vld [vmem:[%s9828 + $0x14] sm:$0xf]
      %v12426 = vld [vmem:[%s9828 + $0x18] sm:$0xf]
      %v12427 = vld [vmem:[%s9828 + $0x1c] sm:$0xf]
      %v12428 = vld [vmem:[%s9828 + $0x20] sm:$0xf]
      %v12429 = vld [vmem:[%s9828 + $0x24] sm:$0xf]
      %v12430 = vld [vmem:[%s9828 + $0x28] sm:$0xf]
      %v12431 = vld [vmem:[%s9828 + $0x2c] sm:$0xf]
      %v12432 = vld [vmem:[%s9828 + $0x30] sm:$0xf]
      %v12433 = vld [vmem:[%s9828 + $0x34] sm:$0xf]
      %v12434 = vld [vmem:[%s9828 + $0x38] sm:$0xf]
      %v12435 = vld [vmem:[%s9828 + $0x3c] sm:$0xf]
      %v12437 = vshrl.u32 %v12193, 16
      %v12439 = vrot.slane %v12437, 4
      %v12440 = vshll.u32 %v12193, 16
      %v12442 = vrot.slane %v12440, 5
      %v12443 = vor.u32 %v12439, %v12442
      %v12444 = vrot.slane %v11933, 4
      %v12445 = vrot.slane %v11936, 5
      %v12446 = vor.u32 %v12444, %v12445
      %v12447 = vsel %vm7719, %v12443, %v12446
      %v12448 = vrot.slane %v11942, 4
      %v12449 = vrot.slane %v11945, 5
      %v12450 = vor.u32 %v12448, %v12449
      %v12451 = vsel %vm7719, %v12446, %v12450
      %v12452 = vrot.slane %v11951, 4
      %v12453 = vrot.slane %v11954, 5
      %v12454 = vor.u32 %v12452, %v12453
      %v12455 = vsel %vm7719, %v12450, %v12454
      %v12456 = vrot.slane %v11960, 4
      %v12457 = vrot.slane %v11963, 5
      %v12458 = vor.u32 %v12456, %v12457
      %v12459 = vsel %vm7719, %v12454, %v12458
      %v12460 = vrot.slane %v11969, 4
      %v12461 = vrot.slane %v11972, 5
      %v12462 = vor.u32 %v12460, %v12461
      %v12463 = vsel %vm7719, %v12458, %v12462
      %v12464 = vrot.slane %v11978, 4
      %v12465 = vrot.slane %v11981, 5
      %v12466 = vor.u32 %v12464, %v12465
      %v12467 = vsel %vm7719, %v12462, %v12466
      %v12468 = vrot.slane %v11987, 4
      %v12469 = vrot.slane %v11990, 5
      %v12470 = vor.u32 %v12468, %v12469
      %v12471 = vsel %vm7719, %v12466, %v12470
      %v12472 = vrot.slane %v11996, 4
      %v12473 = vrot.slane %v11999, 5
      %v12474 = vor.u32 %v12472, %v12473
      %v12475 = vsel %vm7719, %v12470, %v12474
      %v12477 = vshrl.u32 %v12419, 16
      %v12479 = vrot.slane %v12477, 4
      %v12480 = vshll.u32 %v12419, 16
      %v12482 = vrot.slane %v12480, 5
      %v12483 = vor.u32 %v12479, %v12482
      %v12484 = vsel %vm7719, %v12474, %v12483
      %v12510 = vunpack.c.l.b16 %v12420
      %v12511 = vunpack.c.l.b16 %v12421
      %v12512 = vunpack.c.l.b16 %v12422
      %v12513 = vunpack.c.l.b16 %v12423
      %v12514 = vunpack.c.l.b16 %v12424
      %v12515 = vunpack.c.l.b16 %v12425
      %v12516 = vunpack.c.l.b16 %v12426
      %v12517 = vunpack.c.l.b16 %v12427
      %v12518 = vunpack.c.l.b16 %v12428
      %v12519 = vunpack.c.l.b16 %v12429
      %v12520 = vunpack.c.l.b16 %v12430
      %v12521 = vunpack.c.l.b16 %v12431
      %v12522 = vunpack.c.l.b16 %v12432
      %v12523 = vunpack.c.l.b16 %v12433
      %v12524 = vunpack.c.l.b16 %v12434
      %v12525 = vunpack.c.l.b16 %v12435
      %v12526 = vpack.c.b16 %v12511, %v12510
      %v12527 = vpack.c.b16 %v12513, %v12512
      %v12528 = vpack.c.b16 %v12515, %v12514
      %v12529 = vpack.c.b16 %v12517, %v12516
      %v12530 = vpack.c.b16 %v12519, %v12518
      %v12531 = vpack.c.b16 %v12521, %v12520
      %v12532 = vpack.c.b16 %v12523, %v12522
      %v12533 = vpack.c.b16 %v12525, %v12524
      %12542 = vmatprep.subr.bf16.mxu0 0
      %12543 = vmatpush1.bf16.msra.mxu0 %v12526
      %12544 = vmatprep.subr.bf16.mxu0 0
      %12545 = vmatpush1.bf16.msra.mxu0 %v12527
      %12546 = vmatprep.subr.bf16.mxu0 0
      %12547 = vmatpush1.bf16.msra.mxu0 %v12528
      %12548 = vmatprep.subr.bf16.mxu0 0
      %12549 = vmatpush1.bf16.msra.mxu0 %v12529
      %12550 = vmatprep.subr.bf16.mxu0 0
      %12551 = vmatpush1.bf16.msra.mxu0 %v12530
      %12552 = vmatprep.subr.bf16.mxu0 0
      %12553 = vmatpush1.bf16.msra.mxu0 %v12531
      %12554 = vmatprep.subr.bf16.mxu0 0
      %12555 = vmatpush1.bf16.msra.mxu0 %v12532
      %12556 = vmatprep.subr.bf16.mxu0 0
      %12557 = vmatpush1.bf16.msra.mxu0 %v12533
      %12558 = vmatprep.subr.bf16.mxu0 0
      %12559 = vmatpush1.bf16.msra.mxu0 0
      %12560 = vmatprep.subr.bf16.mxu0 0
      %12561 = vmatpush1.bf16.msra.mxu0 0
      %12562 = vmatprep.subr.bf16.mxu0 0
      %12563 = vmatpush1.bf16.msra.mxu0 0
      %12564 = vmatprep.subr.bf16.mxu0 0
      %12565 = vmatpush1.bf16.msra.mxu0 0
      %12566 = vmatprep.subr.bf16.mxu0 0
      %12567 = vmatpush1.bf16.msra.mxu0 0
      %12568 = vmatprep.subr.bf16.mxu0 0
      %12569 = vmatpush1.bf16.msra.mxu0 0
      %12570 = vmatprep.subr.bf16.mxu0 0
      %12571 = vmatpush1.bf16.msra.mxu0 0
      %12572 = vmatprep.subr.bf16.mxu0 0
      %12573 = vmatpush1.bf16.msra.mxu0 0
      %12574 = vmatprep.mubr.bf16.mxu0 0
      %12575 = vmatmul.mubr.bf16.gmra.mrb[0].mxu0 %v12447
      %v12576 = vpop.f32.mrb[0].mxu0
      %v12577 = vadd.f32 0.0, %v12576
      %v12578 = vpop.f32.mrb[0].mxu0
      %v12579 = vpop.f32.mrb[0].mxu0
      %v12580 = vadd.f32 0.0, %v12579
      %v12581 = vpop.f32.mrb[0].mxu0
      %12582 = vmatprep.mubr.bf16.mxu0 0
      %12583 = vmatmul.mubr.bf16.gmra.mrb[0].mxu0 %v12451
      %v12584 = vpop.f32.mrb[0].mxu0
      %v12585 = vadd.f32 0.0, %v12584
      %v12586 = vpop.f32.mrb[0].mxu0
      %v12587 = vpop.f32.mrb[0].mxu0
      %v12588 = vadd.f32 0.0, %v12587
      %v12589 = vpop.f32.mrb[0].mxu0
      %12590 = vmatprep.mubr.bf16.mxu0 0
      %12591 = vmatmul.mubr.bf16.gmra.mrb[0].mxu0 %v12455
      %v12592 = vpop.f32.mrb[0].mxu0
      %v12593 = vadd.f32 0.0, %v12592
      %v12594 = vpop.f32.mrb[0].mxu0
      %v12595 = vpop.f32.mrb[0].mxu0
      %v12596 = vadd.f32 0.0, %v12595
      %v12597 = vpop.f32.mrb[0].mxu0
      %12598 = vmatprep.mubr.bf16.mxu0 0
      %12599 = vmatmul.mubr.bf16.gmra.mrb[0].mxu0 %v12459
      %v12600 = vpop.f32.mrb[0].mxu0
      %v12601 = vadd.f32 0.0, %v12600
      %v12602 = vpop.f32.mrb[0].mxu0
      %v12603 = vpop.f32.mrb[0].mxu0
      %v12604 = vadd.f32 0.0, %v12603
      %v12605 = vpop.f32.mrb[0].mxu0
      %12606 = vmatprep.mubr.bf16.mxu0 0
      %12607 = vmatmul.mubr.bf16.gmra.mrb[0].mxu0 %v12463
      %v12608 = vpop.f32.mrb[0].mxu0
      %v12609 = vadd.f32 0.0, %v12608
      %v12610 = vpop.f32.mrb[0].mxu0
      %v12611 = vpop.f32.mrb[0].mxu0
      %v12612 = vadd.f32 0.0, %v12611
      %v12613 = vpop.f32.mrb[0].mxu0
      %12614 = vmatprep.mubr.bf16.mxu0 0
      %12615 = vmatmul.mubr.bf16.gmra.mrb[0].mxu0 %v12467
      %v12616 = vpop.f32.mrb[0].mxu0
      %v12617 = vadd.f32 0.0, %v12616
      %v12618 = vpop.f32.mrb[0].mxu0
      %v12619 = vpop.f32.mrb[0].mxu0
      %v12620 = vadd.f32 0.0, %v12619
      %v12621 = vpop.f32.mrb[0].mxu0
      %12622 = vmatprep.mubr.bf16.mxu0 0
      %12623 = vmatmul.mubr.bf16.gmra.mrb[0].mxu0 %v12471
      %v12624 = vpop.f32.mrb[0].mxu0
      %v12625 = vadd.f32 0.0, %v12624
      %v12626 = vpop.f32.mrb[0].mxu0
      %v12627 = vpop.f32.mrb[0].mxu0
      %v12628 = vadd.f32 0.0, %v12627
      %v12629 = vpop.f32.mrb[0].mxu0
      %12630 = vmatprep.mubr.bf16.mxu0 0
      %12631 = vmatmul.mubr.bf16.gmra.mrb[0].mxu0 %v12475
      %v12632 = vpop.f32.mrb[0].mxu0
      %v12633 = vadd.f32 0.0, %v12632
      %v12634 = vpop.f32.mrb[0].mxu0
      %v12635 = vpop.f32.mrb[0].mxu0
      %v12636 = vadd.f32 0.0, %v12635
      %v12637 = vpop.f32.mrb[0].mxu0
      %12638 = vmatprep.mubr.bf16.mxu0 0
      %12639 = vmatmul.mubr.bf16.gmra.mrb[0].mxu0 %v12484
      %v12640 = vpop.f32.mrb[0].mxu0
      %v12641 = vadd.f32 0.0, %v12640
      %v12642 = vpop.f32.mrb[0].mxu0
      %v12643 = vpop.f32.mrb[0].mxu0
      %v12644 = vadd.f32 0.0, %v12643
      %v12645 = vpop.f32.mrb[0].mxu0
      %12646 = vdwg.mxu0
      %v12647 = vadd.f32 %v12401, %v12577
      %v12648 = vadd.f32 %v12402, %v12580
      %v12649 = vadd.f32 %v12403, %v12585
      %v12650 = vadd.f32 %v12404, %v12588
      %v12651 = vadd.f32 %v12405, %v12593
      %v12652 = vadd.f32 %v12406, %v12596
      %v12653 = vadd.f32 %v12407, %v12601
      %v12654 = vadd.f32 %v12408, %v12604
      %v12655 = vadd.f32 %v12409, %v12609
      %v12656 = vadd.f32 %v12410, %v12612
      %v12657 = vadd.f32 %v12411, %v12617
      %v12658 = vadd.f32 %v12412, %v12620
      %v12659 = vadd.f32 %v12413, %v12625
      %v12660 = vadd.f32 %v12414, %v12628
      %v12661 = vadd.f32 %v12415, %v12633
      %v12662 = vadd.f32 %v12416, %v12636
      %v12663 = vadd.f32 %v12417, %v12641
      %v12664 = vadd.f32 %v12418, %v12644
      %v12665 = vmul.f32 %v12647, %v10168
      %v12666 = vmul.f32 %v12648, %v10168
      %v12667 = vmul.f32 %v12649, %v10168
      %v12668 = vmul.f32 %v12650, %v10168
      %v12669 = vmul.f32 %v12651, %v10168
      %v12670 = vmul.f32 %v12652, %v10168
      %v12671 = vmul.f32 %v12653, %v10168
      %v12672 = vmul.f32 %v12654, %v10168
      %v12673 = vmul.f32 %v12655, %v10168
      %v12674 = vmul.f32 %v12656, %v10168
      %v12675 = vmul.f32 %v12657, %v10168
      %v12676 = vmul.f32 %v12658, %v10168
      %v12677 = vmul.f32 %v12659, %v10168
      %v12678 = vmul.f32 %v12660, %v10168
      %v12679 = vmul.f32 %v12661, %v10168
      %v12680 = vmul.f32 %v12662, %v10168
      %v12681 = vmul.f32 %v12663, %v10168
      %v12682 = vmul.f32 %v12664, %v10168
      %v12683 = vadd.f32 %v12665, %v10204
      %v12684 = vadd.f32 %v12666, %v10204
      %v12685 = vadd.f32 %v12667, %v10204
      %v12686 = vadd.f32 %v12668, %v10204
      %v12687 = vadd.f32 %v12669, %v10204
      %v12688 = vadd.f32 %v12670, %v10204
      %v12689 = vadd.f32 %v12671, %v10204
      %v12690 = vadd.f32 %v12672, %v10204
      %v12691 = vadd.f32 %v12673, %v10204
      %v12692 = vadd.f32 %v12674, %v10204
      %v12693 = vadd.f32 %v12675, %v10204
      %v12694 = vadd.f32 %v12676, %v10204
      %v12695 = vadd.f32 %v12677, %v10204
      %v12696 = vadd.f32 %v12678, %v10204
      %v12697 = vadd.f32 %v12679, %v10204
      %v12698 = vadd.f32 %v12680, %v10204
      %v12699 = vadd.f32 %v12681, %v10204
      %v12700 = vadd.f32 %v12682, %v10204
      %v12701 = vmax.f32 %v12683, 0.0
      %v12702 = vmax.f32 %v12684, 0.0
      %v12703 = vmax.f32 %v12685, 0.0
      %v12704 = vmax.f32 %v12686, 0.0
      %v12705 = vmax.f32 %v12687, 0.0
      %v12706 = vmax.f32 %v12688, 0.0
      %v12707 = vmax.f32 %v12689, 0.0
      %v12708 = vmax.f32 %v12690, 0.0
      %v12709 = vmax.f32 %v12691, 0.0
      %v12710 = vmax.f32 %v12692, 0.0
      %v12711 = vmax.f32 %v12693, 0.0
      %v12712 = vmax.f32 %v12694, 0.0
      %v12713 = vmax.f32 %v12695, 0.0
      %v12714 = vmax.f32 %v12696, 0.0
      %v12715 = vmax.f32 %v12697, 0.0
      %v12716 = vmax.f32 %v12698, 0.0
      %v12717 = vmax.f32 %v12699, 0.0
      %v12718 = vmax.f32 %v12700, 0.0
      %v12719 = vpack.c.bf16 %v12702, %v12701
      %v12720 = vpack.c.bf16 %v12704, %v12703
      %v12721 = vpack.c.bf16 %v12706, %v12705
      %v12722 = vpack.c.bf16 %v12708, %v12707
      %v12723 = vpack.c.bf16 %v12710, %v12709
      %v12724 = vpack.c.bf16 %v12712, %v12711
      %v12725 = vpack.c.bf16 %v12714, %v12713
      %v12726 = vpack.c.bf16 %v12716, %v12715
      %v12727 = vpack.c.bf16 %v12718, %v12717
      %v12737 = vunpack.c.l.b16 %v12719
      %v12738 = vunpack.c.h.b16 %v12719
      %v12739 = vunpack.c.l.b16 %v12720
      %v12740 = vunpack.c.h.b16 %v12720
      %v12741 = vunpack.c.l.b16 %v12721
      %v12742 = vunpack.c.h.b16 %v12721
      %v12743 = vunpack.c.l.b16 %v12722
      %v12744 = vunpack.c.h.b16 %v12722
      %v12745 = vunpack.c.l.b16 %v12723
      %v12746 = vunpack.c.h.b16 %v12723
      %v12747 = vunpack.c.l.b16 %v12724
      %v12748 = vunpack.c.h.b16 %v12724
      %v12749 = vunpack.c.l.b16 %v12725
      %v12750 = vunpack.c.h.b16 %v12725
      %v12751 = vunpack.c.l.b16 %v12726
      %v12752 = vunpack.c.h.b16 %v12726
      %v12753 = vunpack.c.l.b16 %v12727
      %v12754 = vunpack.c.h.b16 %v12727
      %v12755 = vpack.c.b16 %v12737, %v12737
      %v12756 = vpack.c.b16 %v12738, %v12738
      %v12757 = vpack.c.b16 %v12739, %v12739
      %v12758 = vpack.c.b16 %v12740, %v12740
      %v12759 = vpack.c.b16 %v12741, %v12741
      %v12760 = vpack.c.b16 %v12742, %v12742
      %v12761 = vpack.c.b16 %v12743, %v12743
      %v12762 = vpack.c.b16 %v12744, %v12744
      %v12763 = vpack.c.b16 %v12745, %v12745
      %v12764 = vpack.c.b16 %v12746, %v12746
      %v12765 = vpack.c.b16 %v12747, %v12747
      %v12766 = vpack.c.b16 %v12748, %v12748
      %v12767 = vpack.c.b16 %v12749, %v12749
      %v12768 = vpack.c.b16 %v12750, %v12750
      %v12769 = vpack.c.b16 %v12751, %v12751
      %v12770 = vpack.c.b16 %v12752, %v12752
      %v12771 = vpack.c.b16 %v12753, %v12753
      %v12772 = vpack.c.b16 %v12754, %v12754
      %12791 = vst [vmem:[%s278 + $0x78] sm:$0xf] %v12755
      %12792 = vst [vmem:[%s278 + $0x7c] sm:$0xf] %v12756
      %12793 = vst [vmem:[%s278 + $0x80] sm:$0xf] %v12757
      %12794 = vst [vmem:[%s278 + $0x84] sm:$0xf] %v12758
      %12795 = vst [vmem:[%s278 + $0x88] sm:$0xf] %v12759
      %12796 = vst [vmem:[%s278 + $0x8c] sm:$0xf] %v12760
      %12797 = vst [vmem:[%s278 + $0x90] sm:$0xf] %v12761
      %12798 = vst [vmem:[%s278 + $0x94] sm:$0xf] %v12762
      %12799 = vst [vmem:[%s278 + $0x98] sm:$0xf] %v12763
      %12800 = vst [vmem:[%s278 + $0x9c] sm:$0xf] %v12764
      %12801 = vst [vmem:[%s278 + $0xa0] sm:$0xf] %v12765
      %12802 = vst [vmem:[%s278 + $0xa4] sm:$0xf] %v12766
      %12803 = vst [vmem:[%s278 + $0xa8] sm:$0xf] %v12767
      %12804 = vst [vmem:[%s278 + $0xac] sm:$0xf] %v12768
      %12805 = vst [vmem:[%s278 + $0xb0] sm:$0xf] %v12769
      %12806 = vst [vmem:[%s278 + $0xb4] sm:$0xf] %v12770
      %12807 = vst [vmem:[%s278 + $0xb8] sm:$0xf] %v12771
      %12808 = vst [vmem:[%s278 + $0xbc] sm:$0xf] %v12772
      %p12809 = scmp.lt.s32.totalorder %s18, 1
      %s12810 = scalar_select %p12809, %s18, 1
      %s12811 = smul.addr %s12810, 48
      %s12812 = smul.addr %s12811, 4
      %s12813 = scalar_lea.vmem %s7, %s12812
      // Predicated region
      $region49: #{conv_block_forward.1} parent=47 // pred_check
        %p12814 = pneg %p188
      $region50: #{conv_block_forward.1} parent=47 // pred_check_branch
        %12816 = sbr.rel (%p12814) target = $region52
      $region51: #{conv_block_forward.1} parent=47 // pred_region
        _
      $region52: #{conv_block_forward.1} parent=47 // pred_fallthru
        _
    $region48: #{conv_block_forward.1} parent=5 // pred_fallthru
      _
    %p12817 = scmp.le.s32.totalorder 2, %s13
    // Predicated region
    $region53: #{conv_block_forward.1} parent=5 // pred_check
      %p12818 = pneg %p12817
    $region54: #{conv_block_forward.1} parent=5 // pred_check_branch
      %12820 = sbr.rel (%p12818) target = $region56
    $region55: #{conv_block_forward.1} parent=5 // pred_region
      %s12821 = ssub.s32 %s13, 2
      // Predicated region
      $region57: #{conv_block_forward.1} parent=55 // pred_check
        %p12822 = pneg %p194
      $region58: #{conv_block_forward.1} parent=55 // pred_check_branch
        %12824 = sbr.rel (%p12822) target = $region60
      $region59: #{conv_block_forward.1} parent=55 // pred_region
        %p12825 = scmp.lt.s32.totalorder %s19, 1
        %s12826 = scalar_select %p12825, %s19, 1
        %s12827 = smul.addr %s12826, 48
        %s12828 = smul.addr %s12827, 4
        %s12829 = scalar_lea.vmem %s7, %s12828
      $region60: #{conv_block_forward.1} parent=55 // pred_fallthru
        _
    $region56: #{conv_block_forward.1} parent=5 // pred_fallthru
      _
  $region6: #{conv_block_forward.1} parent=0 // loop_footer
    %s17 = sadd.s32 1, %s13
  $region7: #{conv_block_forward.1} parent=0 // loop_footer_branch
    %12 = sbr.rel target = $region3
  $region8: #{conv_block_forward.1} parent=0 // loop_exit
    _

</llo_original>
